<compile_context>
chip_gen: v5e
topology: v5e:2x2
jax: 0.10.0
libtpu: 0.0.40
codegen_flags: <defaults>
</compile_context>

<pallas_src>
import functools

import jax
import jax.numpy as jnp
import numpy as np
from jax import lax
from jax.experimental import pallas as pl
from jax.experimental.pallas import tpu as pltpu

_VMEM_LIMIT_BYTES = 32 * 1024 * 1024
_BN_EPS = 1e-5


# ----------------------------------------------------------------------------
# helpers
# ----------------------------------------------------------------------------
def _gelu_exact(x):
    # PyTorch nn.GELU() default is the exact (erf-based) GELU.
    return 0.5 * x * (1.0 + jax.scipy.special.erf(x * 0.7071067811865476))


def _full_spec(shape):
    n = len(shape)
    return pl.BlockSpec(shape, lambda *_: (0,) * n)


def _pick_block_b(B, L, target_rows=512):
    """Sequences per block: fill sublanes, keep >=2 parallel blocks for megacore."""
    bb = max(1, min(B, target_rows // max(L, 1)))
    while B % bb:
        bb -= 1
    if B // bb < 2 and B >= 2:
        bb = max(1, B // 2)
        while B % bb:
            bb -= 1
    return bb


def _compiler_params():
    return pltpu.CompilerParams(dimension_semantics=("parallel",),
                                vmem_limit_bytes=_VMEM_LIMIT_BYTES)


# ----------------------------------------------------------------------------
# kernels
# ----------------------------------------------------------------------------
def _embed_kernel(x_ref, wp_ref, bpos_ref, o_ref, *, compute_dtype):
    # x: (Rb, P); wp: (P, D) (already compute_dtype); bpos: (Rb, D) = tile(b_P + W_pos)
    x = x_ref[...].astype(compute_dtype)
    y = jnp.dot(x, wp_ref[...], preferred_element_type=jnp.float32)
    o_ref[...] = y + bpos_ref[...]


def _attn_kernel(*refs, n_heads, q_len, n_rows_total, eps, pre_bn, add_prev,
                 approx_recip, compute_dtype):
    # inputs : src (Rb, D) [, prev (H, Bb, L, L)] [, stats (nb,2,D), gamma (1,D), beta (1,D)]
    #          wq (D,D) bq (1,D) wk bk wv bv wo bo        (wq/bq already scaled by d_k^-0.5)
    # outputs: y (Rb, D), scores (H, Bb, L, L), pstats (1, 2, D)
    i = 0
    src_ref = refs[i]; i += 1
    prev_ref = None
    if add_prev:
        prev_ref = refs[i]; i += 1
    stats_ref = g_ref = beta_ref = None
    if pre_bn:
        stats_ref, g_ref, beta_ref = refs[i], refs[i + 1], refs[i + 2]; i += 3
    wq_ref, bq_ref, wk_ref, bk_ref, wv_ref, bv_ref, wo_ref, bo_ref = refs[i:i + 8]
    i += 8
    y_ref, scores_ref, pstats_ref = refs[i], refs[i + 1], refs[i + 2]

    R, D = src_ref.shape
    bb = R // q_len
    dk = D // n_heads

    x = src_ref[...]                                               # (R, D) f32
    if pre_bn:
        # exact batch statistics from the previous kernel's partial sums
        s = jnp.sum(stats_ref[...], axis=0)                        # (2, D)
        mean = s[0:1, :] * (1.0 / n_rows_total)
        msq = s[1:2, :] * (1.0 / n_rows_total)
        inv = lax.rsqrt(msq - mean * mean + eps) * g_ref[...]
        x = (x - mean) * inv + beta_ref[...]

    xc = x.astype(compute_dtype)
    # fused full-D projections (one matmul each for all heads)
    q = jnp.dot(xc, wq_ref[...], preferred_element_type=jnp.float32) + bq_ref[...]
    k = jnp.dot(xc, wk_ref[...], preferred_element_type=jnp.float32) + bk_ref[...]
    v = jnp.dot(xc, wv_ref[...], preferred_element_type=jnp.float32) + bv_ref[...]
    q3 = q.reshape(bb, q_len, D).astype(compute_dtype)
    k3 = k.reshape(bb, q_len, D).astype(compute_dtype)
    v3 = v.reshape(bb, q_len, D).astype(compute_dtype)
    prev = prev_ref[...] if add_prev else None                     # (H, bb, L, L)

    heads = []
    for h in range(n_heads):                                       # static unroll, H small
        sl = slice(h * dk, (h + 1) * dk)
        s_h = jnp.einsum("bld,bmd->blm", q3[:, :, sl], k3[:, :, sl],
                         preferred_element_type=jnp.float32)       # scale folded in W_Q
        if add_prev:
            s_h = s_h + prev[h]
        scores_ref[h] = s_h                                        # residual attention carry
        m = jnp.max(s_h, axis=-1, keepdims=True)
        e = jnp.exp(s_h - m)
        a = e * pl.reciprocal(jnp.sum(e, axis=-1, keepdims=True), approx=approx_recip)
        heads.append(jnp.einsum("blm,bmd->bld", a.astype(compute_dtype), v3[:, :, sl],
                                preferred_element_type=jnp.float32))

    o_cat = jnp.concatenate(heads, axis=-1).reshape(R, D).astype(compute_dtype)
    attn = jnp.dot(o_cat, wo_ref[...], preferred_element_type=jnp.float32) + bo_ref[...]

    y = x + attn                                                   # residual (f32)
    y_ref[...] = y
    pstats_ref[0, 0:1, :] = jnp.sum(y, axis=0, keepdims=True)
    pstats_ref[0, 1:2, :] = jnp.sum(y * y, axis=0, keepdims=True)


def _ffn_kernel(y_ref, stats_ref, g_ref, beta_ref, w1_ref, b1_ref, w2_ref, b2_ref,
                z_ref, pstats_ref, *, n_rows_total, eps, compute_dtype):
    # BatchNorm(attn residual) -> Linear -> GELU -> Linear -> residual -> partial stats
    y = y_ref[...]                                                 # (R, D) f32
    s = jnp.sum(stats_ref[...], axis=0)
    mean = s[0:1, :] * (1.0 / n_rows_total)
    msq = s[1:2, :] * (1.0 / n_rows_total)
    inv = lax.rsqrt(msq - mean * mean + eps) * g_ref[...]
    src = (y - mean) * inv + beta_ref[...]

    h = jnp.dot(src.astype(compute_dtype), w1_ref[...],
                preferred_element_type=jnp.float32) + b1_ref[...]
    h = _gelu_exact(h)                                             # f32 elementwise
    ff = jnp.dot(h.astype(compute_dtype), w2_ref[...],
                 preferred_element_type=jnp.float32) + b2_ref[...]

    z = src + ff
    z_ref[...] = z
    pstats_ref[0, 0:1, :] = jnp.sum(z, axis=0, keepdims=True)
    pstats_ref[0, 1:2, :] = jnp.sum(z * z, axis=0, keepdims=True)


def _bn_kernel(z_ref, stats_ref, g_ref, beta_ref, o_ref, *, n_rows_total, eps):
    z = z_ref[...]
    s = jnp.sum(stats_ref[...], axis=0)
    mean = s[0:1, :] * (1.0 / n_rows_total)
    msq = s[1:2, :] * (1.0 / n_rows_total)
    inv = lax.rsqrt(msq - mean * mean + eps) * g_ref[...]
    o_ref[...] = (z - mean) * inv + beta_ref[...]


# ----------------------------------------------------------------------------
# pallas_call wrappers
# ----------------------------------------------------------------------------
def embed_call(xp2, wp, bias_pos_tiled, rb, compute_dtype):
    R_total, P = xp2.shape
    D = wp.shape[1]
    kern = functools.partial(_embed_kernel, compute_dtype=compute_dtype)
    return pl.pallas_call(
        kern,
        out_shape=jax.ShapeDtypeStruct((R_total, D), jnp.float32),
        grid=(R_total // rb,),
        in_specs=[pl.BlockSpec((rb, P), lambda r: (r, 0)),
                  _full_spec(wp.shape),
                  _full_spec(bias_pos_tiled.shape)],
        out_specs=pl.BlockSpec((rb, D), lambda r: (r, 0)),
        compiler_params=_compiler_params(),
    )(xp2, wp, bias_pos_tiled)


def attention_call(src2, prev, pre_stats, kp, *, n_heads, pre_bn, add_prev,
                   bb, q_len, n_rows_total, eps, approx_recip, compute_dtype):
    R_total, D = src2.shape
    rb = bb * q_len
    nblk = R_total // rb
    B = R_total // q_len

    in_arrays = [src2]
    in_specs = [pl.BlockSpec((rb, D), lambda b: (b, 0))]
    if add_prev:
        in_arrays.append(prev)
        in_specs.append(pl.BlockSpec((n_heads, bb, q_len, q_len), lambda b: (0, b, 0, 0)))
    if pre_bn:
        st, g, be = pre_stats
        in_arrays += [st, g, be]
        in_specs += [_full_spec(st.shape), _full_spec(g.shape), _full_spec(be.shape)]
    w_list = [kp["wq"], kp["bq"], kp["wk"], kp["bk"],
              kp["wv"], kp["bv"], kp["wo"], kp["bo"]]
    in_arrays += w_list
    in_specs += [_full_spec(w.shape) for w in w_list]

    kern = functools.partial(
        _attn_kernel, n_heads=n_heads, q_len=q_len, n_rows_total=n_rows_total, eps=eps,
        pre_bn=pre_bn, add_prev=add_prev, approx_recip=approx_recip,
        compute_dtype=compute_dtype)

    out_shape = (jax.ShapeDtypeStruct((R_total, D), jnp.float32),
                 jax.ShapeDtypeStruct((n_heads, B, q_len, q_len), jnp.float32),
                 jax.ShapeDtypeStruct((nblk, 2, D), jnp.float32))
    out_specs = (pl.BlockSpec((rb, D), lambda b: (b, 0)),
                 pl.BlockSpec((n_heads, bb, q_len, q_len), lambda b: (0, b, 0, 0)),
                 pl.BlockSpec((1, 2, D), lambda b: (b, 0, 0)))
    return pl.pallas_call(
        kern, out_shape=out_shape, grid=(nblk,),
        in_specs=in_specs, out_specs=out_specs,
        compiler_params=_compiler_params(),
    )(*in_arrays)


def ffn_call(y2, st1, kp, *, bb, q_len, n_rows_total, eps, compute_dtype):
    R_total, D = y2.shape
    rb = bb * q_len
    nblk = R_total // rb
    kern = functools.partial(_ffn_kernel, n_rows_total=n_rows_total, eps=eps,
                             compute_dtype=compute_dtype)
    arrays = [y2, st1, kp["g1"], kp["be1"], kp["w1"], kp["b1"], kp["w2"], kp["b2"]]
    in_specs = [pl.BlockSpec((rb, D), lambda b: (b, 0))]
    in_specs += [_full_spec(a.shape) for a in arrays[1:]]
    out_shape = (jax.ShapeDtypeStruct((R_total, D), jnp.float32),
                 jax.ShapeDtypeStruct((nblk, 2, D), jnp.float32))
    out_specs = (pl.BlockSpec((rb, D), lambda b: (b, 0)),
                 pl.BlockSpec((1, 2, D), lambda b: (b, 0, 0)))
    return pl.pallas_call(
        kern, out_shape=out_shape, grid=(nblk,),
        in_specs=in_specs, out_specs=out_specs,
        compiler_params=_compiler_params(),
    )(*arrays)


def batchnorm_call(z2, st, gamma, beta, *, bb, q_len, n_rows_total, eps):
    R_total, D = z2.shape
    rb = bb * q_len
    nblk = R_total // rb
    kern = functools.partial(_bn_kernel, n_rows_total=n_rows_total, eps=eps)
    return pl.pallas_call(
        kern,
        out_shape=jax.ShapeDtypeStruct((R_total, D), jnp.float32),
        grid=(nblk,),
        in_specs=[pl.BlockSpec((rb, D), lambda b: (b, 0)),
                  _full_spec(st.shape), _full_spec(gamma.shape), _full_spec(beta.shape)],
        out_specs=pl.BlockSpec((rb, D), lambda b: (b, 0)),
        compiler_params=_compiler_params(),
    )(z2, st, gamma, beta)


# ----------------------------------------------------------------------------
# model forward (TSTiEncoder, res_attention=True, norm='BatchNorm', pre_norm=False)
# ----------------------------------------------------------------------------
def tsti_encoder_forward(x, params, *, n_heads, fast_math=False, eps=_BN_EPS):
    compute_dtype = jnp.bfloat16 if fast_math else jnp.float32
    approx_recip = fast_math          # EUP approx reciprocal only in fast-math mode

    bs, nv, P, N = x.shape
    D = params["Wp"].shape[1]
    L = N
    B = bs * nv
    n_rows_total = float(B * L)
    dk = D // n_heads
    scale = dk ** -0.5

    bb = _pick_block_b(B, L)
    rb = bb * L

    # layout glue (mirrors the module's permute + reshape)
    xp2 = jnp.transpose(x, (0, 1, 3, 2)).reshape(B * L, P)

    # patch embedding:  W_P(x) + W_pos   (bias and positional encoding pre-combined)
    wp_c = params["Wp"].astype(compute_dtype)
    bias_pos_tiled = jnp.tile(params["bp"] + params["Wpos"], (bb, 1))      # (rb, D)
    z2 = embed_call(xp2, wp_c, bias_pos_tiled, rb, compute_dtype)

    scores = None
    pre_stats = None                 # (partial stats, gamma, beta) of previous norm_ffn
    st2 = None
    g2 = be2 = None
    for li, lp in enumerate(params["layers"]):
        kp = dict(
            wq=(lp["Wq"] * scale).astype(compute_dtype), bq=lp["bq"] * scale,
            wk=lp["Wk"].astype(compute_dtype), bk=lp["bk"],
            wv=lp["Wv"].astype(compute_dtype), bv=lp["bv"],
            wo=lp["Wo"].astype(compute_dtype), bo=lp["bo"],
            w1=lp["W1"].astype(compute_dtype), b1=lp["b1f"],
            w2=lp["W2"].astype(compute_dtype), b2=lp["b2f"],
            g1=lp["g1"], be1=lp["be1"],
        )
        y2, scores, st1 = attention_call(
            z2, scores, pre_stats, kp, n_heads=n_heads,
            pre_bn=(li > 0), add_prev=(li > 0),
            bb=bb, q_len=L, n_rows_total=n_rows_total, eps=eps,
            approx_recip=approx_recip, compute_dtype=compute_dtype)
        z2, st2 = ffn_call(y2, st1, kp, bb=bb, q_len=L,
                           n_rows_total=n_rows_total, eps=eps,
                           compute_dtype=compute_dtype)
        pre_stats = (st2, lp["g2"], lp["be2"])
        g2, be2 = lp["g2"], lp["be2"]

    out2 = batchnorm_call(z2, st2, g2, be2, bb=bb, q_len=L,
                          n_rows_total=n_rows_total, eps=eps)
    z = out2.reshape(bs, nv, L, D).transpose(0, 1, 3, 2)    # [bs, n_vars, d_model, patch_num]
    return z
# TODO(synk): BatchNorm running-stat buffer updates (a training side effect) are not modeled;
#             normalization itself uses exact batch statistics as the training forward does.


# ----------------------------------------------------------------------------
# deterministic parameter init (shapes follow the module __init__)
# ----------------------------------------------------------------------------
def init_params(key, patch_len, patch_num, d_model, n_heads, d_ff, n_layers):
    def lin(k, fan_in, fan_out):
        k1, k2 = jax.random.split(k)
        bound = 1.0 / np.sqrt(fan_in)
        W = jax.random.uniform(k1, (fan_in, fan_out), jnp.float32, -bound, bound)
        b = jax.random.uniform(k2, (1, fan_out), jnp.float32, -bound, bound)
        return W, b

    keys = jax.random.split(key, 2 + n_layers)
    Wp, bp = lin(keys[0], patch_len, d_model)
    Wpos = jax.random.uniform(keys[1], (patch_num, d_model), jnp.float32, -0.02, 0.02)

    layers = []
    for i in range(n_layers):
        lk = jax.random.split(keys[2 + i], 6)
        Wq, bq = lin(lk[0], d_model, d_model)
        Wk, bk = lin(lk[1], d_model, d_model)
        Wv, bv = lin(lk[2], d_model, d_model)
        Wo, bo = lin(lk[3], d_model, d_model)
        W1, b1 = lin(lk[4], d_model, d_ff)
        W2, b2 = lin(lk[5], d_ff, d_model)
        layers.append(dict(
            Wq=Wq, bq=bq, Wk=Wk, bk=bk, Wv=Wv, bv=bv, Wo=Wo, bo=bo,
            W1=W1, b1f=b1, W2=W2, b2f=b2,
            g1=jnp.ones((1, d_model), jnp.float32), be1=jnp.zeros((1, d_model), jnp.float32),
            g2=jnp.ones((1, d_model), jnp.float32), be2=jnp.zeros((1, d_model), jnp.float32),
        ))
    return dict(Wp=Wp, bp=bp, Wpos=Wpos, layers=layers)


# ----------------------------------------------------------------------------
# pure-JAX reference (mirrors the PyTorch forward)
# ----------------------------------------------------------------------------
def ref_forward(x, params, n_heads, eps=_BN_EPS):
    bs, nv, P, N = x.shape
    D = params["Wp"].shape[1]
    dk = D // n_heads
    xp = jnp.transpose(x, (0, 1, 3, 2)).reshape(bs * nv, N, P)
    u = xp @ params["Wp"] + params["bp"] + params["Wpos"]
    B, L, _ = u.shape
    prev = jnp.zeros((B, n_heads, L, L), jnp.float32)

    def bn(x, g, b):
        m = jnp.mean(x, axis=(0, 1), keepdims=True)
        v = jnp.mean(x * x, axis=(0, 1), keepdims=True) - m * m
        return (x - m) / jnp.sqrt(v + eps) * g[None] + b[None]

    for p in params["layers"]:
        q = (u @ p["Wq"] + p["bq"]).reshape(B, L, n_heads, dk).transpose(0, 2, 1, 3)
        k = (u @ p["Wk"] + p["bk"]).reshape(B, L, n_heads, dk).transpose(0, 2, 1, 3)
        v = (u @ p["Wv"] + p["bv"]).reshape(B, L, n_heads, dk).transpose(0, 2, 1, 3)
        s = jnp.einsum("bhld,bhmd->bhlm", q, k) * (dk ** -0.5) + prev
        a = jax.nn.softmax(s, axis=-1)
        o = jnp.einsum("bhlm,bhmd->bhld", a, v).transpose(0, 2, 1, 3).reshape(B, L, D)
        o = o @ p["Wo"] + p["bo"]
        u2 = bn(u + o, p["g1"], p["be1"])
        ff = _gelu_exact(u2 @ p["W1"] + p["b1f"]) @ p["W2"] + p["b2f"]
        u = bn(u2 + ff, p["g2"], p["be2"])
        prev = s
    return u.reshape(bs, nv, N, D).transpose(0, 1, 3, 2)


# ----------------------------------------------------------------------------
if __name__ == "__main__":
    bs, c_in, patch_len, patch_num = 2, 4, 16, 8
    d_model, n_heads, d_ff, n_layers = 32, 4, 64, 2

    key = jax.random.PRNGKey(0)
    kx, kp = jax.random.split(key)
    x = jax.random.normal(kx, (bs, c_in, patch_len, patch_num), jnp.float32)
    params = init_params(kp, patch_len, patch_num, d_model, n_heads, d_ff, n_layers)

    z_ref = ref_forward(x, params, n_heads)

    # exact-precision path (f32 MXU operands, exact reciprocal) -- strict check
    fwd = jax.jit(functools.partial(tsti_encoder_forward, n_heads=n_heads, fast_math=False))
    z = jax.block_until_ready(fwd(x, params))
    assert z.shape == (bs, c_in, d_model, patch_num), z.shape
    err = float(jnp.max(jnp.abs(z - z_ref)))
    assert err < 1e-3, f"f32 mismatch vs reference: {err}"

    # fast path (bf16 MXU operands + approx reciprocal, v6e/v7x oriented) -- loose check
    fwd_fast = jax.jit(functools.partial(tsti_encoder_forward, n_heads=n_heads, fast_math=True))
    z_fast = jax.block_until_ready(fwd_fast(x, params))
    rel_fast = float(jnp.max(jnp.abs(z_fast - z_ref))) / (1e-6 + float(jnp.max(jnp.abs(z_ref))))
    assert rel_fast < 0.1, f"bf16 fast-math mismatch vs reference: {rel_fast}"

    print("KERNEL_OK")
</pallas_src>

<mosaic_0001>
module attributes {stable_mosaic.version = 11 : i64} {
  func.func @_embed_kernel(%arg0: i32, %arg1: memref<32x16xf32, #tpu.memory_space<vmem>>, %arg2: memref<16x32xf32, #tpu.memory_space<vmem>>, %arg3: memref<32x32xf32, #tpu.memory_space<vmem>>, %arg4: memref<32x32xf32, #tpu.memory_space<vmem>>) attributes {dimension_semantics = [#tpu.dimension_semantics<parallel>], iteration_bounds = array<i64: 2>, scalar_prefetch = 0 : i64, scratch_operands = 0 : i64, tpu.core_type = #tpu.core_type<tc>, window_params = [{transform_indices = @transform_0, window_bounds = array<i64: 32, 16>}, {pipeline_mode = #tpu.pipeline_mode<synchronous>, transform_indices = @transform_1, window_bounds = array<i64: 16, 32>}, {pipeline_mode = #tpu.pipeline_mode<synchronous>, transform_indices = @transform_2, window_bounds = array<i64: 32, 32>}, {transform_indices = @transform_3, window_bounds = array<i64: 32, 32>}]} {
    %c0 = arith.constant 0 : index
    %c0_0 = arith.constant 0 : index
    %0 = vector.load %arg1[%c0, %c0_0] : memref<32x16xf32, #tpu.memory_space<vmem>>, vector<32x16xf32>
    %c0_1 = arith.constant 0 : index
    %c0_2 = arith.constant 0 : index
    %1 = vector.load %arg2[%c0_1, %c0_2] : memref<16x32xf32, #tpu.memory_space<vmem>>, vector<16x32xf32>
    %cst = arith.constant dense<0.000000e+00> : vector<32x32xf32>
    %2 = tpu.matmul %0, %1, %cst {dimension_numbers = #tpu.dot_dimension_numbers<[1], [0], [0], [1], [0, 0, 1, 1], [], []>} : vector<32x16xf32>, vector<16x32xf32>, vector<32x32xf32> -> vector<32x32xf32>
    %c0_3 = arith.constant 0 : index
    %c0_4 = arith.constant 0 : index
    %3 = vector.load %arg3[%c0_3, %c0_4] : memref<32x32xf32, #tpu.memory_space<vmem>>, vector<32x32xf32>
    %4 = arith.addf %2, %3 : vector<32x32xf32>
    %c0_5 = arith.constant 0 : index
    %c0_6 = arith.constant 0 : index
    %5 = vector.load %arg4[%c0_5, %c0_6] : memref<32x32xf32, #tpu.memory_space<vmem>>, vector<32x32xf32>
    tpu.vector_store %arg4[%c0_5, %c0_6], %4 {strides = array<i32>} : memref<32x32xf32, #tpu.memory_space<vmem>>, vector<32x32xf32>,
    return
  }
  func.func @transform_0(%arg0: i32) -> (i32, i32) {
    %c0_i32 = arith.constant 0 : i32
    %c0_i32_0 = arith.constant 0 : i32
    return %arg0, %c0_i32 : i32, i32
  }
  func.func @transform_1(%arg0: i32) -> (i32, i32) {
    %c0_i32 = arith.constant 0 : i32
    %c0_i32_0 = arith.constant 0 : i32
    %c0_i32_1 = arith.constant 0 : i32
    return %c0_i32, %c0_i32_0 : i32, i32
  }
  func.func @transform_2(%arg0: i32) -> (i32, i32) {
    %c0_i32 = arith.constant 0 : i32
    %c0_i32_0 = arith.constant 0 : i32
    %c0_i32_1 = arith.constant 0 : i32
    return %c0_i32, %c0_i32_0 : i32, i32
  }
  func.func @transform_3(%arg0: i32) -> (i32, i32) {
    %c0_i32 = arith.constant 0 : i32
    %c0_i32_0 = arith.constant 0 : i32
    return %arg0, %c0_i32 : i32, i32
  }
}

module attributes {stable_mosaic.version = 11 : i64} {
  func.func @_attn_kernel(%arg0: i32, %arg1: memref<32x32xf32, #tpu.memory_space<vmem>>, %arg2: memref<4x4x8x8xf32, #tpu.memory_space<vmem>>, %arg3: memref<2x2x32xf32, #tpu.memory_space<vmem>>, %arg4: memref<1x32xf32, #tpu.memory_space<vmem>>, %arg5: memref<1x32xf32, #tpu.memory_space<vmem>>, %arg6: memref<32x32xf32, #tpu.memory_space<vmem>>, %arg7: memref<1x32xf32, #tpu.memory_space<vmem>>, %arg8: memref<32x32xf32, #tpu.memory_space<vmem>>, %arg9: memref<1x32xf32, #tpu.memory_space<vmem>>, %arg10: memref<32x32xf32, #tpu.memory_space<vmem>>, %arg11: memref<1x32xf32, #tpu.memory_space<vmem>>, %arg12: memref<32x32xf32, #tpu.memory_space<vmem>>, %arg13: memref<1x32xf32, #tpu.memory_space<vmem>>, %arg14: memref<32x32xf32, #tpu.memory_space<vmem>>, %arg15: memref<4x4x8x8xf32, #tpu.memory_space<vmem>>, %arg16: memref<1x2x32xf32, #tpu.memory_space<vmem>>) attributes {dimension_semantics = [#tpu.dimension_semantics<parallel>], iteration_bounds = array<i64: 2>, scalar_prefetch = 0 : i64, scratch_operands = 0 : i64, tpu.core_type = #tpu.core_type<tc>, window_params = [{transform_indices = @transform_0, window_bounds = array<i64: 32, 32>}, {transform_indices = @transform_1, window_bounds = array<i64: 4, 4, 8, 8>}, {pipeline_mode = #tpu.pipeline_mode<synchronous>, transform_indices = @transform_2, window_bounds = array<i64: 2, 2, 32>}, {pipeline_mode = #tpu.pipeline_mode<synchronous>, transform_indices = @transform_3, window_bounds = array<i64: 1, 32>}, {pipeline_mode = #tpu.pipeline_mode<synchronous>, transform_indices = @transform_4, window_bounds = array<i64: 1, 32>}, {pipeline_mode = #tpu.pipeline_mode<synchronous>, transform_indices = @transform_5, window_bounds = array<i64: 32, 32>}, {pipeline_mode = #tpu.pipeline_mode<synchronous>, transform_indices = @transform_6, window_bounds = array<i64: 1, 32>}, {pipeline_mode = #tpu.pipeline_mode<synchronous>, transform_indices = @transform_7, window_bounds = array<i64: 32, 32>}, {pipeline_mode = #tpu.pipeline_mode<synchronous>, transform_indices = @transform_8, window_bounds = array<i64: 1, 32>}, {pipeline_mode = #tpu.pipeline_mode<synchronous>, transform_indices = @transform_9, window_bounds = array<i64: 32, 32>}, {pipeline_mode = #tpu.pipeline_mode<synchronous>, transform_indices = @transform_10, window_bounds = array<i64: 1, 32>}, {pipeline_mode = #tpu.pipeline_mode<synchronous>, transform_indices = @transform_11, window_bounds = array<i64: 32, 32>}, {pipeline_mode = #tpu.pipeline_mode<synchronous>, transform_indices = @transform_12, window_bounds = array<i64: 1, 32>}, {transform_indices = @transform_13, window_bounds = array<i64: 32, 32>}, {transform_indices = @transform_14, window_bounds = array<i64: 4, 4, 8, 8>}, {transform_indices = @transform_15, window_bounds = array<i64: 1, 2, 32>}]} {
    %c0 = arith.constant 0 : index
    %c0_0 = arith.constant 0 : index
    %0 = vector.load %arg1[%c0, %c0_0] : memref<32x32xf32, #tpu.memory_space<vmem>>, vector<32x32xf32>
    %c0_1 = arith.constant 0 : index
    %c0_2 = arith.constant 0 : index
    %c0_3 = arith.constant 0 : index
    %1 = vector.load %arg3[%c0_1, %c0_2, %c0_3] : memref<2x2x32xf32, #tpu.memory_space<vmem>>, vector<2x2x32xf32>
    %cst = arith.constant dense<0.000000e+00> : vector<2x32xf32>
    %2 = vector.multi_reduction <add>, %1, %cst [0] : vector<2x2x32xf32> to vector<2x32xf32>
    %3 = vector.extract_strided_slice %2 {offsets = [0, 0], sizes = [1, 32], strides = [1, 1]} : vector<2x32xf32> to vector<1x32xf32>
    %cst_4 = arith.constant 1.562500e-02 : f32
    %4 = vector.broadcast %cst_4 : f32 to vector<1x32xf32>
    %5 = arith.mulf %3, %4 : vector<1x32xf32>
    %6 = vector.extract_strided_slice %2 {offsets = [1, 0], sizes = [1, 32], strides = [1, 1]} : vector<2x32xf32> to vector<1x32xf32>
    %cst_5 = arith.constant 1.562500e-02 : f32
    %7 = vector.broadcast %cst_5 : f32 to vector<1x32xf32>
    %8 = arith.mulf %6, %7 : vector<1x32xf32>
    %9 = arith.mulf %5, %5 : vector<1x32xf32>
    %10 = arith.subf %8, %9 : vector<1x32xf32>
    %cst_6 = arith.constant 9.99999974E-6 : f32
    %11 = vector.broadcast %cst_6 : f32 to vector<1x32xf32>
    %12 = arith.addf %10, %11 : vector<1x32xf32>
    %13 = math.rsqrt %12 : vector<1x32xf32>
    %c0_7 = arith.constant 0 : index
    %c0_8 = arith.constant 0 : index
    %14 = vector.load %arg4[%c0_7, %c0_8] : memref<1x32xf32, #tpu.memory_space<vmem>>, vector<1x32xf32>
    %15 = arith.mulf %13, %14 : vector<1x32xf32>
    %16 = vector.broadcast %5 : vector<1x32xf32> to vector<32x32xf32>
    %17 = arith.subf %0, %16 : vector<32x32xf32>
    %18 = vector.broadcast %15 : vector<1x32xf32> to vector<32x32xf32>
    %19 = arith.mulf %17, %18 : vector<32x32xf32>
    %c0_9 = arith.constant 0 : index
    %c0_10 = arith.constant 0 : index
    %20 = vector.load %arg5[%c0_9, %c0_10] : memref<1x32xf32, #tpu.memory_space<vmem>>, vector<1x32xf32>
    %21 = vector.broadcast %20 : vector<1x32xf32> to vector<32x32xf32>
    %22 = arith.addf %19, %21 : vector<32x32xf32>
    %c0_11 = arith.constant 0 : index
    %c0_12 = arith.constant 0 : index
    %23 = vector.load %arg6[%c0_11, %c0_12] : memref<32x32xf32, #tpu.memory_space<vmem>>, vector<32x32xf32>
    %cst_13 = arith.constant dense<0.000000e+00> : vector<32x32xf32>
    %24 = tpu.matmul %22, %23, %cst_13 {dimension_numbers = #tpu.dot_dimension_numbers<[1], [0], [0], [1], [0, 0, 1, 1], [], []>} : vector<32x32xf32>, vector<32x32xf32>, vector<32x32xf32> -> vector<32x32xf32>
    %c0_14 = arith.constant 0 : index
    %c0_15 = arith.constant 0 : index
    %25 = vector.load %arg7[%c0_14, %c0_15] : memref<1x32xf32, #tpu.memory_space<vmem>>, vector<1x32xf32>
    %26 = vector.broadcast %25 : vector<1x32xf32> to vector<32x32xf32>
    %27 = arith.addf %24, %26 : vector<32x32xf32>
    %c0_16 = arith.constant 0 : index
    %c0_17 = arith.constant 0 : index
    %28 = vector.load %arg8[%c0_16, %c0_17] : memref<32x32xf32, #tpu.memory_space<vmem>>, vector<32x32xf32>
    %cst_18 = arith.constant dense<0.000000e+00> : vector<32x32xf32>
    %29 = tpu.matmul %22, %28, %cst_18 {dimension_numbers = #tpu.dot_dimension_numbers<[1], [0], [0], [1], [0, 0, 1, 1], [], []>} : vector<32x32xf32>, vector<32x32xf32>, vector<32x32xf32> -> vector<32x32xf32>
    %c0_19 = arith.constant 0 : index
    %c0_20 = arith.constant 0 : index
    %30 = vector.load %arg9[%c0_19, %c0_20] : memref<1x32xf32, #tpu.memory_space<vmem>>, vector<1x32xf32>
    %31 = vector.broadcast %30 : vector<1x32xf32> to vector<32x32xf32>
    %32 = arith.addf %29, %31 : vector<32x32xf32>
    %c0_21 = arith.constant 0 : index
    %c0_22 = arith.constant 0 : index
    %33 = vector.load %arg10[%c0_21, %c0_22] : memref<32x32xf32, #tpu.memory_space<vmem>>, vector<32x32xf32>
    %cst_23 = arith.constant dense<0.000000e+00> : vector<32x32xf32>
    %34 = tpu.matmul %22, %33, %cst_23 {dimension_numbers = #tpu.dot_dimension_numbers<[1], [0], [0], [1], [0, 0, 1, 1], [], []>} : vector<32x32xf32>, vector<32x32xf32>, vector<32x32xf32> -> vector<32x32xf32>
    %c0_24 = arith.constant 0 : index
    %c0_25 = arith.constant 0 : index
    %35 = vector.load %arg11[%c0_24, %c0_25] : memref<1x32xf32, #tpu.memory_space<vmem>>, vector<1x32xf32>
    %36 = vector.broadcast %35 : vector<1x32xf32> to vector<32x32xf32>
    %37 = arith.addf %34, %36 : vector<32x32xf32>
    %38 = vector.shape_cast %27 : vector<32x32xf32> to vector<4x8x32xf32>
    %39 = vector.shape_cast %32 : vector<32x32xf32> to vector<4x8x32xf32>
    %40 = vector.shape_cast %37 : vector<32x32xf32> to vector<4x8x32xf32>
    %c0_26 = arith.constant 0 : index
    %c0_27 = arith.constant 0 : index
    %c0_28 = arith.constant 0 : index
    %c0_29 = arith.constant 0 : index
    %41 = vector.load %arg2[%c0_26, %c0_27, %c0_28, %c0_29] : memref<4x4x8x8xf32, #tpu.memory_space<vmem>>, vector<4x4x8x8xf32>
    %42 = vector.extract_strided_slice %38 {offsets = [0, 0, 0], sizes = [4, 8, 8], strides = [1, 1, 1]} : vector<4x8x32xf32> to vector<4x8x8xf32>
    %43 = vector.extract_strided_slice %39 {offsets = [0, 0, 0], sizes = [4, 8, 8], strides = [1, 1, 1]} : vector<4x8x32xf32> to vector<4x8x8xf32>
    "tpu.trace_start"() <{level = 10 : i32, message = "bld,bmd->blm"}> : () -> ()
    %cst_30 = arith.constant dense<0.000000e+00> : vector<4x8x8xf32>
    %44 = tpu.matmul %42, %43, %cst_30 {dimension_numbers = #tpu.dot_dimension_numbers<[2], [2], [1], [1], [0, 0, 0, 1, 1, 1], [0], [0]>} : vector<4x8x8xf32>, vector<4x8x8xf32>, vector<4x8x8xf32> -> vector<4x8x8xf32>
    "tpu.trace_stop"() : () -> ()
    %45 = vector.extract_strided_slice %41 {offsets = [0, 0, 0, 0], sizes = [1, 4, 8, 8], strides = [1, 1, 1, 1]} : vector<4x4x8x8xf32> to vector<1x4x8x8xf32>
    %46 = vector.shape_cast %45 : vector<1x4x8x8xf32> to vector<4x8x8xf32>
    %47 = arith.addf %44, %46 : vector<4x8x8xf32>
    %c0_31 = arith.constant 0 : index
    %c0_32 = arith.constant 0 : index
    %c0_33 = arith.constant 0 : index
    %c0_34 = arith.constant 0 : index
    %48 = vector.load %arg15[%c0_31, %c0_32, %c0_33, %c0_34] : memref<4x4x8x8xf32, #tpu.memory_space<vmem>>, vector<1x4x8x8xf32>
    %49 = vector.shape_cast %48 : vector<1x4x8x8xf32> to vector<4x8x8xf32>
    %50 = vector.shape_cast %47 : vector<4x8x8xf32> to vector<1x4x8x8xf32>
    tpu.vector_store %arg15[%c0_31, %c0_32, %c0_33, %c0_34], %50 {strides = array<i32>} : memref<4x4x8x8xf32, #tpu.memory_space<vmem>>, vector<1x4x8x8xf32>,
    %cst_35 = arith.constant dense<0xFF800000> : vector<4x8xf32>
    %51 = vector.multi_reduction <maximumf>, %47, %cst_35 [2] : vector<4x8x8xf32> to vector<4x8xf32>
    %52 = vector.shape_cast %51 : vector<4x8xf32> to vector<4x8x1xf32>
    %53 = vector.broadcast %52 : vector<4x8x1xf32> to vector<4x8x8xf32>
    %54 = arith.subf %47, %53 : vector<4x8x8xf32>
    %55 = math.exp %54 : vector<4x8x8xf32>
    %cst_36 = arith.constant dense<0.000000e+00> : vector<4x8xf32>
    %56 = vector.multi_reduction <add>, %55, %cst_36 [2] : vector<4x8x8xf32> to vector<4x8xf32>
    %57 = vector.shape_cast %56 : vector<4x8xf32> to vector<4x8x1xf32>
    %58 = tpu.reciprocal %57 : vector<4x8x1xf32> -> vector<4x8x1xf32>
    %59 = vector.broadcast %58 : vector<4x8x1xf32> to vector<4x8x8xf32>
    %60 = arith.mulf %55, %59 : vector<4x8x8xf32>
    %61 = vector.extract_strided_slice %40 {offsets = [0, 0, 0], sizes = [4, 8, 8], strides = [1, 1, 1]} : vector<4x8x32xf32> to vector<4x8x8xf32>
    "tpu.trace_start"() <{level = 10 : i32, message = "blm,bmd->bld"}> : () -> ()
    %cst_37 = arith.constant dense<0.000000e+00> : vector<4x8x8xf32>
    %62 = tpu.matmul %60, %61, %cst_37 {dimension_numbers = #tpu.dot_dimension_numbers<[2], [1], [1], [2], [0, 0, 0, 1, 1, 2], [0], [0]>} : vector<4x8x8xf32>, vector<4x8x8xf32>, vector<4x8x8xf32> -> vector<4x8x8xf32>
    "tpu.trace_stop"() : () -> ()
    %63 = vector.extract_strided_slice %38 {offsets = [0, 0, 8], sizes = [4, 8, 8], strides = [1, 1, 1]} : vector<4x8x32xf32> to vector<4x8x8xf32>
    %64 = vector.extract_strided_slice %39 {offsets = [0, 0, 8], sizes = [4, 8, 8], strides = [1, 1, 1]} : vector<4x8x32xf32> to vector<4x8x8xf32>
    "tpu.trace_start"() <{level = 10 : i32, message = "bld,bmd->blm"}> : () -> ()
    %cst_38 = arith.constant dense<0.000000e+00> : vector<4x8x8xf32>
    %65 = tpu.matmul %63, %64, %cst_38 {dimension_numbers = #tpu.dot_dimension_numbers<[2], [2], [1], [1], [0, 0, 0, 1, 1, 1], [0], [0]>} : vector<4x8x8xf32>, vector<4x8x8xf32>, vector<4x8x8xf32> -> vector<4x8x8xf32>
    "tpu.trace_stop"() : () -> ()
    %66 = vector.extract_strided_slice %41 {offsets = [1, 0, 0, 0], sizes = [1, 4, 8, 8], strides = [1, 1, 1, 1]} : vector<4x4x8x8xf32> to vector<1x4x8x8xf32>
    %67 = vector.shape_cast %66 : vector<1x4x8x8xf32> to vector<4x8x8xf32>
    %68 = arith.addf %65, %67 : vector<4x8x8xf32>
    %c1 = arith.constant 1 : index
    %c0_39 = arith.constant 0 : index
    %c0_40 = arith.constant 0 : index
    %c0_41 = arith.constant 0 : index
    %69 = vector.load %arg15[%c1, %c0_39, %c0_40, %c0_41] : memref<4x4x8x8xf32, #tpu.memory_space<vmem>>, vector<1x4x8x8xf32>
    %70 = vector.shape_cast %69 : vector<1x4x8x8xf32> to vector<4x8x8xf32>
    %71 = vector.shape_cast %68 : vector<4x8x8xf32> to vector<1x4x8x8xf32>
    tpu.vector_store %arg15[%c1, %c0_39, %c0_40, %c0_41], %71 {strides = array<i32>} : memref<4x4x8x8xf32, #tpu.memory_space<vmem>>, vector<1x4x8x8xf32>,
    %cst_42 = arith.constant dense<0xFF800000> : vector<4x8xf32>
    %72 = vector.multi_reduction <maximumf>, %68, %cst_42 [2] : vector<4x8x8xf32> to vector<4x8xf32>
    %73 = vector.shape_cast %72 : vector<4x8xf32> to vector<4x8x1xf32>
    %74 = vector.broadcast %73 : vector<4x8x1xf32> to vector<4x8x8xf32>
    %75 = arith.subf %68, %74 : vector<4x8x8xf32>
    %76 = math.exp %75 : vector<4x8x8xf32>
    %cst_43 = arith.constant dense<0.000000e+00> : vector<4x8xf32>
    %77 = vector.multi_reduction <add>, %76, %cst_43 [2] : vector<4x8x8xf32> to vector<4x8xf32>
    %78 = vector.shape_cast %77 : vector<4x8xf32> to vector<4x8x1xf32>
    %79 = tpu.reciprocal %78 : vector<4x8x1xf32> -> vector<4x8x1xf32>
    %80 = vector.broadcast %79 : vector<4x8x1xf32> to vector<4x8x8xf32>
    %81 = arith.mulf %76, %80 : vector<4x8x8xf32>
    %82 = vector.extract_strided_slice %40 {offsets = [0, 0, 8], sizes = [4, 8, 8], strides = [1, 1, 1]} : vector<4x8x32xf32> to vector<4x8x8xf32>
    "tpu.trace_start"() <{level = 10 : i32, message = "blm,bmd->bld"}> : () -> ()
    %cst_44 = arith.constant dense<0.000000e+00> : vector<4x8x8xf32>
    %83 = tpu.matmul %81, %82, %cst_44 {dimension_numbers = #tpu.dot_dimension_numbers<[2], [1], [1], [2], [0, 0, 0, 1, 1, 2], [0], [0]>} : vector<4x8x8xf32>, vector<4x8x8xf32>, vector<4x8x8xf32> -> vector<4x8x8xf32>
    "tpu.trace_stop"() : () -> ()
    %84 = vector.extract_strided_slice %38 {offsets = [0, 0, 16], sizes = [4, 8, 8], strides = [1, 1, 1]} : vector<4x8x32xf32> to vector<4x8x8xf32>
    %85 = vector.extract_strided_slice %39 {offsets = [0, 0, 16], sizes = [4, 8, 8], strides = [1, 1, 1]} : vector<4x8x32xf32> to vector<4x8x8xf32>
    "tpu.trace_start"() <{level = 10 : i32, message = "bld,bmd->blm"}> : () -> ()
    %cst_45 = arith.constant dense<0.000000e+00> : vector<4x8x8xf32>
    %86 = tpu.matmul %84, %85, %cst_45 {dimension_numbers = #tpu.dot_dimension_numbers<[2], [2], [1], [1], [0, 0, 0, 1, 1, 1], [0], [0]>} : vector<4x8x8xf32>, vector<4x8x8xf32>, vector<4x8x8xf32> -> vector<4x8x8xf32>
    "tpu.trace_stop"() : () -> ()
    %87 = vector.extract_strided_slice %41 {offsets = [2, 0, 0, 0], sizes = [1, 4, 8, 8], strides = [1, 1, 1, 1]} : vector<4x4x8x8xf32> to vector<1x4x8x8xf32>
    %88 = vector.shape_cast %87 : vector<1x4x8x8xf32> to vector<4x8x8xf32>
    %89 = arith.addf %86, %88 : vector<4x8x8xf32>
    %c2 = arith.constant 2 : index
    %c0_46 = arith.constant 0 : index
    %c0_47 = arith.constant 0 : index
    %c0_48 = arith.constant 0 : index
    %90 = vector.load %arg15[%c2, %c0_46, %c0_47, %c0_48] : memref<4x4x8x8xf32, #tpu.memory_space<vmem>>, vector<1x4x8x8xf32>
    %91 = vector.shape_cast %90 : vector<1x4x8x8xf32> to vector<4x8x8xf32>
    %92 = vector.shape_cast %89 : vector<4x8x8xf32> to vector<1x4x8x8xf32>
    tpu.vector_store %arg15[%c2, %c0_46, %c0_47, %c0_48], %92 {strides = array<i32>} : memref<4x4x8x8xf32, #tpu.memory_space<vmem>>, vector<1x4x8x8xf32>,
    %cst_49 = arith.constant dense<0xFF800000> : vector<4x8xf32>
    %93 = vector.multi_reduction <maximumf>, %89, %cst_49 [2] : vector<4x8x8xf32> to vector<4x8xf32>
    %94 = vector.shape_cast %93 : vector<4x8xf32> to vector<4x8x1xf32>
    %95 = vector.broadcast %94 : vector<4x8x1xf32> to vector<4x8x8xf32>
    %96 = arith.subf %89, %95 : vector<4x8x8xf32>
    %97 = math.exp %96 : vector<4x8x8xf32>
    %cst_50 = arith.constant dense<0.000000e+00> : vector<4x8xf32>
    %98 = vector.multi_reduction <add>, %97, %cst_50 [2] : vector<4x8x8xf32> to vector<4x8xf32>
    %99 = vector.shape_cast %98 : vector<4x8xf32> to vector<4x8x1xf32>
    %100 = tpu.reciprocal %99 : vector<4x8x1xf32> -> vector<4x8x1xf32>
    %101 = vector.broadcast %100 : vector<4x8x1xf32> to vector<4x8x8xf32>
    %102 = arith.mulf %97, %101 : vector<4x8x8xf32>
    %103 = vector.extract_strided_slice %40 {offsets = [0, 0, 16], sizes = [4, 8, 8], strides = [1, 1, 1]} : vector<4x8x32xf32> to vector<4x8x8xf32>
    "tpu.trace_start"() <{level = 10 : i32, message = "blm,bmd->bld"}> : () -> ()
    %cst_51 = arith.constant dense<0.000000e+00> : vector<4x8x8xf32>
    %104 = tpu.matmul %102, %103, %cst_51 {dimension_numbers = #tpu.dot_dimension_numbers<[2], [1], [1], [2], [0, 0, 0, 1, 1, 2], [0], [0]>} : vector<4x8x8xf32>, vector<4x8x8xf32>, vector<4x8x8xf32> -> vector<4x8x8xf32>
    "tpu.trace_stop"() : () -> ()
    %105 = vector.extract_strided_slice %38 {offsets = [0, 0, 24], sizes = [4, 8, 8], strides = [1, 1, 1]} : vector<4x8x32xf32> to vector<4x8x8xf32>
    %106 = vector.extract_strided_slice %39 {offsets = [0, 0, 24], sizes = [4, 8, 8], strides = [1, 1, 1]} : vector<4x8x32xf32> to vector<4x8x8xf32>
    "tpu.trace_start"() <{level = 10 : i32, message = "bld,bmd->blm"}> : () -> ()
    %cst_52 = arith.constant dense<0.000000e+00> : vector<4x8x8xf32>
    %107 = tpu.matmul %105, %106, %cst_52 {dimension_numbers = #tpu.dot_dimension_numbers<[2], [2], [1], [1], [0, 0, 0, 1, 1, 1], [0], [0]>} : vector<4x8x8xf32>, vector<4x8x8xf32>, vector<4x8x8xf32> -> vector<4x8x8xf32>
    "tpu.trace_stop"() : () -> ()
    %108 = vector.extract_strided_slice %41 {offsets = [3, 0, 0, 0], sizes = [1, 4, 8, 8], strides = [1, 1, 1, 1]} : vector<4x4x8x8xf32> to vector<1x4x8x8xf32>
    %109 = vector.shape_cast %108 : vector<1x4x8x8xf32> to vector<4x8x8xf32>
    %110 = arith.addf %107, %109 : vector<4x8x8xf32>
    %c3 = arith.constant 3 : index
    %c0_53 = arith.constant 0 : index
    %c0_54 = arith.constant 0 : index
    %c0_55 = arith.constant 0 : index
    %111 = vector.load %arg15[%c3, %c0_53, %c0_54, %c0_55] : memref<4x4x8x8xf32, #tpu.memory_space<vmem>>, vector<1x4x8x8xf32>
    %112 = vector.shape_cast %111 : vector<1x4x8x8xf32> to vector<4x8x8xf32>
    %113 = vector.shape_cast %110 : vector<4x8x8xf32> to vector<1x4x8x8xf32>
    tpu.vector_store %arg15[%c3, %c0_53, %c0_54, %c0_55], %113 {strides = array<i32>} : memref<4x4x8x8xf32, #tpu.memory_space<vmem>>, vector<1x4x8x8xf32>,
    %cst_56 = arith.constant dense<0xFF800000> : vector<4x8xf32>
    %114 = vector.multi_reduction <maximumf>, %110, %cst_56 [2] : vector<4x8x8xf32> to vector<4x8xf32>
    %115 = vector.shape_cast %114 : vector<4x8xf32> to vector<4x8x1xf32>
    %116 = vector.broadcast %115 : vector<4x8x1xf32> to vector<4x8x8xf32>
    %117 = arith.subf %110, %116 : vector<4x8x8xf32>
    %118 = math.exp %117 : vector<4x8x8xf32>
    %cst_57 = arith.constant dense<0.000000e+00> : vector<4x8xf32>
    %119 = vector.multi_reduction <add>, %118, %cst_57 [2] : vector<4x8x8xf32> to vector<4x8xf32>
    %120 = vector.shape_cast %119 : vector<4x8xf32> to vector<4x8x1xf32>
    %121 = tpu.reciprocal %120 : vector<4x8x1xf32> -> vector<4x8x1xf32>
    %122 = vector.broadcast %121 : vector<4x8x1xf32> to vector<4x8x8xf32>
    %123 = arith.mulf %118, %122 : vector<4x8x8xf32>
    %124 = vector.extract_strided_slice %40 {offsets = [0, 0, 24], sizes = [4, 8, 8], strides = [1, 1, 1]} : vector<4x8x32xf32> to vector<4x8x8xf32>
    "tpu.trace_start"() <{level = 10 : i32, message = "blm,bmd->bld"}> : () -> ()
    %cst_58 = arith.constant dense<0.000000e+00> : vector<4x8x8xf32>
    %125 = tpu.matmul %123, %124, %cst_58 {dimension_numbers = #tpu.dot_dimension_numbers<[2], [1], [1], [2], [0, 0, 0, 1, 1, 2], [0], [0]>} : vector<4x8x8xf32>, vector<4x8x8xf32>, vector<4x8x8xf32> -> vector<4x8x8xf32>
    "tpu.trace_stop"() : () -> ()
    %126 = tpu.concatenate %62, %83, %104, %125 in 2 : vector<4x8x8xf32>, vector<4x8x8xf32>, vector<4x8x8xf32>, vector<4x8x8xf32> -> vector<4x8x32xf32>
    %127 = vector.shape_cast %126 : vector<4x8x32xf32> to vector<32x32xf32>
    %c0_59 = arith.constant 0 : index
    %c0_60 = arith.constant 0 : index
    %128 = vector.load %arg12[%c0_59, %c0_60] : memref<32x32xf32, #tpu.memory_space<vmem>>, vector<32x32xf32>
    %cst_61 = arith.constant dense<0.000000e+00> : vector<32x32xf32>
    %129 = tpu.matmul %127, %128, %cst_61 {dimension_numbers = #tpu.dot_dimension_numbers<[1], [0], [0], [1], [0, 0, 1, 1], [], []>} : vector<32x32xf32>, vector<32x32xf32>, vector<32x32xf32> -> vector<32x32xf32>
    %c0_62 = arith.constant 0 : index
    %c0_63 = arith.constant 0 : index
    %130 = vector.load %arg13[%c0_62, %c0_63] : memref<1x32xf32, #tpu.memory_space<vmem>>, vector<1x32xf32>
    %131 = vector.broadcast %130 : vector<1x32xf32> to vector<32x32xf32>
    %132 = arith.addf %129, %131 : vector<32x32xf32>
    %133 = arith.addf %22, %132 : vector<32x32xf32>
    %c0_64 = arith.constant 0 : index
    %c0_65 = arith.constant 0 : index
    %134 = vector.load %arg14[%c0_64, %c0_65] : memref<32x32xf32, #tpu.memory_space<vmem>>, vector<32x32xf32>
    tpu.vector_store %arg14[%c0_64, %c0_65], %133 {strides = array<i32>} : memref<32x32xf32, #tpu.memory_space<vmem>>, vector<32x32xf32>,
    %cst_66 = arith.constant dense<0.000000e+00> : vector<32xf32>
    %135 = vector.multi_reduction <add>, %133, %cst_66 [0] : vector<32x32xf32> to vector<32xf32>
    %136 = vector.shape_cast %135 : vector<32xf32> to vector<1x32xf32>
    %c0_67 = arith.constant 0 : index
    %c0_68 = arith.constant 0 : index
    %c0_69 = arith.constant 0 : index
    %137 = vector.load %arg16[%c0_67, %c0_68, %c0_69] : memref<1x2x32xf32, #tpu.memory_space<vmem>>, vector<1x1x32xf32>
    %138 = vector.shape_cast %137 : vector<1x1x32xf32> to vector<1x32xf32>
    %139 = vector.shape_cast %136 : vector<1x32xf32> to vector<1x1x32xf32>
    tpu.vector_store %arg16[%c0_67, %c0_68, %c0_69], %139 {strides = array<i32>} : memref<1x2x32xf32, #tpu.memory_space<vmem>>, vector<1x1x32xf32>,
    %140 = arith.mulf %133, %133 : vector<32x32xf32>
    %cst_70 = arith.constant dense<0.000000e+00> : vector<32xf32>
    %141 = vector.multi_reduction <add>, %140, %cst_70 [0] : vector<32x32xf32> to vector<32xf32>
    %142 = vector.shape_cast %141 : vector<32xf32> to vector<1x32xf32>
    %c0_71 = arith.constant 0 : index
    %c1_72 = arith.constant 1 : index
    %c0_73 = arith.constant 0 : index
    %143 = vector.load %arg16[%c0_71, %c1_72, %c0_73] : memref<1x2x32xf32, #tpu.memory_space<vmem>>, vector<1x1x32xf32>
    %144 = vector.shape_cast %143 : vector<1x1x32xf32> to vector<1x32xf32>
    %145 = vector.shape_cast %142 : vector<1x32xf32> to vector<1x1x32xf32>
    tpu.vector_store %arg16[%c0_71, %c1_72, %c0_73], %145 {strides = array<i32>} : memref<1x2x32xf32, #tpu.memory_space<vmem>>, vector<1x1x32xf32>,
    return
  }
  func.func @transform_0(%arg0: i32) -> (i32, i32) {
    %c0_i32 = arith.constant 0 : i32
    %c0_i32_0 = arith.constant 0 : i32
    return %arg0, %c0_i32 : i32, i32
  }
  func.func @transform_1(%arg0: i32) -> (i32, i32, i32, i32) {
    %c0_i32 = arith.constant 0 : i32
    %c0_i32_0 = arith.constant 0 : i32
    %c0_i32_1 = arith.constant 0 : i32
    %c0_i32_2 = arith.constant 0 : i32
    return %c0_i32, %arg0, %c0_i32_0, %c0_i32_1 : i32, i32, i32, i32
  }
  func.func @transform_2(%arg0: i32) -> (i32, i32, i32) {
    %c0_i32 = arith.constant 0 : i32
    %c0_i32_0 = arith.constant 0 : i32
    %c0_i32_1 = arith.constant 0 : i32
    %c0_i32_2 = arith.constant 0 : i32
    return %c0_i32, %c0_i32_0, %c0_i32_1 : i32, i32, i32
  }
  func.func @transform_3(%arg0: i32) -> (i32, i32) {
    %c0_i32 = arith.constant 0 : i32
    %c0_i32_0 = arith.constant 0 : i32
    %c0_i32_1 = arith.constant 0 : i32
    return %c0_i32, %c0_i32_0 : i32, i32
  }
  func.func @transform_4(%arg0: i32) -> (i32, i32) {
    %c0_i32 = arith.constant 0 : i32
    %c0_i32_0 = arith.constant 0 : i32
    %c0_i32_1 = arith.constant 0 : i32
    return %c0_i32, %c0_i32_0 : i32, i32
  }
  func.func @transform_5(%arg0: i32) -> (i32, i32) {
    %c0_i32 = arith.constant 0 : i32
    %c0_i32_0 = arith.constant 0 : i32
    %c0_i32_1 = arith.constant 0 : i32
    return %c0_i32, %c0_i32_0 : i32, i32
  }
  func.func @transform_6(%arg0: i32) -> (i32, i32) {
    %c0_i32 = arith.constant 0 : i32
    %c0_i32_0 = arith.constant 0 : i32
    %c0_i32_1 = arith.constant 0 : i32
    return %c0_i32, %c0_i32_0 : i32, i32
  }
  func.func @transform_7(%arg0: i32) -> (i32, i32) {
    %c0_i32 = arith.constant 0 : i32
    %c0_i32_0 = arith.constant 0 : i32
    %c0_i32_1 = arith.constant 0 : i32
    return %c0_i32, %c0_i32_0 : i32, i32
  }
  func.func @transform_8(%arg0: i32) -> (i32, i32) {
    %c0_i32 = arith.constant 0 : i32
    %c0_i32_0 = arith.constant 0 : i32
    %c0_i32_1 = arith.constant 0 : i32
    return %c0_i32, %c0_i32_0 : i32, i32
  }
  func.func @transform_9(%arg0: i32) -> (i32, i32) {
    %c0_i32 = arith.constant 0 : i32
    %c0_i32_0 = arith.constant 0 : i32
    %c0_i32_1 = arith.constant 0 : i32
    return %c0_i32, %c0_i32_0 : i32, i32
  }
  func.func @transform_10(%arg0: i32) -> (i32, i32) {
    %c0_i32 = arith.constant 0 : i32
    %c0_i32_0 = arith.constant 0 : i32
    %c0_i32_1 = arith.constant 0 : i32
    return %c0_i32, %c0_i32_0 : i32, i32
  }
  func.func @transform_11(%arg0: i32) -> (i32, i32) {
    %c0_i32 = arith.constant 0 : i32
    %c0_i32_0 = arith.constant 0 : i32
    %c0_i32_1 = arith.constant 0 : i32
    return %c0_i32, %c0_i32_0 : i32, i32
  }
  func.func @transform_12(%arg0: i32) -> (i32, i32) {
    %c0_i32 = arith.constant 0 : i32
    %c0_i32_0 = arith.constant 0 : i32
    %c0_i32_1 = arith.constant 0 : i32
    return %c0_i32, %c0_i32_0 : i32, i32
  }
  func.func @transform_13(%arg0: i32) -> (i32, i32) {
    %c0_i32 = arith.constant 0 : i32
    %c0_i32_0 = arith.constant 0 : i32
    return %arg0, %c0_i32 : i32, i32
  }
  func.func @transform_14(%arg0: i32) -> (i32, i32, i32, i32) {
    %c0_i32 = arith.constant 0 : i32
    %c0_i32_0 = arith.constant 0 : i32
    %c0_i32_1 = arith.constant 0 : i32
    %c0_i32_2 = arith.constant 0 : i32
    return %c0_i32, %arg0, %c0_i32_0, %c0_i32_1 : i32, i32, i32, i32
  }
  func.func @transform_15(%arg0: i32) -> (i32, i32, i32) {
    %c0_i32 = arith.constant 0 : i32
    %c0_i32_0 = arith.constant 0 : i32
    %c0_i32_1 = arith.constant 0 : i32
    return %arg0, %c0_i32, %c0_i32_0 : i32, i32, i32
  }
}

module attributes {stable_mosaic.version = 11 : i64} {
  func.func @_ffn_kernel(%arg0: i32, %arg1: memref<32x32xf32, #tpu.memory_space<vmem>>, %arg2: memref<2x2x32xf32, #tpu.memory_space<vmem>>, %arg3: memref<1x32xf32, #tpu.memory_space<vmem>>, %arg4: memref<1x32xf32, #tpu.memory_space<vmem>>, %arg5: memref<32x64xf32, #tpu.memory_space<vmem>>, %arg6: memref<1x64xf32, #tpu.memory_space<vmem>>, %arg7: memref<64x32xf32, #tpu.memory_space<vmem>>, %arg8: memref<1x32xf32, #tpu.memory_space<vmem>>, %arg9: memref<32x32xf32, #tpu.memory_space<vmem>>, %arg10: memref<1x2x32xf32, #tpu.memory_space<vmem>>) attributes {dimension_semantics = [#tpu.dimension_semantics<parallel>], iteration_bounds = array<i64: 2>, scalar_prefetch = 0 : i64, scratch_operands = 0 : i64, tpu.core_type = #tpu.core_type<tc>, window_params = [{transform_indices = @transform_0, window_bounds = array<i64: 32, 32>}, {pipeline_mode = #tpu.pipeline_mode<synchronous>, transform_indices = @transform_1, window_bounds = array<i64: 2, 2, 32>}, {pipeline_mode = #tpu.pipeline_mode<synchronous>, transform_indices = @transform_2, window_bounds = array<i64: 1, 32>}, {pipeline_mode = #tpu.pipeline_mode<synchronous>, transform_indices = @transform_3, window_bounds = array<i64: 1, 32>}, {pipeline_mode = #tpu.pipeline_mode<synchronous>, transform_indices = @transform_4, window_bounds = array<i64: 32, 64>}, {pipeline_mode = #tpu.pipeline_mode<synchronous>, transform_indices = @transform_5, window_bounds = array<i64: 1, 64>}, {pipeline_mode = #tpu.pipeline_mode<synchronous>, transform_indices = @transform_6, window_bounds = array<i64: 64, 32>}, {pipeline_mode = #tpu.pipeline_mode<synchronous>, transform_indices = @transform_7, window_bounds = array<i64: 1, 32>}, {transform_indices = @transform_8, window_bounds = array<i64: 32, 32>}, {transform_indices = @transform_9, window_bounds = array<i64: 1, 2, 32>}]} {
    %c0 = arith.constant 0 : index
    %c0_0 = arith.constant 0 : index
    %0 = vector.load %arg1[%c0, %c0_0] : memref<32x32xf32, #tpu.memory_space<vmem>>, vector<32x32xf32>
    %c0_1 = arith.constant 0 : index
    %c0_2 = arith.constant 0 : index
    %c0_3 = arith.constant 0 : index
    %1 = vector.load %arg2[%c0_1, %c0_2, %c0_3] : memref<2x2x32xf32, #tpu.memory_space<vmem>>, vector<2x2x32xf32>
    %cst = arith.constant dense<0.000000e+00> : vector<2x32xf32>
    %2 = vector.multi_reduction <add>, %1, %cst [0] : vector<2x2x32xf32> to vector<2x32xf32>
    %3 = vector.extract_strided_slice %2 {offsets = [0, 0], sizes = [1, 32], strides = [1, 1]} : vector<2x32xf32> to vector<1x32xf32>
    %cst_4 = arith.constant 1.562500e-02 : f32
    %4 = vector.broadcast %cst_4 : f32 to vector<1x32xf32>
    %5 = arith.mulf %3, %4 : vector<1x32xf32>
    %6 = vector.extract_strided_slice %2 {offsets = [1, 0], sizes = [1, 32], strides = [1, 1]} : vector<2x32xf32> to vector<1x32xf32>
    %cst_5 = arith.constant 1.562500e-02 : f32
    %7 = vector.broadcast %cst_5 : f32 to vector<1x32xf32>
    %8 = arith.mulf %6, %7 : vector<1x32xf32>
    %9 = arith.mulf %5, %5 : vector<1x32xf32>
    %10 = arith.subf %8, %9 : vector<1x32xf32>
    %cst_6 = arith.constant 9.99999974E-6 : f32
    %11 = vector.broadcast %cst_6 : f32 to vector<1x32xf32>
    %12 = arith.addf %10, %11 : vector<1x32xf32>
    %13 = math.rsqrt %12 : vector<1x32xf32>
    %c0_7 = arith.constant 0 : index
    %c0_8 = arith.constant 0 : index
    %14 = vector.load %arg3[%c0_7, %c0_8] : memref<1x32xf32, #tpu.memory_space<vmem>>, vector<1x32xf32>
    %15 = arith.mulf %13, %14 : vector<1x32xf32>
    %16 = vector.broadcast %5 : vector<1x32xf32> to vector<32x32xf32>
    %17 = arith.subf %0, %16 : vector<32x32xf32>
    %18 = vector.broadcast %15 : vector<1x32xf32> to vector<32x32xf32>
    %19 = arith.mulf %17, %18 : vector<32x32xf32>
    %c0_9 = arith.constant 0 : index
    %c0_10 = arith.constant 0 : index
    %20 = vector.load %arg4[%c0_9, %c0_10] : memref<1x32xf32, #tpu.memory_space<vmem>>, vector<1x32xf32>
    %21 = vector.broadcast %20 : vector<1x32xf32> to vector<32x32xf32>
    %22 = arith.addf %19, %21 : vector<32x32xf32>
    %c0_11 = arith.constant 0 : index
    %c0_12 = arith.constant 0 : index
    %23 = vector.load %arg5[%c0_11, %c0_12] : memref<32x64xf32, #tpu.memory_space<vmem>>, vector<32x64xf32>
    %cst_13 = arith.constant dense<0.000000e+00> : vector<32x64xf32>
    %24 = tpu.matmul %22, %23, %cst_13 {dimension_numbers = #tpu.dot_dimension_numbers<[1], [0], [0], [1], [0, 0, 1, 1], [], []>} : vector<32x32xf32>, vector<32x64xf32>, vector<32x64xf32> -> vector<32x64xf32>
    %c0_14 = arith.constant 0 : index
    %c0_15 = arith.constant 0 : index
    %25 = vector.load %arg6[%c0_14, %c0_15] : memref<1x64xf32, #tpu.memory_space<vmem>>, vector<1x64xf32>
    %26 = vector.broadcast %25 : vector<1x64xf32> to vector<32x64xf32>
    %27 = arith.addf %24, %26 : vector<32x64xf32>
    %cst_16 = arith.constant 5.000000e-01 : f32
    %28 = vector.broadcast %cst_16 : f32 to vector<32x64xf32>
    %29 = arith.mulf %28, %27 : vector<32x64xf32>
    %cst_17 = arith.constant 0.707106769 : f32
    %30 = vector.broadcast %cst_17 : f32 to vector<32x64xf32>
    %31 = arith.mulf %27, %30 : vector<32x64xf32>
    %32 = math.erf %31 : vector<32x64xf32>
    %cst_18 = arith.constant 1.000000e+00 : f32
    %33 = vector.broadcast %cst_18 : f32 to vector<32x64xf32>
    %34 = arith.addf %33, %32 : vector<32x64xf32>
    %35 = arith.mulf %29, %34 : vector<32x64xf32>
    %c0_19 = arith.constant 0 : index
    %c0_20 = arith.constant 0 : index
    %36 = vector.load %arg7[%c0_19, %c0_20] : memref<64x32xf32, #tpu.memory_space<vmem>>, vector<64x32xf32>
    %cst_21 = arith.constant dense<0.000000e+00> : vector<32x32xf32>
    %37 = tpu.matmul %35, %36, %cst_21 {dimension_numbers = #tpu.dot_dimension_numbers<[1], [0], [0], [1], [0, 0, 1, 1], [], []>} : vector<32x64xf32>, vector<64x32xf32>, vector<32x32xf32> -> vector<32x32xf32>
    %c0_22 = arith.constant 0 : index
    %c0_23 = arith.constant 0 : index
    %38 = vector.load %arg8[%c0_22, %c0_23] : memref<1x32xf32, #tpu.memory_space<vmem>>, vector<1x32xf32>
    %39 = vector.broadcast %38 : vector<1x32xf32> to vector<32x32xf32>
    %40 = arith.addf %37, %39 : vector<32x32xf32>
    %41 = arith.addf %22, %40 : vector<32x32xf32>
    %c0_24 = arith.constant 0 : index
    %c0_25 = arith.constant 0 : index
    %42 = vector.load %arg9[%c0_24, %c0_25] : memref<32x32xf32, #tpu.memory_space<vmem>>, vector<32x32xf32>
    tpu.vector_store %arg9[%c0_24, %c0_25], %41 {strides = array<i32>} : memref<32x32xf32, #tpu.memory_space<vmem>>, vector<32x32xf32>,
    %cst_26 = arith.constant dense<0.000000e+00> : vector<32xf32>
    %43 = vector.multi_reduction <add>, %41, %cst_26 [0] : vector<32x32xf32> to vector<32xf32>
    %44 = vector.shape_cast %43 : vector<32xf32> to vector<1x32xf32>
    %c0_27 = arith.constant 0 : index
    %c0_28 = arith.constant 0 : index
    %c0_29 = arith.constant 0 : index
    %45 = vector.load %arg10[%c0_27, %c0_28, %c0_29] : memref<1x2x32xf32, #tpu.memory_space<vmem>>, vector<1x1x32xf32>
    %46 = vector.shape_cast %45 : vector<1x1x32xf32> to vector<1x32xf32>
    %47 = vector.shape_cast %44 : vector<1x32xf32> to vector<1x1x32xf32>
    tpu.vector_store %arg10[%c0_27, %c0_28, %c0_29], %47 {strides = array<i32>} : memref<1x2x32xf32, #tpu.memory_space<vmem>>, vector<1x1x32xf32>,
    %48 = arith.mulf %41, %41 : vector<32x32xf32>
    %cst_30 = arith.constant dense<0.000000e+00> : vector<32xf32>
    %49 = vector.multi_reduction <add>, %48, %cst_30 [0] : vector<32x32xf32> to vector<32xf32>
    %50 = vector.shape_cast %49 : vector<32xf32> to vector<1x32xf32>
    %c0_31 = arith.constant 0 : index
    %c1 = arith.constant 1 : index
    %c0_32 = arith.constant 0 : index
    %51 = vector.load %arg10[%c0_31, %c1, %c0_32] : memref<1x2x32xf32, #tpu.memory_space<vmem>>, vector<1x1x32xf32>
    %52 = vector.shape_cast %51 : vector<1x1x32xf32> to vector<1x32xf32>
    %53 = vector.shape_cast %50 : vector<1x32xf32> to vector<1x1x32xf32>
    tpu.vector_store %arg10[%c0_31, %c1, %c0_32], %53 {strides = array<i32>} : memref<1x2x32xf32, #tpu.memory_space<vmem>>, vector<1x1x32xf32>,
    return
  }
  func.func @transform_0(%arg0: i32) -> (i32, i32) {
    %c0_i32 = arith.constant 0 : i32
    %c0_i32_0 = arith.constant 0 : i32
    return %arg0, %c0_i32 : i32, i32
  }
  func.func @transform_1(%arg0: i32) -> (i32, i32, i32) {
    %c0_i32 = arith.constant 0 : i32
    %c0_i32_0 = arith.constant 0 : i32
    %c0_i32_1 = arith.constant 0 : i32
    %c0_i32_2 = arith.constant 0 : i32
    return %c0_i32, %c0_i32_0, %c0_i32_1 : i32, i32, i32
  }
  func.func @transform_2(%arg0: i32) -> (i32, i32) {
    %c0_i32 = arith.constant 0 : i32
    %c0_i32_0 = arith.constant 0 : i32
    %c0_i32_1 = arith.constant 0 : i32
    return %c0_i32, %c0_i32_0 : i32, i32
  }
  func.func @transform_3(%arg0: i32) -> (i32, i32) {
    %c0_i32 = arith.constant 0 : i32
    %c0_i32_0 = arith.constant 0 : i32
    %c0_i32_1 = arith.constant 0 : i32
    return %c0_i32, %c0_i32_0 : i32, i32
  }
  func.func @transform_4(%arg0: i32) -> (i32, i32) {
    %c0_i32 = arith.constant 0 : i32
    %c0_i32_0 = arith.constant 0 : i32
    %c0_i32_1 = arith.constant 0 : i32
    return %c0_i32, %c0_i32_0 : i32, i32
  }
  func.func @transform_5(%arg0: i32) -> (i32, i32) {
    %c0_i32 = arith.constant 0 : i32
    %c0_i32_0 = arith.constant 0 : i32
    %c0_i32_1 = arith.constant 0 : i32
    return %c0_i32, %c0_i32_0 : i32, i32
  }
  func.func @transform_6(%arg0: i32) -> (i32, i32) {
    %c0_i32 = arith.constant 0 : i32
    %c0_i32_0 = arith.constant 0 : i32
    %c0_i32_1 = arith.constant 0 : i32
    return %c0_i32, %c0_i32_0 : i32, i32
  }
  func.func @transform_7(%arg0: i32) -> (i32, i32) {
    %c0_i32 = arith.constant 0 : i32
    %c0_i32_0 = arith.constant 0 : i32
    %c0_i32_1 = arith.constant 0 : i32
    return %c0_i32, %c0_i32_0 : i32, i32
  }
  func.func @transform_8(%arg0: i32) -> (i32, i32) {
    %c0_i32 = arith.constant 0 : i32
    %c0_i32_0 = arith.constant 0 : i32
    return %arg0, %c0_i32 : i32, i32
  }
  func.func @transform_9(%arg0: i32) -> (i32, i32, i32) {
    %c0_i32 = arith.constant 0 : i32
    %c0_i32_0 = arith.constant 0 : i32
    %c0_i32_1 = arith.constant 0 : i32
    return %arg0, %c0_i32, %c0_i32_0 : i32, i32, i32
  }
}

module attributes {stable_mosaic.version = 11 : i64} {
  func.func @_attn_kernel(%arg0: i32, %arg1: memref<32x32xf32, #tpu.memory_space<vmem>>, %arg2: memref<32x32xf32, #tpu.memory_space<vmem>>, %arg3: memref<1x32xf32, #tpu.memory_space<vmem>>, %arg4: memref<32x32xf32, #tpu.memory_space<vmem>>, %arg5: memref<1x32xf32, #tpu.memory_space<vmem>>, %arg6: memref<32x32xf32, #tpu.memory_space<vmem>>, %arg7: memref<1x32xf32, #tpu.memory_space<vmem>>, %arg8: memref<32x32xf32, #tpu.memory_space<vmem>>, %arg9: memref<1x32xf32, #tpu.memory_space<vmem>>, %arg10: memref<32x32xf32, #tpu.memory_space<vmem>>, %arg11: memref<4x4x8x8xf32, #tpu.memory_space<vmem>>, %arg12: memref<1x2x32xf32, #tpu.memory_space<vmem>>) attributes {dimension_semantics = [#tpu.dimension_semantics<parallel>], iteration_bounds = array<i64: 2>, scalar_prefetch = 0 : i64, scratch_operands = 0 : i64, tpu.core_type = #tpu.core_type<tc>, window_params = [{transform_indices = @transform_0, window_bounds = array<i64: 32, 32>}, {pipeline_mode = #tpu.pipeline_mode<synchronous>, transform_indices = @transform_1, window_bounds = array<i64: 32, 32>}, {pipeline_mode = #tpu.pipeline_mode<synchronous>, transform_indices = @transform_2, window_bounds = array<i64: 1, 32>}, {pipeline_mode = #tpu.pipeline_mode<synchronous>, transform_indices = @transform_3, window_bounds = array<i64: 32, 32>}, {pipeline_mode = #tpu.pipeline_mode<synchronous>, transform_indices = @transform_4, window_bounds = array<i64: 1, 32>}, {pipeline_mode = #tpu.pipeline_mode<synchronous>, transform_indices = @transform_5, window_bounds = array<i64: 32, 32>}, {pipeline_mode = #tpu.pipeline_mode<synchronous>, transform_indices = @transform_6, window_bounds = array<i64: 1, 32>}, {pipeline_mode = #tpu.pipeline_mode<synchronous>, transform_indices = @transform_7, window_bounds = array<i64: 32, 32>}, {pipeline_mode = #tpu.pipeline_mode<synchronous>, transform_indices = @transform_8, window_bounds = array<i64: 1, 32>}, {transform_indices = @transform_9, window_bounds = array<i64: 32, 32>}, {transform_indices = @transform_10, window_bounds = array<i64: 4, 4, 8, 8>}, {transform_indices = @transform_11, window_bounds = array<i64: 1, 2, 32>}]} {
    %c0 = arith.constant 0 : index
    %c0_0 = arith.constant 0 : index
    %0 = vector.load %arg1[%c0, %c0_0] : memref<32x32xf32, #tpu.memory_space<vmem>>, vector<32x32xf32>
    %c0_1 = arith.constant 0 : index
    %c0_2 = arith.constant 0 : index
    %1 = vector.load %arg2[%c0_1, %c0_2] : memref<32x32xf32, #tpu.memory_space<vmem>>, vector<32x32xf32>
    %cst = arith.constant dense<0.000000e+00> : vector<32x32xf32>
    %2 = tpu.matmul %0, %1, %cst {dimension_numbers = #tpu.dot_dimension_numbers<[1], [0], [0], [1], [0, 0, 1, 1], [], []>} : vector<32x32xf32>, vector<32x32xf32>, vector<32x32xf32> -> vector<32x32xf32>
    %c0_3 = arith.constant 0 : index
    %c0_4 = arith.constant 0 : index
    %3 = vector.load %arg3[%c0_3, %c0_4] : memref<1x32xf32, #tpu.memory_space<vmem>>, vector<1x32xf32>
    %4 = vector.broadcast %3 : vector<1x32xf32> to vector<32x32xf32>
    %5 = arith.addf %2, %4 : vector<32x32xf32>
    %c0_5 = arith.constant 0 : index
    %c0_6 = arith.constant 0 : index
    %6 = vector.load %arg4[%c0_5, %c0_6] : memref<32x32xf32, #tpu.memory_space<vmem>>, vector<32x32xf32>
    %cst_7 = arith.constant dense<0.000000e+00> : vector<32x32xf32>
    %7 = tpu.matmul %0, %6, %cst_7 {dimension_numbers = #tpu.dot_dimension_numbers<[1], [0], [0], [1], [0, 0, 1, 1], [], []>} : vector<32x32xf32>, vector<32x32xf32>, vector<32x32xf32> -> vector<32x32xf32>
    %c0_8 = arith.constant 0 : index
    %c0_9 = arith.constant 0 : index
    %8 = vector.load %arg5[%c0_8, %c0_9] : memref<1x32xf32, #tpu.memory_space<vmem>>, vector<1x32xf32>
    %9 = vector.broadcast %8 : vector<1x32xf32> to vector<32x32xf32>
    %10 = arith.addf %7, %9 : vector<32x32xf32>
    %c0_10 = arith.constant 0 : index
    %c0_11 = arith.constant 0 : index
    %11 = vector.load %arg6[%c0_10, %c0_11] : memref<32x32xf32, #tpu.memory_space<vmem>>, vector<32x32xf32>
    %cst_12 = arith.constant dense<0.000000e+00> : vector<32x32xf32>
    %12 = tpu.matmul %0, %11, %cst_12 {dimension_numbers = #tpu.dot_dimension_numbers<[1], [0], [0], [1], [0, 0, 1, 1], [], []>} : vector<32x32xf32>, vector<32x32xf32>, vector<32x32xf32> -> vector<32x32xf32>
    %c0_13 = arith.constant 0 : index
    %c0_14 = arith.constant 0 : index
    %13 = vector.load %arg7[%c0_13, %c0_14] : memref<1x32xf32, #tpu.memory_space<vmem>>, vector<1x32xf32>
    %14 = vector.broadcast %13 : vector<1x32xf32> to vector<32x32xf32>
    %15 = arith.addf %12, %14 : vector<32x32xf32>
    %16 = vector.shape_cast %5 : vector<32x32xf32> to vector<4x8x32xf32>
    %17 = vector.shape_cast %10 : vector<32x32xf32> to vector<4x8x32xf32>
    %18 = vector.shape_cast %15 : vector<32x32xf32> to vector<4x8x32xf32>
    %19 = vector.extract_strided_slice %16 {offsets = [0, 0, 0], sizes = [4, 8, 8], strides = [1, 1, 1]} : vector<4x8x32xf32> to vector<4x8x8xf32>
    %20 = vector.extract_strided_slice %17 {offsets = [0, 0, 0], sizes = [4, 8, 8], strides = [1, 1, 1]} : vector<4x8x32xf32> to vector<4x8x8xf32>
    "tpu.trace_start"() <{level = 10 : i32, message = "bld,bmd->blm"}> : () -> ()
    %cst_15 = arith.constant dense<0.000000e+00> : vector<4x8x8xf32>
    %21 = tpu.matmul %19, %20, %cst_15 {dimension_numbers = #tpu.dot_dimension_numbers<[2], [2], [1], [1], [0, 0, 0, 1, 1, 1], [0], [0]>} : vector<4x8x8xf32>, vector<4x8x8xf32>, vector<4x8x8xf32> -> vector<4x8x8xf32>
    "tpu.trace_stop"() : () -> ()
    %c0_16 = arith.constant 0 : index
    %c0_17 = arith.constant 0 : index
    %c0_18 = arith.constant 0 : index
    %c0_19 = arith.constant 0 : index
    %22 = vector.load %arg11[%c0_16, %c0_17, %c0_18, %c0_19] : memref<4x4x8x8xf32, #tpu.memory_space<vmem>>, vector<1x4x8x8xf32>
    %23 = vector.shape_cast %22 : vector<1x4x8x8xf32> to vector<4x8x8xf32>
    %24 = vector.shape_cast %21 : vector<4x8x8xf32> to vector<1x4x8x8xf32>
    tpu.vector_store %arg11[%c0_16, %c0_17, %c0_18, %c0_19], %24 {strides = array<i32>} : memref<4x4x8x8xf32, #tpu.memory_space<vmem>>, vector<1x4x8x8xf32>,
    %cst_20 = arith.constant dense<0xFF800000> : vector<4x8xf32>
    %25 = vector.multi_reduction <maximumf>, %21, %cst_20 [2] : vector<4x8x8xf32> to vector<4x8xf32>
    %26 = vector.shape_cast %25 : vector<4x8xf32> to vector<4x8x1xf32>
    %27 = vector.broadcast %26 : vector<4x8x1xf32> to vector<4x8x8xf32>
    %28 = arith.subf %21, %27 : vector<4x8x8xf32>
    %29 = math.exp %28 : vector<4x8x8xf32>
    %cst_21 = arith.constant dense<0.000000e+00> : vector<4x8xf32>
    %30 = vector.multi_reduction <add>, %29, %cst_21 [2] : vector<4x8x8xf32> to vector<4x8xf32>
    %31 = vector.shape_cast %30 : vector<4x8xf32> to vector<4x8x1xf32>
    %32 = tpu.reciprocal %31 : vector<4x8x1xf32> -> vector<4x8x1xf32>
    %33 = vector.broadcast %32 : vector<4x8x1xf32> to vector<4x8x8xf32>
    %34 = arith.mulf %29, %33 : vector<4x8x8xf32>
    %35 = vector.extract_strided_slice %18 {offsets = [0, 0, 0], sizes = [4, 8, 8], strides = [1, 1, 1]} : vector<4x8x32xf32> to vector<4x8x8xf32>
    "tpu.trace_start"() <{level = 10 : i32, message = "blm,bmd->bld"}> : () -> ()
    %cst_22 = arith.constant dense<0.000000e+00> : vector<4x8x8xf32>
    %36 = tpu.matmul %34, %35, %cst_22 {dimension_numbers = #tpu.dot_dimension_numbers<[2], [1], [1], [2], [0, 0, 0, 1, 1, 2], [0], [0]>} : vector<4x8x8xf32>, vector<4x8x8xf32>, vector<4x8x8xf32> -> vector<4x8x8xf32>
    "tpu.trace_stop"() : () -> ()
    %37 = vector.extract_strided_slice %16 {offsets = [0, 0, 8], sizes = [4, 8, 8], strides = [1, 1, 1]} : vector<4x8x32xf32> to vector<4x8x8xf32>
    %38 = vector.extract_strided_slice %17 {offsets = [0, 0, 8], sizes = [4, 8, 8], strides = [1, 1, 1]} : vector<4x8x32xf32> to vector<4x8x8xf32>
    "tpu.trace_start"() <{level = 10 : i32, message = "bld,bmd->blm"}> : () -> ()
    %cst_23 = arith.constant dense<0.000000e+00> : vector<4x8x8xf32>
    %39 = tpu.matmul %37, %38, %cst_23 {dimension_numbers = #tpu.dot_dimension_numbers<[2], [2], [1], [1], [0, 0, 0, 1, 1, 1], [0], [0]>} : vector<4x8x8xf32>, vector<4x8x8xf32>, vector<4x8x8xf32> -> vector<4x8x8xf32>
    "tpu.trace_stop"() : () -> ()
    %c1 = arith.constant 1 : index
    %c0_24 = arith.constant 0 : index
    %c0_25 = arith.constant 0 : index
    %c0_26 = arith.constant 0 : index
    %40 = vector.load %arg11[%c1, %c0_24, %c0_25, %c0_26] : memref<4x4x8x8xf32, #tpu.memory_space<vmem>>, vector<1x4x8x8xf32>
    %41 = vector.shape_cast %40 : vector<1x4x8x8xf32> to vector<4x8x8xf32>
    %42 = vector.shape_cast %39 : vector<4x8x8xf32> to vector<1x4x8x8xf32>
    tpu.vector_store %arg11[%c1, %c0_24, %c0_25, %c0_26], %42 {strides = array<i32>} : memref<4x4x8x8xf32, #tpu.memory_space<vmem>>, vector<1x4x8x8xf32>,
    %cst_27 = arith.constant dense<0xFF800000> : vector<4x8xf32>
    %43 = vector.multi_reduction <maximumf>, %39, %cst_27 [2] : vector<4x8x8xf32> to vector<4x8xf32>
    %44 = vector.shape_cast %43 : vector<4x8xf32> to vector<4x8x1xf32>
    %45 = vector.broadcast %44 : vector<4x8x1xf32> to vector<4x8x8xf32>
    %46 = arith.subf %39, %45 : vector<4x8x8xf32>
    %47 = math.exp %46 : vector<4x8x8xf32>
    %cst_28 = arith.constant dense<0.000000e+00> : vector<4x8xf32>
    %48 = vector.multi_reduction <add>, %47, %cst_28 [2] : vector<4x8x8xf32> to vector<4x8xf32>
    %49 = vector.shape_cast %48 : vector<4x8xf32> to vector<4x8x1xf32>
    %50 = tpu.reciprocal %49 : vector<4x8x1xf32> -> vector<4x8x1xf32>
    %51 = vector.broadcast %50 : vector<4x8x1xf32> to vector<4x8x8xf32>
    %52 = arith.mulf %47, %51 : vector<4x8x8xf32>
    %53 = vector.extract_strided_slice %18 {offsets = [0, 0, 8], sizes = [4, 8, 8], strides = [1, 1, 1]} : vector<4x8x32xf32> to vector<4x8x8xf32>
    "tpu.trace_start"() <{level = 10 : i32, message = "blm,bmd->bld"}> : () -> ()
    %cst_29 = arith.constant dense<0.000000e+00> : vector<4x8x8xf32>
    %54 = tpu.matmul %52, %53, %cst_29 {dimension_numbers = #tpu.dot_dimension_numbers<[2], [1], [1], [2], [0, 0, 0, 1, 1, 2], [0], [0]>} : vector<4x8x8xf32>, vector<4x8x8xf32>, vector<4x8x8xf32> -> vector<4x8x8xf32>
    "tpu.trace_stop"() : () -> ()
    %55 = vector.extract_strided_slice %16 {offsets = [0, 0, 16], sizes = [4, 8, 8], strides = [1, 1, 1]} : vector<4x8x32xf32> to vector<4x8x8xf32>
    %56 = vector.extract_strided_slice %17 {offsets = [0, 0, 16], sizes = [4, 8, 8], strides = [1, 1, 1]} : vector<4x8x32xf32> to vector<4x8x8xf32>
    "tpu.trace_start"() <{level = 10 : i32, message = "bld,bmd->blm"}> : () -> ()
    %cst_30 = arith.constant dense<0.000000e+00> : vector<4x8x8xf32>
    %57 = tpu.matmul %55, %56, %cst_30 {dimension_numbers = #tpu.dot_dimension_numbers<[2], [2], [1], [1], [0, 0, 0, 1, 1, 1], [0], [0]>} : vector<4x8x8xf32>, vector<4x8x8xf32>, vector<4x8x8xf32> -> vector<4x8x8xf32>
    "tpu.trace_stop"() : () -> ()
    %c2 = arith.constant 2 : index
    %c0_31 = arith.constant 0 : index
    %c0_32 = arith.constant 0 : index
    %c0_33 = arith.constant 0 : index
    %58 = vector.load %arg11[%c2, %c0_31, %c0_32, %c0_33] : memref<4x4x8x8xf32, #tpu.memory_space<vmem>>, vector<1x4x8x8xf32>
    %59 = vector.shape_cast %58 : vector<1x4x8x8xf32> to vector<4x8x8xf32>
    %60 = vector.shape_cast %57 : vector<4x8x8xf32> to vector<1x4x8x8xf32>
    tpu.vector_store %arg11[%c2, %c0_31, %c0_32, %c0_33], %60 {strides = array<i32>} : memref<4x4x8x8xf32, #tpu.memory_space<vmem>>, vector<1x4x8x8xf32>,
    %cst_34 = arith.constant dense<0xFF800000> : vector<4x8xf32>
    %61 = vector.multi_reduction <maximumf>, %57, %cst_34 [2] : vector<4x8x8xf32> to vector<4x8xf32>
    %62 = vector.shape_cast %61 : vector<4x8xf32> to vector<4x8x1xf32>
    %63 = vector.broadcast %62 : vector<4x8x1xf32> to vector<4x8x8xf32>
    %64 = arith.subf %57, %63 : vector<4x8x8xf32>
    %65 = math.exp %64 : vector<4x8x8xf32>
    %cst_35 = arith.constant dense<0.000000e+00> : vector<4x8xf32>
    %66 = vector.multi_reduction <add>, %65, %cst_35 [2] : vector<4x8x8xf32> to vector<4x8xf32>
    %67 = vector.shape_cast %66 : vector<4x8xf32> to vector<4x8x1xf32>
    %68 = tpu.reciprocal %67 : vector<4x8x1xf32> -> vector<4x8x1xf32>
    %69 = vector.broadcast %68 : vector<4x8x1xf32> to vector<4x8x8xf32>
    %70 = arith.mulf %65, %69 : vector<4x8x8xf32>
    %71 = vector.extract_strided_slice %18 {offsets = [0, 0, 16], sizes = [4, 8, 8], strides = [1, 1, 1]} : vector<4x8x32xf32> to vector<4x8x8xf32>
    "tpu.trace_start"() <{level = 10 : i32, message = "blm,bmd->bld"}> : () -> ()
    %cst_36 = arith.constant dense<0.000000e+00> : vector<4x8x8xf32>
    %72 = tpu.matmul %70, %71, %cst_36 {dimension_numbers = #tpu.dot_dimension_numbers<[2], [1], [1], [2], [0, 0, 0, 1, 1, 2], [0], [0]>} : vector<4x8x8xf32>, vector<4x8x8xf32>, vector<4x8x8xf32> -> vector<4x8x8xf32>
    "tpu.trace_stop"() : () -> ()
    %73 = vector.extract_strided_slice %16 {offsets = [0, 0, 24], sizes = [4, 8, 8], strides = [1, 1, 1]} : vector<4x8x32xf32> to vector<4x8x8xf32>
    %74 = vector.extract_strided_slice %17 {offsets = [0, 0, 24], sizes = [4, 8, 8], strides = [1, 1, 1]} : vector<4x8x32xf32> to vector<4x8x8xf32>
    "tpu.trace_start"() <{level = 10 : i32, message = "bld,bmd->blm"}> : () -> ()
    %cst_37 = arith.constant dense<0.000000e+00> : vector<4x8x8xf32>
    %75 = tpu.matmul %73, %74, %cst_37 {dimension_numbers = #tpu.dot_dimension_numbers<[2], [2], [1], [1], [0, 0, 0, 1, 1, 1], [0], [0]>} : vector<4x8x8xf32>, vector<4x8x8xf32>, vector<4x8x8xf32> -> vector<4x8x8xf32>
    "tpu.trace_stop"() : () -> ()
    %c3 = arith.constant 3 : index
    %c0_38 = arith.constant 0 : index
    %c0_39 = arith.constant 0 : index
    %c0_40 = arith.constant 0 : index
    %76 = vector.load %arg11[%c3, %c0_38, %c0_39, %c0_40] : memref<4x4x8x8xf32, #tpu.memory_space<vmem>>, vector<1x4x8x8xf32>
    %77 = vector.shape_cast %76 : vector<1x4x8x8xf32> to vector<4x8x8xf32>
    %78 = vector.shape_cast %75 : vector<4x8x8xf32> to vector<1x4x8x8xf32>
    tpu.vector_store %arg11[%c3, %c0_38, %c0_39, %c0_40], %78 {strides = array<i32>} : memref<4x4x8x8xf32, #tpu.memory_space<vmem>>, vector<1x4x8x8xf32>,
    %cst_41 = arith.constant dense<0xFF800000> : vector<4x8xf32>
    %79 = vector.multi_reduction <maximumf>, %75, %cst_41 [2] : vector<4x8x8xf32> to vector<4x8xf32>
    %80 = vector.shape_cast %79 : vector<4x8xf32> to vector<4x8x1xf32>
    %81 = vector.broadcast %80 : vector<4x8x1xf32> to vector<4x8x8xf32>
    %82 = arith.subf %75, %81 : vector<4x8x8xf32>
    %83 = math.exp %82 : vector<4x8x8xf32>
    %cst_42 = arith.constant dense<0.000000e+00> : vector<4x8xf32>
    %84 = vector.multi_reduction <add>, %83, %cst_42 [2] : vector<4x8x8xf32> to vector<4x8xf32>
    %85 = vector.shape_cast %84 : vector<4x8xf32> to vector<4x8x1xf32>
    %86 = tpu.reciprocal %85 : vector<4x8x1xf32> -> vector<4x8x1xf32>
    %87 = vector.broadcast %86 : vector<4x8x1xf32> to vector<4x8x8xf32>
    %88 = arith.mulf %83, %87 : vector<4x8x8xf32>
    %89 = vector.extract_strided_slice %18 {offsets = [0, 0, 24], sizes = [4, 8, 8], strides = [1, 1, 1]} : vector<4x8x32xf32> to vector<4x8x8xf32>
    "tpu.trace_start"() <{level = 10 : i32, message = "blm,bmd->bld"}> : () -> ()
    %cst_43 = arith.constant dense<0.000000e+00> : vector<4x8x8xf32>
    %90 = tpu.matmul %88, %89, %cst_43 {dimension_numbers = #tpu.dot_dimension_numbers<[2], [1], [1], [2], [0, 0, 0, 1, 1, 2], [0], [0]>} : vector<4x8x8xf32>, vector<4x8x8xf32>, vector<4x8x8xf32> -> vector<4x8x8xf32>
    "tpu.trace_stop"() : () -> ()
    %91 = tpu.concatenate %36, %54, %72, %90 in 2 : vector<4x8x8xf32>, vector<4x8x8xf32>, vector<4x8x8xf32>, vector<4x8x8xf32> -> vector<4x8x32xf32>
    %92 = vector.shape_cast %91 : vector<4x8x32xf32> to vector<32x32xf32>
    %c0_44 = arith.constant 0 : index
    %c0_45 = arith.constant 0 : index
    %93 = vector.load %arg8[%c0_44, %c0_45] : memref<32x32xf32, #tpu.memory_space<vmem>>, vector<32x32xf32>
    %cst_46 = arith.constant dense<0.000000e+00> : vector<32x32xf32>
    %94 = tpu.matmul %92, %93, %cst_46 {dimension_numbers = #tpu.dot_dimension_numbers<[1], [0], [0], [1], [0, 0, 1, 1], [], []>} : vector<32x32xf32>, vector<32x32xf32>, vector<32x32xf32> -> vector<32x32xf32>
    %c0_47 = arith.constant 0 : index
    %c0_48 = arith.constant 0 : index
    %95 = vector.load %arg9[%c0_47, %c0_48] : memref<1x32xf32, #tpu.memory_space<vmem>>, vector<1x32xf32>
    %96 = vector.broadcast %95 : vector<1x32xf32> to vector<32x32xf32>
    %97 = arith.addf %94, %96 : vector<32x32xf32>
    %98 = arith.addf %0, %97 : vector<32x32xf32>
    %c0_49 = arith.constant 0 : index
    %c0_50 = arith.constant 0 : index
    %99 = vector.load %arg10[%c0_49, %c0_50] : memref<32x32xf32, #tpu.memory_space<vmem>>, vector<32x32xf32>
    tpu.vector_store %arg10[%c0_49, %c0_50], %98 {strides = array<i32>} : memref<32x32xf32, #tpu.memory_space<vmem>>, vector<32x32xf32>,
    %cst_51 = arith.constant dense<0.000000e+00> : vector<32xf32>
    %100 = vector.multi_reduction <add>, %98, %cst_51 [0] : vector<32x32xf32> to vector<32xf32>
    %101 = vector.shape_cast %100 : vector<32xf32> to vector<1x32xf32>
    %c0_52 = arith.constant 0 : index
    %c0_53 = arith.constant 0 : index
    %c0_54 = arith.constant 0 : index
    %102 = vector.load %arg12[%c0_52, %c0_53, %c0_54] : memref<1x2x32xf32, #tpu.memory_space<vmem>>, vector<1x1x32xf32>
    %103 = vector.shape_cast %102 : vector<1x1x32xf32> to vector<1x32xf32>
    %104 = vector.shape_cast %101 : vector<1x32xf32> to vector<1x1x32xf32>
    tpu.vector_store %arg12[%c0_52, %c0_53, %c0_54], %104 {strides = array<i32>} : memref<1x2x32xf32, #tpu.memory_space<vmem>>, vector<1x1x32xf32>,
    %105 = arith.mulf %98, %98 : vector<32x32xf32>
    %cst_55 = arith.constant dense<0.000000e+00> : vector<32xf32>
    %106 = vector.multi_reduction <add>, %105, %cst_55 [0] : vector<32x32xf32> to vector<32xf32>
    %107 = vector.shape_cast %106 : vector<32xf32> to vector<1x32xf32>
    %c0_56 = arith.constant 0 : index
    %c1_57 = arith.constant 1 : index
    %c0_58 = arith.constant 0 : index
    %108 = vector.load %arg12[%c0_56, %c1_57, %c0_58] : memref<1x2x32xf32, #tpu.memory_space<vmem>>, vector<1x1x32xf32>
    %109 = vector.shape_cast %108 : vector<1x1x32xf32> to vector<1x32xf32>
    %110 = vector.shape_cast %107 : vector<1x32xf32> to vector<1x1x32xf32>
    tpu.vector_store %arg12[%c0_56, %c1_57, %c0_58], %110 {strides = array<i32>} : memref<1x2x32xf32, #tpu.memory_space<vmem>>, vector<1x1x32xf32>,
    return
  }
  func.func @transform_0(%arg0: i32) -> (i32, i32) {
    %c0_i32 = arith.constant 0 : i32
    %c0_i32_0 = arith.constant 0 : i32
    return %arg0, %c0_i32 : i32, i32
  }
  func.func @transform_1(%arg0: i32) -> (i32, i32) {
    %c0_i32 = arith.constant 0 : i32
    %c0_i32_0 = arith.constant 0 : i32
    %c0_i32_1 = arith.constant 0 : i32
    return %c0_i32, %c0_i32_0 : i32, i32
  }
  func.func @transform_2(%arg0: i32) -> (i32, i32) {
    %c0_i32 = arith.constant 0 : i32
    %c0_i32_0 = arith.constant 0 : i32
    %c0_i32_1 = arith.constant 0 : i32
    return %c0_i32, %c0_i32_0 : i32, i32
  }
  func.func @transform_3(%arg0: i32) -> (i32, i32) {
    %c0_i32 = arith.constant 0 : i32
    %c0_i32_0 = arith.constant 0 : i32
    %c0_i32_1 = arith.constant 0 : i32
    return %c0_i32, %c0_i32_0 : i32, i32
  }
  func.func @transform_4(%arg0: i32) -> (i32, i32) {
    %c0_i32 = arith.constant 0 : i32
    %c0_i32_0 = arith.constant 0 : i32
    %c0_i32_1 = arith.constant 0 : i32
    return %c0_i32, %c0_i32_0 : i32, i32
  }
  func.func @transform_5(%arg0: i32) -> (i32, i32) {
    %c0_i32 = arith.constant 0 : i32
    %c0_i32_0 = arith.constant 0 : i32
    %c0_i32_1 = arith.constant 0 : i32
    return %c0_i32, %c0_i32_0 : i32, i32
  }
  func.func @transform_6(%arg0: i32) -> (i32, i32) {
    %c0_i32 = arith.constant 0 : i32
    %c0_i32_0 = arith.constant 0 : i32
    %c0_i32_1 = arith.constant 0 : i32
    return %c0_i32, %c0_i32_0 : i32, i32
  }
  func.func @transform_7(%arg0: i32) -> (i32, i32) {
    %c0_i32 = arith.constant 0 : i32
    %c0_i32_0 = arith.constant 0 : i32
    %c0_i32_1 = arith.constant 0 : i32
    return %c0_i32, %c0_i32_0 : i32, i32
  }
  func.func @transform_8(%arg0: i32) -> (i32, i32) {
    %c0_i32 = arith.constant 0 : i32
    %c0_i32_0 = arith.constant 0 : i32
    %c0_i32_1 = arith.constant 0 : i32
    return %c0_i32, %c0_i32_0 : i32, i32
  }
  func.func @transform_9(%arg0: i32) -> (i32, i32) {
    %c0_i32 = arith.constant 0 : i32
    %c0_i32_0 = arith.constant 0 : i32
    return %arg0, %c0_i32 : i32, i32
  }
  func.func @transform_10(%arg0: i32) -> (i32, i32, i32, i32) {
    %c0_i32 = arith.constant 0 : i32
    %c0_i32_0 = arith.constant 0 : i32
    %c0_i32_1 = arith.constant 0 : i32
    %c0_i32_2 = arith.constant 0 : i32
    return %c0_i32, %arg0, %c0_i32_0, %c0_i32_1 : i32, i32, i32, i32
  }
  func.func @transform_11(%arg0: i32) -> (i32, i32, i32) {
    %c0_i32 = arith.constant 0 : i32
    %c0_i32_0 = arith.constant 0 : i32
    %c0_i32_1 = arith.constant 0 : i32
    return %arg0, %c0_i32, %c0_i32_0 : i32, i32, i32
  }
}

module attributes {stable_mosaic.version = 11 : i64} {
  func.func @_bn_kernel(%arg0: i32, %arg1: memref<32x32xf32, #tpu.memory_space<vmem>>, %arg2: memref<2x2x32xf32, #tpu.memory_space<vmem>>, %arg3: memref<1x32xf32, #tpu.memory_space<vmem>>, %arg4: memref<1x32xf32, #tpu.memory_space<vmem>>, %arg5: memref<32x32xf32, #tpu.memory_space<vmem>>) attributes {dimension_semantics = [#tpu.dimension_semantics<parallel>], iteration_bounds = array<i64: 2>, scalar_prefetch = 0 : i64, scratch_operands = 0 : i64, tpu.core_type = #tpu.core_type<tc>, window_params = [{transform_indices = @transform_0, window_bounds = array<i64: 32, 32>}, {pipeline_mode = #tpu.pipeline_mode<synchronous>, transform_indices = @transform_1, window_bounds = array<i64: 2, 2, 32>}, {pipeline_mode = #tpu.pipeline_mode<synchronous>, transform_indices = @transform_2, window_bounds = array<i64: 1, 32>}, {pipeline_mode = #tpu.pipeline_mode<synchronous>, transform_indices = @transform_3, window_bounds = array<i64: 1, 32>}, {transform_indices = @transform_4, window_bounds = array<i64: 32, 32>}]} {
    %c0 = arith.constant 0 : index
    %c0_0 = arith.constant 0 : index
    %0 = vector.load %arg1[%c0, %c0_0] : memref<32x32xf32, #tpu.memory_space<vmem>>, vector<32x32xf32>
    %c0_1 = arith.constant 0 : index
    %c0_2 = arith.constant 0 : index
    %c0_3 = arith.constant 0 : index
    %1 = vector.load %arg2[%c0_1, %c0_2, %c0_3] : memref<2x2x32xf32, #tpu.memory_space<vmem>>, vector<2x2x32xf32>
    %cst = arith.constant dense<0.000000e+00> : vector<2x32xf32>
    %2 = vector.multi_reduction <add>, %1, %cst [0] : vector<2x2x32xf32> to vector<2x32xf32>
    %3 = vector.extract_strided_slice %2 {offsets = [0, 0], sizes = [1, 32], strides = [1, 1]} : vector<2x32xf32> to vector<1x32xf32>
    %cst_4 = arith.constant 1.562500e-02 : f32
    %4 = vector.broadcast %cst_4 : f32 to vector<1x32xf32>
    %5 = arith.mulf %3, %4 : vector<1x32xf32>
    %6 = vector.extract_strided_slice %2 {offsets = [1, 0], sizes = [1, 32], strides = [1, 1]} : vector<2x32xf32> to vector<1x32xf32>
    %cst_5 = arith.constant 1.562500e-02 : f32
    %7 = vector.broadcast %cst_5 : f32 to vector<1x32xf32>
    %8 = arith.mulf %6, %7 : vector<1x32xf32>
    %9 = arith.mulf %5, %5 : vector<1x32xf32>
    %10 = arith.subf %8, %9 : vector<1x32xf32>
    %cst_6 = arith.constant 9.99999974E-6 : f32
    %11 = vector.broadcast %cst_6 : f32 to vector<1x32xf32>
    %12 = arith.addf %10, %11 : vector<1x32xf32>
    %13 = math.rsqrt %12 : vector<1x32xf32>
    %c0_7 = arith.constant 0 : index
    %c0_8 = arith.constant 0 : index
    %14 = vector.load %arg3[%c0_7, %c0_8] : memref<1x32xf32, #tpu.memory_space<vmem>>, vector<1x32xf32>
    %15 = arith.mulf %13, %14 : vector<1x32xf32>
    %16 = vector.broadcast %5 : vector<1x32xf32> to vector<32x32xf32>
    %17 = arith.subf %0, %16 : vector<32x32xf32>
    %18 = vector.broadcast %15 : vector<1x32xf32> to vector<32x32xf32>
    %19 = arith.mulf %17, %18 : vector<32x32xf32>
    %c0_9 = arith.constant 0 : index
    %c0_10 = arith.constant 0 : index
    %20 = vector.load %arg4[%c0_9, %c0_10] : memref<1x32xf32, #tpu.memory_space<vmem>>, vector<1x32xf32>
    %21 = vector.broadcast %20 : vector<1x32xf32> to vector<32x32xf32>
    %22 = arith.addf %19, %21 : vector<32x32xf32>
    %c0_11 = arith.constant 0 : index
    %c0_12 = arith.constant 0 : index
    %23 = vector.load %arg5[%c0_11, %c0_12] : memref<32x32xf32, #tpu.memory_space<vmem>>, vector<32x32xf32>
    tpu.vector_store %arg5[%c0_11, %c0_12], %22 {strides = array<i32>} : memref<32x32xf32, #tpu.memory_space<vmem>>, vector<32x32xf32>,
    return
  }
  func.func @transform_0(%arg0: i32) -> (i32, i32) {
    %c0_i32 = arith.constant 0 : i32
    %c0_i32_0 = arith.constant 0 : i32
    return %arg0, %c0_i32 : i32, i32
  }
  func.func @transform_1(%arg0: i32) -> (i32, i32, i32) {
    %c0_i32 = arith.constant 0 : i32
    %c0_i32_0 = arith.constant 0 : i32
    %c0_i32_1 = arith.constant 0 : i32
    %c0_i32_2 = arith.constant 0 : i32
    return %c0_i32, %c0_i32_0, %c0_i32_1 : i32, i32, i32
  }
  func.func @transform_2(%arg0: i32) -> (i32, i32) {
    %c0_i32 = arith.constant 0 : i32
    %c0_i32_0 = arith.constant 0 : i32
    %c0_i32_1 = arith.constant 0 : i32
    return %c0_i32, %c0_i32_0 : i32, i32
  }
  func.func @transform_3(%arg0: i32) -> (i32, i32) {
    %c0_i32 = arith.constant 0 : i32
    %c0_i32_0 = arith.constant 0 : i32
    %c0_i32_1 = arith.constant 0 : i32
    return %c0_i32, %c0_i32_0 : i32, i32
  }
  func.func @transform_4(%arg0: i32) -> (i32, i32) {
    %c0_i32 = arith.constant 0 : i32
    %c0_i32_0 = arith.constant 0 : i32
    return %arg0, %c0_i32 : i32, i32
  }
}

</mosaic_0001>

<llo_original>
// kernel: tsti_encoder_forward.6
$region0: #{tsti_encoder_forward.6}
  #allocation0 [shape = 'u32[]', space=smem, size = 0x4, offset = 0x4, fixed_abs, tag = 'smem constant byte address 0x4 - core index']
  #allocation1 [shape = 'u32[72,128]{1,0:T(1,128)}', space=vmem, size = 0x9000, scoped, tag = 'internal scratch']
  %s0 = inlined_call_operand.hbm [shape: f32[64,16], index: 0, kind: input, shape index: {}]
  %s1 = inlined_call_operand.vmem [shape: f32[16,32], index: 1, kind: input, shape index: {}]
  %s2 = inlined_call_operand.vmem [shape: f32[32,32], index: 2, kind: input, shape index: {}]
  %s3 = inlined_call_operand.vmem [shape: f32[64,32], index: 3, kind: output, shape index: {}]
  %s4 = sld [smem:[#allocation0]]
  $region49: #{tsti_encoder_forward.6} parent=0
    _
  %s6 = ssub.s32 1, %s4
  %s7 = scalar_select 0, %s6, %s4
  $region1: #{tsti_encoder_forward.6} parent=0
    #allocation2 [shape = 'u8[32768]{0}', space=vmem, size = 0x8000, scoped, tag = 'input window, operand 0']
    #allocation3 [shape = 's32[2]{0}', space=sflag, size = 0x8, scoped, tag = 'scoped memory for tsti_encoder_forward.6']
    %8 = vsyncpa [#allocation3], 0
    %s9 = scalar_lea.sflag [#allocation3], 1
    %10 = vsyncpa %s9, 0
    loop: start=0, step=1, limit=4
    $region2: #{tsti_encoder_forward.6} parent=1 // loop_pre_header
      _
    $region3: #{tsti_encoder_forward.6} parent=1 // loop_header
      %s12 = sphi 0, %s16
      %p13 = scmp.ge.s32.totalorder %s12, 4
      %s22 = sphi 0, %s24
      %s25 = sphi 0, %s22
      %s26 = sphi 0, %s25
      %s42 = sphi 0, %s26
      %s46 = sphi 0, %s46
      %s48 = sphi 0, %s46
      %s49 = sphi 0, %s48
      %s63 = sphi 0, %s49
      %s67 = sphi 0, %s67
      %s69 = sphi 0, %s67
      %s70 = sphi 0, %s69
      %s84 = sphi 0, %s70
      %s90 = sphi 0, %s92
      %s93 = sphi 0, %s90
      %s94 = sphi 0, %s93
      %s110 = sphi 0, %s94
    $region4: #{tsti_encoder_forward.6} parent=1 // loop_header_branch
      %15 = sbr.rel (%p13) target = $region8
    $region5: #{tsti_encoder_forward.6} parent=1 // loop_body
      %s17 = ssub.s32 %s12, 1
      %s18 = ssub.s32 %s12, 2
      %s19 = sadd.s32 %s12, 1
      %s20 = ssub.s32 %s12, %s19
      %p21 = scmp.eq.s32.totalorder %s20, 0
      %s23 = sadd.s32 %s22, 1
      %s24 = scalar_select %p21, %s22, %s23
      %p27 = pneg %p21
      %p28 = scmp.eq.s32.totalorder %s12, 1
      %p29 = por %p27, %p28
      %p30 = scmp.ne.s32.totalorder %s22, %s25
      %p31 = scmp.eq.s32.totalorder %s12, 0
      %p32 = por %p30, %p31
      %p33 = scmp.ne.s32.totalorder %s22, %s25
      %p34 = scmp.eq.s32.totalorder %s17, 1
      %p35 = por %p33, %p34
      %p36 = scmp.ne.s32.totalorder %s25, %s26
      %p37 = scmp.eq.s32.totalorder %s17, 0
      %p38 = por %p36, %p37
      %p39 = scmp.ne.s32.totalorder %s25, %s26
      %p40 = scmp.eq.s32.totalorder %s18, 1
      %p41 = por %p39, %p40
      %p43 = scmp.ne.s32.totalorder %s26, %s42
      %p44 = scmp.eq.s32.totalorder %s18, 0
      %p45 = por %p43, %p44
      %s47 = sadd.s32 %s46, 1
      %p50 = scmp.eq.s32.totalorder %s12, 1
      %p51 = scmp.ne.s32.totalorder %s46, %s48
      %p52 = scmp.eq.s32.totalorder %s12, 0
      %p53 = por %p51, %p52
      %p54 = scmp.ne.s32.totalorder %s46, %s48
      %p55 = scmp.eq.s32.totalorder %s17, 1
      %p56 = por %p54, %p55
      %p57 = scmp.ne.s32.totalorder %s48, %s49
      %p58 = scmp.eq.s32.totalorder %s17, 0
      %p59 = por %p57, %p58
      %p60 = scmp.ne.s32.totalorder %s48, %s49
      %p61 = scmp.eq.s32.totalorder %s18, 1
      %p62 = por %p60, %p61
      %p64 = scmp.ne.s32.totalorder %s49, %s63
      %p65 = scmp.eq.s32.totalorder %s18, 0
      %p66 = por %p64, %p65
      %s68 = sadd.s32 %s67, 1
      %p71 = scmp.eq.s32.totalorder %s12, 1
      %p72 = scmp.ne.s32.totalorder %s67, %s69
      %p73 = scmp.eq.s32.totalorder %s12, 0
      %p74 = por %p72, %p73
      %p75 = scmp.ne.s32.totalorder %s67, %s69
      %p76 = scmp.eq.s32.totalorder %s17, 1
      %p77 = por %p75, %p76
      %p78 = scmp.ne.s32.totalorder %s69, %s70
      %p79 = scmp.eq.s32.totalorder %s17, 0
      %p80 = por %p78, %p79
      %p81 = scmp.ne.s32.totalorder %s69, %s70
      %p82 = scmp.eq.s32.totalorder %s18, 1
      %p83 = por %p81, %p82
      %p85 = scmp.ne.s32.totalorder %s70, %s84
      %p86 = scmp.eq.s32.totalorder %s18, 0
      %p87 = por %p85, %p86
      %s88 = ssub.s32 %s12, %s19
      %p89 = scmp.eq.s32.totalorder %s88, 0
      %s91 = sadd.s32 %s90, 1
      %s92 = scalar_select %p89, %s90, %s91
      %p95 = pneg %p89
      %p96 = scmp.eq.s32.totalorder %s12, 1
      %p97 = por %p95, %p96
      %p98 = scmp.ne.s32.totalorder %s90, %s93
      %p99 = scmp.eq.s32.totalorder %s12, 0
      %p100 = por %p98, %p99
      %p101 = scmp.ne.s32.totalorder %s90, %s93
      %p102 = scmp.eq.s32.totalorder %s17, 1
      %p103 = por %p101, %p102
      %p104 = scmp.ne.s32.totalorder %s93, %s94
      %p105 = scmp.eq.s32.totalorder %s17, 0
      %p106 = por %p104, %p105
      %p107 = scmp.ne.s32.totalorder %s93, %s94
      %p108 = scmp.eq.s32.totalorder %s18, 1
      %p109 = por %p107, %p108
      %p111 = scmp.ne.s32.totalorder %s94, %s110
      %p112 = scmp.eq.s32.totalorder %s18, 0
      %p113 = por %p111, %p112
      %p114 = scmp.le.s32.totalorder 1, %s12
      %p115 = scmp.lt.s32.totalorder %s12, 3
      %p116 = pnand %p114, %p115
      %p117 = pneg %p116
      // Predicated region
      $region9: #{tsti_encoder_forward.6} parent=5 // pred_check
        _
      $region10: #{tsti_encoder_forward.6} parent=5 // pred_check_branch
        %119 = sbr.rel (%p116) target = $region12
      $region11: #{tsti_encoder_forward.6} parent=5 // pred_region
        %s120 = ssub.s32 %s12, 1
        // Predicated region
        $region13: #{tsti_encoder_forward.6} parent=11 // pred_check
          %p121 = pneg %p59
        $region14: #{tsti_encoder_forward.6} parent=11 // pred_check_branch
          %123 = sbr.rel (%p121) target = $region16
        $region15: #{tsti_encoder_forward.6} parent=11 // pred_region
          _
        $region16: #{tsti_encoder_forward.6} parent=11 // pred_fallthru
          _
        // Predicated region
        $region17: #{tsti_encoder_forward.6} parent=11 // pred_check
          %p124 = pneg %p80
        $region18: #{tsti_encoder_forward.6} parent=11 // pred_check_branch
          %126 = sbr.rel (%p124) target = $region20
        $region19: #{tsti_encoder_forward.6} parent=11 // pred_region
          _
        $region20: #{tsti_encoder_forward.6} parent=11 // pred_fallthru
          _
      $region12: #{tsti_encoder_forward.6} parent=5 // pred_fallthru
        _
      %p127 = scmp.lt.s32.totalorder %s12, 2
      // Predicated region
      $region21: #{tsti_encoder_forward.6} parent=5 // pred_check
        %p128 = pneg %p127
      $region22: #{tsti_encoder_forward.6} parent=5 // pred_check_branch
        %130 = sbr.rel (%p128) target = $region24
      $region23: #{tsti_encoder_forward.6} parent=5 // pred_region
        // Predicated region
        $region25: #{tsti_encoder_forward.6} parent=23 // pred_check
          %p131 = pneg %p32
        $region26: #{tsti_encoder_forward.6} parent=23 // pred_check_branch
          %133 = sbr.rel (%p131) target = $region28
        $region27: #{tsti_encoder_forward.6} parent=23 // pred_region
          %s134 = sand.u32 %s22, 1
          %s135 = scalar_lea.sflag [#allocation3], %s134
          %s136 = sand.u32 %s22, 1
          %s137 = smul.addr %s136, 32
          %s138 = scalar_lea.vmem [#allocation2], %s137
          %s139 = smul.u32 4, %s12
          %141 = vsyncadd %s135, 0
          %s142 = smul.addr %s139, 8
          %s143 = scalar_lea.hbm %s0, %s142
          %s144 = sshll.u32 %s143, 4
          %s145 = int_to_ptr.hbm [resolvable:$true] %s144
          %s146 = sshll.u32 %s138, 4
          %s147 = int_to_ptr.vmem [resolvable:$true] %s146
          %152 = dma.hbm_to_vmem [thread:$0]  %s145, 512, %s147, %s135, 128, 128, 8
        $region28: #{tsti_encoder_forward.6} parent=23 // pred_fallthru
          _
      $region24: #{tsti_encoder_forward.6} parent=5 // pred_fallthru
        _
      %p153 = scmp.le.s32.totalorder 1, %s12
      %p154 = scmp.lt.s32.totalorder %s12, 3
      %p155 = pnand %p153, %p154
      %p156 = pneg %p155
      // Predicated region
      $region29: #{tsti_encoder_forward.6} parent=5 // pred_check
        _
      $region30: #{tsti_encoder_forward.6} parent=5 // pred_check_branch
        %158 = sbr.rel (%p155) target = $region32
      $region31: #{tsti_encoder_forward.6} parent=5 // pred_region
        %s159 = ssub.s32 %s12, 1
        %s160 = sand.u32 %s25, 1
        %s161 = scalar_lea.sflag [#allocation3], %s160
        %s162 = sand.u32 %s25, 1
        %s163 = smul.addr %s162, 32
        %s164 = scalar_lea.vmem [#allocation2], %s163
        // Predicated region
        $region33: #{tsti_encoder_forward.6} parent=31 // pred_check
          %p165 = pneg %p38
        $region34: #{tsti_encoder_forward.6} parent=31 // pred_check_branch
          %167 = sbr.rel (%p165) target = $region36
        $region35: #{tsti_encoder_forward.6} parent=31 // pred_region
          %169 = dma.done %s161, 512
        $region36: #{tsti_encoder_forward.6} parent=31 // pred_fallthru
          _
        %s170 = sand.u32 %s25, 1
        %s171 = scalar_lea.sflag [#allocation3], %s170
        %s172 = sand.u32 %s25, 1
        %s173 = smul.addr %s172, 32
        %s174 = scalar_lea.vmem [#allocation2], %s173
        %p175 = pneg %p38
        %p176 = pneg %p35
        %p177 = pneg %p59
        %p178 = pneg %p56
        %p179 = pneg %p80
        %p180 = pneg %p77
        %p181 = pneg %p106
        %p182 = pneg %p103
        %s183 = smul.u32 4, %s17
        %p184 = scmp.lt.s32.totalorder %s183, 7
        %s185 = scalar_select %p184, %s183, 7
        %s186 = smul.addr %s185, 8
        %s187 = scalar_lea.vmem %s3, %s186
        %s188 = smul.u32 4, %s17
        %s189 = smul.u32 4, %s17
        %p190 = scmp.lt.s32.totalorder %s189, 7
        %s191 = scalar_select %p190, %s189, 7
        %s192 = smul.addr %s191, 8
        %s193 = scalar_lea.vmem %s3, %s192
        %s194 = smul.u32 4, %s17
        %v195 = vld [vmem:[%s164] sm:$0xff]
        %v196 = vld [vmem:[%s164 + $0x8] sm:$0xff]
        %v197 = vld [vmem:[%s164 + $0x10] sm:$0xff]
        %v198 = vld [vmem:[%s164 + $0x18] sm:$0xff]
        %v199 = vld [vmem:[%s1] sm:$0xff]
        %v200 = vld [vmem:[%s1 + $0x8] sm:$0xff]
        %v201 = vld [vmem:[%s2] sm:$0xff]
        %v202 = vld [vmem:[%s2 + $0x8] sm:$0xff]
        %v203 = vld [vmem:[%s2 + $0x10] sm:$0xff]
        %v204 = vld [vmem:[%s2 + $0x18] sm:$0xff]
        %vm205 = vcmask 130048
        %v207 = vsel %vm205, %v195, 0
        %v210 = vsel %vm205, %v196, 0
        %v213 = vsel %vm205, %v197, 0
        %v216 = vsel %vm205, %v198, 0
        %218 = vmatpush.msra.mxu0 0.0
        %219 = vmatpush.msra.mxu0 0.0
        %220 = vmatpush.msra.mxu0 0.0
        %221 = vmatpush.msra.mxu0 0.0
        %222 = vmatpush.msra.mxu0 0.0
        %223 = vmatpush.msra.mxu0 0.0
        %224 = vmatpush.msra.mxu0 0.0
        %225 = vmatpush.msra.mxu0 0.0
        %226 = vmatpush.msra.mxu0 0.0
        %227 = vmatpush.msra.mxu0 0.0
        %228 = vmatpush.msra.mxu0 0.0
        %229 = vmatpush.msra.mxu0 0.0
        %230 = vmatpush.msra.mxu0 0.0
        %231 = vmatpush.msra.mxu0 0.0
        %232 = vmatpush.msra.mxu0 %v200
        %233 = vmatpush.msra.mxu0 %v199
        %234 = vmatmul.f32.gmra.mxu0 %v207
        %v235 = vpop.f32.mrf.mxu0
        %v236 = vadd.f32 %v201, %v235
        %237 = vmatmul.f32.gmra.mxu0 %v210
        %v238 = vpop.f32.mrf.mxu0
        %v239 = vadd.f32 %v202, %v238
        %240 = vmatmul.f32.gmra.mxu0 %v213
        %v241 = vpop.f32.mrf.mxu0
        %v242 = vadd.f32 %v203, %v241
        %243 = vmatmul.f32.gmra.mxu0 %v216
        %v244 = vpop.f32.mrf.mxu0
        %v245 = vadd.f32 %v204, %v244
        %246 = vdwg.mxu0
        %vm247 = vcmask 261120
        %248 = vst.msk [vmem:[%s193] sm:$0xff] %vm247, %v236
        %249 = vst.msk [vmem:[%s193 + $0x8] sm:$0xff] %vm247, %v239
        %250 = vst.msk [vmem:[%s193 + $0x10] sm:$0xff] %vm247, %v242
        %251 = vst.msk [vmem:[%s193 + $0x18] sm:$0xff] %vm247, %v245
        %s252 = smul.u32 4, %s17
        %p253 = scmp.lt.s32.totalorder %s252, 7
        %s254 = scalar_select %p253, %s252, 7
        %s255 = smul.addr %s254, 8
        %s256 = scalar_lea.vmem %s3, %s255
        // Predicated region
        $region37: #{tsti_encoder_forward.6} parent=31 // pred_check
          %p257 = pneg %p103
        $region38: #{tsti_encoder_forward.6} parent=31 // pred_check_branch
          %259 = sbr.rel (%p257) target = $region40
        $region39: #{tsti_encoder_forward.6} parent=31 // pred_region
          %s260 = smul.u32 4, %s17
        $region40: #{tsti_encoder_forward.6} parent=31 // pred_fallthru
          _
      $region32: #{tsti_encoder_forward.6} parent=5 // pred_fallthru
        _
      %p261 = scmp.le.s32.totalorder 2, %s12
      // Predicated region
      $region41: #{tsti_encoder_forward.6} parent=5 // pred_check
        %p262 = pneg %p261
      $region42: #{tsti_encoder_forward.6} parent=5 // pred_check_branch
        %264 = sbr.rel (%p262) target = $region44
      $region43: #{tsti_encoder_forward.6} parent=5 // pred_region
        %s265 = ssub.s32 %s12, 2
        // Predicated region
        $region45: #{tsti_encoder_forward.6} parent=43 // pred_check
          %p266 = pneg %p109
        $region46: #{tsti_encoder_forward.6} parent=43 // pred_check_branch
          %268 = sbr.rel (%p266) target = $region48
        $region47: #{tsti_encoder_forward.6} parent=43 // pred_region
          %s269 = smul.u32 4, %s18
          %p270 = scmp.lt.s32.totalorder %s269, 7
          %s271 = scalar_select %p270, %s269, 7
          %s272 = smul.addr %s271, 8
          %s273 = scalar_lea.vmem %s3, %s272
        $region48: #{tsti_encoder_forward.6} parent=43 // pred_fallthru
          _
      $region44: #{tsti_encoder_forward.6} parent=5 // pred_fallthru
        _
    $region6: #{tsti_encoder_forward.6} parent=1 // loop_footer
      %s16 = sadd.s32 1, %s12
    $region7: #{tsti_encoder_forward.6} parent=1 // loop_footer_branch
      %11 = sbr.rel target = $region3
    $region8: #{tsti_encoder_forward.6} parent=1 // loop_exit
      _
    %274 = vsyncpa [#allocation3], 1
    %s275 = scalar_lea.sflag [#allocation3], 1
    %276 = vsyncpa %s275, 1

// kernel: tsti_encoder_forward.8
$region0: #{tsti_encoder_forward.8}
  #allocation0 [shape = 'u32[]', space=smem, size = 0x4, offset = 0x4, fixed_abs, tag = 'smem constant byte address 0x4 - core index']
  #allocation1 [shape = 'u32[72,128]{1,0:T(1,128)}', space=vmem, size = 0x9000, scoped, tag = 'internal scratch']
  %s0 = inlined_call_operand.vmem [shape: f32[64,32], index: 0, kind: input, shape index: {}]
  %s1 = inlined_call_operand.vmem [shape: f32[2,2,32], index: 1, kind: input, shape index: {}]
  %s2 = inlined_call_operand.vmem [shape: f32[1,32], index: 2, kind: input, shape index: {}]
  %s3 = inlined_call_operand.vmem [shape: f32[1,32], index: 3, kind: input, shape index: {}]
  %s4 = inlined_call_operand.vmem [shape: f32[32,64], index: 4, kind: input, shape index: {}]
  %s5 = inlined_call_operand.vmem [shape: f32[1,64], index: 5, kind: input, shape index: {}]
  %s6 = inlined_call_operand.vmem [shape: f32[64,32], index: 6, kind: input, shape index: {}]
  %s7 = inlined_call_operand.vmem [shape: f32[1,32], index: 7, kind: input, shape index: {}]
  %s8 = inlined_call_operand.vmem [shape: f32[64,32], index: 8, kind: output, shape index: {0}]
  %s9 = inlined_call_operand.vmem [shape: f32[2,2,32], index: 9, kind: output, shape index: {1}]
  %10 = xla_tuple %s8, %s9
  %s11 = sld [smem:[#allocation0]]
  $region73: #{tsti_encoder_forward.8} parent=0
    _
  %s13 = ssub.s32 1, %s11
  %s14 = scalar_select 0, %s13, %s11
  loop: start=0, step=1, limit=4
  $region2: #{tsti_encoder_forward.8} parent=0 // loop_pre_header
    _
  $region3: #{tsti_encoder_forward.8} parent=0 // loop_header
    %s16 = sphi 0, %s20
    %p17 = scmp.ge.s32.totalorder %s16, 4
    %s26 = sphi 0, %s28
    %s29 = sphi 0, %s26
    %s30 = sphi 0, %s29
    %s46 = sphi 0, %s30
    %s50 = sphi 0, %s50
    %s52 = sphi 0, %s50
    %s53 = sphi 0, %s52
    %s67 = sphi 0, %s53
    %s71 = sphi 0, %s71
    %s73 = sphi 0, %s71
    %s74 = sphi 0, %s73
    %s88 = sphi 0, %s74
    %s92 = sphi 0, %s92
    %s94 = sphi 0, %s92
    %s95 = sphi 0, %s94
    %s109 = sphi 0, %s95
    %s113 = sphi 0, %s113
    %s115 = sphi 0, %s113
    %s116 = sphi 0, %s115
    %s130 = sphi 0, %s116
    %s134 = sphi 0, %s134
    %s136 = sphi 0, %s134
    %s137 = sphi 0, %s136
    %s151 = sphi 0, %s137
    %s155 = sphi 0, %s155
    %s157 = sphi 0, %s155
    %s158 = sphi 0, %s157
    %s172 = sphi 0, %s158
    %s176 = sphi 0, %s176
    %s178 = sphi 0, %s176
    %s179 = sphi 0, %s178
    %s193 = sphi 0, %s179
    %s199 = sphi 0, %s201
    %s202 = sphi 0, %s199
    %s203 = sphi 0, %s202
    %s219 = sphi 0, %s203
    %s225 = sphi 0, %s227
    %s228 = sphi 0, %s225
    %s229 = sphi 0, %s228
    %s245 = sphi 0, %s229
  $region4: #{tsti_encoder_forward.8} parent=0 // loop_header_branch
    %19 = sbr.rel (%p17) target = $region8
  $region5: #{tsti_encoder_forward.8} parent=0 // loop_body
    %s21 = ssub.s32 %s16, 1
    %s22 = ssub.s32 %s16, 2
    %s23 = sadd.s32 %s16, 1
    %s24 = ssub.s32 %s16, %s23
    %p25 = scmp.eq.s32.totalorder %s24, 0
    %s27 = sadd.s32 %s26, 1
    %s28 = scalar_select %p25, %s26, %s27
    %p31 = pneg %p25
    %p32 = scmp.eq.s32.totalorder %s16, 1
    %p33 = por %p31, %p32
    %p34 = scmp.ne.s32.totalorder %s26, %s29
    %p35 = scmp.eq.s32.totalorder %s16, 0
    %p36 = por %p34, %p35
    %p37 = scmp.ne.s32.totalorder %s26, %s29
    %p38 = scmp.eq.s32.totalorder %s21, 1
    %p39 = por %p37, %p38
    %p40 = scmp.ne.s32.totalorder %s29, %s30
    %p41 = scmp.eq.s32.totalorder %s21, 0
    %p42 = por %p40, %p41
    %p43 = scmp.ne.s32.totalorder %s29, %s30
    %p44 = scmp.eq.s32.totalorder %s22, 1
    %p45 = por %p43, %p44
    %p47 = scmp.ne.s32.totalorder %s30, %s46
    %p48 = scmp.eq.s32.totalorder %s22, 0
    %p49 = por %p47, %p48
    %s51 = sadd.s32 %s50, 1
    %p54 = scmp.eq.s32.totalorder %s16, 1
    %p55 = scmp.ne.s32.totalorder %s50, %s52
    %p56 = scmp.eq.s32.totalorder %s16, 0
    %p57 = por %p55, %p56
    %p58 = scmp.ne.s32.totalorder %s50, %s52
    %p59 = scmp.eq.s32.totalorder %s21, 1
    %p60 = por %p58, %p59
    %p61 = scmp.ne.s32.totalorder %s52, %s53
    %p62 = scmp.eq.s32.totalorder %s21, 0
    %p63 = por %p61, %p62
    %p64 = scmp.ne.s32.totalorder %s52, %s53
    %p65 = scmp.eq.s32.totalorder %s22, 1
    %p66 = por %p64, %p65
    %p68 = scmp.ne.s32.totalorder %s53, %s67
    %p69 = scmp.eq.s32.totalorder %s22, 0
    %p70 = por %p68, %p69
    %s72 = sadd.s32 %s71, 1
    %p75 = scmp.eq.s32.totalorder %s16, 1
    %p76 = scmp.ne.s32.totalorder %s71, %s73
    %p77 = scmp.eq.s32.totalorder %s16, 0
    %p78 = por %p76, %p77
    %p79 = scmp.ne.s32.totalorder %s71, %s73
    %p80 = scmp.eq.s32.totalorder %s21, 1
    %p81 = por %p79, %p80
    %p82 = scmp.ne.s32.totalorder %s73, %s74
    %p83 = scmp.eq.s32.totalorder %s21, 0
    %p84 = por %p82, %p83
    %p85 = scmp.ne.s32.totalorder %s73, %s74
    %p86 = scmp.eq.s32.totalorder %s22, 1
    %p87 = por %p85, %p86
    %p89 = scmp.ne.s32.totalorder %s74, %s88
    %p90 = scmp.eq.s32.totalorder %s22, 0
    %p91 = por %p89, %p90
    %s93 = sadd.s32 %s92, 1
    %p96 = scmp.eq.s32.totalorder %s16, 1
    %p97 = scmp.ne.s32.totalorder %s92, %s94
    %p98 = scmp.eq.s32.totalorder %s16, 0
    %p99 = por %p97, %p98
    %p100 = scmp.ne.s32.totalorder %s92, %s94
    %p101 = scmp.eq.s32.totalorder %s21, 1
    %p102 = por %p100, %p101
    %p103 = scmp.ne.s32.totalorder %s94, %s95
    %p104 = scmp.eq.s32.totalorder %s21, 0
    %p105 = por %p103, %p104
    %p106 = scmp.ne.s32.totalorder %s94, %s95
    %p107 = scmp.eq.s32.totalorder %s22, 1
    %p108 = por %p106, %p107
    %p110 = scmp.ne.s32.totalorder %s95, %s109
    %p111 = scmp.eq.s32.totalorder %s22, 0
    %p112 = por %p110, %p111
    %s114 = sadd.s32 %s113, 1
    %p117 = scmp.eq.s32.totalorder %s16, 1
    %p118 = scmp.ne.s32.totalorder %s113, %s115
    %p119 = scmp.eq.s32.totalorder %s16, 0
    %p120 = por %p118, %p119
    %p121 = scmp.ne.s32.totalorder %s113, %s115
    %p122 = scmp.eq.s32.totalorder %s21, 1
    %p123 = por %p121, %p122
    %p124 = scmp.ne.s32.totalorder %s115, %s116
    %p125 = scmp.eq.s32.totalorder %s21, 0
    %p126 = por %p124, %p125
    %p127 = scmp.ne.s32.totalorder %s115, %s116
    %p128 = scmp.eq.s32.totalorder %s22, 1
    %p129 = por %p127, %p128
    %p131 = scmp.ne.s32.totalorder %s116, %s130
    %p132 = scmp.eq.s32.totalorder %s22, 0
    %p133 = por %p131, %p132
    %s135 = sadd.s32 %s134, 1
    %p138 = scmp.eq.s32.totalorder %s16, 1
    %p139 = scmp.ne.s32.totalorder %s134, %s136
    %p140 = scmp.eq.s32.totalorder %s16, 0
    %p141 = por %p139, %p140
    %p142 = scmp.ne.s32.totalorder %s134, %s136
    %p143 = scmp.eq.s32.totalorder %s21, 1
    %p144 = por %p142, %p143
    %p145 = scmp.ne.s32.totalorder %s136, %s137
    %p146 = scmp.eq.s32.totalorder %s21, 0
    %p147 = por %p145, %p146
    %p148 = scmp.ne.s32.totalorder %s136, %s137
    %p149 = scmp.eq.s32.totalorder %s22, 1
    %p150 = por %p148, %p149
    %p152 = scmp.ne.s32.totalorder %s137, %s151
    %p153 = scmp.eq.s32.totalorder %s22, 0
    %p154 = por %p152, %p153
    %s156 = sadd.s32 %s155, 1
    %p159 = scmp.eq.s32.totalorder %s16, 1
    %p160 = scmp.ne.s32.totalorder %s155, %s157
    %p161 = scmp.eq.s32.totalorder %s16, 0
    %p162 = por %p160, %p161
    %p163 = scmp.ne.s32.totalorder %s155, %s157
    %p164 = scmp.eq.s32.totalorder %s21, 1
    %p165 = por %p163, %p164
    %p166 = scmp.ne.s32.totalorder %s157, %s158
    %p167 = scmp.eq.s32.totalorder %s21, 0
    %p168 = por %p166, %p167
    %p169 = scmp.ne.s32.totalorder %s157, %s158
    %p170 = scmp.eq.s32.totalorder %s22, 1
    %p171 = por %p169, %p170
    %p173 = scmp.ne.s32.totalorder %s158, %s172
    %p174 = scmp.eq.s32.totalorder %s22, 0
    %p175 = por %p173, %p174
    %s177 = sadd.s32 %s176, 1
    %p180 = scmp.eq.s32.totalorder %s16, 1
    %p181 = scmp.ne.s32.totalorder %s176, %s178
    %p182 = scmp.eq.s32.totalorder %s16, 0
    %p183 = por %p181, %p182
    %p184 = scmp.ne.s32.totalorder %s176, %s178
    %p185 = scmp.eq.s32.totalorder %s21, 1
    %p186 = por %p184, %p185
    %p187 = scmp.ne.s32.totalorder %s178, %s179
    %p188 = scmp.eq.s32.totalorder %s21, 0
    %p189 = por %p187, %p188
    %p190 = scmp.ne.s32.totalorder %s178, %s179
    %p191 = scmp.eq.s32.totalorder %s22, 1
    %p192 = por %p190, %p191
    %p194 = scmp.ne.s32.totalorder %s179, %s193
    %p195 = scmp.eq.s32.totalorder %s22, 0
    %p196 = por %p194, %p195
    %s197 = ssub.s32 %s16, %s23
    %p198 = scmp.eq.s32.totalorder %s197, 0
    %s200 = sadd.s32 %s199, 1
    %s201 = scalar_select %p198, %s199, %s200
    %p204 = pneg %p198
    %p205 = scmp.eq.s32.totalorder %s16, 1
    %p206 = por %p204, %p205
    %p207 = scmp.ne.s32.totalorder %s199, %s202
    %p208 = scmp.eq.s32.totalorder %s16, 0
    %p209 = por %p207, %p208
    %p210 = scmp.ne.s32.totalorder %s199, %s202
    %p211 = scmp.eq.s32.totalorder %s21, 1
    %p212 = por %p210, %p211
    %p213 = scmp.ne.s32.totalorder %s202, %s203
    %p214 = scmp.eq.s32.totalorder %s21, 0
    %p215 = por %p213, %p214
    %p216 = scmp.ne.s32.totalorder %s202, %s203
    %p217 = scmp.eq.s32.totalorder %s22, 1
    %p218 = por %p216, %p217
    %p220 = scmp.ne.s32.totalorder %s203, %s219
    %p221 = scmp.eq.s32.totalorder %s22, 0
    %p222 = por %p220, %p221
    %s223 = ssub.s32 %s16, %s23
    %p224 = scmp.eq.s32.totalorder %s223, 0
    %s226 = sadd.s32 %s225, 1
    %s227 = scalar_select %p224, %s225, %s226
    %p230 = pneg %p224
    %p231 = scmp.eq.s32.totalorder %s16, 1
    %p232 = por %p230, %p231
    %p233 = scmp.ne.s32.totalorder %s225, %s228
    %p234 = scmp.eq.s32.totalorder %s16, 0
    %p235 = por %p233, %p234
    %p236 = scmp.ne.s32.totalorder %s225, %s228
    %p237 = scmp.eq.s32.totalorder %s21, 1
    %p238 = por %p236, %p237
    %p239 = scmp.ne.s32.totalorder %s228, %s229
    %p240 = scmp.eq.s32.totalorder %s21, 0
    %p241 = por %p239, %p240
    %p242 = scmp.ne.s32.totalorder %s228, %s229
    %p243 = scmp.eq.s32.totalorder %s22, 1
    %p244 = por %p242, %p243
    %p246 = scmp.ne.s32.totalorder %s229, %s245
    %p247 = scmp.eq.s32.totalorder %s22, 0
    %p248 = por %p246, %p247
    %p249 = scmp.le.s32.totalorder 1, %s16
    %p250 = scmp.lt.s32.totalorder %s16, 3
    %p251 = pnand %p249, %p250
    %p252 = pneg %p251
    // Predicated region
    $region9: #{tsti_encoder_forward.8} parent=5 // pred_check
      _
    $region10: #{tsti_encoder_forward.8} parent=5 // pred_check_branch
      %254 = sbr.rel (%p251) target = $region12
    $region11: #{tsti_encoder_forward.8} parent=5 // pred_region
      %s255 = ssub.s32 %s16, 1
      // Predicated region
      $region13: #{tsti_encoder_forward.8} parent=11 // pred_check
        %p256 = pneg %p63
      $region14: #{tsti_encoder_forward.8} parent=11 // pred_check_branch
        %258 = sbr.rel (%p256) target = $region16
      $region15: #{tsti_encoder_forward.8} parent=11 // pred_region
        _
      $region16: #{tsti_encoder_forward.8} parent=11 // pred_fallthru
        _
      // Predicated region
      $region17: #{tsti_encoder_forward.8} parent=11 // pred_check
        %p259 = pneg %p84
      $region18: #{tsti_encoder_forward.8} parent=11 // pred_check_branch
        %261 = sbr.rel (%p259) target = $region20
      $region19: #{tsti_encoder_forward.8} parent=11 // pred_region
        _
      $region20: #{tsti_encoder_forward.8} parent=11 // pred_fallthru
        _
      // Predicated region
      $region21: #{tsti_encoder_forward.8} parent=11 // pred_check
        %p262 = pneg %p105
      $region22: #{tsti_encoder_forward.8} parent=11 // pred_check_branch
        %264 = sbr.rel (%p262) target = $region24
      $region23: #{tsti_encoder_forward.8} parent=11 // pred_region
        _
      $region24: #{tsti_encoder_forward.8} parent=11 // pred_fallthru
        _
      // Predicated region
      $region25: #{tsti_encoder_forward.8} parent=11 // pred_check
        %p265 = pneg %p126
      $region26: #{tsti_encoder_forward.8} parent=11 // pred_check_branch
        %267 = sbr.rel (%p265) target = $region28
      $region27: #{tsti_encoder_forward.8} parent=11 // pred_region
        _
      $region28: #{tsti_encoder_forward.8} parent=11 // pred_fallthru
        _
      // Predicated region
      $region29: #{tsti_encoder_forward.8} parent=11 // pred_check
        %p268 = pneg %p147
      $region30: #{tsti_encoder_forward.8} parent=11 // pred_check_branch
        %270 = sbr.rel (%p268) target = $region32
      $region31: #{tsti_encoder_forward.8} parent=11 // pred_region
        _
      $region32: #{tsti_encoder_forward.8} parent=11 // pred_fallthru
        _
      // Predicated region
      $region33: #{tsti_encoder_forward.8} parent=11 // pred_check
        %p271 = pneg %p168
      $region34: #{tsti_encoder_forward.8} parent=11 // pred_check_branch
        %273 = sbr.rel (%p271) target = $region36
      $region35: #{tsti_encoder_forward.8} parent=11 // pred_region
        _
      $region36: #{tsti_encoder_forward.8} parent=11 // pred_fallthru
        _
      // Predicated region
      $region37: #{tsti_encoder_forward.8} parent=11 // pred_check
        %p274 = pneg %p189
      $region38: #{tsti_encoder_forward.8} parent=11 // pred_check_branch
        %276 = sbr.rel (%p274) target = $region40
      $region39: #{tsti_encoder_forward.8} parent=11 // pred_region
        _
      $region40: #{tsti_encoder_forward.8} parent=11 // pred_fallthru
        _
    $region12: #{tsti_encoder_forward.8} parent=5 // pred_fallthru
      _
    %p277 = scmp.lt.s32.totalorder %s16, 2
    // Predicated region
    $region41: #{tsti_encoder_forward.8} parent=5 // pred_check
      %p278 = pneg %p277
    $region42: #{tsti_encoder_forward.8} parent=5 // pred_check_branch
      %280 = sbr.rel (%p278) target = $region44
    $region43: #{tsti_encoder_forward.8} parent=5 // pred_region
      // Predicated region
      $region45: #{tsti_encoder_forward.8} parent=43 // pred_check
        %p281 = pneg %p36
      $region46: #{tsti_encoder_forward.8} parent=43 // pred_check_branch
        %283 = sbr.rel (%p281) target = $region48
      $region47: #{tsti_encoder_forward.8} parent=43 // pred_region
        %s284 = smul.u32 4, %s16
        %p285 = scmp.lt.s32.totalorder %s284, 7
        %s286 = scalar_select %p285, %s284, 7
        %s287 = smul.addr %s286, 8
        %s288 = scalar_lea.vmem %s0, %s287
        %s289 = smul.u32 4, %s16
      $region48: #{tsti_encoder_forward.8} parent=43 // pred_fallthru
        _
    $region44: #{tsti_encoder_forward.8} parent=5 // pred_fallthru
      _
    %p290 = scmp.le.s32.totalorder 1, %s16
    %p291 = scmp.lt.s32.totalorder %s16, 3
    %p292 = pnand %p290, %p291
    %p293 = pneg %p292
    // Predicated region
    $region49: #{tsti_encoder_forward.8} parent=5 // pred_check
      _
    $region50: #{tsti_encoder_forward.8} parent=5 // pred_check_branch
      %295 = sbr.rel (%p292) target = $region52
    $region51: #{tsti_encoder_forward.8} parent=5 // pred_region
      %s296 = ssub.s32 %s16, 1
      %s297 = smul.u32 4, %s21
      %p298 = scmp.lt.s32.totalorder %s297, 7
      %s299 = scalar_select %p298, %s297, 7
      %s300 = smul.addr %s299, 8
      %s301 = scalar_lea.vmem %s0, %s300
      %p302 = pneg %p42
      %p303 = pneg %p39
      %p304 = pneg %p63
      %p305 = pneg %p60
      %p306 = pneg %p84
      %p307 = pneg %p81
      %p308 = pneg %p105
      %p309 = pneg %p102
      %p310 = pneg %p126
      %p311 = pneg %p123
      %p312 = pneg %p147
      %p313 = pneg %p144
      %p314 = pneg %p168
      %p315 = pneg %p165
      %p316 = pneg %p189
      %p317 = pneg %p186
      %p318 = pneg %p215
      %p319 = pneg %p212
      %s320 = smul.u32 4, %s21
      %p321 = scmp.lt.s32.totalorder %s320, 7
      %s322 = scalar_select %p321, %s320, 7
      %s323 = smul.addr %s322, 8
      %s324 = scalar_lea.vmem %s8, %s323
      %p325 = pneg %p241
      %p326 = pneg %p238
      %p327 = scmp.lt.s32.totalorder %s21, 1
      %s328 = scalar_select %p327, %s21, 1
      %s329 = smul.addr %s328, 2
      %s330 = scalar_lea.vmem %s9, %s329
      %s331 = smul.u32 4, %s21
      %p332 = scmp.lt.s32.totalorder %s331, 7
      %s333 = scalar_select %p332, %s331, 7
      %s334 = smul.addr %s333, 8
      %s335 = scalar_lea.vmem %s0, %s334
      %s336 = smul.u32 4, %s21
      %s337 = smul.u32 4, %s21
      %p338 = scmp.lt.s32.totalorder %s337, 7
      %s339 = scalar_select %p338, %s337, 7
      %s340 = smul.addr %s339, 8
      %s341 = scalar_lea.vmem %s8, %s340
      %s342 = smul.u32 4, %s21
      %p343 = scmp.lt.s32.totalorder %s21, 1
      %s344 = scalar_select %p343, %s21, 1
      %s345 = smul.addr %s344, 2
      %s346 = scalar_lea.vmem %s9, %s345
      %v347 = vld [vmem:[%s335] sm:$0xff]
      %v348 = vld [vmem:[%s335 + $0x8] sm:$0xff]
      %v349 = vld [vmem:[%s335 + $0x10] sm:$0xff]
      %v350 = vld [vmem:[%s335 + $0x18] sm:$0xff]
      %v351 = vld [vmem:[%s1] sm:$0x3]
      %v352 = vld [vmem:[%s1 + $0x2] sm:$0x3]
      %vm353 = vcmask 254976
      %v354 = vsel %vm353, %v351, 0.0
      %v355 = vsel %vm353, %v352, 0.0
      %v356 = vadd.f32 %v354, %v355
      %v357 = vmul.f32 %v356, 0.015625
      %v358 = vmul.f32 %v357, %v357
      %v360 = vrot.slane %v358, 7
      %v362 = vsub.f32 %v357, %v360
      %v363 = vadd.f32 %v362, 1e-05
      %v364 = vrsqrt.pop %v363
      %v365 = vmul.f32 %v364, %v363
      %v366 = vmul.f32 %v365, %v364
      %v367 = vmul.f32 0.5, %v366
      %v368 = vsub.f32 1.5, %v367
      %v369 = vmul.f32 %v364, %v368
      %vm370 = vweird.f32 %v363
      %vm371 = vweird.f32 %v364
      %vm372 = vmor %vm370, %vm371
      %v373 = vsel %vm372, %v364, %v369
      %v374 = vld [vmem:[%s2] sm:$0x1]
      %v376 = vperm.slane %v374, 0
      %v378 = vmul.f32 %v373, %v376
      %v379 = vperm.slane %v357, 0
      %v380 = vsub.f32 %v347, %v379
      %v381 = vsub.f32 %v348, %v379
      %v382 = vsub.f32 %v349, %v379
      %v383 = vsub.f32 %v350, %v379
      %v384 = vperm.slane %v378, 1
      %v385 = vmul.f32 %v380, %v384
      %v386 = vmul.f32 %v381, %v384
      %v387 = vmul.f32 %v382, %v384
      %v388 = vmul.f32 %v383, %v384
      %v389 = vld [vmem:[%s3] sm:$0x1]
      %v391 = vperm.slane %v389, 0
      %v393 = vadd.f32 %v385, %v391
      %v394 = vadd.f32 %v386, %v391
      %v395 = vadd.f32 %v387, %v391
      %v396 = vadd.f32 %v388, %v391
      %v397 = vld [vmem:[%s4] sm:$0xff]
      %v398 = vld [vmem:[%s4 + $0x8] sm:$0xff]
      %v399 = vld [vmem:[%s4 + $0x10] sm:$0xff]
      %v400 = vld [vmem:[%s4 + $0x18] sm:$0xff]
      %v401 = vld [vmem:[%s5] sm:$0x1]
      %v403 = vperm.slane %v401, 0
      %vm405 = vcmask 261120
      %v407 = vsel %vm405, %v393, 0
      %v410 = vsel %vm405, %v394, 0
      %v413 = vsel %vm405, %v395, 0
      %v416 = vsel %vm405, %v396, 0
      %418 = vmatpush.msra.mxu0 0.0
      %419 = vmatpush.msra.mxu0 0.0
      %420 = vmatpush.msra.mxu0 0.0
      %421 = vmatpush.msra.mxu0 0.0
      %422 = vmatpush.msra.mxu0 0.0
      %423 = vmatpush.msra.mxu0 0.0
      %424 = vmatpush.msra.mxu0 0.0
      %425 = vmatpush.msra.mxu0 0.0
      %426 = vmatpush.msra.mxu0 0.0
      %427 = vmatpush.msra.mxu0 0.0
      %428 = vmatpush.msra.mxu0 0.0
      %429 = vmatpush.msra.mxu0 0.0
      %430 = vmatpush.msra.mxu0 %v400
      %431 = vmatpush.msra.mxu0 %v399
      %432 = vmatpush.msra.mxu0 %v398
      %433 = vmatpush.msra.mxu0 %v397
      %434 = vmatmul.f32.gmra.mxu0 %v407
      %v435 = vpop.f32.mrf.mxu0
      %v436 = vadd.f32 %v403, %v435
      %437 = vmatmul.f32.gmra.mxu0 %v410
      %v438 = vpop.f32.mrf.mxu0
      %v439 = vadd.f32 %v403, %v438
      %440 = vmatmul.f32.gmra.mxu0 %v413
      %v441 = vpop.f32.mrf.mxu0
      %v442 = vadd.f32 %v403, %v441
      %443 = vmatmul.f32.gmra.mxu0 %v416
      %v444 = vpop.f32.mrf.mxu0
      %v445 = vadd.f32 %v403, %v444
      %446 = vdwg.mxu0
      %v447 = vmul.f32 %v436, 0.5
      %v448 = vmul.f32 %v439, 0.5
      %v449 = vmul.f32 %v442, 0.5
      %v450 = vmul.f32 %v445, 0.5
      %v451 = vmul.f32 %v436, 0.70710677
      %v452 = vmul.f32 %v439, 0.70710677
      %v453 = vmul.f32 %v442, 0.70710677
      %v454 = vmul.f32 %v445, 0.70710677
      %v455 = vmul.f32 %v451, %v451
      %v456 = vmin.f32 16.0, %v455
      %v457 = vmul.f32 %v456, 2.1237322e-06
      %v458 = vadd.f32 %v457, 0.00028619796
      %v459 = vmul.f32 %v456, %v458
      %v460 = vadd.f32 %v459, 0.0036580483
      %v461 = vmul.f32 %v456, %v460
      %v462 = vadd.f32 %v461, 0.05243302
      %v463 = vmul.f32 %v456, %v462
      %v464 = vadd.f32 %v463, 0.18741608
      %v465 = vmul.f32 %v456, %v464
      %v466 = vadd.f32 %v465, 1.1283791
      %v467 = vmul.f32 %v451, %v466
      %v468 = vmul.f32 %v456, 3.8918573e-05
      %v469 = vadd.f32 %v468, 0.001143296
      %v470 = vmul.f32 %v456, %v469
      %v471 = vadd.f32 %v470, 0.014752088
      %v472 = vmul.f32 %v456, %v471
      %v473 = vadd.f32 %v472, 0.112945676
      %v474 = vmul.f32 %v456, %v473
      %v475 = vadd.f32 %v474, 0.4994258
      %v476 = vmul.f32 %v456, %v475
      %v477 = vadd.f32 %v476, 1.0
      %v478 = vrcp.pop %v477
      %v479 = vmul.f32 %v477, %v478
      %v480 = vsub.f32 1.0, %v479
      %v481 = vmul.f32 %v478, %v480
      %v482 = vadd.f32 %v478, %v481
      %vm483 = vweird.f32 %v477
      %vm484 = vweird.f32 %v478
      %vm485 = vmor %vm483, %vm484
      %v486 = vsel %vm485, %v478, %v482
      %v487 = vand.u32 2147483647, %v477
      %vm488 = vcmp.eq.f32.partialorder %v487, 8.507059e+37
      %v489 = vand.u32 %v477, 2147483648
      %v490 = vor.u32 1.1754944e-38, %v489
      %v491 = vsel %vm488, %v490, %v486
      %v492 = vmul.f32 %v467, %v491
      %v493 = vmin.f32 %v492, 1.0
      %v494 = vmax.f32 %v493, -1.0
      %v495 = vmul.f32 %v452, %v452
      %v496 = vmin.f32 16.0, %v495
      %v497 = vmul.f32 %v496, 2.1237322e-06
      %v498 = vadd.f32 %v497, 0.00028619796
      %v499 = vmul.f32 %v496, %v498
      %v500 = vadd.f32 %v499, 0.0036580483
      %v501 = vmul.f32 %v496, %v500
      %v502 = vadd.f32 %v501, 0.05243302
      %v503 = vmul.f32 %v496, %v502
      %v504 = vadd.f32 %v503, 0.18741608
      %v505 = vmul.f32 %v496, %v504
      %v506 = vadd.f32 %v505, 1.1283791
      %v507 = vmul.f32 %v452, %v506
      %v508 = vmul.f32 %v496, 3.8918573e-05
      %v509 = vadd.f32 %v508, 0.001143296
      %v510 = vmul.f32 %v496, %v509
      %v511 = vadd.f32 %v510, 0.014752088
      %v512 = vmul.f32 %v496, %v511
      %v513 = vadd.f32 %v512, 0.112945676
      %v514 = vmul.f32 %v496, %v513
      %v515 = vadd.f32 %v514, 0.4994258
      %v516 = vmul.f32 %v496, %v515
      %v517 = vadd.f32 %v516, 1.0
      %v518 = vrcp.pop %v517
      %v519 = vmul.f32 %v517, %v518
      %v520 = vsub.f32 1.0, %v519
      %v521 = vmul.f32 %v518, %v520
      %v522 = vadd.f32 %v518, %v521
      %vm523 = vweird.f32 %v517
      %vm524 = vweird.f32 %v518
      %vm525 = vmor %vm523, %vm524
      %v526 = vsel %vm525, %v518, %v522
      %v527 = vand.u32 2147483647, %v517
      %vm528 = vcmp.eq.f32.partialorder %v527, 8.507059e+37
      %v529 = vand.u32 %v517, 2147483648
      %v530 = vor.u32 1.1754944e-38, %v529
      %v531 = vsel %vm528, %v530, %v526
      %v532 = vmul.f32 %v507, %v531
      %v533 = vmin.f32 %v532, 1.0
      %v534 = vmax.f32 %v533, -1.0
      %v535 = vmul.f32 %v453, %v453
      %v536 = vmin.f32 16.0, %v535
      %v537 = vmul.f32 %v536, 2.1237322e-06
      %v538 = vadd.f32 %v537, 0.00028619796
      %v539 = vmul.f32 %v536, %v538
      %v540 = vadd.f32 %v539, 0.0036580483
      %v541 = vmul.f32 %v536, %v540
      %v542 = vadd.f32 %v541, 0.05243302
      %v543 = vmul.f32 %v536, %v542
      %v544 = vadd.f32 %v543, 0.18741608
      %v545 = vmul.f32 %v536, %v544
      %v546 = vadd.f32 %v545, 1.1283791
      %v547 = vmul.f32 %v453, %v546
      %v548 = vmul.f32 %v536, 3.8918573e-05
      %v549 = vadd.f32 %v548, 0.001143296
      %v550 = vmul.f32 %v536, %v549
      %v551 = vadd.f32 %v550, 0.014752088
      %v552 = vmul.f32 %v536, %v551
      %v553 = vadd.f32 %v552, 0.112945676
      %v554 = vmul.f32 %v536, %v553
      %v555 = vadd.f32 %v554, 0.4994258
      %v556 = vmul.f32 %v536, %v555
      %v557 = vadd.f32 %v556, 1.0
      %v558 = vrcp.pop %v557
      %v559 = vmul.f32 %v557, %v558
      %v560 = vsub.f32 1.0, %v559
      %v561 = vmul.f32 %v558, %v560
      %v562 = vadd.f32 %v558, %v561
      %vm563 = vweird.f32 %v557
      %vm564 = vweird.f32 %v558
      %vm565 = vmor %vm563, %vm564
      %v566 = vsel %vm565, %v558, %v562
      %v567 = vand.u32 2147483647, %v557
      %vm568 = vcmp.eq.f32.partialorder %v567, 8.507059e+37
      %v569 = vand.u32 %v557, 2147483648
      %v570 = vor.u32 1.1754944e-38, %v569
      %v571 = vsel %vm568, %v570, %v566
      %v572 = vmul.f32 %v547, %v571
      %v573 = vmin.f32 %v572, 1.0
      %v574 = vmax.f32 %v573, -1.0
      %v575 = vmul.f32 %v454, %v454
      %v576 = vmin.f32 16.0, %v575
      %v577 = vmul.f32 %v576, 2.1237322e-06
      %v578 = vadd.f32 %v577, 0.00028619796
      %v579 = vmul.f32 %v576, %v578
      %v580 = vadd.f32 %v579, 0.0036580483
      %v581 = vmul.f32 %v576, %v580
      %v582 = vadd.f32 %v581, 0.05243302
      %v583 = vmul.f32 %v576, %v582
      %v584 = vadd.f32 %v583, 0.18741608
      %v585 = vmul.f32 %v576, %v584
      %v586 = vadd.f32 %v585, 1.1283791
      %v587 = vmul.f32 %v454, %v586
      %v588 = vmul.f32 %v576, 3.8918573e-05
      %v589 = vadd.f32 %v588, 0.001143296
      %v590 = vmul.f32 %v576, %v589
      %v591 = vadd.f32 %v590, 0.014752088
      %v592 = vmul.f32 %v576, %v591
      %v593 = vadd.f32 %v592, 0.112945676
      %v594 = vmul.f32 %v576, %v593
      %v595 = vadd.f32 %v594, 0.4994258
      %v596 = vmul.f32 %v576, %v595
      %v597 = vadd.f32 %v596, 1.0
      %v598 = vrcp.pop %v597
      %v599 = vmul.f32 %v597, %v598
      %v600 = vsub.f32 1.0, %v599
      %v601 = vmul.f32 %v598, %v600
      %v602 = vadd.f32 %v598, %v601
      %vm603 = vweird.f32 %v597
      %vm604 = vweird.f32 %v598
      %vm605 = vmor %vm603, %vm604
      %v606 = vsel %vm605, %v598, %v602
      %v607 = vand.u32 2147483647, %v597
      %vm608 = vcmp.eq.f32.partialorder %v607, 8.507059e+37
      %v609 = vand.u32 %v597, 2147483648
      %v610 = vor.u32 1.1754944e-38, %v609
      %v611 = vsel %vm608, %v610, %v606
      %v612 = vmul.f32 %v587, %v611
      %v613 = vmin.f32 %v612, 1.0
      %v614 = vmax.f32 %v613, -1.0
      %v615 = vadd.f32 %v494, 1.0
      %v616 = vadd.f32 %v534, 1.0
      %v617 = vadd.f32 %v574, 1.0
      %v618 = vadd.f32 %v614, 1.0
      %v619 = vmul.f32 %v447, %v615
      %v620 = vmul.f32 %v448, %v616
      %v621 = vmul.f32 %v449, %v617
      %v622 = vmul.f32 %v450, %v618
      %v623 = vld [vmem:[%s6] sm:$0xff]
      %v624 = vld [vmem:[%s6 + $0x8] sm:$0xff]
      %v625 = vld [vmem:[%s6 + $0x10] sm:$0xff]
      %v626 = vld [vmem:[%s6 + $0x18] sm:$0xff]
      %v627 = vld [vmem:[%s6 + $0x20] sm:$0xff]
      %v628 = vld [vmem:[%s6 + $0x28] sm:$0xff]
      %v629 = vld [vmem:[%s6 + $0x30] sm:$0xff]
      %v630 = vld [vmem:[%s6 + $0x38] sm:$0xff]
      %v631 = vld [vmem:[%s7] sm:$0x1]
      %v633 = vperm.slane %v631, 0
      %vm635 = vcmask 523264
      %v637 = vsel %vm635, %v619, 0
      %v640 = vsel %vm635, %v620, 0
      %v643 = vsel %vm635, %v621, 0
      %v646 = vsel %vm635, %v622, 0
      %648 = vmatpush.msra.mxu0 0.0
      %649 = vmatpush.msra.mxu0 0.0
      %650 = vmatpush.msra.mxu0 0.0
      %651 = vmatpush.msra.mxu0 0.0
      %652 = vmatpush.msra.mxu0 0.0
      %653 = vmatpush.msra.mxu0 0.0
      %654 = vmatpush.msra.mxu0 0.0
      %655 = vmatpush.msra.mxu0 0.0
      %656 = vmatpush.msra.mxu0 %v630
      %657 = vmatpush.msra.mxu0 %v629
      %658 = vmatpush.msra.mxu0 %v628
      %659 = vmatpush.msra.mxu0 %v627
      %660 = vmatpush.msra.mxu0 %v626
      %661 = vmatpush.msra.mxu0 %v625
      %662 = vmatpush.msra.mxu0 %v624
      %663 = vmatpush.msra.mxu0 %v623
      %664 = vmatmul.f32.gmra.mxu0 %v637
      %v665 = vpop.f32.mrf.mxu0
      %v666 = vadd.f32 %v633, %v665
      %667 = vmatmul.f32.gmra.mxu0 %v640
      %v668 = vpop.f32.mrf.mxu0
      %v669 = vadd.f32 %v633, %v668
      %670 = vmatmul.f32.gmra.mxu0 %v643
      %v671 = vpop.f32.mrf.mxu0
      %v672 = vadd.f32 %v633, %v671
      %673 = vmatmul.f32.gmra.mxu0 %v646
      %v674 = vpop.f32.mrf.mxu0
      %v675 = vadd.f32 %v633, %v674
      %676 = vdwg.mxu0
      %v677 = vadd.f32 %v393, %v666
      %v678 = vadd.f32 %v394, %v669
      %v679 = vadd.f32 %v395, %v672
      %v680 = vadd.f32 %v396, %v675
      %681 = vst.msk [vmem:[%s341] sm:$0xff] %vm405, %v677
      %682 = vst.msk [vmem:[%s341 + $0x8] sm:$0xff] %vm405, %v678
      %683 = vst.msk [vmem:[%s341 + $0x10] sm:$0xff] %vm405, %v679
      %684 = vst.msk [vmem:[%s341 + $0x18] sm:$0xff] %vm405, %v680
      %v685 = vsel %vm405, %v677, 0.0
      %v686 = vsel %vm405, %v678, 0.0
      %v687 = vadd.f32 %v685, %v686
      %v688 = vsel %vm405, %v679, 0.0
      %v689 = vadd.f32 %v687, %v688
      %v690 = vsel %vm405, %v680, 0.0
      %v691 = vadd.f32 %v689, %v690
      %v692 = vrot.slane %v691, 4
      %v693 = vadd.f32 %v691, %v692
      %v694 = vrot.slane %v693, 2
      %v695 = vadd.f32 %v693, %v694
      %v696 = vrot.slane %v695, 1
      %v697 = vadd.f32 %v695, %v696
      %vm698 = vcmask 253952
      %699 = vst.msk [vmem:[%s346] sm:$0x1] %vm698, %v697
      %v700 = vmul.f32 %v677, %v677
      %v701 = vmul.f32 %v678, %v678
      %v702 = vmul.f32 %v679, %v679
      %v703 = vmul.f32 %v680, %v680
      %v704 = vsel %vm405, %v700, 0.0
      %v705 = vsel %vm405, %v701, 0.0
      %v706 = vadd.f32 %v704, %v705
      %v707 = vsel %vm405, %v702, 0.0
      %v708 = vadd.f32 %v706, %v707
      %v709 = vsel %vm405, %v703, 0.0
      %v710 = vadd.f32 %v708, %v709
      %v711 = vrot.slane %v710, 4
      %v712 = vadd.f32 %v710, %v711
      %v713 = vrot.slane %v712, 2
      %v714 = vadd.f32 %v712, %v713
      %v715 = vrot.slane %v714, 1
      %v716 = vadd.f32 %v714, %v715
      %717 = vst.msk [vmem:[%s346 + $0x1] sm:$0x1] %vm698, %v716
      %s718 = smul.u32 4, %s21
      %p719 = scmp.lt.s32.totalorder %s718, 7
      %s720 = scalar_select %p719, %s718, 7
      %s721 = smul.addr %s720, 8
      %s722 = scalar_lea.vmem %s8, %s721
      %p723 = scmp.lt.s32.totalorder %s21, 1
      %s724 = scalar_select %p723, %s21, 1
      %s725 = smul.addr %s724, 2
      %s726 = scalar_lea.vmem %s9, %s725
      // Predicated region
      $region53: #{tsti_encoder_forward.8} parent=51 // pred_check
        %p727 = pneg %p212
      $region54: #{tsti_encoder_forward.8} parent=51 // pred_check_branch
        %729 = sbr.rel (%p727) target = $region56
      $region55: #{tsti_encoder_forward.8} parent=51 // pred_region
        %s730 = smul.u32 4, %s21
      $region56: #{tsti_encoder_forward.8} parent=51 // pred_fallthru
        _
      // Predicated region
      $region57: #{tsti_encoder_forward.8} parent=51 // pred_check
        %p731 = pneg %p238
      $region58: #{tsti_encoder_forward.8} parent=51 // pred_check_branch
        %733 = sbr.rel (%p731) target = $region60
      $region59: #{tsti_encoder_forward.8} parent=51 // pred_region
        _
      $region60: #{tsti_encoder_forward.8} parent=51 // pred_fallthru
        _
    $region52: #{tsti_encoder_forward.8} parent=5 // pred_fallthru
      _
    %p734 = scmp.le.s32.totalorder 2, %s16
    // Predicated region
    $region61: #{tsti_encoder_forward.8} parent=5 // pred_check
      %p735 = pneg %p734
    $region62: #{tsti_encoder_forward.8} parent=5 // pred_check_branch
      %737 = sbr.rel (%p735) target = $region64
    $region63: #{tsti_encoder_forward.8} parent=5 // pred_region
      %s738 = ssub.s32 %s16, 2
      // Predicated region
      $region65: #{tsti_encoder_forward.8} parent=63 // pred_check
        %p739 = pneg %p218
      $region66: #{tsti_encoder_forward.8} parent=63 // pred_check_branch
        %741 = sbr.rel (%p739) target = $region68
      $region67: #{tsti_encoder_forward.8} parent=63 // pred_region
        %s742 = smul.u32 4, %s22
        %p743 = scmp.lt.s32.totalorder %s742, 7
        %s744 = scalar_select %p743, %s742, 7
        %s745 = smul.addr %s744, 8
        %s746 = scalar_lea.vmem %s8, %s745
      $region68: #{tsti_encoder_forward.8} parent=63 // pred_fallthru
        _
      // Predicated region
      $region69: #{tsti_encoder_forward.8} parent=63 // pred_check
        %p747 = pneg %p244
      $region70: #{tsti_encoder_forward.8} parent=63 // pred_check_branch
        %749 = sbr.rel (%p747) target = $region72
      $region71: #{tsti_encoder_forward.8} parent=63 // pred_region
        %p750 = scmp.lt.s32.totalorder %s22, 1
        %s751 = scalar_select %p750, %s22, 1
        %s752 = smul.addr %s751, 2
        %s753 = scalar_lea.vmem %s9, %s752
      $region72: #{tsti_encoder_forward.8} parent=63 // pred_fallthru
        _
    $region64: #{tsti_encoder_forward.8} parent=5 // pred_fallthru
      _
  $region6: #{tsti_encoder_forward.8} parent=0 // loop_footer
    %s20 = sadd.s32 1, %s16
  $region7: #{tsti_encoder_forward.8} parent=0 // loop_footer_branch
    %15 = sbr.rel target = $region3
  $region8: #{tsti_encoder_forward.8} parent=0 // loop_exit
    _

// kernel: tsti_encoder_forward.11
$region0: #{tsti_encoder_forward.11}
  #allocation0 [shape = 'u32[]', space=smem, size = 0x4, offset = 0x4, fixed_abs, tag = 'smem constant byte address 0x4 - core index']
  #allocation1 [shape = 'u32[72,128]{1,0:T(1,128)}', space=vmem, size = 0x9000, scoped, tag = 'internal scratch']
  %s0 = inlined_call_operand.vmem [shape: f32[64,32], index: 0, kind: input, shape index: {}]
  %s1 = inlined_call_operand.vmem [shape: f32[2,2,32], index: 1, kind: input, shape index: {}]
  %s2 = inlined_call_operand.vmem [shape: f32[1,32], index: 2, kind: input, shape index: {}]
  %s3 = inlined_call_operand.vmem [shape: f32[1,32], index: 3, kind: input, shape index: {}]
  %s4 = inlined_call_operand.hbm [shape: f32[64,32], index: 4, kind: output, shape index: {}]
  %s5 = sld [smem:[#allocation0]]
  $region49: #{tsti_encoder_forward.11} parent=0
    _
  %s7 = ssub.s32 1, %s5
  %s8 = scalar_select 0, %s7, %s5
  $region1: #{tsti_encoder_forward.11} parent=0
    #allocation2 [shape = 'u8[32768]{0}', space=vmem, size = 0x8000, scoped, tag = 'output window, operand 0']
    #allocation3 [shape = 's32[2]{0}', space=sflag, size = 0x8, scoped, tag = 'scoped memory for tsti_encoder_forward.11']
    %9 = vsyncpa [#allocation3], 0
    %s10 = scalar_lea.sflag [#allocation3], 1
    %11 = vsyncpa %s10, 0
    loop: start=0, step=1, limit=4
    $region2: #{tsti_encoder_forward.11} parent=1 // loop_pre_header
      _
    $region3: #{tsti_encoder_forward.11} parent=1 // loop_header
      %s13 = sphi 0, %s17
      %p14 = scmp.ge.s32.totalorder %s13, 4
      %s23 = sphi 0, %s25
      %s26 = sphi 0, %s23
      %s27 = sphi 0, %s26
      %s43 = sphi 0, %s27
      %s47 = sphi 0, %s47
      %s49 = sphi 0, %s47
      %s50 = sphi 0, %s49
      %s64 = sphi 0, %s50
      %s68 = sphi 0, %s68
      %s70 = sphi 0, %s68
      %s71 = sphi 0, %s70
      %s85 = sphi 0, %s71
      %s89 = sphi 0, %s89
      %s91 = sphi 0, %s89
      %s92 = sphi 0, %s91
      %s106 = sphi 0, %s92
      %s112 = sphi 0, %s114
      %s115 = sphi 0, %s112
      %s116 = sphi 0, %s115
      %s132 = sphi 0, %s116
    $region4: #{tsti_encoder_forward.11} parent=1 // loop_header_branch
      %16 = sbr.rel (%p14) target = $region8
    $region5: #{tsti_encoder_forward.11} parent=1 // loop_body
      %s18 = ssub.s32 %s13, 1
      %s19 = ssub.s32 %s13, 2
      %s20 = sadd.s32 %s13, 1
      %s21 = ssub.s32 %s13, %s20
      %p22 = scmp.eq.s32.totalorder %s21, 0
      %s24 = sadd.s32 %s23, 1
      %s25 = scalar_select %p22, %s23, %s24
      %p28 = pneg %p22
      %p29 = scmp.eq.s32.totalorder %s13, 1
      %p30 = por %p28, %p29
      %p31 = scmp.ne.s32.totalorder %s23, %s26
      %p32 = scmp.eq.s32.totalorder %s13, 0
      %p33 = por %p31, %p32
      %p34 = scmp.ne.s32.totalorder %s23, %s26
      %p35 = scmp.eq.s32.totalorder %s18, 1
      %p36 = por %p34, %p35
      %p37 = scmp.ne.s32.totalorder %s26, %s27
      %p38 = scmp.eq.s32.totalorder %s18, 0
      %p39 = por %p37, %p38
      %p40 = scmp.ne.s32.totalorder %s26, %s27
      %p41 = scmp.eq.s32.totalorder %s19, 1
      %p42 = por %p40, %p41
      %p44 = scmp.ne.s32.totalorder %s27, %s43
      %p45 = scmp.eq.s32.totalorder %s19, 0
      %p46 = por %p44, %p45
      %s48 = sadd.s32 %s47, 1
      %p51 = scmp.eq.s32.totalorder %s13, 1
      %p52 = scmp.ne.s32.totalorder %s47, %s49
      %p53 = scmp.eq.s32.totalorder %s13, 0
      %p54 = por %p52, %p53
      %p55 = scmp.ne.s32.totalorder %s47, %s49
      %p56 = scmp.eq.s32.totalorder %s18, 1
      %p57 = por %p55, %p56
      %p58 = scmp.ne.s32.totalorder %s49, %s50
      %p59 = scmp.eq.s32.totalorder %s18, 0
      %p60 = por %p58, %p59
      %p61 = scmp.ne.s32.totalorder %s49, %s50
      %p62 = scmp.eq.s32.totalorder %s19, 1
      %p63 = por %p61, %p62
      %p65 = scmp.ne.s32.totalorder %s50, %s64
      %p66 = scmp.eq.s32.totalorder %s19, 0
      %p67 = por %p65, %p66
      %s69 = sadd.s32 %s68, 1
      %p72 = scmp.eq.s32.totalorder %s13, 1
      %p73 = scmp.ne.s32.totalorder %s68, %s70
      %p74 = scmp.eq.s32.totalorder %s13, 0
      %p75 = por %p73, %p74
      %p76 = scmp.ne.s32.totalorder %s68, %s70
      %p77 = scmp.eq.s32.totalorder %s18, 1
      %p78 = por %p76, %p77
      %p79 = scmp.ne.s32.totalorder %s70, %s71
      %p80 = scmp.eq.s32.totalorder %s18, 0
      %p81 = por %p79, %p80
      %p82 = scmp.ne.s32.totalorder %s70, %s71
      %p83 = scmp.eq.s32.totalorder %s19, 1
      %p84 = por %p82, %p83
      %p86 = scmp.ne.s32.totalorder %s71, %s85
      %p87 = scmp.eq.s32.totalorder %s19, 0
      %p88 = por %p86, %p87
      %s90 = sadd.s32 %s89, 1
      %p93 = scmp.eq.s32.totalorder %s13, 1
      %p94 = scmp.ne.s32.totalorder %s89, %s91
      %p95 = scmp.eq.s32.totalorder %s13, 0
      %p96 = por %p94, %p95
      %p97 = scmp.ne.s32.totalorder %s89, %s91
      %p98 = scmp.eq.s32.totalorder %s18, 1
      %p99 = por %p97, %p98
      %p100 = scmp.ne.s32.totalorder %s91, %s92
      %p101 = scmp.eq.s32.totalorder %s18, 0
      %p102 = por %p100, %p101
      %p103 = scmp.ne.s32.totalorder %s91, %s92
      %p104 = scmp.eq.s32.totalorder %s19, 1
      %p105 = por %p103, %p104
      %p107 = scmp.ne.s32.totalorder %s92, %s106
      %p108 = scmp.eq.s32.totalorder %s19, 0
      %p109 = por %p107, %p108
      %s110 = ssub.s32 %s13, %s20
      %p111 = scmp.eq.s32.totalorder %s110, 0
      %s113 = sadd.s32 %s112, 1
      %s114 = scalar_select %p111, %s112, %s113
      %p117 = pneg %p111
      %p118 = scmp.eq.s32.totalorder %s13, 1
      %p119 = por %p117, %p118
      %p120 = scmp.ne.s32.totalorder %s112, %s115
      %p121 = scmp.eq.s32.totalorder %s13, 0
      %p122 = por %p120, %p121
      %p123 = scmp.ne.s32.totalorder %s112, %s115
      %p124 = scmp.eq.s32.totalorder %s18, 1
      %p125 = por %p123, %p124
      %p126 = scmp.ne.s32.totalorder %s115, %s116
      %p127 = scmp.eq.s32.totalorder %s18, 0
      %p128 = por %p126, %p127
      %p129 = scmp.ne.s32.totalorder %s115, %s116
      %p130 = scmp.eq.s32.totalorder %s19, 1
      %p131 = por %p129, %p130
      %p133 = scmp.ne.s32.totalorder %s116, %s132
      %p134 = scmp.eq.s32.totalorder %s19, 0
      %p135 = por %p133, %p134
      %p136 = scmp.le.s32.totalorder 1, %s13
      %p137 = scmp.lt.s32.totalorder %s13, 3
      %p138 = pnand %p136, %p137
      %p139 = pneg %p138
      // Predicated region
      $region9: #{tsti_encoder_forward.11} parent=5 // pred_check
        _
      $region10: #{tsti_encoder_forward.11} parent=5 // pred_check_branch
        %141 = sbr.rel (%p138) target = $region12
      $region11: #{tsti_encoder_forward.11} parent=5 // pred_region
        %s142 = ssub.s32 %s13, 1
        // Predicated region
        $region13: #{tsti_encoder_forward.11} parent=11 // pred_check
          %p143 = pneg %p60
        $region14: #{tsti_encoder_forward.11} parent=11 // pred_check_branch
          %145 = sbr.rel (%p143) target = $region16
        $region15: #{tsti_encoder_forward.11} parent=11 // pred_region
          _
        $region16: #{tsti_encoder_forward.11} parent=11 // pred_fallthru
          _
        // Predicated region
        $region17: #{tsti_encoder_forward.11} parent=11 // pred_check
          %p146 = pneg %p81
        $region18: #{tsti_encoder_forward.11} parent=11 // pred_check_branch
          %148 = sbr.rel (%p146) target = $region20
        $region19: #{tsti_encoder_forward.11} parent=11 // pred_region
          _
        $region20: #{tsti_encoder_forward.11} parent=11 // pred_fallthru
          _
        // Predicated region
        $region21: #{tsti_encoder_forward.11} parent=11 // pred_check
          %p149 = pneg %p102
        $region22: #{tsti_encoder_forward.11} parent=11 // pred_check_branch
          %151 = sbr.rel (%p149) target = $region24
        $region23: #{tsti_encoder_forward.11} parent=11 // pred_region
          _
        $region24: #{tsti_encoder_forward.11} parent=11 // pred_fallthru
          _
      $region12: #{tsti_encoder_forward.11} parent=5 // pred_fallthru
        _
      %p152 = scmp.lt.s32.totalorder %s13, 2
      // Predicated region
      $region25: #{tsti_encoder_forward.11} parent=5 // pred_check
        %p153 = pneg %p152
      $region26: #{tsti_encoder_forward.11} parent=5 // pred_check_branch
        %155 = sbr.rel (%p153) target = $region28
      $region27: #{tsti_encoder_forward.11} parent=5 // pred_region
        // Predicated region
        $region29: #{tsti_encoder_forward.11} parent=27 // pred_check
          %p156 = pneg %p33
        $region30: #{tsti_encoder_forward.11} parent=27 // pred_check_branch
          %158 = sbr.rel (%p156) target = $region32
        $region31: #{tsti_encoder_forward.11} parent=27 // pred_region
          %s159 = smul.u32 4, %s13
          %p160 = scmp.lt.s32.totalorder %s159, 7
          %s161 = scalar_select %p160, %s159, 7
          %s162 = smul.addr %s161, 8
          %s163 = scalar_lea.vmem %s0, %s162
          %s164 = smul.u32 4, %s13
        $region32: #{tsti_encoder_forward.11} parent=27 // pred_fallthru
          _
      $region28: #{tsti_encoder_forward.11} parent=5 // pred_fallthru
        _
      %p165 = scmp.le.s32.totalorder 1, %s13
      %p166 = scmp.lt.s32.totalorder %s13, 3
      %p167 = pnand %p165, %p166
      %p168 = pneg %p167
      // Predicated region
      $region33: #{tsti_encoder_forward.11} parent=5 // pred_check
        _
      $region34: #{tsti_encoder_forward.11} parent=5 // pred_check_branch
        %170 = sbr.rel (%p167) target = $region36
      $region35: #{tsti_encoder_forward.11} parent=5 // pred_region
        %s171 = ssub.s32 %s13, 1
        %s172 = smul.u32 4, %s18
        %p173 = scmp.lt.s32.totalorder %s172, 7
        %s174 = scalar_select %p173, %s172, 7
        %s175 = smul.addr %s174, 8
        %s176 = scalar_lea.vmem %s0, %s175
        %p177 = pneg %p39
        %p178 = pneg %p36
        %p179 = pneg %p60
        %p180 = pneg %p57
        %p181 = pneg %p81
        %p182 = pneg %p78
        %p183 = pneg %p102
        %p184 = pneg %p99
        %p185 = pneg %p128
        %p186 = pneg %p125
        %s187 = sand.u32 %s115, 1
        %s188 = scalar_lea.sflag [#allocation3], %s187
        %s189 = sand.u32 %s115, 1
        %s190 = smul.addr %s189, 32
        %s191 = scalar_lea.vmem [#allocation2], %s190
        %s192 = smul.u32 4, %s18
        %p193 = scmp.lt.s32.totalorder %s192, 7
        %s194 = scalar_select %p193, %s192, 7
        %s195 = smul.addr %s194, 8
        %s196 = scalar_lea.vmem %s0, %s195
        %s197 = smul.u32 4, %s18
        %s198 = smul.u32 4, %s18
        %v199 = vld [vmem:[%s196] sm:$0xff]
        %v200 = vld [vmem:[%s196 + $0x8] sm:$0xff]
        %v201 = vld [vmem:[%s196 + $0x10] sm:$0xff]
        %v202 = vld [vmem:[%s196 + $0x18] sm:$0xff]
        %v203 = vld [vmem:[%s1] sm:$0x3]
        %v204 = vld [vmem:[%s1 + $0x2] sm:$0x3]
        %vm205 = vcmask 254976
        %v206 = vsel %vm205, %v203, 0.0
        %v207 = vsel %vm205, %v204, 0.0
        %v208 = vadd.f32 %v206, %v207
        %v209 = vmul.f32 %v208, 0.015625
        %v210 = vmul.f32 %v209, %v209
        %v212 = vrot.slane %v210, 7
        %v214 = vsub.f32 %v209, %v212
        %v215 = vadd.f32 %v214, 1e-05
        %v216 = vrsqrt.pop %v215
        %v217 = vmul.f32 %v216, %v215
        %v218 = vmul.f32 %v217, %v216
        %v219 = vmul.f32 0.5, %v218
        %v220 = vsub.f32 1.5, %v219
        %v221 = vmul.f32 %v216, %v220
        %vm222 = vweird.f32 %v215
        %vm223 = vweird.f32 %v216
        %vm224 = vmor %vm222, %vm223
        %v225 = vsel %vm224, %v216, %v221
        %v226 = vld [vmem:[%s2] sm:$0x1]
        %v228 = vperm.slane %v226, 0
        %v230 = vmul.f32 %v225, %v228
        %v231 = vperm.slane %v209, 0
        %v232 = vsub.f32 %v199, %v231
        %v233 = vsub.f32 %v200, %v231
        %v234 = vsub.f32 %v201, %v231
        %v235 = vsub.f32 %v202, %v231
        %v236 = vperm.slane %v230, 1
        %v237 = vmul.f32 %v232, %v236
        %v238 = vmul.f32 %v233, %v236
        %v239 = vmul.f32 %v234, %v236
        %v240 = vmul.f32 %v235, %v236
        %v241 = vld [vmem:[%s3] sm:$0x1]
        %v243 = vperm.slane %v241, 0
        %v245 = vadd.f32 %v237, %v243
        %v246 = vadd.f32 %v238, %v243
        %v247 = vadd.f32 %v239, %v243
        %v248 = vadd.f32 %v240, %v243
        %vm249 = vcmask 261120
        %250 = vst.msk [vmem:[%s191] sm:$0xff] %vm249, %v245
        %251 = vst.msk [vmem:[%s191 + $0x8] sm:$0xff] %vm249, %v246
        %252 = vst.msk [vmem:[%s191 + $0x10] sm:$0xff] %vm249, %v247
        %253 = vst.msk [vmem:[%s191 + $0x18] sm:$0xff] %vm249, %v248
        %s254 = sand.u32 %s115, 1
        %s255 = scalar_lea.sflag [#allocation3], %s254
        %s256 = sand.u32 %s115, 1
        %s257 = smul.addr %s256, 32
        %s258 = scalar_lea.vmem [#allocation2], %s257
        // Predicated region
        $region37: #{tsti_encoder_forward.11} parent=35 // pred_check
          %p259 = pneg %p125
        $region38: #{tsti_encoder_forward.11} parent=35 // pred_check_branch
          %261 = sbr.rel (%p259) target = $region40
        $region39: #{tsti_encoder_forward.11} parent=35 // pred_region
          %s262 = smul.u32 4, %s18
          %264 = vsyncadd %s255, 0
          %s265 = smul.addr %s262, 8
          %s266 = scalar_lea.hbm %s4, %s265
          %s267 = sshll.u32 %s258, 4
          %s268 = int_to_ptr.vmem [resolvable:$true] %s267
          %s269 = sshll.u32 %s266, 4
          %s270 = int_to_ptr.hbm [resolvable:$true] %s269
          %275 = dma.vmem_to_hbm [thread:$0]  %s268, 512, %s270, %s255, 128, 128, 8
        $region40: #{tsti_encoder_forward.11} parent=35 // pred_fallthru
          _
      $region36: #{tsti_encoder_forward.11} parent=5 // pred_fallthru
        _
      %p276 = scmp.le.s32.totalorder 2, %s13
      // Predicated region
      $region41: #{tsti_encoder_forward.11} parent=5 // pred_check
        %p277 = pneg %p276
      $region42: #{tsti_encoder_forward.11} parent=5 // pred_check_branch
        %279 = sbr.rel (%p277) target = $region44
      $region43: #{tsti_encoder_forward.11} parent=5 // pred_region
        %s280 = ssub.s32 %s13, 2
        // Predicated region
        $region45: #{tsti_encoder_forward.11} parent=43 // pred_check
          %p281 = pneg %p131
        $region46: #{tsti_encoder_forward.11} parent=43 // pred_check_branch
          %283 = sbr.rel (%p281) target = $region48
        $region47: #{tsti_encoder_forward.11} parent=43 // pred_region
          %s284 = sand.u32 %s116, 1
          %s285 = scalar_lea.sflag [#allocation3], %s284
          %s286 = sand.u32 %s116, 1
          %s287 = smul.addr %s286, 32
          %s288 = scalar_lea.vmem [#allocation2], %s287
          %290 = dma.done %s285, 512
        $region48: #{tsti_encoder_forward.11} parent=43 // pred_fallthru
          _
      $region44: #{tsti_encoder_forward.11} parent=5 // pred_fallthru
        _
    $region6: #{tsti_encoder_forward.11} parent=1 // loop_footer
      %s17 = sadd.s32 1, %s13
    $region7: #{tsti_encoder_forward.11} parent=1 // loop_footer_branch
      %12 = sbr.rel target = $region3
    $region8: #{tsti_encoder_forward.11} parent=1 // loop_exit
      _
    %291 = vsyncpa [#allocation3], 1
    %s292 = scalar_lea.sflag [#allocation3], 1
    %293 = vsyncpa %s292, 1

// kernel: tsti_encoder_forward.9
$region0: #{tsti_encoder_forward.9}
  #allocation0 [shape = 'u32[]', space=smem, size = 0x4, offset = 0x4, fixed_abs, tag = 'smem constant byte address 0x4 - core index']
  #allocation1 [shape = 'u32[72,128]{1,0:T(1,128)}', space=vmem, size = 0x9000, scoped, tag = 'internal scratch']
  #allocation9 [shape = 's32[]', space=sflag, size = 0x4, offset = 0, fixed_abs, tag = 'sflag constant byte address 0x0 - dummy sync flag']
  %s0 = inlined_call_operand.vmem [shape: f32[64,32], index: 0, kind: input, shape index: {}]
  %s1 = inlined_call_operand.vmem [shape: f32[4,8,8,8], index: 1, kind: input, shape index: {}]
  %s2 = inlined_call_operand.vmem [shape: f32[2,2,32], index: 2, kind: input, shape index: {}]
  %s3 = inlined_call_operand.vmem [shape: f32[1,32], index: 3, kind: input, shape index: {}]
  %s4 = inlined_call_operand.vmem [shape: f32[1,32], index: 4, kind: input, shape index: {}]
  %s5 = inlined_call_operand.vmem [shape: f32[32,32], index: 5, kind: input, shape index: {}]
  %s6 = inlined_call_operand.vmem [shape: f32[1,32], index: 6, kind: input, shape index: {}]
  %s7 = inlined_call_operand.vmem [shape: f32[32,32], index: 7, kind: input, shape index: {}]
  %s8 = inlined_call_operand.vmem [shape: f32[1,32], index: 8, kind: input, shape index: {}]
  %s9 = inlined_call_operand.vmem [shape: f32[32,32], index: 9, kind: input, shape index: {}]
  %s10 = inlined_call_operand.vmem [shape: f32[1,32], index: 10, kind: input, shape index: {}]
  %s11 = inlined_call_operand.hbm [shape: f32[32,32], index: 11, kind: input, shape index: {}]
  %s12 = inlined_call_operand.hbm [shape: f32[1,32], index: 12, kind: input, shape index: {}]
  %s13 = inlined_call_operand.vmem [shape: f32[64,32], index: 13, kind: output, shape index: {0}]
  %s14 = inlined_call_operand.hbm [shape: f32[4,8,8,8], index: 14, kind: output, shape index: {1}]
  %s15 = inlined_call_operand.vmem [shape: f32[2,2,32], index: 15, kind: output, shape index: {2}]
  %16 = xla_tuple %s13, %s14, %s15
  %s17 = sld [smem:[#allocation0]]
  $region147: #{tsti_encoder_forward.9} parent=0
    _
  %s19 = ssub.s32 1, %s17
  %s20 = scalar_select 0, %s19, %s17
  $region1: #{tsti_encoder_forward.9} parent=0
    #allocation2 [shape = 'u8[131072]{0}', space=vmem, size = 0x20000, scoped, tag = 'input window, operand 1']
    #allocation3 [shape = 'u8[16384]{0}', space=vmem, size = 0x4000, scoped, tag = 'input window, operand 11, single buffered']
    #allocation4 [shape = 's32[2]{0}', space=sflag, size = 0x8, scoped, tag = 'scoped memory for tsti_encoder_forward.9']
    #allocation5 [shape = 's32[2]{0}', space=sflag, size = 0x8, scoped, tag = 'scoped memory for tsti_encoder_forward.9']
    #allocation6 [shape = 'u8[512]{0}', space=vmem, size = 0x400, scoped, tag = 'input window, operand 12, single buffered']
    #allocation7 [shape = 's32[1]{0}', space=sflag, size = 0x4, scoped, tag = 'scoped memory for tsti_encoder_forward.9']
    #allocation8 [shape = 'u8[131072]{0}', space=vmem, size = 0x20000, scoped, tag = 'output window, operand 1']
    %21 = vsyncpa [#allocation4], 0
    %22 = vsyncpa [#allocation7], 0
    %23 = vsyncpa [#allocation5], 0
    %s24 = scalar_lea.sflag [#allocation5], 1
    %25 = vsyncpa %s24, 0
    loop: start=0, step=1, limit=4
    $region2: #{tsti_encoder_forward.9} parent=1 // loop_pre_header
      _
    $region3: #{tsti_encoder_forward.9} parent=1 // loop_header
      %s27 = sphi 0, %s31
      %p28 = scmp.ge.s32.totalorder %s27, 4
      %s37 = sphi 0, %s39
      %s40 = sphi 0, %s37
      %s41 = sphi 0, %s40
      %s57 = sphi 0, %s41
      %s63 = sphi 0, %s65
      %s66 = sphi 0, %s63
      %s67 = sphi 0, %s66
      %s83 = sphi 0, %s67
      %s87 = sphi 0, %s87
      %s89 = sphi 0, %s87
      %s90 = sphi 0, %s89
      %s104 = sphi 0, %s90
      %s108 = sphi 0, %s108
      %s110 = sphi 0, %s108
      %s111 = sphi 0, %s110
      %s125 = sphi 0, %s111
      %s129 = sphi 0, %s129
      %s131 = sphi 0, %s129
      %s132 = sphi 0, %s131
      %s146 = sphi 0, %s132
      %s150 = sphi 0, %s150
      %s152 = sphi 0, %s150
      %s153 = sphi 0, %s152
      %s167 = sphi 0, %s153
      %s171 = sphi 0, %s171
      %s173 = sphi 0, %s171
      %s174 = sphi 0, %s173
      %s188 = sphi 0, %s174
      %s192 = sphi 0, %s192
      %s194 = sphi 0, %s192
      %s195 = sphi 0, %s194
      %s209 = sphi 0, %s195
      %s213 = sphi 0, %s213
      %s215 = sphi 0, %s213
      %s216 = sphi 0, %s215
      %s230 = sphi 0, %s216
      %s234 = sphi 0, %s234
      %s236 = sphi 0, %s234
      %s237 = sphi 0, %s236
      %s251 = sphi 0, %s237
      %s255 = sphi 0, %s255
      %s257 = sphi 0, %s255
      %s258 = sphi 0, %s257
      %s272 = sphi 0, %s258
      %s276 = sphi 0, %s276
      %s278 = sphi 0, %s276
      %s279 = sphi 0, %s278
      %s293 = sphi 0, %s279
      %s297 = sphi 0, %s297
      %s299 = sphi 0, %s297
      %s300 = sphi 0, %s299
      %s314 = sphi 0, %s300
      %s320 = sphi 0, %s322
      %s323 = sphi 0, %s320
      %s324 = sphi 0, %s323
      %s340 = sphi 0, %s324
      %s346 = sphi 0, %s348
      %s349 = sphi 0, %s346
      %s350 = sphi 0, %s349
      %s366 = sphi 0, %s350
      %s372 = sphi 0, %s374
      %s375 = sphi 0, %s372
      %s376 = sphi 0, %s375
      %s392 = sphi 0, %s376
    $region4: #{tsti_encoder_forward.9} parent=1 // loop_header_branch
      %30 = sbr.rel (%p28) target = $region8
    $region5: #{tsti_encoder_forward.9} parent=1 // loop_body
      %s32 = ssub.s32 %s27, 1
      %s33 = ssub.s32 %s27, 2
      %s34 = sadd.s32 %s27, 1
      %s35 = ssub.s32 %s27, %s34
      %p36 = scmp.eq.s32.totalorder %s35, 0
      %s38 = sadd.s32 %s37, 1
      %s39 = scalar_select %p36, %s37, %s38
      %p42 = pneg %p36
      %p43 = scmp.eq.s32.totalorder %s27, 1
      %p44 = por %p42, %p43
      %p45 = scmp.ne.s32.totalorder %s37, %s40
      %p46 = scmp.eq.s32.totalorder %s27, 0
      %p47 = por %p45, %p46
      %p48 = scmp.ne.s32.totalorder %s37, %s40
      %p49 = scmp.eq.s32.totalorder %s32, 1
      %p50 = por %p48, %p49
      %p51 = scmp.ne.s32.totalorder %s40, %s41
      %p52 = scmp.eq.s32.totalorder %s32, 0
      %p53 = por %p51, %p52
      %p54 = scmp.ne.s32.totalorder %s40, %s41
      %p55 = scmp.eq.s32.totalorder %s33, 1
      %p56 = por %p54, %p55
      %p58 = scmp.ne.s32.totalorder %s41, %s57
      %p59 = scmp.eq.s32.totalorder %s33, 0
      %p60 = por %p58, %p59
      %s61 = ssub.s32 %s27, %s34
      %p62 = scmp.eq.s32.totalorder %s61, 0
      %s64 = sadd.s32 %s63, 1
      %s65 = scalar_select %p62, %s63, %s64
      %p68 = pneg %p62
      %p69 = scmp.eq.s32.totalorder %s27, 1
      %p70 = por %p68, %p69
      %p71 = scmp.ne.s32.totalorder %s63, %s66
      %p72 = scmp.eq.s32.totalorder %s27, 0
      %p73 = por %p71, %p72
      %p74 = scmp.ne.s32.totalorder %s63, %s66
      %p75 = scmp.eq.s32.totalorder %s32, 1
      %p76 = por %p74, %p75
      %p77 = scmp.ne.s32.totalorder %s66, %s67
      %p78 = scmp.eq.s32.totalorder %s32, 0
      %p79 = por %p77, %p78
      %p80 = scmp.ne.s32.totalorder %s66, %s67
      %p81 = scmp.eq.s32.totalorder %s33, 1
      %p82 = por %p80, %p81
      %p84 = scmp.ne.s32.totalorder %s67, %s83
      %p85 = scmp.eq.s32.totalorder %s33, 0
      %p86 = por %p84, %p85
      %s88 = sadd.s32 %s87, 1
      %p91 = scmp.eq.s32.totalorder %s27, 1
      %p92 = scmp.ne.s32.totalorder %s87, %s89
      %p93 = scmp.eq.s32.totalorder %s27, 0
      %p94 = por %p92, %p93
      %p95 = scmp.ne.s32.totalorder %s87, %s89
      %p96 = scmp.eq.s32.totalorder %s32, 1
      %p97 = por %p95, %p96
      %p98 = scmp.ne.s32.totalorder %s89, %s90
      %p99 = scmp.eq.s32.totalorder %s32, 0
      %p100 = por %p98, %p99
      %p101 = scmp.ne.s32.totalorder %s89, %s90
      %p102 = scmp.eq.s32.totalorder %s33, 1
      %p103 = por %p101, %p102
      %p105 = scmp.ne.s32.totalorder %s90, %s104
      %p106 = scmp.eq.s32.totalorder %s33, 0
      %p107 = por %p105, %p106
      %s109 = sadd.s32 %s108, 1
      %p112 = scmp.eq.s32.totalorder %s27, 1
      %p113 = scmp.ne.s32.totalorder %s108, %s110
      %p114 = scmp.eq.s32.totalorder %s27, 0
      %p115 = por %p113, %p114
      %p116 = scmp.ne.s32.totalorder %s108, %s110
      %p117 = scmp.eq.s32.totalorder %s32, 1
      %p118 = por %p116, %p117
      %p119 = scmp.ne.s32.totalorder %s110, %s111
      %p120 = scmp.eq.s32.totalorder %s32, 0
      %p121 = por %p119, %p120
      %p122 = scmp.ne.s32.totalorder %s110, %s111
      %p123 = scmp.eq.s32.totalorder %s33, 1
      %p124 = por %p122, %p123
      %p126 = scmp.ne.s32.totalorder %s111, %s125
      %p127 = scmp.eq.s32.totalorder %s33, 0
      %p128 = por %p126, %p127
      %s130 = sadd.s32 %s129, 1
      %p133 = scmp.eq.s32.totalorder %s27, 1
      %p134 = scmp.ne.s32.totalorder %s129, %s131
      %p135 = scmp.eq.s32.totalorder %s27, 0
      %p136 = por %p134, %p135
      %p137 = scmp.ne.s32.totalorder %s129, %s131
      %p138 = scmp.eq.s32.totalorder %s32, 1
      %p139 = por %p137, %p138
      %p140 = scmp.ne.s32.totalorder %s131, %s132
      %p141 = scmp.eq.s32.totalorder %s32, 0
      %p142 = por %p140, %p141
      %p143 = scmp.ne.s32.totalorder %s131, %s132
      %p144 = scmp.eq.s32.totalorder %s33, 1
      %p145 = por %p143, %p144
      %p147 = scmp.ne.s32.totalorder %s132, %s146
      %p148 = scmp.eq.s32.totalorder %s33, 0
      %p149 = por %p147, %p148
      %s151 = sadd.s32 %s150, 1
      %p154 = scmp.eq.s32.totalorder %s27, 1
      %p155 = scmp.ne.s32.totalorder %s150, %s152
      %p156 = scmp.eq.s32.totalorder %s27, 0
      %p157 = por %p155, %p156
      %p158 = scmp.ne.s32.totalorder %s150, %s152
      %p159 = scmp.eq.s32.totalorder %s32, 1
      %p160 = por %p158, %p159
      %p161 = scmp.ne.s32.totalorder %s152, %s153
      %p162 = scmp.eq.s32.totalorder %s32, 0
      %p163 = por %p161, %p162
      %p164 = scmp.ne.s32.totalorder %s152, %s153
      %p165 = scmp.eq.s32.totalorder %s33, 1
      %p166 = por %p164, %p165
      %p168 = scmp.ne.s32.totalorder %s153, %s167
      %p169 = scmp.eq.s32.totalorder %s33, 0
      %p170 = por %p168, %p169
      %s172 = sadd.s32 %s171, 1
      %p175 = scmp.eq.s32.totalorder %s27, 1
      %p176 = scmp.ne.s32.totalorder %s171, %s173
      %p177 = scmp.eq.s32.totalorder %s27, 0
      %p178 = por %p176, %p177
      %p179 = scmp.ne.s32.totalorder %s171, %s173
      %p180 = scmp.eq.s32.totalorder %s32, 1
      %p181 = por %p179, %p180
      %p182 = scmp.ne.s32.totalorder %s173, %s174
      %p183 = scmp.eq.s32.totalorder %s32, 0
      %p184 = por %p182, %p183
      %p185 = scmp.ne.s32.totalorder %s173, %s174
      %p186 = scmp.eq.s32.totalorder %s33, 1
      %p187 = por %p185, %p186
      %p189 = scmp.ne.s32.totalorder %s174, %s188
      %p190 = scmp.eq.s32.totalorder %s33, 0
      %p191 = por %p189, %p190
      %s193 = sadd.s32 %s192, 1
      %p196 = scmp.eq.s32.totalorder %s27, 1
      %p197 = scmp.ne.s32.totalorder %s192, %s194
      %p198 = scmp.eq.s32.totalorder %s27, 0
      %p199 = por %p197, %p198
      %p200 = scmp.ne.s32.totalorder %s192, %s194
      %p201 = scmp.eq.s32.totalorder %s32, 1
      %p202 = por %p200, %p201
      %p203 = scmp.ne.s32.totalorder %s194, %s195
      %p204 = scmp.eq.s32.totalorder %s32, 0
      %p205 = por %p203, %p204
      %p206 = scmp.ne.s32.totalorder %s194, %s195
      %p207 = scmp.eq.s32.totalorder %s33, 1
      %p208 = por %p206, %p207
      %p210 = scmp.ne.s32.totalorder %s195, %s209
      %p211 = scmp.eq.s32.totalorder %s33, 0
      %p212 = por %p210, %p211
      %s214 = sadd.s32 %s213, 1
      %p217 = scmp.eq.s32.totalorder %s27, 1
      %p218 = scmp.ne.s32.totalorder %s213, %s215
      %p219 = scmp.eq.s32.totalorder %s27, 0
      %p220 = por %p218, %p219
      %p221 = scmp.ne.s32.totalorder %s213, %s215
      %p222 = scmp.eq.s32.totalorder %s32, 1
      %p223 = por %p221, %p222
      %p224 = scmp.ne.s32.totalorder %s215, %s216
      %p225 = scmp.eq.s32.totalorder %s32, 0
      %p226 = por %p224, %p225
      %p227 = scmp.ne.s32.totalorder %s215, %s216
      %p228 = scmp.eq.s32.totalorder %s33, 1
      %p229 = por %p227, %p228
      %p231 = scmp.ne.s32.totalorder %s216, %s230
      %p232 = scmp.eq.s32.totalorder %s33, 0
      %p233 = por %p231, %p232
      %s235 = sadd.s32 %s234, 1
      %p238 = scmp.eq.s32.totalorder %s27, 1
      %p239 = scmp.ne.s32.totalorder %s234, %s236
      %p240 = scmp.eq.s32.totalorder %s27, 0
      %p241 = por %p239, %p240
      %p242 = scmp.ne.s32.totalorder %s234, %s236
      %p243 = scmp.eq.s32.totalorder %s32, 1
      %p244 = por %p242, %p243
      %p245 = scmp.ne.s32.totalorder %s236, %s237
      %p246 = scmp.eq.s32.totalorder %s32, 0
      %p247 = por %p245, %p246
      %p248 = scmp.ne.s32.totalorder %s236, %s237
      %p249 = scmp.eq.s32.totalorder %s33, 1
      %p250 = por %p248, %p249
      %p252 = scmp.ne.s32.totalorder %s237, %s251
      %p253 = scmp.eq.s32.totalorder %s33, 0
      %p254 = por %p252, %p253
      %s256 = sadd.s32 %s255, 1
      %p259 = scmp.eq.s32.totalorder %s27, 1
      %p260 = scmp.ne.s32.totalorder %s255, %s257
      %p261 = scmp.eq.s32.totalorder %s27, 0
      %p262 = por %p260, %p261
      %p263 = scmp.ne.s32.totalorder %s255, %s257
      %p264 = scmp.eq.s32.totalorder %s32, 1
      %p265 = por %p263, %p264
      %p266 = scmp.ne.s32.totalorder %s257, %s258
      %p267 = scmp.eq.s32.totalorder %s32, 0
      %p268 = por %p266, %p267
      %p269 = scmp.ne.s32.totalorder %s257, %s258
      %p270 = scmp.eq.s32.totalorder %s33, 1
      %p271 = por %p269, %p270
      %p273 = scmp.ne.s32.totalorder %s258, %s272
      %p274 = scmp.eq.s32.totalorder %s33, 0
      %p275 = por %p273, %p274
      %s277 = sadd.s32 %s276, 1
      %p280 = scmp.eq.s32.totalorder %s27, 1
      %p281 = scmp.ne.s32.totalorder %s276, %s278
      %p282 = scmp.eq.s32.totalorder %s27, 0
      %p283 = por %p281, %p282
      %p284 = scmp.ne.s32.totalorder %s276, %s278
      %p285 = scmp.eq.s32.totalorder %s32, 1
      %p286 = por %p284, %p285
      %p287 = scmp.ne.s32.totalorder %s278, %s279
      %p288 = scmp.eq.s32.totalorder %s32, 0
      %p289 = por %p287, %p288
      %p290 = scmp.ne.s32.totalorder %s278, %s279
      %p291 = scmp.eq.s32.totalorder %s33, 1
      %p292 = por %p290, %p291
      %p294 = scmp.ne.s32.totalorder %s279, %s293
      %p295 = scmp.eq.s32.totalorder %s33, 0
      %p296 = por %p294, %p295
      %s298 = sadd.s32 %s297, 1
      %p301 = scmp.eq.s32.totalorder %s27, 1
      %p302 = scmp.ne.s32.totalorder %s297, %s299
      %p303 = scmp.eq.s32.totalorder %s27, 0
      %p304 = por %p302, %p303
      %p305 = scmp.ne.s32.totalorder %s297, %s299
      %p306 = scmp.eq.s32.totalorder %s32, 1
      %p307 = por %p305, %p306
      %p308 = scmp.ne.s32.totalorder %s299, %s300
      %p309 = scmp.eq.s32.totalorder %s32, 0
      %p310 = por %p308, %p309
      %p311 = scmp.ne.s32.totalorder %s299, %s300
      %p312 = scmp.eq.s32.totalorder %s33, 1
      %p313 = por %p311, %p312
      %p315 = scmp.ne.s32.totalorder %s300, %s314
      %p316 = scmp.eq.s32.totalorder %s33, 0
      %p317 = por %p315, %p316
      %s318 = ssub.s32 %s27, %s34
      %p319 = scmp.eq.s32.totalorder %s318, 0
      %s321 = sadd.s32 %s320, 1
      %s322 = scalar_select %p319, %s320, %s321
      %p325 = pneg %p319
      %p326 = scmp.eq.s32.totalorder %s27, 1
      %p327 = por %p325, %p326
      %p328 = scmp.ne.s32.totalorder %s320, %s323
      %p329 = scmp.eq.s32.totalorder %s27, 0
      %p330 = por %p328, %p329
      %p331 = scmp.ne.s32.totalorder %s320, %s323
      %p332 = scmp.eq.s32.totalorder %s32, 1
      %p333 = por %p331, %p332
      %p334 = scmp.ne.s32.totalorder %s323, %s324
      %p335 = scmp.eq.s32.totalorder %s32, 0
      %p336 = por %p334, %p335
      %p337 = scmp.ne.s32.totalorder %s323, %s324
      %p338 = scmp.eq.s32.totalorder %s33, 1
      %p339 = por %p337, %p338
      %p341 = scmp.ne.s32.totalorder %s324, %s340
      %p342 = scmp.eq.s32.totalorder %s33, 0
      %p343 = por %p341, %p342
      %s344 = ssub.s32 %s27, %s34
      %p345 = scmp.eq.s32.totalorder %s344, 0
      %s347 = sadd.s32 %s346, 1
      %s348 = scalar_select %p345, %s346, %s347
      %p351 = pneg %p345
      %p352 = scmp.eq.s32.totalorder %s27, 1
      %p353 = por %p351, %p352
      %p354 = scmp.ne.s32.totalorder %s346, %s349
      %p355 = scmp.eq.s32.totalorder %s27, 0
      %p356 = por %p354, %p355
      %p357 = scmp.ne.s32.totalorder %s346, %s349
      %p358 = scmp.eq.s32.totalorder %s32, 1
      %p359 = por %p357, %p358
      %p360 = scmp.ne.s32.totalorder %s349, %s350
      %p361 = scmp.eq.s32.totalorder %s32, 0
      %p362 = por %p360, %p361
      %p363 = scmp.ne.s32.totalorder %s349, %s350
      %p364 = scmp.eq.s32.totalorder %s33, 1
      %p365 = por %p363, %p364
      %p367 = scmp.ne.s32.totalorder %s350, %s366
      %p368 = scmp.eq.s32.totalorder %s33, 0
      %p369 = por %p367, %p368
      %s370 = ssub.s32 %s27, %s34
      %p371 = scmp.eq.s32.totalorder %s370, 0
      %s373 = sadd.s32 %s372, 1
      %s374 = scalar_select %p371, %s372, %s373
      %p377 = pneg %p371
      %p378 = scmp.eq.s32.totalorder %s27, 1
      %p379 = por %p377, %p378
      %p380 = scmp.ne.s32.totalorder %s372, %s375
      %p381 = scmp.eq.s32.totalorder %s27, 0
      %p382 = por %p380, %p381
      %p383 = scmp.ne.s32.totalorder %s372, %s375
      %p384 = scmp.eq.s32.totalorder %s32, 1
      %p385 = por %p383, %p384
      %p386 = scmp.ne.s32.totalorder %s375, %s376
      %p387 = scmp.eq.s32.totalorder %s32, 0
      %p388 = por %p386, %p387
      %p389 = scmp.ne.s32.totalorder %s375, %s376
      %p390 = scmp.eq.s32.totalorder %s33, 1
      %p391 = por %p389, %p390
      %p393 = scmp.ne.s32.totalorder %s376, %s392
      %p394 = scmp.eq.s32.totalorder %s33, 0
      %p395 = por %p393, %p394
      %p396 = scmp.le.s32.totalorder 1, %s27
      %p397 = scmp.lt.s32.totalorder %s27, 3
      %p398 = pnand %p396, %p397
      %p399 = pneg %p398
      // Predicated region
      $region9: #{tsti_encoder_forward.9} parent=5 // pred_check
        _
      $region10: #{tsti_encoder_forward.9} parent=5 // pred_check_branch
        %401 = sbr.rel (%p398) target = $region12
      $region11: #{tsti_encoder_forward.9} parent=5 // pred_region
        %s402 = ssub.s32 %s27, 1
        // Predicated region
        $region13: #{tsti_encoder_forward.9} parent=11 // pred_check
          %p403 = pneg %p100
        $region14: #{tsti_encoder_forward.9} parent=11 // pred_check_branch
          %405 = sbr.rel (%p403) target = $region16
        $region15: #{tsti_encoder_forward.9} parent=11 // pred_region
          _
        $region16: #{tsti_encoder_forward.9} parent=11 // pred_fallthru
          _
        // Predicated region
        $region17: #{tsti_encoder_forward.9} parent=11 // pred_check
          %p406 = pneg %p121
        $region18: #{tsti_encoder_forward.9} parent=11 // pred_check_branch
          %408 = sbr.rel (%p406) target = $region20
        $region19: #{tsti_encoder_forward.9} parent=11 // pred_region
          _
        $region20: #{tsti_encoder_forward.9} parent=11 // pred_fallthru
          _
        // Predicated region
        $region21: #{tsti_encoder_forward.9} parent=11 // pred_check
          %p409 = pneg %p142
        $region22: #{tsti_encoder_forward.9} parent=11 // pred_check_branch
          %411 = sbr.rel (%p409) target = $region24
        $region23: #{tsti_encoder_forward.9} parent=11 // pred_region
          _
        $region24: #{tsti_encoder_forward.9} parent=11 // pred_fallthru
          _
        // Predicated region
        $region25: #{tsti_encoder_forward.9} parent=11 // pred_check
          %p412 = pneg %p163
        $region26: #{tsti_encoder_forward.9} parent=11 // pred_check_branch
          %414 = sbr.rel (%p412) target = $region28
        $region27: #{tsti_encoder_forward.9} parent=11 // pred_region
          _
        $region28: #{tsti_encoder_forward.9} parent=11 // pred_fallthru
          _
        // Predicated region
        $region29: #{tsti_encoder_forward.9} parent=11 // pred_check
          %p415 = pneg %p184
        $region30: #{tsti_encoder_forward.9} parent=11 // pred_check_branch
          %417 = sbr.rel (%p415) target = $region32
        $region31: #{tsti_encoder_forward.9} parent=11 // pred_region
          _
        $region32: #{tsti_encoder_forward.9} parent=11 // pred_fallthru
          _
        // Predicated region
        $region33: #{tsti_encoder_forward.9} parent=11 // pred_check
          %p418 = pneg %p205
        $region34: #{tsti_encoder_forward.9} parent=11 // pred_check_branch
          %420 = sbr.rel (%p418) target = $region36
        $region35: #{tsti_encoder_forward.9} parent=11 // pred_region
          _
        $region36: #{tsti_encoder_forward.9} parent=11 // pred_fallthru
          _
        // Predicated region
        $region37: #{tsti_encoder_forward.9} parent=11 // pred_check
          %p421 = pneg %p226
        $region38: #{tsti_encoder_forward.9} parent=11 // pred_check_branch
          %423 = sbr.rel (%p421) target = $region40
        $region39: #{tsti_encoder_forward.9} parent=11 // pred_region
          _
        $region40: #{tsti_encoder_forward.9} parent=11 // pred_fallthru
          _
        // Predicated region
        $region41: #{tsti_encoder_forward.9} parent=11 // pred_check
          %p424 = pneg %p247
        $region42: #{tsti_encoder_forward.9} parent=11 // pred_check_branch
          %426 = sbr.rel (%p424) target = $region44
        $region43: #{tsti_encoder_forward.9} parent=11 // pred_region
          _
        $region44: #{tsti_encoder_forward.9} parent=11 // pred_fallthru
          _
        // Predicated region
        $region45: #{tsti_encoder_forward.9} parent=11 // pred_check
          %p427 = pneg %p268
        $region46: #{tsti_encoder_forward.9} parent=11 // pred_check_branch
          %429 = sbr.rel (%p427) target = $region48
        $region47: #{tsti_encoder_forward.9} parent=11 // pred_region
          _
        $region48: #{tsti_encoder_forward.9} parent=11 // pred_fallthru
          _
        // Predicated region
        $region49: #{tsti_encoder_forward.9} parent=11 // pred_check
          %p430 = pneg %p289
        $region50: #{tsti_encoder_forward.9} parent=11 // pred_check_branch
          %432 = sbr.rel (%p430) target = $region52
        $region51: #{tsti_encoder_forward.9} parent=11 // pred_region
          %434 = vsyncadd [#allocation4], 0
          %s435 = sshll.u32 %s11, 4
          %s436 = int_to_ptr.hbm [resolvable:$true] %s435
          %s437 = sshll.u32 [#allocation3], 4
          %s438 = int_to_ptr.vmem [resolvable:$true] %s437
          %443 = dma.hbm_to_vmem [thread:$0]  %s436, 512, %s438, [#allocation4], 128, 128, 8
        $region52: #{tsti_encoder_forward.9} parent=11 // pred_fallthru
          _
        // Predicated region
        $region53: #{tsti_encoder_forward.9} parent=11 // pred_check
          %p444 = pneg %p310
        $region54: #{tsti_encoder_forward.9} parent=11 // pred_check_branch
          %446 = sbr.rel (%p444) target = $region56
        $region55: #{tsti_encoder_forward.9} parent=11 // pred_region
          %448 = vsyncadd [#allocation7], 0
          %s450 = sshll.u32 %s12, 4
          %s451 = int_to_ptr.hbm [resolvable:$true] %s450
          %s452 = sshll.u32 [#allocation6], 4
          %s453 = int_to_ptr.vmem [resolvable:$true] %s452
          %455 = dma.hbm_to_vmem [thread:$0]  %s451, 16, %s453, [#allocation7]
        $region56: #{tsti_encoder_forward.9} parent=11 // pred_fallthru
          _
      $region12: #{tsti_encoder_forward.9} parent=5 // pred_fallthru
        _
      %p456 = scmp.lt.s32.totalorder %s27, 2
      // Predicated region
      $region57: #{tsti_encoder_forward.9} parent=5 // pred_check
        %p457 = pneg %p456
      $region58: #{tsti_encoder_forward.9} parent=5 // pred_check_branch
        %459 = sbr.rel (%p457) target = $region60
      $region59: #{tsti_encoder_forward.9} parent=5 // pred_region
        // Predicated region
        $region61: #{tsti_encoder_forward.9} parent=59 // pred_check
          %p460 = pneg %p47
        $region62: #{tsti_encoder_forward.9} parent=59 // pred_check_branch
          %462 = sbr.rel (%p460) target = $region64
        $region63: #{tsti_encoder_forward.9} parent=59 // pred_region
          %s463 = smul.u32 4, %s27
          %p464 = scmp.lt.s32.totalorder %s463, 7
          %s465 = scalar_select %p464, %s463, 7
          %s466 = smul.addr %s465, 8
          %s467 = scalar_lea.vmem %s0, %s466
          %s468 = smul.u32 4, %s27
        $region64: #{tsti_encoder_forward.9} parent=59 // pred_fallthru
          _
        // Predicated region
        $region65: #{tsti_encoder_forward.9} parent=59 // pred_check
          %p469 = pneg %p73
        $region66: #{tsti_encoder_forward.9} parent=59 // pred_check_branch
          %471 = sbr.rel (%p469) target = $region68
        $region67: #{tsti_encoder_forward.9} parent=59 // pred_region
          %s472 = sand.u32 %s63, 1
          %s473 = sand.u32 %s63, 1
          %s474 = smul.addr %s473, 128
          %s475 = scalar_lea.vmem [#allocation2], %s474
          %s476 = smul.u32 4, %s27
          %s477 = smul.addr %s476, 8
          %s478 = scalar_lea.vmem %s1, %s477
          // Predicated region
          $region69: #{tsti_encoder_forward.9} parent=67 // pred_check
            _
          $region70: #{tsti_encoder_forward.9} parent=67 // pred_check_branch
            %480 = sbr.rel (0) target = $region72
          $region71: #{tsti_encoder_forward.9} parent=67 // pred_region
            // Predicated region
            $region73: #{tsti_encoder_forward.9} parent=71 // pred_check
              _
            $region74: #{tsti_encoder_forward.9} parent=71 // pred_check_branch
              %482 = sbr.rel (0) target = $region76
            $region75: #{tsti_encoder_forward.9} parent=71 // pred_region
              // Predicated region
              $region88: #{tsti_encoder_forward.9} parent=75 // pred_check
                _
              $region89: #{tsti_encoder_forward.9} parent=75 // pred_check_branch
                %528 = sbr.rel (0) target = $region91
              $region90: #{tsti_encoder_forward.9} parent=75 // pred_region
                loop: start=0, step=1, limit=1
                $region92: #{tsti_encoder_forward.9} parent=90 // loop_pre_header
                  _
                $region93: #{tsti_encoder_forward.9} parent=90 // loop_header
                  %s530 = sphi 0, %s534
                  %p531 = scmp.ge.s32.totalorder %s530, 1
                  %s535 = sphi %s478, %s478
                  %s536 = sphi %s475, %s475
                $region94: #{tsti_encoder_forward.9} parent=90 // loop_header_branch
                  %533 = sbr.rel (%p531) target = $region98
                $region95: #{tsti_encoder_forward.9} parent=90 // loop_body
                  %v537 = vld [vmem:[%s535] sm:$0xff]
                  %538 = vst [vmem:[%s536] sm:$0xff] %v537
                  %v539 = vld [vmem:[%s535 + $0x8] sm:$0xff]
                  %540 = vst [vmem:[%s536 + $0x8] sm:$0xff] %v539
                  %v541 = vld [vmem:[%s535 + $0x10] sm:$0xff]
                  %542 = vst [vmem:[%s536 + $0x10] sm:$0xff] %v541
                  %v543 = vld [vmem:[%s535 + $0x18] sm:$0xff]
                  %544 = vst [vmem:[%s536 + $0x18] sm:$0xff] %v543
                  %v545 = vld [vmem:[%s535 + $0x40] sm:$0xff]
                  %546 = vst [vmem:[%s536 + $0x20] sm:$0xff] %v545
                  %v547 = vld [vmem:[%s535 + $0x48] sm:$0xff]
                  %548 = vst [vmem:[%s536 + $0x28] sm:$0xff] %v547
                  %v549 = vld [vmem:[%s535 + $0x50] sm:$0xff]
                  %550 = vst [vmem:[%s536 + $0x30] sm:$0xff] %v549
                  %v551 = vld [vmem:[%s535 + $0x58] sm:$0xff]
                  %552 = vst [vmem:[%s536 + $0x38] sm:$0xff] %v551
                  %v553 = vld [vmem:[%s535 + $0x80] sm:$0xff]
                  %554 = vst [vmem:[%s536 + $0x40] sm:$0xff] %v553
                  %v555 = vld [vmem:[%s535 + $0x88] sm:$0xff]
                  %556 = vst [vmem:[%s536 + $0x48] sm:$0xff] %v555
                  %v557 = vld [vmem:[%s535 + $0x90] sm:$0xff]
                  %558 = vst [vmem:[%s536 + $0x50] sm:$0xff] %v557
                  %v559 = vld [vmem:[%s535 + $0x98] sm:$0xff]
                  %560 = vst [vmem:[%s536 + $0x58] sm:$0xff] %v559
                  %v561 = vld [vmem:[%s535 + $0xc0] sm:$0xff]
                  %562 = vst [vmem:[%s536 + $0x60] sm:$0xff] %v561
                  %v563 = vld [vmem:[%s535 + $0xc8] sm:$0xff]
                  %564 = vst [vmem:[%s536 + $0x68] sm:$0xff] %v563
                  %v565 = vld [vmem:[%s535 + $0xd0] sm:$0xff]
                  %566 = vst [vmem:[%s536 + $0x70] sm:$0xff] %v565
                  %v567 = vld [vmem:[%s535 + $0xd8] sm:$0xff]
                  %568 = vst [vmem:[%s536 + $0x78] sm:$0xff] %v567
                $region96: #{tsti_encoder_forward.9} parent=90 // loop_footer
                  %s534 = sadd.s32 1, %s530
                $region97: #{tsti_encoder_forward.9} parent=90 // loop_footer_branch
                  %529 = sbr.rel target = $region93
                $region98: #{tsti_encoder_forward.9} parent=90 // loop_exit
                  _
              $region91: #{tsti_encoder_forward.9} parent=75 // pred_fallthru
                _
              // Predicated region
              $region99: #{tsti_encoder_forward.9} parent=75 // pred_check
                _
              $region100: #{tsti_encoder_forward.9} parent=75 // pred_check_branch
                %570 = sbr.rel target = $region102
              $region101: #{tsti_encoder_forward.9} parent=75 // pred_region
                _
              $region102: #{tsti_encoder_forward.9} parent=75 // pred_fallthru
                _
            $region76: #{tsti_encoder_forward.9} parent=71 // pred_fallthru
              _
            // Predicated region
            $region77: #{tsti_encoder_forward.9} parent=71 // pred_check
              _
            $region78: #{tsti_encoder_forward.9} parent=71 // pred_check_branch
              %484 = sbr.rel target = $region80
            $region79: #{tsti_encoder_forward.9} parent=71 // pred_region
              %s486 = ssub.s32 256, 1
              loop: start=0, step=1, limit=1
              $region81: #{tsti_encoder_forward.9} parent=79 // loop_pre_header
                _
              $region82: #{tsti_encoder_forward.9} parent=79 // loop_header
                %s488 = sphi 0, %s492
                %p489 = scmp.ge.s32.totalorder %s488, 1
                %s493 = sphi %s478, %s478
                %s494 = sphi %s475, %s475
              $region83: #{tsti_encoder_forward.9} parent=79 // loop_header_branch
                %491 = sbr.rel (%p489) target = $region87
              $region84: #{tsti_encoder_forward.9} parent=79 // loop_body
                %v495 = vld [vmem:[%s493] sm:%s486]
                %496 = vst [vmem:[%s494] sm:%s486] %v495
                %v497 = vld [vmem:[%s493 + $0x8] sm:%s486]
                %498 = vst [vmem:[%s494 + $0x8] sm:%s486] %v497
                %v499 = vld [vmem:[%s493 + $0x10] sm:%s486]
                %500 = vst [vmem:[%s494 + $0x10] sm:%s486] %v499
                %v501 = vld [vmem:[%s493 + $0x18] sm:%s486]
                %502 = vst [vmem:[%s494 + $0x18] sm:%s486] %v501
                %v503 = vld [vmem:[%s493 + $0x40] sm:%s486]
                %504 = vst [vmem:[%s494 + $0x20] sm:%s486] %v503
                %v505 = vld [vmem:[%s493 + $0x48] sm:%s486]
                %506 = vst [vmem:[%s494 + $0x28] sm:%s486] %v505
                %v507 = vld [vmem:[%s493 + $0x50] sm:%s486]
                %508 = vst [vmem:[%s494 + $0x30] sm:%s486] %v507
                %v509 = vld [vmem:[%s493 + $0x58] sm:%s486]
                %510 = vst [vmem:[%s494 + $0x38] sm:%s486] %v509
                %v511 = vld [vmem:[%s493 + $0x80] sm:%s486]
                %512 = vst [vmem:[%s494 + $0x40] sm:%s486] %v511
                %v513 = vld [vmem:[%s493 + $0x88] sm:%s486]
                %514 = vst [vmem:[%s494 + $0x48] sm:%s486] %v513
                %v515 = vld [vmem:[%s493 + $0x90] sm:%s486]
                %516 = vst [vmem:[%s494 + $0x50] sm:%s486] %v515
                %v517 = vld [vmem:[%s493 + $0x98] sm:%s486]
                %518 = vst [vmem:[%s494 + $0x58] sm:%s486] %v517
                %v519 = vld [vmem:[%s493 + $0xc0] sm:%s486]
                %520 = vst [vmem:[%s494 + $0x60] sm:%s486] %v519
                %v521 = vld [vmem:[%s493 + $0xc8] sm:%s486]
                %522 = vst [vmem:[%s494 + $0x68] sm:%s486] %v521
                %v523 = vld [vmem:[%s493 + $0xd0] sm:%s486]
                %524 = vst [vmem:[%s494 + $0x70] sm:%s486] %v523
                %v525 = vld [vmem:[%s493 + $0xd8] sm:%s486]
                %526 = vst [vmem:[%s494 + $0x78] sm:%s486] %v525
              $region85: #{tsti_encoder_forward.9} parent=79 // loop_footer
                %s492 = sadd.s32 1, %s488
              $region86: #{tsti_encoder_forward.9} parent=79 // loop_footer_branch
                %487 = sbr.rel target = $region82
              $region87: #{tsti_encoder_forward.9} parent=79 // loop_exit
                _
            $region80: #{tsti_encoder_forward.9} parent=71 // pred_fallthru
              _
          $region72: #{tsti_encoder_forward.9} parent=67 // pred_fallthru
            _
          %571 = vnop
        $region68: #{tsti_encoder_forward.9} parent=59 // pred_fallthru
          _
      $region60: #{tsti_encoder_forward.9} parent=5 // pred_fallthru
        _
      %p572 = scmp.le.s32.totalorder 1, %s27
      %p573 = scmp.lt.s32.totalorder %s27, 3
      %p574 = pnand %p572, %p573
      %p575 = pneg %p574
      // Predicated region
      $region103: #{tsti_encoder_forward.9} parent=5 // pred_check
        _
      $region104: #{tsti_encoder_forward.9} parent=5 // pred_check_branch
        %577 = sbr.rel (%p574) target = $region106
      $region105: #{tsti_encoder_forward.9} parent=5 // pred_region
        %s578 = ssub.s32 %s27, 1
        %s579 = sand.u32 %s66, 1
        %s580 = sand.u32 %s66, 1
        %s581 = smul.addr %s580, 128
        %s582 = scalar_lea.vmem [#allocation2], %s581
        // Predicated region
        $region107: #{tsti_encoder_forward.9} parent=105 // pred_check
          %p583 = pneg %p79
        $region108: #{tsti_encoder_forward.9} parent=105 // pred_check_branch
          %585 = sbr.rel (%p583) target = $region110
        $region109: #{tsti_encoder_forward.9} parent=105 // pred_region
          _
        $region110: #{tsti_encoder_forward.9} parent=105 // pred_fallthru
          _
        // Predicated region
        $region111: #{tsti_encoder_forward.9} parent=105 // pred_check
          %p586 = pneg %p289
        $region112: #{tsti_encoder_forward.9} parent=105 // pred_check_branch
          %588 = sbr.rel (%p586) target = $region114
        $region113: #{tsti_encoder_forward.9} parent=105 // pred_region
          %590 = dma.done [#allocation4], 512
        $region114: #{tsti_encoder_forward.9} parent=105 // pred_fallthru
          _
        // Predicated region
        $region115: #{tsti_encoder_forward.9} parent=105 // pred_check
          %p591 = pneg %p310
        $region116: #{tsti_encoder_forward.9} parent=105 // pred_check_branch
          %593 = sbr.rel (%p591) target = $region118
        $region117: #{tsti_encoder_forward.9} parent=105 // pred_region
          %595 = dma.done [#allocation7], 16
        $region118: #{tsti_encoder_forward.9} parent=105 // pred_fallthru
          _
        %s596 = smul.u32 4, %s32
        %p597 = scmp.lt.s32.totalorder %s596, 7
        %s598 = scalar_select %p597, %s596, 7
        %s599 = smul.addr %s598, 8
        %s600 = scalar_lea.vmem %s0, %s599
        %p601 = pneg %p53
        %p602 = pneg %p50
        %s603 = sand.u32 %s66, 1
        %s604 = sand.u32 %s66, 1
        %s605 = smul.addr %s604, 128
        %s606 = scalar_lea.vmem [#allocation2], %s605
        %p607 = pneg %p79
        %p608 = pneg %p76
        %p609 = pneg %p100
        %p610 = pneg %p97
        %p611 = pneg %p121
        %p612 = pneg %p118
        %p613 = pneg %p142
        %p614 = pneg %p139
        %p615 = pneg %p163
        %p616 = pneg %p160
        %p617 = pneg %p184
        %p618 = pneg %p181
        %p619 = pneg %p205
        %p620 = pneg %p202
        %p621 = pneg %p226
        %p622 = pneg %p223
        %p623 = pneg %p247
        %p624 = pneg %p244
        %p625 = pneg %p268
        %p626 = pneg %p265
        %p627 = pneg %p289
        %p628 = pneg %p286
        %p629 = pneg %p310
        %p630 = pneg %p307
        %p631 = pneg %p336
        %p632 = pneg %p333
        %s633 = smul.u32 4, %s32
        %p634 = scmp.lt.s32.totalorder %s633, 7
        %s635 = scalar_select %p634, %s633, 7
        %s636 = smul.addr %s635, 8
        %s637 = scalar_lea.vmem %s13, %s636
        %p638 = pneg %p362
        %p639 = pneg %p359
        %s640 = sand.u32 %s349, 1
        %s641 = scalar_lea.sflag [#allocation5], %s640
        %s642 = sand.u32 %s349, 1
        %s643 = smul.addr %s642, 128
        %s644 = scalar_lea.vmem [#allocation8], %s643
        %p645 = pneg %p388
        %p646 = pneg %p385
        %p647 = scmp.lt.s32.totalorder %s32, 1
        %s648 = scalar_select %p647, %s32, 1
        %s649 = smul.addr %s648, 2
        %s650 = scalar_lea.vmem %s15, %s649
        %s651 = smul.u32 4, %s32
        %p652 = scmp.lt.s32.totalorder %s651, 7
        %s653 = scalar_select %p652, %s651, 7
        %s654 = smul.addr %s653, 8
        %s655 = scalar_lea.vmem %s0, %s654
        %s656 = smul.u32 4, %s32
        %s657 = smul.u32 4, %s32
        %s658 = smul.u32 4, %s32
        %p659 = scmp.lt.s32.totalorder %s658, 7
        %s660 = scalar_select %p659, %s658, 7
        %s661 = smul.addr %s660, 8
        %s662 = scalar_lea.vmem %s13, %s661
        %s663 = smul.u32 4, %s32
        %s664 = smul.u32 4, %s32
        %p665 = scmp.lt.s32.totalorder %s32, 1
        %s666 = scalar_select %p665, %s32, 1
        %s667 = smul.addr %s666, 2
        %s668 = scalar_lea.vmem %s15, %s667
        %v669 = vld [vmem:[%s655] sm:$0xff]
        %v670 = vld [vmem:[%s655 + $0x8] sm:$0xff]
        %v671 = vld [vmem:[%s655 + $0x10] sm:$0xff]
        %v672 = vld [vmem:[%s655 + $0x18] sm:$0xff]
        %v673 = vld [vmem:[%s2] sm:$0x3]
        %v674 = vld [vmem:[%s2 + $0x2] sm:$0x3]
        %vm675 = vcmask 254976
        %v676 = vsel %vm675, %v673, 0.0
        %v677 = vsel %vm675, %v674, 0.0
        %v678 = vadd.f32 %v676, %v677
        %v679 = vmul.f32 %v678, 0.015625
        %v680 = vmul.f32 %v679, %v679
        %v682 = vrot.slane %v680, 7
        %v684 = vsub.f32 %v679, %v682
        %v685 = vadd.f32 %v684, 1e-05
        %v686 = vrsqrt.pop %v685
        %v687 = vmul.f32 %v686, %v685
        %v688 = vmul.f32 %v687, %v686
        %v689 = vmul.f32 0.5, %v688
        %v690 = vsub.f32 1.5, %v689
        %v691 = vmul.f32 %v686, %v690
        %vm692 = vweird.f32 %v685
        %vm693 = vweird.f32 %v686
        %vm694 = vmor %vm692, %vm693
        %v695 = vsel %vm694, %v686, %v691
        %v696 = vld [vmem:[%s3] sm:$0x1]
        %v698 = vperm.slane %v696, 0
        %v700 = vmul.f32 %v695, %v698
        %v701 = vperm.slane %v679, 0
        %v702 = vsub.f32 %v669, %v701
        %v703 = vsub.f32 %v670, %v701
        %v704 = vsub.f32 %v671, %v701
        %v705 = vsub.f32 %v672, %v701
        %v706 = vperm.slane %v700, 1
        %v707 = vmul.f32 %v702, %v706
        %v708 = vmul.f32 %v703, %v706
        %v709 = vmul.f32 %v704, %v706
        %v710 = vmul.f32 %v705, %v706
        %v711 = vld [vmem:[%s4] sm:$0x1]
        %v713 = vperm.slane %v711, 0
        %v715 = vadd.f32 %v707, %v713
        %v716 = vadd.f32 %v708, %v713
        %v717 = vadd.f32 %v709, %v713
        %v718 = vadd.f32 %v710, %v713
        %v719 = vld [vmem:[%s5] sm:$0xff]
        %v720 = vld [vmem:[%s5 + $0x8] sm:$0xff]
        %v721 = vld [vmem:[%s5 + $0x10] sm:$0xff]
        %v722 = vld [vmem:[%s5 + $0x18] sm:$0xff]
        %v723 = vld [vmem:[%s6] sm:$0x1]
        %v725 = vperm.slane %v723, 0
        %vm727 = vcmask 261120
        %v729 = vsel %vm727, %v715, 0
        %v732 = vsel %vm727, %v716, 0
        %v735 = vsel %vm727, %v717, 0
        %v738 = vsel %vm727, %v718, 0
        %740 = vmatpush.msra.mxu0 0.0
        %741 = vmatpush.msra.mxu0 0.0
        %742 = vmatpush.msra.mxu0 0.0
        %743 = vmatpush.msra.mxu0 0.0
        %744 = vmatpush.msra.mxu0 0.0
        %745 = vmatpush.msra.mxu0 0.0
        %746 = vmatpush.msra.mxu0 0.0
        %747 = vmatpush.msra.mxu0 0.0
        %748 = vmatpush.msra.mxu0 0.0
        %749 = vmatpush.msra.mxu0 0.0
        %750 = vmatpush.msra.mxu0 0.0
        %751 = vmatpush.msra.mxu0 0.0
        %752 = vmatpush.msra.mxu0 %v722
        %753 = vmatpush.msra.mxu0 %v721
        %754 = vmatpush.msra.mxu0 %v720
        %755 = vmatpush.msra.mxu0 %v719
        %756 = vmatmul.f32.gmra.mxu0 %v729
        %v757 = vpop.f32.mrf.mxu0
        %v758 = vadd.f32 %v725, %v757
        %759 = vmatmul.f32.gmra.mxu0 %v732
        %v760 = vpop.f32.mrf.mxu0
        %v761 = vadd.f32 %v725, %v760
        %762 = vmatmul.f32.gmra.mxu0 %v735
        %v763 = vpop.f32.mrf.mxu0
        %v764 = vadd.f32 %v725, %v763
        %765 = vmatmul.f32.gmra.mxu0 %v738
        %v766 = vpop.f32.mrf.mxu0
        %v767 = vadd.f32 %v725, %v766
        %768 = vdwg.mxu0
        %v769 = vld [vmem:[%s7] sm:$0xff]
        %v770 = vld [vmem:[%s7 + $0x8] sm:$0xff]
        %v771 = vld [vmem:[%s7 + $0x10] sm:$0xff]
        %v772 = vld [vmem:[%s7 + $0x18] sm:$0xff]
        %v773 = vld [vmem:[%s8] sm:$0x1]
        %v775 = vperm.slane %v773, 0
        %777 = vmatpush.msra.mxu0 0.0
        %778 = vmatpush.msra.mxu0 0.0
        %779 = vmatpush.msra.mxu0 0.0
        %780 = vmatpush.msra.mxu0 0.0
        %781 = vmatpush.msra.mxu0 0.0
        %782 = vmatpush.msra.mxu0 0.0
        %783 = vmatpush.msra.mxu0 0.0
        %784 = vmatpush.msra.mxu0 0.0
        %785 = vmatpush.msra.mxu0 0.0
        %786 = vmatpush.msra.mxu0 0.0
        %787 = vmatpush.msra.mxu0 0.0
        %788 = vmatpush.msra.mxu0 0.0
        %789 = vmatpush.msra.mxu0 %v772
        %790 = vmatpush.msra.mxu0 %v771
        %791 = vmatpush.msra.mxu0 %v770
        %792 = vmatpush.msra.mxu0 %v769
        %793 = vmatmul.f32.gmra.mxu0 %v729
        %v794 = vpop.f32.mrf.mxu0
        %v795 = vadd.f32 %v775, %v794
        %796 = vmatmul.f32.gmra.mxu0 %v732
        %v797 = vpop.f32.mrf.mxu0
        %v798 = vadd.f32 %v775, %v797
        %799 = vmatmul.f32.gmra.mxu0 %v735
        %v800 = vpop.f32.mrf.mxu0
        %v801 = vadd.f32 %v775, %v800
        %802 = vmatmul.f32.gmra.mxu0 %v738
        %v803 = vpop.f32.mrf.mxu0
        %v804 = vadd.f32 %v775, %v803
        %805 = vdwg.mxu0
        %v806 = vld [vmem:[%s9] sm:$0xff]
        %v807 = vld [vmem:[%s9 + $0x8] sm:$0xff]
        %v808 = vld [vmem:[%s9 + $0x10] sm:$0xff]
        %v809 = vld [vmem:[%s9 + $0x18] sm:$0xff]
        %v810 = vld [vmem:[%s10] sm:$0x1]
        %v812 = vperm.slane %v810, 0
        %814 = vmatpush.msra.mxu0 0.0
        %815 = vmatpush.msra.mxu0 0.0
        %816 = vmatpush.msra.mxu0 0.0
        %817 = vmatpush.msra.mxu0 0.0
        %818 = vmatpush.msra.mxu0 0.0
        %819 = vmatpush.msra.mxu0 0.0
        %820 = vmatpush.msra.mxu0 0.0
        %821 = vmatpush.msra.mxu0 0.0
        %822 = vmatpush.msra.mxu0 0.0
        %823 = vmatpush.msra.mxu0 0.0
        %824 = vmatpush.msra.mxu0 0.0
        %825 = vmatpush.msra.mxu0 0.0
        %826 = vmatpush.msra.mxu0 %v809
        %827 = vmatpush.msra.mxu0 %v808
        %828 = vmatpush.msra.mxu0 %v807
        %829 = vmatpush.msra.mxu0 %v806
        %830 = vmatmul.f32.gmra.mxu0 %v729
        %v831 = vpop.f32.mrf.mxu0
        %v832 = vadd.f32 %v812, %v831
        %833 = vmatmul.f32.gmra.mxu0 %v732
        %v834 = vpop.f32.mrf.mxu0
        %v835 = vadd.f32 %v812, %v834
        %836 = vmatmul.f32.gmra.mxu0 %v735
        %v837 = vpop.f32.mrf.mxu0
        %v838 = vadd.f32 %v812, %v837
        %839 = vmatmul.f32.gmra.mxu0 %v738
        %v840 = vpop.f32.mrf.mxu0
        %v841 = vadd.f32 %v812, %v840
        %842 = vdwg.mxu0
        %v843 = vld [vmem:[%s582] sm:$0xff]
        %v844 = vld [vmem:[%s582 + $0x8] sm:$0xff]
        %v845 = vld [vmem:[%s582 + $0x10] sm:$0xff]
        %v846 = vld [vmem:[%s582 + $0x18] sm:$0xff]
        %v847 = vld [vmem:[%s582 + $0x20] sm:$0xff]
        %v848 = vld [vmem:[%s582 + $0x28] sm:$0xff]
        %v849 = vld [vmem:[%s582 + $0x30] sm:$0xff]
        %v850 = vld [vmem:[%s582 + $0x38] sm:$0xff]
        %v851 = vld [vmem:[%s582 + $0x40] sm:$0xff]
        %v852 = vld [vmem:[%s582 + $0x48] sm:$0xff]
        %v853 = vld [vmem:[%s582 + $0x50] sm:$0xff]
        %v854 = vld [vmem:[%s582 + $0x58] sm:$0xff]
        %v855 = vld [vmem:[%s582 + $0x60] sm:$0xff]
        %v856 = vld [vmem:[%s582 + $0x68] sm:$0xff]
        %v857 = vld [vmem:[%s582 + $0x70] sm:$0xff]
        %v858 = vld [vmem:[%s582 + $0x78] sm:$0xff]
        %vm859 = vcmask 64512
        %v861 = vsel %vm859, %v758, 0
        %v864 = vsel %vm859, %v795, 0
        %866 = vmatpush.xpose.msra.mxu0 0.0
        %867 = vmatpush.xpose.msra.mxu0 0.0
        %868 = vmatpush.xpose.msra.mxu0 0.0
        %869 = vmatpush.xpose.msra.mxu0 0.0
        %870 = vmatpush.xpose.msra.mxu0 0.0
        %871 = vmatpush.xpose.msra.mxu0 0.0
        %872 = vmatpush.xpose.msra.mxu0 0.0
        %873 = vmatpush.xpose.msra.mxu0 0.0
        %874 = vmatpush.xpose.msra.mxu0 0.0
        %875 = vmatpush.xpose.msra.mxu0 0.0
        %876 = vmatpush.xpose.msra.mxu0 0.0
        %877 = vmatpush.xpose.msra.mxu0 0.0
        %878 = vmatpush.xpose.msra.mxu0 0.0
        %879 = vmatpush.xpose.msra.mxu0 0.0
        %880 = vmatpush.xpose.msra.mxu0 0.0
        %881 = vmatpush.xpose.msra.mxu0 %v864
        %882 = vmatmul.f32.gmra.mxu0 %v861
        %v883 = vpop.f32.mrf.mxu0
        %v884 = vadd.f32 %v843, %v883
        %885 = vdwg.mxu0
        %v887 = vsel %vm859, %v761, 0
        %v890 = vsel %vm859, %v798, 0
        %892 = vmatpush.xpose.msra.mxu0 0.0
        %893 = vmatpush.xpose.msra.mxu0 0.0
        %894 = vmatpush.xpose.msra.mxu0 0.0
        %895 = vmatpush.xpose.msra.mxu0 0.0
        %896 = vmatpush.xpose.msra.mxu0 0.0
        %897 = vmatpush.xpose.msra.mxu0 0.0
        %898 = vmatpush.xpose.msra.mxu0 0.0
        %899 = vmatpush.xpose.msra.mxu0 0.0
        %900 = vmatpush.xpose.msra.mxu0 0.0
        %901 = vmatpush.xpose.msra.mxu0 0.0
        %902 = vmatpush.xpose.msra.mxu0 0.0
        %903 = vmatpush.xpose.msra.mxu0 0.0
        %904 = vmatpush.xpose.msra.mxu0 0.0
        %905 = vmatpush.xpose.msra.mxu0 0.0
        %906 = vmatpush.xpose.msra.mxu0 0.0
        %907 = vmatpush.xpose.msra.mxu0 %v890
        %908 = vmatmul.f32.gmra.mxu0 %v887
        %v909 = vpop.f32.mrf.mxu0
        %v910 = vadd.f32 %v844, %v909
        %911 = vdwg.mxu0
        %v913 = vsel %vm859, %v764, 0
        %v916 = vsel %vm859, %v801, 0
        %918 = vmatpush.xpose.msra.mxu0 0.0
        %919 = vmatpush.xpose.msra.mxu0 0.0
        %920 = vmatpush.xpose.msra.mxu0 0.0
        %921 = vmatpush.xpose.msra.mxu0 0.0
        %922 = vmatpush.xpose.msra.mxu0 0.0
        %923 = vmatpush.xpose.msra.mxu0 0.0
        %924 = vmatpush.xpose.msra.mxu0 0.0
        %925 = vmatpush.xpose.msra.mxu0 0.0
        %926 = vmatpush.xpose.msra.mxu0 0.0
        %927 = vmatpush.xpose.msra.mxu0 0.0
        %928 = vmatpush.xpose.msra.mxu0 0.0
        %929 = vmatpush.xpose.msra.mxu0 0.0
        %930 = vmatpush.xpose.msra.mxu0 0.0
        %931 = vmatpush.xpose.msra.mxu0 0.0
        %932 = vmatpush.xpose.msra.mxu0 0.0
        %933 = vmatpush.xpose.msra.mxu0 %v916
        %934 = vmatmul.f32.gmra.mxu0 %v913
        %v935 = vpop.f32.mrf.mxu0
        %v936 = vadd.f32 %v845, %v935
        %937 = vdwg.mxu0
        %v939 = vsel %vm859, %v767, 0
        %v942 = vsel %vm859, %v804, 0
        %944 = vmatpush.xpose.msra.mxu0 0.0
        %945 = vmatpush.xpose.msra.mxu0 0.0
        %946 = vmatpush.xpose.msra.mxu0 0.0
        %947 = vmatpush.xpose.msra.mxu0 0.0
        %948 = vmatpush.xpose.msra.mxu0 0.0
        %949 = vmatpush.xpose.msra.mxu0 0.0
        %950 = vmatpush.xpose.msra.mxu0 0.0
        %951 = vmatpush.xpose.msra.mxu0 0.0
        %952 = vmatpush.xpose.msra.mxu0 0.0
        %953 = vmatpush.xpose.msra.mxu0 0.0
        %954 = vmatpush.xpose.msra.mxu0 0.0
        %955 = vmatpush.xpose.msra.mxu0 0.0
        %956 = vmatpush.xpose.msra.mxu0 0.0
        %957 = vmatpush.xpose.msra.mxu0 0.0
        %958 = vmatpush.xpose.msra.mxu0 0.0
        %959 = vmatpush.xpose.msra.mxu0 %v942
        %960 = vmatmul.f32.gmra.mxu0 %v939
        %v961 = vpop.f32.mrf.mxu0
        %v962 = vadd.f32 %v846, %v961
        %963 = vdwg.mxu0
        %964 = vst.msk [vmem:[%s644] sm:$0xff] %vm859, %v884
        %965 = vst.msk [vmem:[%s644 + $0x8] sm:$0xff] %vm859, %v910
        %966 = vst.msk [vmem:[%s644 + $0x10] sm:$0xff] %vm859, %v936
        %967 = vst.msk [vmem:[%s644 + $0x18] sm:$0xff] %vm859, %v962
        %v968 = vsel %vm859, %v884, -inf
        %969 = vmax.xlane.f32.xlu0 %v968
        %v970 = vpop.xlane.xlu0 %969
        %v971 = vsel %vm859, %v910, -inf
        %972 = vmax.xlane.f32.xlu0 %v971
        %v973 = vpop.xlane.xlu0 %972
        %v974 = vsel %vm859, %v936, -inf
        %975 = vmax.xlane.f32.xlu0 %v974
        %v976 = vpop.xlane.xlu0 %975
        %v977 = vsel %vm859, %v962, -inf
        %978 = vmax.xlane.f32.xlu0 %v977
        %v979 = vpop.xlane.xlu0 %978
        %v980 = vsub.f32 %v884, %v970
        %v981 = vsub.f32 %v910, %v973
        %v982 = vsub.f32 %v936, %v976
        %v983 = vsub.f32 %v962, %v979
        %v984 = vmul.f32 %v980, 1.442695
        %v985 = vpow.pop %v984
        %v986 = vmul.f32 %v981, 1.442695
        %v987 = vpow.pop %v986
        %v988 = vmul.f32 %v982, 1.442695
        %v989 = vpow.pop %v988
        %v990 = vmul.f32 %v983, 1.442695
        %v991 = vpow.pop %v990
        %v992 = vsel %vm859, %v985, 0.0
        %993 = vadd.xlane.f32.xlu0 %v992
        %v994 = vpop.xlane.xlu0 %993
        %v995 = vsel %vm859, %v987, 0.0
        %996 = vadd.xlane.f32.xlu0 %v995
        %v997 = vpop.xlane.xlu0 %996
        %v998 = vsel %vm859, %v989, 0.0
        %999 = vadd.xlane.f32.xlu0 %v998
        %v1000 = vpop.xlane.xlu0 %999
        %v1001 = vsel %vm859, %v991, 0.0
        %1002 = vadd.xlane.f32.xlu0 %v1001
        %v1003 = vpop.xlane.xlu0 %1002
        %v1004 = vrcp.pop %v994
        %v1005 = vmul.f32 %v994, %v1004
        %v1006 = vsub.f32 1.0, %v1005
        %v1007 = vmul.f32 %v1004, %v1006
        %v1008 = vadd.f32 %v1004, %v1007
        %vm1009 = vweird.f32 %v994
        %vm1010 = vweird.f32 %v1004
        %vm1011 = vmor %vm1009, %vm1010
        %v1012 = vsel %vm1011, %v1004, %v1008
        %v1013 = vand.u32 2147483647, %v994
        %vm1014 = vcmp.eq.f32.partialorder %v1013, 8.507059e+37
        %v1015 = vand.u32 %v994, 2147483648
        %v1016 = vor.u32 1.1754944e-38, %v1015
        %v1017 = vsel %vm1014, %v1016, %v1012
        %v1018 = vrcp.pop %v997
        %v1019 = vmul.f32 %v997, %v1018
        %v1020 = vsub.f32 1.0, %v1019
        %v1021 = vmul.f32 %v1018, %v1020
        %v1022 = vadd.f32 %v1018, %v1021
        %vm1023 = vweird.f32 %v997
        %vm1024 = vweird.f32 %v1018
        %vm1025 = vmor %vm1023, %vm1024
        %v1026 = vsel %vm1025, %v1018, %v1022
        %v1027 = vand.u32 2147483647, %v997
        %vm1028 = vcmp.eq.f32.partialorder %v1027, 8.507059e+37
        %v1029 = vand.u32 %v997, 2147483648
        %v1030 = vor.u32 1.1754944e-38, %v1029
        %v1031 = vsel %vm1028, %v1030, %v1026
        %v1032 = vrcp.pop %v1000
        %v1033 = vmul.f32 %v1000, %v1032
        %v1034 = vsub.f32 1.0, %v1033
        %v1035 = vmul.f32 %v1032, %v1034
        %v1036 = vadd.f32 %v1032, %v1035
        %vm1037 = vweird.f32 %v1000
        %vm1038 = vweird.f32 %v1032
        %vm1039 = vmor %vm1037, %vm1038
        %v1040 = vsel %vm1039, %v1032, %v1036
        %v1041 = vand.u32 2147483647, %v1000
        %vm1042 = vcmp.eq.f32.partialorder %v1041, 8.507059e+37
        %v1043 = vand.u32 %v1000, 2147483648
        %v1044 = vor.u32 1.1754944e-38, %v1043
        %v1045 = vsel %vm1042, %v1044, %v1040
        %v1046 = vrcp.pop %v1003
        %v1047 = vmul.f32 %v1003, %v1046
        %v1048 = vsub.f32 1.0, %v1047
        %v1049 = vmul.f32 %v1046, %v1048
        %v1050 = vadd.f32 %v1046, %v1049
        %vm1051 = vweird.f32 %v1003
        %vm1052 = vweird.f32 %v1046
        %vm1053 = vmor %vm1051, %vm1052
        %v1054 = vsel %vm1053, %v1046, %v1050
        %v1055 = vand.u32 2147483647, %v1003
        %vm1056 = vcmp.eq.f32.partialorder %v1055, 8.507059e+37
        %v1057 = vand.u32 %v1003, 2147483648
        %v1058 = vor.u32 1.1754944e-38, %v1057
        %v1059 = vsel %vm1056, %v1058, %v1054
        %v1060 = vmul.f32 %v985, %v1017
        %v1061 = vmul.f32 %v987, %v1031
        %v1062 = vmul.f32 %v989, %v1045
        %v1063 = vmul.f32 %v991, %v1059
        %v1065 = vsel %vm859, %v1060, 0
        %1067 = vmatpush.msra.mxu0 0.0
        %1068 = vmatpush.msra.mxu0 0.0
        %1069 = vmatpush.msra.mxu0 0.0
        %1070 = vmatpush.msra.mxu0 0.0
        %1071 = vmatpush.msra.mxu0 0.0
        %1072 = vmatpush.msra.mxu0 0.0
        %1073 = vmatpush.msra.mxu0 0.0
        %1074 = vmatpush.msra.mxu0 0.0
        %1075 = vmatpush.msra.mxu0 0.0
        %1076 = vmatpush.msra.mxu0 0.0
        %1077 = vmatpush.msra.mxu0 0.0
        %1078 = vmatpush.msra.mxu0 0.0
        %1079 = vmatpush.msra.mxu0 0.0
        %1080 = vmatpush.msra.mxu0 0.0
        %1081 = vmatpush.msra.mxu0 0.0
        %1082 = vmatpush.msra.mxu0 %v832
        %1083 = vmatmul.f32.gmra.mxu0 %v1065
        %v1084 = vpop.f32.mrf.mxu0
        %v1085 = vadd.f32 0.0, %v1084
        %1086 = vdwg.mxu0
        %v1088 = vsel %vm859, %v1061, 0
        %1090 = vmatpush.msra.mxu0 0.0
        %1091 = vmatpush.msra.mxu0 0.0
        %1092 = vmatpush.msra.mxu0 0.0
        %1093 = vmatpush.msra.mxu0 0.0
        %1094 = vmatpush.msra.mxu0 0.0
        %1095 = vmatpush.msra.mxu0 0.0
        %1096 = vmatpush.msra.mxu0 0.0
        %1097 = vmatpush.msra.mxu0 0.0
        %1098 = vmatpush.msra.mxu0 0.0
        %1099 = vmatpush.msra.mxu0 0.0
        %1100 = vmatpush.msra.mxu0 0.0
        %1101 = vmatpush.msra.mxu0 0.0
        %1102 = vmatpush.msra.mxu0 0.0
        %1103 = vmatpush.msra.mxu0 0.0
        %1104 = vmatpush.msra.mxu0 0.0
        %1105 = vmatpush.msra.mxu0 %v835
        %1106 = vmatmul.f32.gmra.mxu0 %v1088
        %v1107 = vpop.f32.mrf.mxu0
        %v1108 = vadd.f32 0.0, %v1107
        %1109 = vdwg.mxu0
        %v1111 = vsel %vm859, %v1062, 0
        %1113 = vmatpush.msra.mxu0 0.0
        %1114 = vmatpush.msra.mxu0 0.0
        %1115 = vmatpush.msra.mxu0 0.0
        %1116 = vmatpush.msra.mxu0 0.0
        %1117 = vmatpush.msra.mxu0 0.0
        %1118 = vmatpush.msra.mxu0 0.0
        %1119 = vmatpush.msra.mxu0 0.0
        %1120 = vmatpush.msra.mxu0 0.0
        %1121 = vmatpush.msra.mxu0 0.0
        %1122 = vmatpush.msra.mxu0 0.0
        %1123 = vmatpush.msra.mxu0 0.0
        %1124 = vmatpush.msra.mxu0 0.0
        %1125 = vmatpush.msra.mxu0 0.0
        %1126 = vmatpush.msra.mxu0 0.0
        %1127 = vmatpush.msra.mxu0 0.0
        %1128 = vmatpush.msra.mxu0 %v838
        %1129 = vmatmul.f32.gmra.mxu0 %v1111
        %v1130 = vpop.f32.mrf.mxu0
        %v1131 = vadd.f32 0.0, %v1130
        %1132 = vdwg.mxu0
        %v1134 = vsel %vm859, %v1063, 0
        %1136 = vmatpush.msra.mxu0 0.0
        %1137 = vmatpush.msra.mxu0 0.0
        %1138 = vmatpush.msra.mxu0 0.0
        %1139 = vmatpush.msra.mxu0 0.0
        %1140 = vmatpush.msra.mxu0 0.0
        %1141 = vmatpush.msra.mxu0 0.0
        %1142 = vmatpush.msra.mxu0 0.0
        %1143 = vmatpush.msra.mxu0 0.0
        %1144 = vmatpush.msra.mxu0 0.0
        %1145 = vmatpush.msra.mxu0 0.0
        %1146 = vmatpush.msra.mxu0 0.0
        %1147 = vmatpush.msra.mxu0 0.0
        %1148 = vmatpush.msra.mxu0 0.0
        %1149 = vmatpush.msra.mxu0 0.0
        %1150 = vmatpush.msra.mxu0 0.0
        %1151 = vmatpush.msra.mxu0 %v841
        %1152 = vmatmul.f32.gmra.mxu0 %v1134
        %v1153 = vpop.f32.mrf.mxu0
        %v1154 = vadd.f32 0.0, %v1153
        %1155 = vdwg.mxu0
        %1156 = vrot.lane.b32.xlu0 %v758, 120
        %v1157 = vpop.permute.xlu0 %1156
        %1158 = vrot.lane.b32.xlu0 %v795, 120
        %v1159 = vpop.permute.xlu0 %1158
        %v1160 = vsel %vm859, %v1157, 0
        %v1162 = vsel %vm859, %v1159, 0
        %1164 = vmatpush.xpose.msra.mxu0 0.0
        %1165 = vmatpush.xpose.msra.mxu0 0.0
        %1166 = vmatpush.xpose.msra.mxu0 0.0
        %1167 = vmatpush.xpose.msra.mxu0 0.0
        %1168 = vmatpush.xpose.msra.mxu0 0.0
        %1169 = vmatpush.xpose.msra.mxu0 0.0
        %1170 = vmatpush.xpose.msra.mxu0 0.0
        %1171 = vmatpush.xpose.msra.mxu0 0.0
        %1172 = vmatpush.xpose.msra.mxu0 0.0
        %1173 = vmatpush.xpose.msra.mxu0 0.0
        %1174 = vmatpush.xpose.msra.mxu0 0.0
        %1175 = vmatpush.xpose.msra.mxu0 0.0
        %1176 = vmatpush.xpose.msra.mxu0 0.0
        %1177 = vmatpush.xpose.msra.mxu0 0.0
        %1178 = vmatpush.xpose.msra.mxu0 0.0
        %1179 = vmatpush.xpose.msra.mxu0 %v1162
        %1180 = vmatmul.f32.gmra.mxu0 %v1160
        %v1181 = vpop.f32.mrf.mxu0
        %v1182 = vadd.f32 %v847, %v1181
        %1183 = vdwg.mxu0
        %1184 = vrot.lane.b32.xlu0 %v761, 120
        %v1185 = vpop.permute.xlu0 %1184
        %1186 = vrot.lane.b32.xlu0 %v798, 120
        %v1187 = vpop.permute.xlu0 %1186
        %v1188 = vsel %vm859, %v1185, 0
        %v1190 = vsel %vm859, %v1187, 0
        %1192 = vmatpush.xpose.msra.mxu0 0.0
        %1193 = vmatpush.xpose.msra.mxu0 0.0
        %1194 = vmatpush.xpose.msra.mxu0 0.0
        %1195 = vmatpush.xpose.msra.mxu0 0.0
        %1196 = vmatpush.xpose.msra.mxu0 0.0
        %1197 = vmatpush.xpose.msra.mxu0 0.0
        %1198 = vmatpush.xpose.msra.mxu0 0.0
        %1199 = vmatpush.xpose.msra.mxu0 0.0
        %1200 = vmatpush.xpose.msra.mxu0 0.0
        %1201 = vmatpush.xpose.msra.mxu0 0.0
        %1202 = vmatpush.xpose.msra.mxu0 0.0
        %1203 = vmatpush.xpose.msra.mxu0 0.0
        %1204 = vmatpush.xpose.msra.mxu0 0.0
        %1205 = vmatpush.xpose.msra.mxu0 0.0
        %1206 = vmatpush.xpose.msra.mxu0 0.0
        %1207 = vmatpush.xpose.msra.mxu0 %v1190
        %1208 = vmatmul.f32.gmra.mxu0 %v1188
        %v1209 = vpop.f32.mrf.mxu0
        %v1210 = vadd.f32 %v848, %v1209
        %1211 = vdwg.mxu0
        %1212 = vrot.lane.b32.xlu0 %v764, 120
        %v1213 = vpop.permute.xlu0 %1212
        %1214 = vrot.lane.b32.xlu0 %v801, 120
        %v1215 = vpop.permute.xlu0 %1214
        %v1216 = vsel %vm859, %v1213, 0
        %v1218 = vsel %vm859, %v1215, 0
        %1220 = vmatpush.xpose.msra.mxu0 0.0
        %1221 = vmatpush.xpose.msra.mxu0 0.0
        %1222 = vmatpush.xpose.msra.mxu0 0.0
        %1223 = vmatpush.xpose.msra.mxu0 0.0
        %1224 = vmatpush.xpose.msra.mxu0 0.0
        %1225 = vmatpush.xpose.msra.mxu0 0.0
        %1226 = vmatpush.xpose.msra.mxu0 0.0
        %1227 = vmatpush.xpose.msra.mxu0 0.0
        %1228 = vmatpush.xpose.msra.mxu0 0.0
        %1229 = vmatpush.xpose.msra.mxu0 0.0
        %1230 = vmatpush.xpose.msra.mxu0 0.0
        %1231 = vmatpush.xpose.msra.mxu0 0.0
        %1232 = vmatpush.xpose.msra.mxu0 0.0
        %1233 = vmatpush.xpose.msra.mxu0 0.0
        %1234 = vmatpush.xpose.msra.mxu0 0.0
        %1235 = vmatpush.xpose.msra.mxu0 %v1218
        %1236 = vmatmul.f32.gmra.mxu0 %v1216
        %v1237 = vpop.f32.mrf.mxu0
        %v1238 = vadd.f32 %v849, %v1237
        %1239 = vdwg.mxu0
        %1240 = vrot.lane.b32.xlu0 %v767, 120
        %v1241 = vpop.permute.xlu0 %1240
        %1242 = vrot.lane.b32.xlu0 %v804, 120
        %v1243 = vpop.permute.xlu0 %1242
        %v1244 = vsel %vm859, %v1241, 0
        %v1246 = vsel %vm859, %v1243, 0
        %1248 = vmatpush.xpose.msra.mxu0 0.0
        %1249 = vmatpush.xpose.msra.mxu0 0.0
        %1250 = vmatpush.xpose.msra.mxu0 0.0
        %1251 = vmatpush.xpose.msra.mxu0 0.0
        %1252 = vmatpush.xpose.msra.mxu0 0.0
        %1253 = vmatpush.xpose.msra.mxu0 0.0
        %1254 = vmatpush.xpose.msra.mxu0 0.0
        %1255 = vmatpush.xpose.msra.mxu0 0.0
        %1256 = vmatpush.xpose.msra.mxu0 0.0
        %1257 = vmatpush.xpose.msra.mxu0 0.0
        %1258 = vmatpush.xpose.msra.mxu0 0.0
        %1259 = vmatpush.xpose.msra.mxu0 0.0
        %1260 = vmatpush.xpose.msra.mxu0 0.0
        %1261 = vmatpush.xpose.msra.mxu0 0.0
        %1262 = vmatpush.xpose.msra.mxu0 0.0
        %1263 = vmatpush.xpose.msra.mxu0 %v1246
        %1264 = vmatmul.f32.gmra.mxu0 %v1244
        %v1265 = vpop.f32.mrf.mxu0
        %v1266 = vadd.f32 %v850, %v1265
        %1267 = vdwg.mxu0
        %s1268 = scalar_lea.vmem %s644, 32 [#allocation8]
        %1269 = vst.msk [vmem:[%s1268] sm:$0xff] %vm859, %v1182
        %1270 = vst.msk [vmem:[%s1268 + $0x8] sm:$0xff] %vm859, %v1210
        %1271 = vst.msk [vmem:[%s1268 + $0x10] sm:$0xff] %vm859, %v1238
        %1272 = vst.msk [vmem:[%s1268 + $0x18] sm:$0xff] %vm859, %v1266
        %v1273 = vsel %vm859, %v1182, -inf
        %1274 = vmax.xlane.f32.xlu0 %v1273
        %v1275 = vpop.xlane.xlu0 %1274
        %v1276 = vsel %vm859, %v1210, -inf
        %1277 = vmax.xlane.f32.xlu0 %v1276
        %v1278 = vpop.xlane.xlu0 %1277
        %v1279 = vsel %vm859, %v1238, -inf
        %1280 = vmax.xlane.f32.xlu0 %v1279
        %v1281 = vpop.xlane.xlu0 %1280
        %v1282 = vsel %vm859, %v1266, -inf
        %1283 = vmax.xlane.f32.xlu0 %v1282
        %v1284 = vpop.xlane.xlu0 %1283
        %v1285 = vsub.f32 %v1182, %v1275
        %v1286 = vsub.f32 %v1210, %v1278
        %v1287 = vsub.f32 %v1238, %v1281
        %v1288 = vsub.f32 %v1266, %v1284
        %v1289 = vmul.f32 %v1285, 1.442695
        %v1290 = vpow.pop %v1289
        %v1291 = vmul.f32 %v1286, 1.442695
        %v1292 = vpow.pop %v1291
        %v1293 = vmul.f32 %v1287, 1.442695
        %v1294 = vpow.pop %v1293
        %v1295 = vmul.f32 %v1288, 1.442695
        %v1296 = vpow.pop %v1295
        %v1297 = vsel %vm859, %v1290, 0.0
        %1298 = vadd.xlane.f32.xlu0 %v1297
        %v1299 = vpop.xlane.xlu0 %1298
        %v1300 = vsel %vm859, %v1292, 0.0
        %1301 = vadd.xlane.f32.xlu0 %v1300
        %v1302 = vpop.xlane.xlu0 %1301
        %v1303 = vsel %vm859, %v1294, 0.0
        %1304 = vadd.xlane.f32.xlu0 %v1303
        %v1305 = vpop.xlane.xlu0 %1304
        %v1306 = vsel %vm859, %v1296, 0.0
        %1307 = vadd.xlane.f32.xlu0 %v1306
        %v1308 = vpop.xlane.xlu0 %1307
        %v1309 = vrcp.pop %v1299
        %v1310 = vmul.f32 %v1299, %v1309
        %v1311 = vsub.f32 1.0, %v1310
        %v1312 = vmul.f32 %v1309, %v1311
        %v1313 = vadd.f32 %v1309, %v1312
        %vm1314 = vweird.f32 %v1299
        %vm1315 = vweird.f32 %v1309
        %vm1316 = vmor %vm1314, %vm1315
        %v1317 = vsel %vm1316, %v1309, %v1313
        %v1318 = vand.u32 2147483647, %v1299
        %vm1319 = vcmp.eq.f32.partialorder %v1318, 8.507059e+37
        %v1320 = vand.u32 %v1299, 2147483648
        %v1321 = vor.u32 1.1754944e-38, %v1320
        %v1322 = vsel %vm1319, %v1321, %v1317
        %v1323 = vrcp.pop %v1302
        %v1324 = vmul.f32 %v1302, %v1323
        %v1325 = vsub.f32 1.0, %v1324
        %v1326 = vmul.f32 %v1323, %v1325
        %v1327 = vadd.f32 %v1323, %v1326
        %vm1328 = vweird.f32 %v1302
        %vm1329 = vweird.f32 %v1323
        %vm1330 = vmor %vm1328, %vm1329
        %v1331 = vsel %vm1330, %v1323, %v1327
        %v1332 = vand.u32 2147483647, %v1302
        %vm1333 = vcmp.eq.f32.partialorder %v1332, 8.507059e+37
        %v1334 = vand.u32 %v1302, 2147483648
        %v1335 = vor.u32 1.1754944e-38, %v1334
        %v1336 = vsel %vm1333, %v1335, %v1331
        %v1337 = vrcp.pop %v1305
        %v1338 = vmul.f32 %v1305, %v1337
        %v1339 = vsub.f32 1.0, %v1338
        %v1340 = vmul.f32 %v1337, %v1339
        %v1341 = vadd.f32 %v1337, %v1340
        %vm1342 = vweird.f32 %v1305
        %vm1343 = vweird.f32 %v1337
        %vm1344 = vmor %vm1342, %vm1343
        %v1345 = vsel %vm1344, %v1337, %v1341
        %v1346 = vand.u32 2147483647, %v1305
        %vm1347 = vcmp.eq.f32.partialorder %v1346, 8.507059e+37
        %v1348 = vand.u32 %v1305, 2147483648
        %v1349 = vor.u32 1.1754944e-38, %v1348
        %v1350 = vsel %vm1347, %v1349, %v1345
        %v1351 = vrcp.pop %v1308
        %v1352 = vmul.f32 %v1308, %v1351
        %v1353 = vsub.f32 1.0, %v1352
        %v1354 = vmul.f32 %v1351, %v1353
        %v1355 = vadd.f32 %v1351, %v1354
        %vm1356 = vweird.f32 %v1308
        %vm1357 = vweird.f32 %v1351
        %vm1358 = vmor %vm1356, %vm1357
        %v1359 = vsel %vm1358, %v1351, %v1355
        %v1360 = vand.u32 2147483647, %v1308
        %vm1361 = vcmp.eq.f32.partialorder %v1360, 8.507059e+37
        %v1362 = vand.u32 %v1308, 2147483648
        %v1363 = vor.u32 1.1754944e-38, %v1362
        %v1364 = vsel %vm1361, %v1363, %v1359
        %v1365 = vmul.f32 %v1290, %v1322
        %v1366 = vmul.f32 %v1292, %v1336
        %v1367 = vmul.f32 %v1294, %v1350
        %v1368 = vmul.f32 %v1296, %v1364
        %1370 = vrot.lane.b32.xlu0 %v832, 120
        %v1371 = vpop.permute.xlu0 %1370
        %v1374 = vsel %vm859, %v1365, 0
        %1376 = vmatpush.msra.mxu0 0.0
        %1377 = vmatpush.msra.mxu0 0.0
        %1378 = vmatpush.msra.mxu0 0.0
        %1379 = vmatpush.msra.mxu0 0.0
        %1380 = vmatpush.msra.mxu0 0.0
        %1381 = vmatpush.msra.mxu0 0.0
        %1382 = vmatpush.msra.mxu0 0.0
        %1383 = vmatpush.msra.mxu0 0.0
        %1384 = vmatpush.msra.mxu0 0.0
        %1385 = vmatpush.msra.mxu0 0.0
        %1386 = vmatpush.msra.mxu0 0.0
        %1387 = vmatpush.msra.mxu0 0.0
        %1388 = vmatpush.msra.mxu0 0.0
        %1389 = vmatpush.msra.mxu0 0.0
        %1390 = vmatpush.msra.mxu0 0.0
        %1391 = vmatpush.msra.mxu0 %v1371
        %1392 = vmatmul.f32.gmra.mxu0 %v1374
        %v1393 = vpop.f32.mrf.mxu0
        %v1394 = vadd.f32 0.0, %v1393
        %1395 = vdwg.mxu0
        %1397 = vrot.lane.b32.xlu0 %v835, 120
        %v1398 = vpop.permute.xlu0 %1397
        %v1401 = vsel %vm859, %v1366, 0
        %1403 = vmatpush.msra.mxu0 0.0
        %1404 = vmatpush.msra.mxu0 0.0
        %1405 = vmatpush.msra.mxu0 0.0
        %1406 = vmatpush.msra.mxu0 0.0
        %1407 = vmatpush.msra.mxu0 0.0
        %1408 = vmatpush.msra.mxu0 0.0
        %1409 = vmatpush.msra.mxu0 0.0
        %1410 = vmatpush.msra.mxu0 0.0
        %1411 = vmatpush.msra.mxu0 0.0
        %1412 = vmatpush.msra.mxu0 0.0
        %1413 = vmatpush.msra.mxu0 0.0
        %1414 = vmatpush.msra.mxu0 0.0
        %1415 = vmatpush.msra.mxu0 0.0
        %1416 = vmatpush.msra.mxu0 0.0
        %1417 = vmatpush.msra.mxu0 0.0
        %1418 = vmatpush.msra.mxu0 %v1398
        %1419 = vmatmul.f32.gmra.mxu0 %v1401
        %v1420 = vpop.f32.mrf.mxu0
        %v1421 = vadd.f32 0.0, %v1420
        %1422 = vdwg.mxu0
        %1424 = vrot.lane.b32.xlu0 %v838, 120
        %v1425 = vpop.permute.xlu0 %1424
        %v1428 = vsel %vm859, %v1367, 0
        %1430 = vmatpush.msra.mxu0 0.0
        %1431 = vmatpush.msra.mxu0 0.0
        %1432 = vmatpush.msra.mxu0 0.0
        %1433 = vmatpush.msra.mxu0 0.0
        %1434 = vmatpush.msra.mxu0 0.0
        %1435 = vmatpush.msra.mxu0 0.0
        %1436 = vmatpush.msra.mxu0 0.0
        %1437 = vmatpush.msra.mxu0 0.0
        %1438 = vmatpush.msra.mxu0 0.0
        %1439 = vmatpush.msra.mxu0 0.0
        %1440 = vmatpush.msra.mxu0 0.0
        %1441 = vmatpush.msra.mxu0 0.0
        %1442 = vmatpush.msra.mxu0 0.0
        %1443 = vmatpush.msra.mxu0 0.0
        %1444 = vmatpush.msra.mxu0 0.0
        %1445 = vmatpush.msra.mxu0 %v1425
        %1446 = vmatmul.f32.gmra.mxu0 %v1428
        %v1447 = vpop.f32.mrf.mxu0
        %v1448 = vadd.f32 0.0, %v1447
        %1449 = vdwg.mxu0
        %1451 = vrot.lane.b32.xlu0 %v841, 120
        %v1452 = vpop.permute.xlu0 %1451
        %v1455 = vsel %vm859, %v1368, 0
        %1457 = vmatpush.msra.mxu0 0.0
        %1458 = vmatpush.msra.mxu0 0.0
        %1459 = vmatpush.msra.mxu0 0.0
        %1460 = vmatpush.msra.mxu0 0.0
        %1461 = vmatpush.msra.mxu0 0.0
        %1462 = vmatpush.msra.mxu0 0.0
        %1463 = vmatpush.msra.mxu0 0.0
        %1464 = vmatpush.msra.mxu0 0.0
        %1465 = vmatpush.msra.mxu0 0.0
        %1466 = vmatpush.msra.mxu0 0.0
        %1467 = vmatpush.msra.mxu0 0.0
        %1468 = vmatpush.msra.mxu0 0.0
        %1469 = vmatpush.msra.mxu0 0.0
        %1470 = vmatpush.msra.mxu0 0.0
        %1471 = vmatpush.msra.mxu0 0.0
        %1472 = vmatpush.msra.mxu0 %v1452
        %1473 = vmatmul.f32.gmra.mxu0 %v1455
        %v1474 = vpop.f32.mrf.mxu0
        %v1475 = vadd.f32 0.0, %v1474
        %1476 = vdwg.mxu0
        %1477 = vrot.lane.b32.xlu0 %v758, 112
        %v1478 = vpop.permute.xlu0 %1477
        %1479 = vrot.lane.b32.xlu0 %v795, 112
        %v1480 = vpop.permute.xlu0 %1479
        %v1481 = vsel %vm859, %v1478, 0
        %v1483 = vsel %vm859, %v1480, 0
        %1485 = vmatpush.xpose.msra.mxu0 0.0
        %1486 = vmatpush.xpose.msra.mxu0 0.0
        %1487 = vmatpush.xpose.msra.mxu0 0.0
        %1488 = vmatpush.xpose.msra.mxu0 0.0
        %1489 = vmatpush.xpose.msra.mxu0 0.0
        %1490 = vmatpush.xpose.msra.mxu0 0.0
        %1491 = vmatpush.xpose.msra.mxu0 0.0
        %1492 = vmatpush.xpose.msra.mxu0 0.0
        %1493 = vmatpush.xpose.msra.mxu0 0.0
        %1494 = vmatpush.xpose.msra.mxu0 0.0
        %1495 = vmatpush.xpose.msra.mxu0 0.0
        %1496 = vmatpush.xpose.msra.mxu0 0.0
        %1497 = vmatpush.xpose.msra.mxu0 0.0
        %1498 = vmatpush.xpose.msra.mxu0 0.0
        %1499 = vmatpush.xpose.msra.mxu0 0.0
        %1500 = vmatpush.xpose.msra.mxu0 %v1483
        %1501 = vmatmul.f32.gmra.mxu0 %v1481
        %v1502 = vpop.f32.mrf.mxu0
        %v1503 = vadd.f32 %v851, %v1502
        %1504 = vdwg.mxu0
        %1505 = vrot.lane.b32.xlu0 %v761, 112
        %v1506 = vpop.permute.xlu0 %1505
        %1507 = vrot.lane.b32.xlu0 %v798, 112
        %v1508 = vpop.permute.xlu0 %1507
        %v1509 = vsel %vm859, %v1506, 0
        %v1511 = vsel %vm859, %v1508, 0
        %1513 = vmatpush.xpose.msra.mxu0 0.0
        %1514 = vmatpush.xpose.msra.mxu0 0.0
        %1515 = vmatpush.xpose.msra.mxu0 0.0
        %1516 = vmatpush.xpose.msra.mxu0 0.0
        %1517 = vmatpush.xpose.msra.mxu0 0.0
        %1518 = vmatpush.xpose.msra.mxu0 0.0
        %1519 = vmatpush.xpose.msra.mxu0 0.0
        %1520 = vmatpush.xpose.msra.mxu0 0.0
        %1521 = vmatpush.xpose.msra.mxu0 0.0
        %1522 = vmatpush.xpose.msra.mxu0 0.0
        %1523 = vmatpush.xpose.msra.mxu0 0.0
        %1524 = vmatpush.xpose.msra.mxu0 0.0
        %1525 = vmatpush.xpose.msra.mxu0 0.0
        %1526 = vmatpush.xpose.msra.mxu0 0.0
        %1527 = vmatpush.xpose.msra.mxu0 0.0
        %1528 = vmatpush.xpose.msra.mxu0 %v1511
        %1529 = vmatmul.f32.gmra.mxu0 %v1509
        %v1530 = vpop.f32.mrf.mxu0
        %v1531 = vadd.f32 %v852, %v1530
        %1532 = vdwg.mxu0
        %1533 = vrot.lane.b32.xlu0 %v764, 112
        %v1534 = vpop.permute.xlu0 %1533
        %1535 = vrot.lane.b32.xlu0 %v801, 112
        %v1536 = vpop.permute.xlu0 %1535
        %v1537 = vsel %vm859, %v1534, 0
        %v1539 = vsel %vm859, %v1536, 0
        %1541 = vmatpush.xpose.msra.mxu0 0.0
        %1542 = vmatpush.xpose.msra.mxu0 0.0
        %1543 = vmatpush.xpose.msra.mxu0 0.0
        %1544 = vmatpush.xpose.msra.mxu0 0.0
        %1545 = vmatpush.xpose.msra.mxu0 0.0
        %1546 = vmatpush.xpose.msra.mxu0 0.0
        %1547 = vmatpush.xpose.msra.mxu0 0.0
        %1548 = vmatpush.xpose.msra.mxu0 0.0
        %1549 = vmatpush.xpose.msra.mxu0 0.0
        %1550 = vmatpush.xpose.msra.mxu0 0.0
        %1551 = vmatpush.xpose.msra.mxu0 0.0
        %1552 = vmatpush.xpose.msra.mxu0 0.0
        %1553 = vmatpush.xpose.msra.mxu0 0.0
        %1554 = vmatpush.xpose.msra.mxu0 0.0
        %1555 = vmatpush.xpose.msra.mxu0 0.0
        %1556 = vmatpush.xpose.msra.mxu0 %v1539
        %1557 = vmatmul.f32.gmra.mxu0 %v1537
        %v1558 = vpop.f32.mrf.mxu0
        %v1559 = vadd.f32 %v853, %v1558
        %1560 = vdwg.mxu0
        %1561 = vrot.lane.b32.xlu0 %v767, 112
        %v1562 = vpop.permute.xlu0 %1561
        %1563 = vrot.lane.b32.xlu0 %v804, 112
        %v1564 = vpop.permute.xlu0 %1563
        %v1565 = vsel %vm859, %v1562, 0
        %v1567 = vsel %vm859, %v1564, 0
        %1569 = vmatpush.xpose.msra.mxu0 0.0
        %1570 = vmatpush.xpose.msra.mxu0 0.0
        %1571 = vmatpush.xpose.msra.mxu0 0.0
        %1572 = vmatpush.xpose.msra.mxu0 0.0
        %1573 = vmatpush.xpose.msra.mxu0 0.0
        %1574 = vmatpush.xpose.msra.mxu0 0.0
        %1575 = vmatpush.xpose.msra.mxu0 0.0
        %1576 = vmatpush.xpose.msra.mxu0 0.0
        %1577 = vmatpush.xpose.msra.mxu0 0.0
        %1578 = vmatpush.xpose.msra.mxu0 0.0
        %1579 = vmatpush.xpose.msra.mxu0 0.0
        %1580 = vmatpush.xpose.msra.mxu0 0.0
        %1581 = vmatpush.xpose.msra.mxu0 0.0
        %1582 = vmatpush.xpose.msra.mxu0 0.0
        %1583 = vmatpush.xpose.msra.mxu0 0.0
        %1584 = vmatpush.xpose.msra.mxu0 %v1567
        %1585 = vmatmul.f32.gmra.mxu0 %v1565
        %v1586 = vpop.f32.mrf.mxu0
        %v1587 = vadd.f32 %v854, %v1586
        %1588 = vdwg.mxu0
        %s1589 = scalar_lea.vmem %s644, 64 [#allocation8]
        %1590 = vst.msk [vmem:[%s1589] sm:$0xff] %vm859, %v1503
        %1591 = vst.msk [vmem:[%s1589 + $0x8] sm:$0xff] %vm859, %v1531
        %1592 = vst.msk [vmem:[%s1589 + $0x10] sm:$0xff] %vm859, %v1559
        %1593 = vst.msk [vmem:[%s1589 + $0x18] sm:$0xff] %vm859, %v1587
        %v1594 = vsel %vm859, %v1503, -inf
        %1595 = vmax.xlane.f32.xlu0 %v1594
        %v1596 = vpop.xlane.xlu0 %1595
        %v1597 = vsel %vm859, %v1531, -inf
        %1598 = vmax.xlane.f32.xlu0 %v1597
        %v1599 = vpop.xlane.xlu0 %1598
        %v1600 = vsel %vm859, %v1559, -inf
        %1601 = vmax.xlane.f32.xlu0 %v1600
        %v1602 = vpop.xlane.xlu0 %1601
        %v1603 = vsel %vm859, %v1587, -inf
        %1604 = vmax.xlane.f32.xlu0 %v1603
        %v1605 = vpop.xlane.xlu0 %1604
        %v1606 = vsub.f32 %v1503, %v1596
        %v1607 = vsub.f32 %v1531, %v1599
        %v1608 = vsub.f32 %v1559, %v1602
        %v1609 = vsub.f32 %v1587, %v1605
        %v1610 = vmul.f32 %v1606, 1.442695
        %v1611 = vpow.pop %v1610
        %v1612 = vmul.f32 %v1607, 1.442695
        %v1613 = vpow.pop %v1612
        %v1614 = vmul.f32 %v1608, 1.442695
        %v1615 = vpow.pop %v1614
        %v1616 = vmul.f32 %v1609, 1.442695
        %v1617 = vpow.pop %v1616
        %v1618 = vsel %vm859, %v1611, 0.0
        %1619 = vadd.xlane.f32.xlu0 %v1618
        %v1620 = vpop.xlane.xlu0 %1619
        %v1621 = vsel %vm859, %v1613, 0.0
        %1622 = vadd.xlane.f32.xlu0 %v1621
        %v1623 = vpop.xlane.xlu0 %1622
        %v1624 = vsel %vm859, %v1615, 0.0
        %1625 = vadd.xlane.f32.xlu0 %v1624
        %v1626 = vpop.xlane.xlu0 %1625
        %v1627 = vsel %vm859, %v1617, 0.0
        %1628 = vadd.xlane.f32.xlu0 %v1627
        %v1629 = vpop.xlane.xlu0 %1628
        %v1630 = vrcp.pop %v1620
        %v1631 = vmul.f32 %v1620, %v1630
        %v1632 = vsub.f32 1.0, %v1631
        %v1633 = vmul.f32 %v1630, %v1632
        %v1634 = vadd.f32 %v1630, %v1633
        %vm1635 = vweird.f32 %v1620
        %vm1636 = vweird.f32 %v1630
        %vm1637 = vmor %vm1635, %vm1636
        %v1638 = vsel %vm1637, %v1630, %v1634
        %v1639 = vand.u32 2147483647, %v1620
        %vm1640 = vcmp.eq.f32.partialorder %v1639, 8.507059e+37
        %v1641 = vand.u32 %v1620, 2147483648
        %v1642 = vor.u32 1.1754944e-38, %v1641
        %v1643 = vsel %vm1640, %v1642, %v1638
        %v1644 = vrcp.pop %v1623
        %v1645 = vmul.f32 %v1623, %v1644
        %v1646 = vsub.f32 1.0, %v1645
        %v1647 = vmul.f32 %v1644, %v1646
        %v1648 = vadd.f32 %v1644, %v1647
        %vm1649 = vweird.f32 %v1623
        %vm1650 = vweird.f32 %v1644
        %vm1651 = vmor %vm1649, %vm1650
        %v1652 = vsel %vm1651, %v1644, %v1648
        %v1653 = vand.u32 2147483647, %v1623
        %vm1654 = vcmp.eq.f32.partialorder %v1653, 8.507059e+37
        %v1655 = vand.u32 %v1623, 2147483648
        %v1656 = vor.u32 1.1754944e-38, %v1655
        %v1657 = vsel %vm1654, %v1656, %v1652
        %v1658 = vrcp.pop %v1626
        %v1659 = vmul.f32 %v1626, %v1658
        %v1660 = vsub.f32 1.0, %v1659
        %v1661 = vmul.f32 %v1658, %v1660
        %v1662 = vadd.f32 %v1658, %v1661
        %vm1663 = vweird.f32 %v1626
        %vm1664 = vweird.f32 %v1658
        %vm1665 = vmor %vm1663, %vm1664
        %v1666 = vsel %vm1665, %v1658, %v1662
        %v1667 = vand.u32 2147483647, %v1626
        %vm1668 = vcmp.eq.f32.partialorder %v1667, 8.507059e+37
        %v1669 = vand.u32 %v1626, 2147483648
        %v1670 = vor.u32 1.1754944e-38, %v1669
        %v1671 = vsel %vm1668, %v1670, %v1666
        %v1672 = vrcp.pop %v1629
        %v1673 = vmul.f32 %v1629, %v1672
        %v1674 = vsub.f32 1.0, %v1673
        %v1675 = vmul.f32 %v1672, %v1674
        %v1676 = vadd.f32 %v1672, %v1675
        %vm1677 = vweird.f32 %v1629
        %vm1678 = vweird.f32 %v1672
        %vm1679 = vmor %vm1677, %vm1678
        %v1680 = vsel %vm1679, %v1672, %v1676
        %v1681 = vand.u32 2147483647, %v1629
        %vm1682 = vcmp.eq.f32.partialorder %v1681, 8.507059e+37
        %v1683 = vand.u32 %v1629, 2147483648
        %v1684 = vor.u32 1.1754944e-38, %v1683
        %v1685 = vsel %vm1682, %v1684, %v1680
        %v1686 = vmul.f32 %v1611, %v1643
        %v1687 = vmul.f32 %v1613, %v1657
        %v1688 = vmul.f32 %v1615, %v1671
        %v1689 = vmul.f32 %v1617, %v1685
        %1690 = vrot.lane.b32.xlu0 %v832, 112
        %v1691 = vpop.permute.xlu0 %1690
        %v1694 = vsel %vm859, %v1686, 0
        %1696 = vmatpush.msra.mxu0 0.0
        %1697 = vmatpush.msra.mxu0 0.0
        %1698 = vmatpush.msra.mxu0 0.0
        %1699 = vmatpush.msra.mxu0 0.0
        %1700 = vmatpush.msra.mxu0 0.0
        %1701 = vmatpush.msra.mxu0 0.0
        %1702 = vmatpush.msra.mxu0 0.0
        %1703 = vmatpush.msra.mxu0 0.0
        %1704 = vmatpush.msra.mxu0 0.0
        %1705 = vmatpush.msra.mxu0 0.0
        %1706 = vmatpush.msra.mxu0 0.0
        %1707 = vmatpush.msra.mxu0 0.0
        %1708 = vmatpush.msra.mxu0 0.0
        %1709 = vmatpush.msra.mxu0 0.0
        %1710 = vmatpush.msra.mxu0 0.0
        %1711 = vmatpush.msra.mxu0 %v1691
        %1712 = vmatmul.f32.gmra.mxu0 %v1694
        %v1713 = vpop.f32.mrf.mxu0
        %v1714 = vadd.f32 0.0, %v1713
        %1715 = vdwg.mxu0
        %1716 = vrot.lane.b32.xlu0 %v835, 112
        %v1717 = vpop.permute.xlu0 %1716
        %v1720 = vsel %vm859, %v1687, 0
        %1722 = vmatpush.msra.mxu0 0.0
        %1723 = vmatpush.msra.mxu0 0.0
        %1724 = vmatpush.msra.mxu0 0.0
        %1725 = vmatpush.msra.mxu0 0.0
        %1726 = vmatpush.msra.mxu0 0.0
        %1727 = vmatpush.msra.mxu0 0.0
        %1728 = vmatpush.msra.mxu0 0.0
        %1729 = vmatpush.msra.mxu0 0.0
        %1730 = vmatpush.msra.mxu0 0.0
        %1731 = vmatpush.msra.mxu0 0.0
        %1732 = vmatpush.msra.mxu0 0.0
        %1733 = vmatpush.msra.mxu0 0.0
        %1734 = vmatpush.msra.mxu0 0.0
        %1735 = vmatpush.msra.mxu0 0.0
        %1736 = vmatpush.msra.mxu0 0.0
        %1737 = vmatpush.msra.mxu0 %v1717
        %1738 = vmatmul.f32.gmra.mxu0 %v1720
        %v1739 = vpop.f32.mrf.mxu0
        %v1740 = vadd.f32 0.0, %v1739
        %1741 = vdwg.mxu0
        %1742 = vrot.lane.b32.xlu0 %v838, 112
        %v1743 = vpop.permute.xlu0 %1742
        %v1746 = vsel %vm859, %v1688, 0
        %1748 = vmatpush.msra.mxu0 0.0
        %1749 = vmatpush.msra.mxu0 0.0
        %1750 = vmatpush.msra.mxu0 0.0
        %1751 = vmatpush.msra.mxu0 0.0
        %1752 = vmatpush.msra.mxu0 0.0
        %1753 = vmatpush.msra.mxu0 0.0
        %1754 = vmatpush.msra.mxu0 0.0
        %1755 = vmatpush.msra.mxu0 0.0
        %1756 = vmatpush.msra.mxu0 0.0
        %1757 = vmatpush.msra.mxu0 0.0
        %1758 = vmatpush.msra.mxu0 0.0
        %1759 = vmatpush.msra.mxu0 0.0
        %1760 = vmatpush.msra.mxu0 0.0
        %1761 = vmatpush.msra.mxu0 0.0
        %1762 = vmatpush.msra.mxu0 0.0
        %1763 = vmatpush.msra.mxu0 %v1743
        %1764 = vmatmul.f32.gmra.mxu0 %v1746
        %v1765 = vpop.f32.mrf.mxu0
        %v1766 = vadd.f32 0.0, %v1765
        %1767 = vdwg.mxu0
        %1768 = vrot.lane.b32.xlu0 %v841, 112
        %v1769 = vpop.permute.xlu0 %1768
        %v1772 = vsel %vm859, %v1689, 0
        %1774 = vmatpush.msra.mxu0 0.0
        %1775 = vmatpush.msra.mxu0 0.0
        %1776 = vmatpush.msra.mxu0 0.0
        %1777 = vmatpush.msra.mxu0 0.0
        %1778 = vmatpush.msra.mxu0 0.0
        %1779 = vmatpush.msra.mxu0 0.0
        %1780 = vmatpush.msra.mxu0 0.0
        %1781 = vmatpush.msra.mxu0 0.0
        %1782 = vmatpush.msra.mxu0 0.0
        %1783 = vmatpush.msra.mxu0 0.0
        %1784 = vmatpush.msra.mxu0 0.0
        %1785 = vmatpush.msra.mxu0 0.0
        %1786 = vmatpush.msra.mxu0 0.0
        %1787 = vmatpush.msra.mxu0 0.0
        %1788 = vmatpush.msra.mxu0 0.0
        %1789 = vmatpush.msra.mxu0 %v1769
        %1790 = vmatmul.f32.gmra.mxu0 %v1772
        %v1791 = vpop.f32.mrf.mxu0
        %v1792 = vadd.f32 0.0, %v1791
        %1793 = vdwg.mxu0
        %1794 = vrot.lane.b32.xlu0 %v758, 104
        %v1795 = vpop.permute.xlu0 %1794
        %1796 = vrot.lane.b32.xlu0 %v795, 104
        %v1797 = vpop.permute.xlu0 %1796
        %v1798 = vsel %vm859, %v1795, 0
        %v1800 = vsel %vm859, %v1797, 0
        %1802 = vmatpush.xpose.msra.mxu0 0.0
        %1803 = vmatpush.xpose.msra.mxu0 0.0
        %1804 = vmatpush.xpose.msra.mxu0 0.0
        %1805 = vmatpush.xpose.msra.mxu0 0.0
        %1806 = vmatpush.xpose.msra.mxu0 0.0
        %1807 = vmatpush.xpose.msra.mxu0 0.0
        %1808 = vmatpush.xpose.msra.mxu0 0.0
        %1809 = vmatpush.xpose.msra.mxu0 0.0
        %1810 = vmatpush.xpose.msra.mxu0 0.0
        %1811 = vmatpush.xpose.msra.mxu0 0.0
        %1812 = vmatpush.xpose.msra.mxu0 0.0
        %1813 = vmatpush.xpose.msra.mxu0 0.0
        %1814 = vmatpush.xpose.msra.mxu0 0.0
        %1815 = vmatpush.xpose.msra.mxu0 0.0
        %1816 = vmatpush.xpose.msra.mxu0 0.0
        %1817 = vmatpush.xpose.msra.mxu0 %v1800
        %1818 = vmatmul.f32.gmra.mxu0 %v1798
        %v1819 = vpop.f32.mrf.mxu0
        %v1820 = vadd.f32 %v855, %v1819
        %1821 = vdwg.mxu0
        %1822 = vrot.lane.b32.xlu0 %v761, 104
        %v1823 = vpop.permute.xlu0 %1822
        %1824 = vrot.lane.b32.xlu0 %v798, 104
        %v1825 = vpop.permute.xlu0 %1824
        %v1826 = vsel %vm859, %v1823, 0
        %v1828 = vsel %vm859, %v1825, 0
        %1830 = vmatpush.xpose.msra.mxu0 0.0
        %1831 = vmatpush.xpose.msra.mxu0 0.0
        %1832 = vmatpush.xpose.msra.mxu0 0.0
        %1833 = vmatpush.xpose.msra.mxu0 0.0
        %1834 = vmatpush.xpose.msra.mxu0 0.0
        %1835 = vmatpush.xpose.msra.mxu0 0.0
        %1836 = vmatpush.xpose.msra.mxu0 0.0
        %1837 = vmatpush.xpose.msra.mxu0 0.0
        %1838 = vmatpush.xpose.msra.mxu0 0.0
        %1839 = vmatpush.xpose.msra.mxu0 0.0
        %1840 = vmatpush.xpose.msra.mxu0 0.0
        %1841 = vmatpush.xpose.msra.mxu0 0.0
        %1842 = vmatpush.xpose.msra.mxu0 0.0
        %1843 = vmatpush.xpose.msra.mxu0 0.0
        %1844 = vmatpush.xpose.msra.mxu0 0.0
        %1845 = vmatpush.xpose.msra.mxu0 %v1828
        %1846 = vmatmul.f32.gmra.mxu0 %v1826
        %v1847 = vpop.f32.mrf.mxu0
        %v1848 = vadd.f32 %v856, %v1847
        %1849 = vdwg.mxu0
        %1850 = vrot.lane.b32.xlu0 %v764, 104
        %v1851 = vpop.permute.xlu0 %1850
        %1852 = vrot.lane.b32.xlu0 %v801, 104
        %v1853 = vpop.permute.xlu0 %1852
        %v1854 = vsel %vm859, %v1851, 0
        %v1856 = vsel %vm859, %v1853, 0
        %1858 = vmatpush.xpose.msra.mxu0 0.0
        %1859 = vmatpush.xpose.msra.mxu0 0.0
        %1860 = vmatpush.xpose.msra.mxu0 0.0
        %1861 = vmatpush.xpose.msra.mxu0 0.0
        %1862 = vmatpush.xpose.msra.mxu0 0.0
        %1863 = vmatpush.xpose.msra.mxu0 0.0
        %1864 = vmatpush.xpose.msra.mxu0 0.0
        %1865 = vmatpush.xpose.msra.mxu0 0.0
        %1866 = vmatpush.xpose.msra.mxu0 0.0
        %1867 = vmatpush.xpose.msra.mxu0 0.0
        %1868 = vmatpush.xpose.msra.mxu0 0.0
        %1869 = vmatpush.xpose.msra.mxu0 0.0
        %1870 = vmatpush.xpose.msra.mxu0 0.0
        %1871 = vmatpush.xpose.msra.mxu0 0.0
        %1872 = vmatpush.xpose.msra.mxu0 0.0
        %1873 = vmatpush.xpose.msra.mxu0 %v1856
        %1874 = vmatmul.f32.gmra.mxu0 %v1854
        %v1875 = vpop.f32.mrf.mxu0
        %v1876 = vadd.f32 %v857, %v1875
        %1877 = vdwg.mxu0
        %1878 = vrot.lane.b32.xlu0 %v767, 104
        %v1879 = vpop.permute.xlu0 %1878
        %1880 = vrot.lane.b32.xlu0 %v804, 104
        %v1881 = vpop.permute.xlu0 %1880
        %v1882 = vsel %vm859, %v1879, 0
        %v1884 = vsel %vm859, %v1881, 0
        %1886 = vmatpush.xpose.msra.mxu0 0.0
        %1887 = vmatpush.xpose.msra.mxu0 0.0
        %1888 = vmatpush.xpose.msra.mxu0 0.0
        %1889 = vmatpush.xpose.msra.mxu0 0.0
        %1890 = vmatpush.xpose.msra.mxu0 0.0
        %1891 = vmatpush.xpose.msra.mxu0 0.0
        %1892 = vmatpush.xpose.msra.mxu0 0.0
        %1893 = vmatpush.xpose.msra.mxu0 0.0
        %1894 = vmatpush.xpose.msra.mxu0 0.0
        %1895 = vmatpush.xpose.msra.mxu0 0.0
        %1896 = vmatpush.xpose.msra.mxu0 0.0
        %1897 = vmatpush.xpose.msra.mxu0 0.0
        %1898 = vmatpush.xpose.msra.mxu0 0.0
        %1899 = vmatpush.xpose.msra.mxu0 0.0
        %1900 = vmatpush.xpose.msra.mxu0 0.0
        %1901 = vmatpush.xpose.msra.mxu0 %v1884
        %1902 = vmatmul.f32.gmra.mxu0 %v1882
        %v1903 = vpop.f32.mrf.mxu0
        %v1904 = vadd.f32 %v858, %v1903
        %1905 = vdwg.mxu0
        %s1906 = scalar_lea.vmem %s644, 96 [#allocation8]
        %1907 = vst.msk [vmem:[%s1906] sm:$0xff] %vm859, %v1820
        %1908 = vst.msk [vmem:[%s1906 + $0x8] sm:$0xff] %vm859, %v1848
        %1909 = vst.msk [vmem:[%s1906 + $0x10] sm:$0xff] %vm859, %v1876
        %1910 = vst.msk [vmem:[%s1906 + $0x18] sm:$0xff] %vm859, %v1904
        %v1911 = vsel %vm859, %v1820, -inf
        %1912 = vmax.xlane.f32.xlu0 %v1911
        %v1913 = vpop.xlane.xlu0 %1912
        %v1914 = vsel %vm859, %v1848, -inf
        %1915 = vmax.xlane.f32.xlu0 %v1914
        %v1916 = vpop.xlane.xlu0 %1915
        %v1917 = vsel %vm859, %v1876, -inf
        %1918 = vmax.xlane.f32.xlu0 %v1917
        %v1919 = vpop.xlane.xlu0 %1918
        %v1920 = vsel %vm859, %v1904, -inf
        %1921 = vmax.xlane.f32.xlu0 %v1920
        %v1922 = vpop.xlane.xlu0 %1921
        %v1923 = vsub.f32 %v1820, %v1913
        %v1924 = vsub.f32 %v1848, %v1916
        %v1925 = vsub.f32 %v1876, %v1919
        %v1926 = vsub.f32 %v1904, %v1922
        %v1927 = vmul.f32 %v1923, 1.442695
        %v1928 = vpow.pop %v1927
        %v1929 = vmul.f32 %v1924, 1.442695
        %v1930 = vpow.pop %v1929
        %v1931 = vmul.f32 %v1925, 1.442695
        %v1932 = vpow.pop %v1931
        %v1933 = vmul.f32 %v1926, 1.442695
        %v1934 = vpow.pop %v1933
        %v1935 = vsel %vm859, %v1928, 0.0
        %1936 = vadd.xlane.f32.xlu0 %v1935
        %v1937 = vpop.xlane.xlu0 %1936
        %v1938 = vsel %vm859, %v1930, 0.0
        %1939 = vadd.xlane.f32.xlu0 %v1938
        %v1940 = vpop.xlane.xlu0 %1939
        %v1941 = vsel %vm859, %v1932, 0.0
        %1942 = vadd.xlane.f32.xlu0 %v1941
        %v1943 = vpop.xlane.xlu0 %1942
        %v1944 = vsel %vm859, %v1934, 0.0
        %1945 = vadd.xlane.f32.xlu0 %v1944
        %v1946 = vpop.xlane.xlu0 %1945
        %v1947 = vrcp.pop %v1937
        %v1948 = vmul.f32 %v1937, %v1947
        %v1949 = vsub.f32 1.0, %v1948
        %v1950 = vmul.f32 %v1947, %v1949
        %v1951 = vadd.f32 %v1947, %v1950
        %vm1952 = vweird.f32 %v1937
        %vm1953 = vweird.f32 %v1947
        %vm1954 = vmor %vm1952, %vm1953
        %v1955 = vsel %vm1954, %v1947, %v1951
        %v1956 = vand.u32 2147483647, %v1937
        %vm1957 = vcmp.eq.f32.partialorder %v1956, 8.507059e+37
        %v1958 = vand.u32 %v1937, 2147483648
        %v1959 = vor.u32 1.1754944e-38, %v1958
        %v1960 = vsel %vm1957, %v1959, %v1955
        %v1961 = vrcp.pop %v1940
        %v1962 = vmul.f32 %v1940, %v1961
        %v1963 = vsub.f32 1.0, %v1962
        %v1964 = vmul.f32 %v1961, %v1963
        %v1965 = vadd.f32 %v1961, %v1964
        %vm1966 = vweird.f32 %v1940
        %vm1967 = vweird.f32 %v1961
        %vm1968 = vmor %vm1966, %vm1967
        %v1969 = vsel %vm1968, %v1961, %v1965
        %v1970 = vand.u32 2147483647, %v1940
        %vm1971 = vcmp.eq.f32.partialorder %v1970, 8.507059e+37
        %v1972 = vand.u32 %v1940, 2147483648
        %v1973 = vor.u32 1.1754944e-38, %v1972
        %v1974 = vsel %vm1971, %v1973, %v1969
        %v1975 = vrcp.pop %v1943
        %v1976 = vmul.f32 %v1943, %v1975
        %v1977 = vsub.f32 1.0, %v1976
        %v1978 = vmul.f32 %v1975, %v1977
        %v1979 = vadd.f32 %v1975, %v1978
        %vm1980 = vweird.f32 %v1943
        %vm1981 = vweird.f32 %v1975
        %vm1982 = vmor %vm1980, %vm1981
        %v1983 = vsel %vm1982, %v1975, %v1979
        %v1984 = vand.u32 2147483647, %v1943
        %vm1985 = vcmp.eq.f32.partialorder %v1984, 8.507059e+37
        %v1986 = vand.u32 %v1943, 2147483648
        %v1987 = vor.u32 1.1754944e-38, %v1986
        %v1988 = vsel %vm1985, %v1987, %v1983
        %v1989 = vrcp.pop %v1946
        %v1990 = vmul.f32 %v1946, %v1989
        %v1991 = vsub.f32 1.0, %v1990
        %v1992 = vmul.f32 %v1989, %v1991
        %v1993 = vadd.f32 %v1989, %v1992
        %vm1994 = vweird.f32 %v1946
        %vm1995 = vweird.f32 %v1989
        %vm1996 = vmor %vm1994, %vm1995
        %v1997 = vsel %vm1996, %v1989, %v1993
        %v1998 = vand.u32 2147483647, %v1946
        %vm1999 = vcmp.eq.f32.partialorder %v1998, 8.507059e+37
        %v2000 = vand.u32 %v1946, 2147483648
        %v2001 = vor.u32 1.1754944e-38, %v2000
        %v2002 = vsel %vm1999, %v2001, %v1997
        %v2003 = vmul.f32 %v1928, %v1960
        %v2004 = vmul.f32 %v1930, %v1974
        %v2005 = vmul.f32 %v1932, %v1988
        %v2006 = vmul.f32 %v1934, %v2002
        %2007 = vrot.lane.b32.xlu0 %v832, 104
        %v2008 = vpop.permute.xlu0 %2007
        %v2011 = vsel %vm859, %v2003, 0
        %2013 = vmatpush.msra.mxu0 0.0
        %2014 = vmatpush.msra.mxu0 0.0
        %2015 = vmatpush.msra.mxu0 0.0
        %2016 = vmatpush.msra.mxu0 0.0
        %2017 = vmatpush.msra.mxu0 0.0
        %2018 = vmatpush.msra.mxu0 0.0
        %2019 = vmatpush.msra.mxu0 0.0
        %2020 = vmatpush.msra.mxu0 0.0
        %2021 = vmatpush.msra.mxu0 0.0
        %2022 = vmatpush.msra.mxu0 0.0
        %2023 = vmatpush.msra.mxu0 0.0
        %2024 = vmatpush.msra.mxu0 0.0
        %2025 = vmatpush.msra.mxu0 0.0
        %2026 = vmatpush.msra.mxu0 0.0
        %2027 = vmatpush.msra.mxu0 0.0
        %2028 = vmatpush.msra.mxu0 %v2008
        %2029 = vmatmul.f32.gmra.mxu0 %v2011
        %v2030 = vpop.f32.mrf.mxu0
        %v2031 = vadd.f32 0.0, %v2030
        %2032 = vdwg.mxu0
        %2033 = vrot.lane.b32.xlu0 %v835, 104
        %v2034 = vpop.permute.xlu0 %2033
        %v2037 = vsel %vm859, %v2004, 0
        %2039 = vmatpush.msra.mxu0 0.0
        %2040 = vmatpush.msra.mxu0 0.0
        %2041 = vmatpush.msra.mxu0 0.0
        %2042 = vmatpush.msra.mxu0 0.0
        %2043 = vmatpush.msra.mxu0 0.0
        %2044 = vmatpush.msra.mxu0 0.0
        %2045 = vmatpush.msra.mxu0 0.0
        %2046 = vmatpush.msra.mxu0 0.0
        %2047 = vmatpush.msra.mxu0 0.0
        %2048 = vmatpush.msra.mxu0 0.0
        %2049 = vmatpush.msra.mxu0 0.0
        %2050 = vmatpush.msra.mxu0 0.0
        %2051 = vmatpush.msra.mxu0 0.0
        %2052 = vmatpush.msra.mxu0 0.0
        %2053 = vmatpush.msra.mxu0 0.0
        %2054 = vmatpush.msra.mxu0 %v2034
        %2055 = vmatmul.f32.gmra.mxu0 %v2037
        %v2056 = vpop.f32.mrf.mxu0
        %v2057 = vadd.f32 0.0, %v2056
        %2058 = vdwg.mxu0
        %2059 = vrot.lane.b32.xlu0 %v838, 104
        %v2060 = vpop.permute.xlu0 %2059
        %v2063 = vsel %vm859, %v2005, 0
        %2065 = vmatpush.msra.mxu0 0.0
        %2066 = vmatpush.msra.mxu0 0.0
        %2067 = vmatpush.msra.mxu0 0.0
        %2068 = vmatpush.msra.mxu0 0.0
        %2069 = vmatpush.msra.mxu0 0.0
        %2070 = vmatpush.msra.mxu0 0.0
        %2071 = vmatpush.msra.mxu0 0.0
        %2072 = vmatpush.msra.mxu0 0.0
        %2073 = vmatpush.msra.mxu0 0.0
        %2074 = vmatpush.msra.mxu0 0.0
        %2075 = vmatpush.msra.mxu0 0.0
        %2076 = vmatpush.msra.mxu0 0.0
        %2077 = vmatpush.msra.mxu0 0.0
        %2078 = vmatpush.msra.mxu0 0.0
        %2079 = vmatpush.msra.mxu0 0.0
        %2080 = vmatpush.msra.mxu0 %v2060
        %2081 = vmatmul.f32.gmra.mxu0 %v2063
        %v2082 = vpop.f32.mrf.mxu0
        %v2083 = vadd.f32 0.0, %v2082
        %2084 = vdwg.mxu0
        %2085 = vrot.lane.b32.xlu0 %v841, 104
        %v2086 = vpop.permute.xlu0 %2085
        %v2089 = vsel %vm859, %v2006, 0
        %2091 = vmatpush.msra.mxu0 0.0
        %2092 = vmatpush.msra.mxu0 0.0
        %2093 = vmatpush.msra.mxu0 0.0
        %2094 = vmatpush.msra.mxu0 0.0
        %2095 = vmatpush.msra.mxu0 0.0
        %2096 = vmatpush.msra.mxu0 0.0
        %2097 = vmatpush.msra.mxu0 0.0
        %2098 = vmatpush.msra.mxu0 0.0
        %2099 = vmatpush.msra.mxu0 0.0
        %2100 = vmatpush.msra.mxu0 0.0
        %2101 = vmatpush.msra.mxu0 0.0
        %2102 = vmatpush.msra.mxu0 0.0
        %2103 = vmatpush.msra.mxu0 0.0
        %2104 = vmatpush.msra.mxu0 0.0
        %2105 = vmatpush.msra.mxu0 0.0
        %2106 = vmatpush.msra.mxu0 %v2086
        %2107 = vmatmul.f32.gmra.mxu0 %v2089
        %v2108 = vpop.f32.mrf.mxu0
        %v2109 = vadd.f32 0.0, %v2108
        %2110 = vdwg.mxu0
        %2115 = vrot.lane.b32.xlu0 %v1394, 8
        %v2116 = vpop.permute.xlu0 %2115
        %2117 = vrot.lane.b32.xlu0 %v1421, 8
        %v2118 = vpop.permute.xlu0 %2117
        %2119 = vrot.lane.b32.xlu0 %v1448, 8
        %v2120 = vpop.permute.xlu0 %2119
        %2121 = vrot.lane.b32.xlu0 %v1475, 8
        %v2122 = vpop.permute.xlu0 %2121
        %2131 = vrot.lane.b32.xlu0 %v1714, 16
        %v2132 = vpop.permute.xlu0 %2131
        %2133 = vrot.lane.b32.xlu0 %v1740, 16
        %v2134 = vpop.permute.xlu0 %2133
        %2135 = vrot.lane.b32.xlu0 %v1766, 16
        %v2136 = vpop.permute.xlu0 %2135
        %2137 = vrot.lane.b32.xlu0 %v1792, 16
        %v2138 = vpop.permute.xlu0 %2137
        %2147 = vrot.lane.b32.xlu0 %v2031, 24
        %v2148 = vpop.permute.xlu0 %2147
        %2149 = vrot.lane.b32.xlu0 %v2057, 24
        %v2150 = vpop.permute.xlu0 %2149
        %2151 = vrot.lane.b32.xlu0 %v2083, 24
        %v2152 = vpop.permute.xlu0 %2151
        %2153 = vrot.lane.b32.xlu0 %v2109, 24
        %v2154 = vpop.permute.xlu0 %2153
        %v2159 = vsel %vm859, %v1085, %v2116
        %v2160 = vsel %vm859, %v1108, %v2118
        %v2161 = vsel %vm859, %v1131, %v2120
        %v2162 = vsel %vm859, %v1154, %v2122
        %vm2163 = vcmask 130048
        %v2164 = vsel %vm2163, %v2159, %v2132
        %v2165 = vsel %vm2163, %v2160, %v2134
        %v2166 = vsel %vm2163, %v2161, %v2136
        %v2167 = vsel %vm2163, %v2162, %v2138
        %vm2168 = vcmask 195584
        %v2169 = vsel %vm2168, %v2164, %v2148
        %v2170 = vsel %vm2168, %v2165, %v2150
        %v2171 = vsel %vm2168, %v2166, %v2152
        %v2172 = vsel %vm2168, %v2167, %v2154
        %v2173 = vld [vmem:[#allocation3] sm:$0xff]
        %v2174 = vld [vmem:[#allocation3 + $0x8] sm:$0xff]
        %v2175 = vld [vmem:[#allocation3 + $0x10] sm:$0xff]
        %v2176 = vld [vmem:[#allocation3 + $0x18] sm:$0xff]
        %v2177 = vld [vmem:[#allocation6] sm:$0x1]
        %v2179 = vperm.slane %v2177, 0
        %v2182 = vsel %vm727, %v2169, 0
        %v2185 = vsel %vm727, %v2170, 0
        %v2188 = vsel %vm727, %v2171, 0
        %v2191 = vsel %vm727, %v2172, 0
        %2193 = vmatpush.msra.mxu0 0.0
        %2194 = vmatpush.msra.mxu0 0.0
        %2195 = vmatpush.msra.mxu0 0.0
        %2196 = vmatpush.msra.mxu0 0.0
        %2197 = vmatpush.msra.mxu0 0.0
        %2198 = vmatpush.msra.mxu0 0.0
        %2199 = vmatpush.msra.mxu0 0.0
        %2200 = vmatpush.msra.mxu0 0.0
        %2201 = vmatpush.msra.mxu0 0.0
        %2202 = vmatpush.msra.mxu0 0.0
        %2203 = vmatpush.msra.mxu0 0.0
        %2204 = vmatpush.msra.mxu0 0.0
        %2205 = vmatpush.msra.mxu0 %v2176
        %2206 = vmatpush.msra.mxu0 %v2175
        %2207 = vmatpush.msra.mxu0 %v2174
        %2208 = vmatpush.msra.mxu0 %v2173
        %2209 = vmatmul.f32.gmra.mxu0 %v2182
        %v2210 = vpop.f32.mrf.mxu0
        %v2211 = vadd.f32 %v2179, %v2210
        %2212 = vmatmul.f32.gmra.mxu0 %v2185
        %v2213 = vpop.f32.mrf.mxu0
        %v2214 = vadd.f32 %v2179, %v2213
        %2215 = vmatmul.f32.gmra.mxu0 %v2188
        %v2216 = vpop.f32.mrf.mxu0
        %v2217 = vadd.f32 %v2179, %v2216
        %2218 = vmatmul.f32.gmra.mxu0 %v2191
        %v2219 = vpop.f32.mrf.mxu0
        %v2220 = vadd.f32 %v2179, %v2219
        %2221 = vdwg.mxu0
        %v2222 = vadd.f32 %v715, %v2211
        %v2223 = vadd.f32 %v716, %v2214
        %v2224 = vadd.f32 %v717, %v2217
        %v2225 = vadd.f32 %v718, %v2220
        %2226 = vst.msk [vmem:[%s662] sm:$0xff] %vm727, %v2222
        %2227 = vst.msk [vmem:[%s662 + $0x8] sm:$0xff] %vm727, %v2223
        %2228 = vst.msk [vmem:[%s662 + $0x10] sm:$0xff] %vm727, %v2224
        %2229 = vst.msk [vmem:[%s662 + $0x18] sm:$0xff] %vm727, %v2225
        %v2230 = vsel %vm727, %v2222, 0.0
        %v2231 = vsel %vm727, %v2223, 0.0
        %v2232 = vadd.f32 %v2230, %v2231
        %v2233 = vsel %vm727, %v2224, 0.0
        %v2234 = vadd.f32 %v2232, %v2233
        %v2235 = vsel %vm727, %v2225, 0.0
        %v2236 = vadd.f32 %v2234, %v2235
        %v2237 = vrot.slane %v2236, 4
        %v2238 = vadd.f32 %v2236, %v2237
        %v2239 = vrot.slane %v2238, 2
        %v2240 = vadd.f32 %v2238, %v2239
        %v2241 = vrot.slane %v2240, 1
        %v2242 = vadd.f32 %v2240, %v2241
        %vm2243 = vcmask 253952
        %2244 = vst.msk [vmem:[%s668] sm:$0x1] %vm2243, %v2242
        %v2245 = vmul.f32 %v2222, %v2222
        %v2246 = vmul.f32 %v2223, %v2223
        %v2247 = vmul.f32 %v2224, %v2224
        %v2248 = vmul.f32 %v2225, %v2225
        %v2249 = vsel %vm727, %v2245, 0.0
        %v2250 = vsel %vm727, %v2246, 0.0
        %v2251 = vadd.f32 %v2249, %v2250
        %v2252 = vsel %vm727, %v2247, 0.0
        %v2253 = vadd.f32 %v2251, %v2252
        %v2254 = vsel %vm727, %v2248, 0.0
        %v2255 = vadd.f32 %v2253, %v2254
        %v2256 = vrot.slane %v2255, 4
        %v2257 = vadd.f32 %v2255, %v2256
        %v2258 = vrot.slane %v2257, 2
        %v2259 = vadd.f32 %v2257, %v2258
        %v2260 = vrot.slane %v2259, 1
        %v2261 = vadd.f32 %v2259, %v2260
        %2262 = vst.msk [vmem:[%s668 + $0x1] sm:$0x1] %vm2243, %v2261
        %s2263 = smul.u32 4, %s32
        %p2264 = scmp.lt.s32.totalorder %s2263, 7
        %s2265 = scalar_select %p2264, %s2263, 7
        %s2266 = smul.addr %s2265, 8
        %s2267 = scalar_lea.vmem %s13, %s2266
        %s2268 = sand.u32 %s349, 1
        %s2269 = scalar_lea.sflag [#allocation5], %s2268
        %s2270 = sand.u32 %s349, 1
        %s2271 = smul.addr %s2270, 128
        %s2272 = scalar_lea.vmem [#allocation8], %s2271
        %p2273 = scmp.lt.s32.totalorder %s32, 1
        %s2274 = scalar_select %p2273, %s32, 1
        %s2275 = smul.addr %s2274, 2
        %s2276 = scalar_lea.vmem %s15, %s2275
        // Predicated region
        $region119: #{tsti_encoder_forward.9} parent=105 // pred_check
          %p2277 = pneg %p333
        $region120: #{tsti_encoder_forward.9} parent=105 // pred_check_branch
          %2279 = sbr.rel (%p2277) target = $region122
        $region121: #{tsti_encoder_forward.9} parent=105 // pred_region
          %s2280 = smul.u32 4, %s32
        $region122: #{tsti_encoder_forward.9} parent=105 // pred_fallthru
          _
        // Predicated region
        $region123: #{tsti_encoder_forward.9} parent=105 // pred_check
          %p2281 = pneg %p359
        $region124: #{tsti_encoder_forward.9} parent=105 // pred_check_branch
          %2283 = sbr.rel (%p2281) target = $region126
        $region125: #{tsti_encoder_forward.9} parent=105 // pred_region
          #allocation10 [shape = 'u32[6]{0}', space=smem, size = 0x18, scoped, tag = 'DMA stride descriptor']
          %s2284 = smul.u32 4, %s32
          %2286 = vsyncadd %s2269, 0
          %s2287 = smul.addr %s2284, 8
          %s2288 = scalar_lea.hbm %s14, %s2287
          %s2290 = sshll.u32 1, 14
          %s2291 = sxor.u32 4294967295, %s2290
          %s2294 = sshll.u32 7, 18
          %s2295 = sxor.u32 4294967295, %s2294
          %s2296 = sand.u32 0, %s2295
          %s2298 = sor.u32 %s2296, 0
          %s2299 = sshll.u32 %s2272, 4
          %s2300 = int_to_ptr.vmem [resolvable:$true] %s2299
          %s2301 = sshll.u32 %s2288, 4
          %s2302 = int_to_ptr.hbm [resolvable:$true] %s2301
          %2308 = sst [smem:[#allocation10]] 512
          %s2309 = scalar_lea.smem [#allocation10], 1
          %2310 = sst [smem:[%s2309]] 1024
          %s2311 = scalar_lea.smem [#allocation10], 2
          %2312 = sst [smem:[%s2311]] 4
          %s2313 = scalar_lea.smem [#allocation10], 3
          %2314 = sst [smem:[%s2313]] 128
          %s2315 = scalar_lea.smem [#allocation10], 4
          %2316 = sst [smem:[%s2315]] 128
          %s2317 = scalar_lea.smem [#allocation10], 5
          %2318 = sst [smem:[%s2317]] 8
          %2320 = dma.general %s2300, 2048, %s2302, %s2269, [#allocation9], [#allocation10], %s2298, 0
        $region126: #{tsti_encoder_forward.9} parent=105 // pred_fallthru
          _
        // Predicated region
        $region127: #{tsti_encoder_forward.9} parent=105 // pred_check
          %p2321 = pneg %p385
        $region128: #{tsti_encoder_forward.9} parent=105 // pred_check_branch
          %2323 = sbr.rel (%p2321) target = $region130
        $region129: #{tsti_encoder_forward.9} parent=105 // pred_region
          _
        $region130: #{tsti_encoder_forward.9} parent=105 // pred_fallthru
          _
      $region106: #{tsti_encoder_forward.9} parent=5 // pred_fallthru
        _
      %p2324 = scmp.le.s32.totalorder 2, %s27
      // Predicated region
      $region131: #{tsti_encoder_forward.9} parent=5 // pred_check
        %p2325 = pneg %p2324
      $region132: #{tsti_encoder_forward.9} parent=5 // pred_check_branch
        %2327 = sbr.rel (%p2325) target = $region134
      $region133: #{tsti_encoder_forward.9} parent=5 // pred_region
        %s2328 = ssub.s32 %s27, 2
        // Predicated region
        $region135: #{tsti_encoder_forward.9} parent=133 // pred_check
          %p2329 = pneg %p339
        $region136: #{tsti_encoder_forward.9} parent=133 // pred_check_branch
          %2331 = sbr.rel (%p2329) target = $region138
        $region137: #{tsti_encoder_forward.9} parent=133 // pred_region
          %s2332 = smul.u32 4, %s33
          %p2333 = scmp.lt.s32.totalorder %s2332, 7
          %s2334 = scalar_select %p2333, %s2332, 7
          %s2335 = smul.addr %s2334, 8
          %s2336 = scalar_lea.vmem %s13, %s2335
        $region138: #{tsti_encoder_forward.9} parent=133 // pred_fallthru
          _
        // Predicated region
        $region139: #{tsti_encoder_forward.9} parent=133 // pred_check
          %p2337 = pneg %p365
        $region140: #{tsti_encoder_forward.9} parent=133 // pred_check_branch
          %2339 = sbr.rel (%p2337) target = $region142
        $region141: #{tsti_encoder_forward.9} parent=133 // pred_region
          %s2340 = sand.u32 %s350, 1
          %s2341 = scalar_lea.sflag [#allocation5], %s2340
          %s2342 = sand.u32 %s350, 1
          %s2343 = smul.addr %s2342, 128
          %s2344 = scalar_lea.vmem [#allocation8], %s2343
          %2346 = dma.done %s2341, 2048
        $region142: #{tsti_encoder_forward.9} parent=133 // pred_fallthru
          _
        // Predicated region
        $region143: #{tsti_encoder_forward.9} parent=133 // pred_check
          %p2347 = pneg %p391
        $region144: #{tsti_encoder_forward.9} parent=133 // pred_check_branch
          %2349 = sbr.rel (%p2347) target = $region146
        $region145: #{tsti_encoder_forward.9} parent=133 // pred_region
          %p2350 = scmp.lt.s32.totalorder %s33, 1
          %s2351 = scalar_select %p2350, %s33, 1
          %s2352 = smul.addr %s2351, 2
          %s2353 = scalar_lea.vmem %s15, %s2352
        $region146: #{tsti_encoder_forward.9} parent=133 // pred_fallthru
          _
      $region134: #{tsti_encoder_forward.9} parent=5 // pred_fallthru
        _
    $region6: #{tsti_encoder_forward.9} parent=1 // loop_footer
      %s31 = sadd.s32 1, %s27
    $region7: #{tsti_encoder_forward.9} parent=1 // loop_footer_branch
      %26 = sbr.rel target = $region3
    $region8: #{tsti_encoder_forward.9} parent=1 // loop_exit
      _
    %2354 = vsyncpa [#allocation4], 1
    %s2355 = scalar_lea.sflag [#allocation4], 1
    %2356 = vsyncpa %s2355, 1
    %2357 = vsyncpa [#allocation7], 1
    %2358 = vsyncpa [#allocation5], 1
    %s2359 = scalar_lea.sflag [#allocation5], 1
    %2360 = vsyncpa %s2359, 1

// kernel: tsti_encoder_forward.7
$region0: #{tsti_encoder_forward.7}
  #allocation0 [shape = 'u32[]', space=smem, size = 0x4, offset = 0x4, fixed_abs, tag = 'smem constant byte address 0x4 - core index']
  #allocation1 [shape = 'u32[72,128]{1,0:T(1,128)}', space=vmem, size = 0x9000, scoped, tag = 'internal scratch']
  %s0 = inlined_call_operand.vmem [shape: f32[64,32], index: 0, kind: input, shape index: {}]
  %s1 = inlined_call_operand.vmem [shape: f32[32,32], index: 1, kind: input, shape index: {}]
  %s2 = inlined_call_operand.vmem [shape: f32[1,32], index: 2, kind: input, shape index: {}]
  %s3 = inlined_call_operand.vmem [shape: f32[32,32], index: 3, kind: input, shape index: {}]
  %s4 = inlined_call_operand.hbm [shape: f32[1,32], index: 4, kind: input, shape index: {}]
  %s5 = inlined_call_operand.vmem [shape: f32[32,32], index: 5, kind: input, shape index: {}]
  %s6 = inlined_call_operand.hbm [shape: f32[1,32], index: 6, kind: input, shape index: {}]
  %s7 = inlined_call_operand.hbm [shape: f32[32,32], index: 7, kind: input, shape index: {}]
  %s8 = inlined_call_operand.hbm [shape: f32[1,32], index: 8, kind: input, shape index: {}]
  %s9 = inlined_call_operand.vmem [shape: f32[64,32], index: 9, kind: output, shape index: {0}]
  %s10 = inlined_call_operand.vmem [shape: f32[4,8,8,8], index: 10, kind: output, shape index: {1}]
  %s11 = inlined_call_operand.vmem [shape: f32[2,2,32], index: 11, kind: output, shape index: {2}]
  %12 = xla_tuple %s9, %s10, %s11
  %s13 = sld [smem:[#allocation0]]
  $region135: #{tsti_encoder_forward.7} parent=0
    _
  %s15 = ssub.s32 1, %s13
  %s16 = scalar_select 0, %s15, %s13
  $region1: #{tsti_encoder_forward.7} parent=0
    #allocation2 [shape = 'u8[512]{0}', space=vmem, size = 0x400, scoped, tag = 'input window, operand 4, single buffered']
    #allocation3 [shape = 's32[2]{0}', space=sflag, size = 0x8, scoped, tag = 'scoped memory for tsti_encoder_forward.7']
    #allocation4 [shape = 'u8[512]{0}', space=vmem, size = 0x400, scoped, tag = 'input window, operand 6, single buffered']
    #allocation5 [shape = 's32[1]{0}', space=sflag, size = 0x4, scoped, tag = 'scoped memory for tsti_encoder_forward.7']
    #allocation6 [shape = 'u8[16384]{0}', space=vmem, size = 0x4000, scoped, tag = 'input window, operand 7, single buffered']
    #allocation7 [shape = 'u8[512]{0}', space=vmem, size = 0x400, scoped, tag = 'input window, operand 8, single buffered']
    #allocation8 [shape = 's32[1]{0}', space=sflag, size = 0x4, scoped, tag = 'scoped memory for tsti_encoder_forward.7']
    #allocation9 [shape = 'u8[131072]{0}', space=vmem, size = 0x20000, scoped, tag = 'output window, operand 1']
    %17 = vsyncpa [#allocation3], 0
    %18 = vsyncpa [#allocation5], 0
    %19 = vsyncpa [#allocation8], 0
    loop: start=0, step=1, limit=4
    $region2: #{tsti_encoder_forward.7} parent=1 // loop_pre_header
      _
    $region3: #{tsti_encoder_forward.7} parent=1 // loop_header
      %s21 = sphi 0, %s25
      %p22 = scmp.ge.s32.totalorder %s21, 4
      %s31 = sphi 0, %s33
      %s34 = sphi 0, %s31
      %s35 = sphi 0, %s34
      %s51 = sphi 0, %s35
      %s55 = sphi 0, %s55
      %s57 = sphi 0, %s55
      %s58 = sphi 0, %s57
      %s72 = sphi 0, %s58
      %s76 = sphi 0, %s76
      %s78 = sphi 0, %s76
      %s79 = sphi 0, %s78
      %s93 = sphi 0, %s79
      %s97 = sphi 0, %s97
      %s99 = sphi 0, %s97
      %s100 = sphi 0, %s99
      %s114 = sphi 0, %s100
      %s118 = sphi 0, %s118
      %s120 = sphi 0, %s118
      %s121 = sphi 0, %s120
      %s135 = sphi 0, %s121
      %s139 = sphi 0, %s139
      %s141 = sphi 0, %s139
      %s142 = sphi 0, %s141
      %s156 = sphi 0, %s142
      %s160 = sphi 0, %s160
      %s162 = sphi 0, %s160
      %s163 = sphi 0, %s162
      %s177 = sphi 0, %s163
      %s181 = sphi 0, %s181
      %s183 = sphi 0, %s181
      %s184 = sphi 0, %s183
      %s198 = sphi 0, %s184
      %s202 = sphi 0, %s202
      %s204 = sphi 0, %s202
      %s205 = sphi 0, %s204
      %s219 = sphi 0, %s205
      %s225 = sphi 0, %s227
      %s228 = sphi 0, %s225
      %s229 = sphi 0, %s228
      %s245 = sphi 0, %s229
      %s251 = sphi 0, %s253
      %s254 = sphi 0, %s251
      %s255 = sphi 0, %s254
      %s271 = sphi 0, %s255
      %s277 = sphi 0, %s279
      %s280 = sphi 0, %s277
      %s281 = sphi 0, %s280
      %s297 = sphi 0, %s281
    $region4: #{tsti_encoder_forward.7} parent=1 // loop_header_branch
      %24 = sbr.rel (%p22) target = $region8
    $region5: #{tsti_encoder_forward.7} parent=1 // loop_body
      %s26 = ssub.s32 %s21, 1
      %s27 = ssub.s32 %s21, 2
      %s28 = sadd.s32 %s21, 1
      %s29 = ssub.s32 %s21, %s28
      %p30 = scmp.eq.s32.totalorder %s29, 0
      %s32 = sadd.s32 %s31, 1
      %s33 = scalar_select %p30, %s31, %s32
      %p36 = pneg %p30
      %p37 = scmp.eq.s32.totalorder %s21, 1
      %p38 = por %p36, %p37
      %p39 = scmp.ne.s32.totalorder %s31, %s34
      %p40 = scmp.eq.s32.totalorder %s21, 0
      %p41 = por %p39, %p40
      %p42 = scmp.ne.s32.totalorder %s31, %s34
      %p43 = scmp.eq.s32.totalorder %s26, 1
      %p44 = por %p42, %p43
      %p45 = scmp.ne.s32.totalorder %s34, %s35
      %p46 = scmp.eq.s32.totalorder %s26, 0
      %p47 = por %p45, %p46
      %p48 = scmp.ne.s32.totalorder %s34, %s35
      %p49 = scmp.eq.s32.totalorder %s27, 1
      %p50 = por %p48, %p49
      %p52 = scmp.ne.s32.totalorder %s35, %s51
      %p53 = scmp.eq.s32.totalorder %s27, 0
      %p54 = por %p52, %p53
      %s56 = sadd.s32 %s55, 1
      %p59 = scmp.eq.s32.totalorder %s21, 1
      %p60 = scmp.ne.s32.totalorder %s55, %s57
      %p61 = scmp.eq.s32.totalorder %s21, 0
      %p62 = por %p60, %p61
      %p63 = scmp.ne.s32.totalorder %s55, %s57
      %p64 = scmp.eq.s32.totalorder %s26, 1
      %p65 = por %p63, %p64
      %p66 = scmp.ne.s32.totalorder %s57, %s58
      %p67 = scmp.eq.s32.totalorder %s26, 0
      %p68 = por %p66, %p67
      %p69 = scmp.ne.s32.totalorder %s57, %s58
      %p70 = scmp.eq.s32.totalorder %s27, 1
      %p71 = por %p69, %p70
      %p73 = scmp.ne.s32.totalorder %s58, %s72
      %p74 = scmp.eq.s32.totalorder %s27, 0
      %p75 = por %p73, %p74
      %s77 = sadd.s32 %s76, 1
      %p80 = scmp.eq.s32.totalorder %s21, 1
      %p81 = scmp.ne.s32.totalorder %s76, %s78
      %p82 = scmp.eq.s32.totalorder %s21, 0
      %p83 = por %p81, %p82
      %p84 = scmp.ne.s32.totalorder %s76, %s78
      %p85 = scmp.eq.s32.totalorder %s26, 1
      %p86 = por %p84, %p85
      %p87 = scmp.ne.s32.totalorder %s78, %s79
      %p88 = scmp.eq.s32.totalorder %s26, 0
      %p89 = por %p87, %p88
      %p90 = scmp.ne.s32.totalorder %s78, %s79
      %p91 = scmp.eq.s32.totalorder %s27, 1
      %p92 = por %p90, %p91
      %p94 = scmp.ne.s32.totalorder %s79, %s93
      %p95 = scmp.eq.s32.totalorder %s27, 0
      %p96 = por %p94, %p95
      %s98 = sadd.s32 %s97, 1
      %p101 = scmp.eq.s32.totalorder %s21, 1
      %p102 = scmp.ne.s32.totalorder %s97, %s99
      %p103 = scmp.eq.s32.totalorder %s21, 0
      %p104 = por %p102, %p103
      %p105 = scmp.ne.s32.totalorder %s97, %s99
      %p106 = scmp.eq.s32.totalorder %s26, 1
      %p107 = por %p105, %p106
      %p108 = scmp.ne.s32.totalorder %s99, %s100
      %p109 = scmp.eq.s32.totalorder %s26, 0
      %p110 = por %p108, %p109
      %p111 = scmp.ne.s32.totalorder %s99, %s100
      %p112 = scmp.eq.s32.totalorder %s27, 1
      %p113 = por %p111, %p112
      %p115 = scmp.ne.s32.totalorder %s100, %s114
      %p116 = scmp.eq.s32.totalorder %s27, 0
      %p117 = por %p115, %p116
      %s119 = sadd.s32 %s118, 1
      %p122 = scmp.eq.s32.totalorder %s21, 1
      %p123 = scmp.ne.s32.totalorder %s118, %s120
      %p124 = scmp.eq.s32.totalorder %s21, 0
      %p125 = por %p123, %p124
      %p126 = scmp.ne.s32.totalorder %s118, %s120
      %p127 = scmp.eq.s32.totalorder %s26, 1
      %p128 = por %p126, %p127
      %p129 = scmp.ne.s32.totalorder %s120, %s121
      %p130 = scmp.eq.s32.totalorder %s26, 0
      %p131 = por %p129, %p130
      %p132 = scmp.ne.s32.totalorder %s120, %s121
      %p133 = scmp.eq.s32.totalorder %s27, 1
      %p134 = por %p132, %p133
      %p136 = scmp.ne.s32.totalorder %s121, %s135
      %p137 = scmp.eq.s32.totalorder %s27, 0
      %p138 = por %p136, %p137
      %s140 = sadd.s32 %s139, 1
      %p143 = scmp.eq.s32.totalorder %s21, 1
      %p144 = scmp.ne.s32.totalorder %s139, %s141
      %p145 = scmp.eq.s32.totalorder %s21, 0
      %p146 = por %p144, %p145
      %p147 = scmp.ne.s32.totalorder %s139, %s141
      %p148 = scmp.eq.s32.totalorder %s26, 1
      %p149 = por %p147, %p148
      %p150 = scmp.ne.s32.totalorder %s141, %s142
      %p151 = scmp.eq.s32.totalorder %s26, 0
      %p152 = por %p150, %p151
      %p153 = scmp.ne.s32.totalorder %s141, %s142
      %p154 = scmp.eq.s32.totalorder %s27, 1
      %p155 = por %p153, %p154
      %p157 = scmp.ne.s32.totalorder %s142, %s156
      %p158 = scmp.eq.s32.totalorder %s27, 0
      %p159 = por %p157, %p158
      %s161 = sadd.s32 %s160, 1
      %p164 = scmp.eq.s32.totalorder %s21, 1
      %p165 = scmp.ne.s32.totalorder %s160, %s162
      %p166 = scmp.eq.s32.totalorder %s21, 0
      %p167 = por %p165, %p166
      %p168 = scmp.ne.s32.totalorder %s160, %s162
      %p169 = scmp.eq.s32.totalorder %s26, 1
      %p170 = por %p168, %p169
      %p171 = scmp.ne.s32.totalorder %s162, %s163
      %p172 = scmp.eq.s32.totalorder %s26, 0
      %p173 = por %p171, %p172
      %p174 = scmp.ne.s32.totalorder %s162, %s163
      %p175 = scmp.eq.s32.totalorder %s27, 1
      %p176 = por %p174, %p175
      %p178 = scmp.ne.s32.totalorder %s163, %s177
      %p179 = scmp.eq.s32.totalorder %s27, 0
      %p180 = por %p178, %p179
      %s182 = sadd.s32 %s181, 1
      %p185 = scmp.eq.s32.totalorder %s21, 1
      %p186 = scmp.ne.s32.totalorder %s181, %s183
      %p187 = scmp.eq.s32.totalorder %s21, 0
      %p188 = por %p186, %p187
      %p189 = scmp.ne.s32.totalorder %s181, %s183
      %p190 = scmp.eq.s32.totalorder %s26, 1
      %p191 = por %p189, %p190
      %p192 = scmp.ne.s32.totalorder %s183, %s184
      %p193 = scmp.eq.s32.totalorder %s26, 0
      %p194 = por %p192, %p193
      %p195 = scmp.ne.s32.totalorder %s183, %s184
      %p196 = scmp.eq.s32.totalorder %s27, 1
      %p197 = por %p195, %p196
      %p199 = scmp.ne.s32.totalorder %s184, %s198
      %p200 = scmp.eq.s32.totalorder %s27, 0
      %p201 = por %p199, %p200
      %s203 = sadd.s32 %s202, 1
      %p206 = scmp.eq.s32.totalorder %s21, 1
      %p207 = scmp.ne.s32.totalorder %s202, %s204
      %p208 = scmp.eq.s32.totalorder %s21, 0
      %p209 = por %p207, %p208
      %p210 = scmp.ne.s32.totalorder %s202, %s204
      %p211 = scmp.eq.s32.totalorder %s26, 1
      %p212 = por %p210, %p211
      %p213 = scmp.ne.s32.totalorder %s204, %s205
      %p214 = scmp.eq.s32.totalorder %s26, 0
      %p215 = por %p213, %p214
      %p216 = scmp.ne.s32.totalorder %s204, %s205
      %p217 = scmp.eq.s32.totalorder %s27, 1
      %p218 = por %p216, %p217
      %p220 = scmp.ne.s32.totalorder %s205, %s219
      %p221 = scmp.eq.s32.totalorder %s27, 0
      %p222 = por %p220, %p221
      %s223 = ssub.s32 %s21, %s28
      %p224 = scmp.eq.s32.totalorder %s223, 0
      %s226 = sadd.s32 %s225, 1
      %s227 = scalar_select %p224, %s225, %s226
      %p230 = pneg %p224
      %p231 = scmp.eq.s32.totalorder %s21, 1
      %p232 = por %p230, %p231
      %p233 = scmp.ne.s32.totalorder %s225, %s228
      %p234 = scmp.eq.s32.totalorder %s21, 0
      %p235 = por %p233, %p234
      %p236 = scmp.ne.s32.totalorder %s225, %s228
      %p237 = scmp.eq.s32.totalorder %s26, 1
      %p238 = por %p236, %p237
      %p239 = scmp.ne.s32.totalorder %s228, %s229
      %p240 = scmp.eq.s32.totalorder %s26, 0
      %p241 = por %p239, %p240
      %p242 = scmp.ne.s32.totalorder %s228, %s229
      %p243 = scmp.eq.s32.totalorder %s27, 1
      %p244 = por %p242, %p243
      %p246 = scmp.ne.s32.totalorder %s229, %s245
      %p247 = scmp.eq.s32.totalorder %s27, 0
      %p248 = por %p246, %p247
      %s249 = ssub.s32 %s21, %s28
      %p250 = scmp.eq.s32.totalorder %s249, 0
      %s252 = sadd.s32 %s251, 1
      %s253 = scalar_select %p250, %s251, %s252
      %p256 = pneg %p250
      %p257 = scmp.eq.s32.totalorder %s21, 1
      %p258 = por %p256, %p257
      %p259 = scmp.ne.s32.totalorder %s251, %s254
      %p260 = scmp.eq.s32.totalorder %s21, 0
      %p261 = por %p259, %p260
      %p262 = scmp.ne.s32.totalorder %s251, %s254
      %p263 = scmp.eq.s32.totalorder %s26, 1
      %p264 = por %p262, %p263
      %p265 = scmp.ne.s32.totalorder %s254, %s255
      %p266 = scmp.eq.s32.totalorder %s26, 0
      %p267 = por %p265, %p266
      %p268 = scmp.ne.s32.totalorder %s254, %s255
      %p269 = scmp.eq.s32.totalorder %s27, 1
      %p270 = por %p268, %p269
      %p272 = scmp.ne.s32.totalorder %s255, %s271
      %p273 = scmp.eq.s32.totalorder %s27, 0
      %p274 = por %p272, %p273
      %s275 = ssub.s32 %s21, %s28
      %p276 = scmp.eq.s32.totalorder %s275, 0
      %s278 = sadd.s32 %s277, 1
      %s279 = scalar_select %p276, %s277, %s278
      %p282 = pneg %p276
      %p283 = scmp.eq.s32.totalorder %s21, 1
      %p284 = por %p282, %p283
      %p285 = scmp.ne.s32.totalorder %s277, %s280
      %p286 = scmp.eq.s32.totalorder %s21, 0
      %p287 = por %p285, %p286
      %p288 = scmp.ne.s32.totalorder %s277, %s280
      %p289 = scmp.eq.s32.totalorder %s26, 1
      %p290 = por %p288, %p289
      %p291 = scmp.ne.s32.totalorder %s280, %s281
      %p292 = scmp.eq.s32.totalorder %s26, 0
      %p293 = por %p291, %p292
      %p294 = scmp.ne.s32.totalorder %s280, %s281
      %p295 = scmp.eq.s32.totalorder %s27, 1
      %p296 = por %p294, %p295
      %p298 = scmp.ne.s32.totalorder %s281, %s297
      %p299 = scmp.eq.s32.totalorder %s27, 0
      %p300 = por %p298, %p299
      %p301 = scmp.le.s32.totalorder 1, %s21
      %p302 = scmp.lt.s32.totalorder %s21, 3
      %p303 = pnand %p301, %p302
      %p304 = pneg %p303
      // Predicated region
      $region9: #{tsti_encoder_forward.7} parent=5 // pred_check
        _
      $region10: #{tsti_encoder_forward.7} parent=5 // pred_check_branch
        %306 = sbr.rel (%p303) target = $region12
      $region11: #{tsti_encoder_forward.7} parent=5 // pred_region
        %s307 = ssub.s32 %s21, 1
        // Predicated region
        $region13: #{tsti_encoder_forward.7} parent=11 // pred_check
          %p308 = pneg %p68
        $region14: #{tsti_encoder_forward.7} parent=11 // pred_check_branch
          %310 = sbr.rel (%p308) target = $region16
        $region15: #{tsti_encoder_forward.7} parent=11 // pred_region
          _
        $region16: #{tsti_encoder_forward.7} parent=11 // pred_fallthru
          _
        // Predicated region
        $region17: #{tsti_encoder_forward.7} parent=11 // pred_check
          %p311 = pneg %p89
        $region18: #{tsti_encoder_forward.7} parent=11 // pred_check_branch
          %313 = sbr.rel (%p311) target = $region20
        $region19: #{tsti_encoder_forward.7} parent=11 // pred_region
          _
        $region20: #{tsti_encoder_forward.7} parent=11 // pred_fallthru
          _
        // Predicated region
        $region21: #{tsti_encoder_forward.7} parent=11 // pred_check
          %p314 = pneg %p110
        $region22: #{tsti_encoder_forward.7} parent=11 // pred_check_branch
          %316 = sbr.rel (%p314) target = $region24
        $region23: #{tsti_encoder_forward.7} parent=11 // pred_region
          _
        $region24: #{tsti_encoder_forward.7} parent=11 // pred_fallthru
          _
        // Predicated region
        $region25: #{tsti_encoder_forward.7} parent=11 // pred_check
          %p317 = pneg %p131
        $region26: #{tsti_encoder_forward.7} parent=11 // pred_check_branch
          %319 = sbr.rel (%p317) target = $region28
        $region27: #{tsti_encoder_forward.7} parent=11 // pred_region
          %321 = vsyncadd [#allocation3], 0
          %s323 = sshll.u32 %s4, 4
          %s324 = int_to_ptr.hbm [resolvable:$true] %s323
          %s325 = sshll.u32 [#allocation2], 4
          %s326 = int_to_ptr.vmem [resolvable:$true] %s325
          %328 = dma.hbm_to_vmem [thread:$0]  %s324, 16, %s326, [#allocation3]
        $region28: #{tsti_encoder_forward.7} parent=11 // pred_fallthru
          _
        // Predicated region
        $region29: #{tsti_encoder_forward.7} parent=11 // pred_check
          %p329 = pneg %p152
        $region30: #{tsti_encoder_forward.7} parent=11 // pred_check_branch
          %331 = sbr.rel (%p329) target = $region32
        $region31: #{tsti_encoder_forward.7} parent=11 // pred_region
          _
        $region32: #{tsti_encoder_forward.7} parent=11 // pred_fallthru
          _
        // Predicated region
        $region33: #{tsti_encoder_forward.7} parent=11 // pred_check
          %p332 = pneg %p173
        $region34: #{tsti_encoder_forward.7} parent=11 // pred_check_branch
          %334 = sbr.rel (%p332) target = $region36
        $region35: #{tsti_encoder_forward.7} parent=11 // pred_region
          %336 = vsyncadd [#allocation5], 0
          %s338 = sshll.u32 %s6, 4
          %s339 = int_to_ptr.hbm [resolvable:$true] %s338
          %s340 = sshll.u32 [#allocation4], 4
          %s341 = int_to_ptr.vmem [resolvable:$true] %s340
          %343 = dma.hbm_to_vmem [thread:$0]  %s339, 16, %s341, [#allocation5]
        $region36: #{tsti_encoder_forward.7} parent=11 // pred_fallthru
          _
        // Predicated region
        $region37: #{tsti_encoder_forward.7} parent=11 // pred_check
          %p344 = pneg %p194
        $region38: #{tsti_encoder_forward.7} parent=11 // pred_check_branch
          %346 = sbr.rel (%p344) target = $region40
        $region39: #{tsti_encoder_forward.7} parent=11 // pred_region
          %348 = vsyncadd [#allocation5], 0
          %s349 = sshll.u32 %s7, 4
          %s350 = int_to_ptr.hbm [resolvable:$true] %s349
          %s351 = sshll.u32 [#allocation6], 4
          %s352 = int_to_ptr.vmem [resolvable:$true] %s351
          %357 = dma.hbm_to_vmem [thread:$0]  %s350, 512, %s352, [#allocation5], 128, 128, 8
        $region40: #{tsti_encoder_forward.7} parent=11 // pred_fallthru
          _
        // Predicated region
        $region41: #{tsti_encoder_forward.7} parent=11 // pred_check
          %p358 = pneg %p215
        $region42: #{tsti_encoder_forward.7} parent=11 // pred_check_branch
          %360 = sbr.rel (%p358) target = $region44
        $region43: #{tsti_encoder_forward.7} parent=11 // pred_region
          %362 = vsyncadd [#allocation8], 0
          %s364 = sshll.u32 %s8, 4
          %s365 = int_to_ptr.hbm [resolvable:$true] %s364
          %s366 = sshll.u32 [#allocation7], 4
          %s367 = int_to_ptr.vmem [resolvable:$true] %s366
          %369 = dma.hbm_to_vmem [thread:$0]  %s365, 16, %s367, [#allocation8]
        $region44: #{tsti_encoder_forward.7} parent=11 // pred_fallthru
          _
      $region12: #{tsti_encoder_forward.7} parent=5 // pred_fallthru
        _
      %p370 = scmp.lt.s32.totalorder %s21, 2
      // Predicated region
      $region45: #{tsti_encoder_forward.7} parent=5 // pred_check
        %p371 = pneg %p370
      $region46: #{tsti_encoder_forward.7} parent=5 // pred_check_branch
        %373 = sbr.rel (%p371) target = $region48
      $region47: #{tsti_encoder_forward.7} parent=5 // pred_region
        // Predicated region
        $region49: #{tsti_encoder_forward.7} parent=47 // pred_check
          %p374 = pneg %p41
        $region50: #{tsti_encoder_forward.7} parent=47 // pred_check_branch
          %376 = sbr.rel (%p374) target = $region52
        $region51: #{tsti_encoder_forward.7} parent=47 // pred_region
          %s377 = smul.u32 4, %s21
          %p378 = scmp.lt.s32.totalorder %s377, 7
          %s379 = scalar_select %p378, %s377, 7
          %s380 = smul.addr %s379, 8
          %s381 = scalar_lea.vmem %s0, %s380
          %s382 = smul.u32 4, %s21
        $region52: #{tsti_encoder_forward.7} parent=47 // pred_fallthru
          _
      $region48: #{tsti_encoder_forward.7} parent=5 // pred_fallthru
        _
      %p383 = scmp.le.s32.totalorder 1, %s21
      %p384 = scmp.lt.s32.totalorder %s21, 3
      %p385 = pnand %p383, %p384
      %p386 = pneg %p385
      // Predicated region
      $region53: #{tsti_encoder_forward.7} parent=5 // pred_check
        _
      $region54: #{tsti_encoder_forward.7} parent=5 // pred_check_branch
        %388 = sbr.rel (%p385) target = $region56
      $region55: #{tsti_encoder_forward.7} parent=5 // pred_region
        %s389 = ssub.s32 %s21, 1
        // Predicated region
        $region57: #{tsti_encoder_forward.7} parent=55 // pred_check
          %p390 = pneg %p131
        $region58: #{tsti_encoder_forward.7} parent=55 // pred_check_branch
          %392 = sbr.rel (%p390) target = $region60
        $region59: #{tsti_encoder_forward.7} parent=55 // pred_region
          %394 = dma.done [#allocation3], 16
        $region60: #{tsti_encoder_forward.7} parent=55 // pred_fallthru
          _
        // Predicated region
        $region61: #{tsti_encoder_forward.7} parent=55 // pred_check
          %p395 = pneg %p173
        $region62: #{tsti_encoder_forward.7} parent=55 // pred_check_branch
          %397 = sbr.rel (%p395) target = $region64
        $region63: #{tsti_encoder_forward.7} parent=55 // pred_region
          %399 = dma.done [#allocation5], 16
        $region64: #{tsti_encoder_forward.7} parent=55 // pred_fallthru
          _
        // Predicated region
        $region65: #{tsti_encoder_forward.7} parent=55 // pred_check
          %p400 = pneg %p194
        $region66: #{tsti_encoder_forward.7} parent=55 // pred_check_branch
          %402 = sbr.rel (%p400) target = $region68
        $region67: #{tsti_encoder_forward.7} parent=55 // pred_region
          %404 = dma.done [#allocation5], 512
        $region68: #{tsti_encoder_forward.7} parent=55 // pred_fallthru
          _
        // Predicated region
        $region69: #{tsti_encoder_forward.7} parent=55 // pred_check
          %p405 = pneg %p215
        $region70: #{tsti_encoder_forward.7} parent=55 // pred_check_branch
          %407 = sbr.rel (%p405) target = $region72
        $region71: #{tsti_encoder_forward.7} parent=55 // pred_region
          %409 = dma.done [#allocation8], 16
        $region72: #{tsti_encoder_forward.7} parent=55 // pred_fallthru
          _
        %s410 = smul.u32 4, %s26
        %p411 = scmp.lt.s32.totalorder %s410, 7
        %s412 = scalar_select %p411, %s410, 7
        %s413 = smul.addr %s412, 8
        %s414 = scalar_lea.vmem %s0, %s413
        %p415 = pneg %p47
        %p416 = pneg %p44
        %p417 = pneg %p68
        %p418 = pneg %p65
        %p419 = pneg %p89
        %p420 = pneg %p86
        %p421 = pneg %p110
        %p422 = pneg %p107
        %p423 = pneg %p131
        %p424 = pneg %p128
        %p425 = pneg %p152
        %p426 = pneg %p149
        %p427 = pneg %p173
        %p428 = pneg %p170
        %p429 = pneg %p194
        %p430 = pneg %p191
        %p431 = pneg %p215
        %p432 = pneg %p212
        %p433 = pneg %p241
        %p434 = pneg %p238
        %s435 = smul.u32 4, %s26
        %p436 = scmp.lt.s32.totalorder %s435, 7
        %s437 = scalar_select %p436, %s435, 7
        %s438 = smul.addr %s437, 8
        %s439 = scalar_lea.vmem %s9, %s438
        %p440 = pneg %p267
        %p441 = pneg %p264
        %s442 = sand.u32 %s254, 1
        %s443 = sand.u32 %s254, 1
        %s444 = smul.addr %s443, 128
        %s445 = scalar_lea.vmem [#allocation9], %s444
        %p446 = pneg %p293
        %p447 = pneg %p290
        %p448 = scmp.lt.s32.totalorder %s26, 1
        %s449 = scalar_select %p448, %s26, 1
        %s450 = smul.addr %s449, 2
        %s451 = scalar_lea.vmem %s11, %s450
        %s452 = smul.u32 4, %s26
        %p453 = scmp.lt.s32.totalorder %s452, 7
        %s454 = scalar_select %p453, %s452, 7
        %s455 = smul.addr %s454, 8
        %s456 = scalar_lea.vmem %s0, %s455
        %s457 = smul.u32 4, %s26
        %s458 = smul.u32 4, %s26
        %p459 = scmp.lt.s32.totalorder %s458, 7
        %s460 = scalar_select %p459, %s458, 7
        %s461 = smul.addr %s460, 8
        %s462 = scalar_lea.vmem %s9, %s461
        %s463 = smul.u32 4, %s26
        %s464 = smul.u32 4, %s26
        %p465 = scmp.lt.s32.totalorder %s26, 1
        %s466 = scalar_select %p465, %s26, 1
        %s467 = smul.addr %s466, 2
        %s468 = scalar_lea.vmem %s11, %s467
        %v469 = vld [vmem:[%s456] sm:$0xff]
        %v470 = vld [vmem:[%s456 + $0x8] sm:$0xff]
        %v471 = vld [vmem:[%s456 + $0x10] sm:$0xff]
        %v472 = vld [vmem:[%s456 + $0x18] sm:$0xff]
        %v473 = vld [vmem:[%s1] sm:$0xff]
        %v474 = vld [vmem:[%s1 + $0x8] sm:$0xff]
        %v475 = vld [vmem:[%s1 + $0x10] sm:$0xff]
        %v476 = vld [vmem:[%s1 + $0x18] sm:$0xff]
        %v477 = vld [vmem:[%s2] sm:$0x1]
        %v479 = vperm.slane %v477, 0
        %vm481 = vcmask 261120
        %v483 = vsel %vm481, %v469, 0
        %v486 = vsel %vm481, %v470, 0
        %v489 = vsel %vm481, %v471, 0
        %v492 = vsel %vm481, %v472, 0
        %494 = vmatpush.msra.mxu0 0.0
        %495 = vmatpush.msra.mxu0 0.0
        %496 = vmatpush.msra.mxu0 0.0
        %497 = vmatpush.msra.mxu0 0.0
        %498 = vmatpush.msra.mxu0 0.0
        %499 = vmatpush.msra.mxu0 0.0
        %500 = vmatpush.msra.mxu0 0.0
        %501 = vmatpush.msra.mxu0 0.0
        %502 = vmatpush.msra.mxu0 0.0
        %503 = vmatpush.msra.mxu0 0.0
        %504 = vmatpush.msra.mxu0 0.0
        %505 = vmatpush.msra.mxu0 0.0
        %506 = vmatpush.msra.mxu0 %v476
        %507 = vmatpush.msra.mxu0 %v475
        %508 = vmatpush.msra.mxu0 %v474
        %509 = vmatpush.msra.mxu0 %v473
        %510 = vmatmul.f32.gmra.mxu0 %v483
        %v511 = vpop.f32.mrf.mxu0
        %v512 = vadd.f32 %v479, %v511
        %513 = vmatmul.f32.gmra.mxu0 %v486
        %v514 = vpop.f32.mrf.mxu0
        %v515 = vadd.f32 %v479, %v514
        %516 = vmatmul.f32.gmra.mxu0 %v489
        %v517 = vpop.f32.mrf.mxu0
        %v518 = vadd.f32 %v479, %v517
        %519 = vmatmul.f32.gmra.mxu0 %v492
        %v520 = vpop.f32.mrf.mxu0
        %v521 = vadd.f32 %v479, %v520
        %522 = vdwg.mxu0
        %v523 = vld [vmem:[%s3] sm:$0xff]
        %v524 = vld [vmem:[%s3 + $0x8] sm:$0xff]
        %v525 = vld [vmem:[%s3 + $0x10] sm:$0xff]
        %v526 = vld [vmem:[%s3 + $0x18] sm:$0xff]
        %v527 = vld [vmem:[#allocation2] sm:$0x1]
        %v529 = vperm.slane %v527, 0
        %531 = vmatpush.msra.mxu0 0.0
        %532 = vmatpush.msra.mxu0 0.0
        %533 = vmatpush.msra.mxu0 0.0
        %534 = vmatpush.msra.mxu0 0.0
        %535 = vmatpush.msra.mxu0 0.0
        %536 = vmatpush.msra.mxu0 0.0
        %537 = vmatpush.msra.mxu0 0.0
        %538 = vmatpush.msra.mxu0 0.0
        %539 = vmatpush.msra.mxu0 0.0
        %540 = vmatpush.msra.mxu0 0.0
        %541 = vmatpush.msra.mxu0 0.0
        %542 = vmatpush.msra.mxu0 0.0
        %543 = vmatpush.msra.mxu0 %v526
        %544 = vmatpush.msra.mxu0 %v525
        %545 = vmatpush.msra.mxu0 %v524
        %546 = vmatpush.msra.mxu0 %v523
        %547 = vmatmul.f32.gmra.mxu0 %v483
        %v548 = vpop.f32.mrf.mxu0
        %v549 = vadd.f32 %v529, %v548
        %550 = vmatmul.f32.gmra.mxu0 %v486
        %v551 = vpop.f32.mrf.mxu0
        %v552 = vadd.f32 %v529, %v551
        %553 = vmatmul.f32.gmra.mxu0 %v489
        %v554 = vpop.f32.mrf.mxu0
        %v555 = vadd.f32 %v529, %v554
        %556 = vmatmul.f32.gmra.mxu0 %v492
        %v557 = vpop.f32.mrf.mxu0
        %v558 = vadd.f32 %v529, %v557
        %559 = vdwg.mxu0
        %v560 = vld [vmem:[%s5] sm:$0xff]
        %v561 = vld [vmem:[%s5 + $0x8] sm:$0xff]
        %v562 = vld [vmem:[%s5 + $0x10] sm:$0xff]
        %v563 = vld [vmem:[%s5 + $0x18] sm:$0xff]
        %v564 = vld [vmem:[#allocation4] sm:$0x1]
        %v566 = vperm.slane %v564, 0
        %568 = vmatpush.msra.mxu0 0.0
        %569 = vmatpush.msra.mxu0 0.0
        %570 = vmatpush.msra.mxu0 0.0
        %571 = vmatpush.msra.mxu0 0.0
        %572 = vmatpush.msra.mxu0 0.0
        %573 = vmatpush.msra.mxu0 0.0
        %574 = vmatpush.msra.mxu0 0.0
        %575 = vmatpush.msra.mxu0 0.0
        %576 = vmatpush.msra.mxu0 0.0
        %577 = vmatpush.msra.mxu0 0.0
        %578 = vmatpush.msra.mxu0 0.0
        %579 = vmatpush.msra.mxu0 0.0
        %580 = vmatpush.msra.mxu0 %v563
        %581 = vmatpush.msra.mxu0 %v562
        %582 = vmatpush.msra.mxu0 %v561
        %583 = vmatpush.msra.mxu0 %v560
        %584 = vmatmul.f32.gmra.mxu0 %v483
        %v585 = vpop.f32.mrf.mxu0
        %v586 = vadd.f32 %v566, %v585
        %587 = vmatmul.f32.gmra.mxu0 %v486
        %v588 = vpop.f32.mrf.mxu0
        %v589 = vadd.f32 %v566, %v588
        %590 = vmatmul.f32.gmra.mxu0 %v489
        %v591 = vpop.f32.mrf.mxu0
        %v592 = vadd.f32 %v566, %v591
        %593 = vmatmul.f32.gmra.mxu0 %v492
        %v594 = vpop.f32.mrf.mxu0
        %v595 = vadd.f32 %v566, %v594
        %596 = vdwg.mxu0
        %vm597 = vcmask 64512
        %v599 = vsel %vm597, %v512, 0
        %v602 = vsel %vm597, %v549, 0
        %604 = vmatpush.xpose.msra.mxu0 0.0
        %605 = vmatpush.xpose.msra.mxu0 0.0
        %606 = vmatpush.xpose.msra.mxu0 0.0
        %607 = vmatpush.xpose.msra.mxu0 0.0
        %608 = vmatpush.xpose.msra.mxu0 0.0
        %609 = vmatpush.xpose.msra.mxu0 0.0
        %610 = vmatpush.xpose.msra.mxu0 0.0
        %611 = vmatpush.xpose.msra.mxu0 0.0
        %612 = vmatpush.xpose.msra.mxu0 0.0
        %613 = vmatpush.xpose.msra.mxu0 0.0
        %614 = vmatpush.xpose.msra.mxu0 0.0
        %615 = vmatpush.xpose.msra.mxu0 0.0
        %616 = vmatpush.xpose.msra.mxu0 0.0
        %617 = vmatpush.xpose.msra.mxu0 0.0
        %618 = vmatpush.xpose.msra.mxu0 0.0
        %619 = vmatpush.xpose.msra.mxu0 %v602
        %620 = vmatmul.f32.gmra.mxu0 %v599
        %v621 = vpop.f32.mrf.mxu0
        %v622 = vadd.f32 0.0, %v621
        %623 = vdwg.mxu0
        %v625 = vsel %vm597, %v515, 0
        %v628 = vsel %vm597, %v552, 0
        %630 = vmatpush.xpose.msra.mxu0 0.0
        %631 = vmatpush.xpose.msra.mxu0 0.0
        %632 = vmatpush.xpose.msra.mxu0 0.0
        %633 = vmatpush.xpose.msra.mxu0 0.0
        %634 = vmatpush.xpose.msra.mxu0 0.0
        %635 = vmatpush.xpose.msra.mxu0 0.0
        %636 = vmatpush.xpose.msra.mxu0 0.0
        %637 = vmatpush.xpose.msra.mxu0 0.0
        %638 = vmatpush.xpose.msra.mxu0 0.0
        %639 = vmatpush.xpose.msra.mxu0 0.0
        %640 = vmatpush.xpose.msra.mxu0 0.0
        %641 = vmatpush.xpose.msra.mxu0 0.0
        %642 = vmatpush.xpose.msra.mxu0 0.0
        %643 = vmatpush.xpose.msra.mxu0 0.0
        %644 = vmatpush.xpose.msra.mxu0 0.0
        %645 = vmatpush.xpose.msra.mxu0 %v628
        %646 = vmatmul.f32.gmra.mxu0 %v625
        %v647 = vpop.f32.mrf.mxu0
        %v648 = vadd.f32 0.0, %v647
        %649 = vdwg.mxu0
        %v651 = vsel %vm597, %v518, 0
        %v654 = vsel %vm597, %v555, 0
        %656 = vmatpush.xpose.msra.mxu0 0.0
        %657 = vmatpush.xpose.msra.mxu0 0.0
        %658 = vmatpush.xpose.msra.mxu0 0.0
        %659 = vmatpush.xpose.msra.mxu0 0.0
        %660 = vmatpush.xpose.msra.mxu0 0.0
        %661 = vmatpush.xpose.msra.mxu0 0.0
        %662 = vmatpush.xpose.msra.mxu0 0.0
        %663 = vmatpush.xpose.msra.mxu0 0.0
        %664 = vmatpush.xpose.msra.mxu0 0.0
        %665 = vmatpush.xpose.msra.mxu0 0.0
        %666 = vmatpush.xpose.msra.mxu0 0.0
        %667 = vmatpush.xpose.msra.mxu0 0.0
        %668 = vmatpush.xpose.msra.mxu0 0.0
        %669 = vmatpush.xpose.msra.mxu0 0.0
        %670 = vmatpush.xpose.msra.mxu0 0.0
        %671 = vmatpush.xpose.msra.mxu0 %v654
        %672 = vmatmul.f32.gmra.mxu0 %v651
        %v673 = vpop.f32.mrf.mxu0
        %v674 = vadd.f32 0.0, %v673
        %675 = vdwg.mxu0
        %v677 = vsel %vm597, %v521, 0
        %v680 = vsel %vm597, %v558, 0
        %682 = vmatpush.xpose.msra.mxu0 0.0
        %683 = vmatpush.xpose.msra.mxu0 0.0
        %684 = vmatpush.xpose.msra.mxu0 0.0
        %685 = vmatpush.xpose.msra.mxu0 0.0
        %686 = vmatpush.xpose.msra.mxu0 0.0
        %687 = vmatpush.xpose.msra.mxu0 0.0
        %688 = vmatpush.xpose.msra.mxu0 0.0
        %689 = vmatpush.xpose.msra.mxu0 0.0
        %690 = vmatpush.xpose.msra.mxu0 0.0
        %691 = vmatpush.xpose.msra.mxu0 0.0
        %692 = vmatpush.xpose.msra.mxu0 0.0
        %693 = vmatpush.xpose.msra.mxu0 0.0
        %694 = vmatpush.xpose.msra.mxu0 0.0
        %695 = vmatpush.xpose.msra.mxu0 0.0
        %696 = vmatpush.xpose.msra.mxu0 0.0
        %697 = vmatpush.xpose.msra.mxu0 %v680
        %698 = vmatmul.f32.gmra.mxu0 %v677
        %v699 = vpop.f32.mrf.mxu0
        %v700 = vadd.f32 0.0, %v699
        %701 = vdwg.mxu0
        %702 = vst.msk [vmem:[%s445] sm:$0xff] %vm597, %v622
        %703 = vst.msk [vmem:[%s445 + $0x8] sm:$0xff] %vm597, %v648
        %704 = vst.msk [vmem:[%s445 + $0x10] sm:$0xff] %vm597, %v674
        %705 = vst.msk [vmem:[%s445 + $0x18] sm:$0xff] %vm597, %v700
        %v706 = vsel %vm597, %v622, -inf
        %707 = vmax.xlane.f32.xlu0 %v706
        %v708 = vpop.xlane.xlu0 %707
        %v709 = vsel %vm597, %v648, -inf
        %710 = vmax.xlane.f32.xlu0 %v709
        %v711 = vpop.xlane.xlu0 %710
        %v712 = vsel %vm597, %v674, -inf
        %713 = vmax.xlane.f32.xlu0 %v712
        %v714 = vpop.xlane.xlu0 %713
        %v715 = vsel %vm597, %v700, -inf
        %716 = vmax.xlane.f32.xlu0 %v715
        %v717 = vpop.xlane.xlu0 %716
        %v718 = vsub.f32 %v622, %v708
        %v719 = vsub.f32 %v648, %v711
        %v720 = vsub.f32 %v674, %v714
        %v721 = vsub.f32 %v700, %v717
        %v722 = vmul.f32 %v718, 1.442695
        %v723 = vpow.pop %v722
        %v724 = vmul.f32 %v719, 1.442695
        %v725 = vpow.pop %v724
        %v726 = vmul.f32 %v720, 1.442695
        %v727 = vpow.pop %v726
        %v728 = vmul.f32 %v721, 1.442695
        %v729 = vpow.pop %v728
        %v730 = vsel %vm597, %v723, 0.0
        %731 = vadd.xlane.f32.xlu0 %v730
        %v732 = vpop.xlane.xlu0 %731
        %v733 = vsel %vm597, %v725, 0.0
        %734 = vadd.xlane.f32.xlu0 %v733
        %v735 = vpop.xlane.xlu0 %734
        %v736 = vsel %vm597, %v727, 0.0
        %737 = vadd.xlane.f32.xlu0 %v736
        %v738 = vpop.xlane.xlu0 %737
        %v739 = vsel %vm597, %v729, 0.0
        %740 = vadd.xlane.f32.xlu0 %v739
        %v741 = vpop.xlane.xlu0 %740
        %v742 = vrcp.pop %v732
        %v743 = vmul.f32 %v732, %v742
        %v744 = vsub.f32 1.0, %v743
        %v745 = vmul.f32 %v742, %v744
        %v746 = vadd.f32 %v742, %v745
        %vm747 = vweird.f32 %v732
        %vm748 = vweird.f32 %v742
        %vm749 = vmor %vm747, %vm748
        %v750 = vsel %vm749, %v742, %v746
        %v751 = vand.u32 2147483647, %v732
        %vm752 = vcmp.eq.f32.partialorder %v751, 8.507059e+37
        %v753 = vand.u32 %v732, 2147483648
        %v754 = vor.u32 1.1754944e-38, %v753
        %v755 = vsel %vm752, %v754, %v750
        %v756 = vrcp.pop %v735
        %v757 = vmul.f32 %v735, %v756
        %v758 = vsub.f32 1.0, %v757
        %v759 = vmul.f32 %v756, %v758
        %v760 = vadd.f32 %v756, %v759
        %vm761 = vweird.f32 %v735
        %vm762 = vweird.f32 %v756
        %vm763 = vmor %vm761, %vm762
        %v764 = vsel %vm763, %v756, %v760
        %v765 = vand.u32 2147483647, %v735
        %vm766 = vcmp.eq.f32.partialorder %v765, 8.507059e+37
        %v767 = vand.u32 %v735, 2147483648
        %v768 = vor.u32 1.1754944e-38, %v767
        %v769 = vsel %vm766, %v768, %v764
        %v770 = vrcp.pop %v738
        %v771 = vmul.f32 %v738, %v770
        %v772 = vsub.f32 1.0, %v771
        %v773 = vmul.f32 %v770, %v772
        %v774 = vadd.f32 %v770, %v773
        %vm775 = vweird.f32 %v738
        %vm776 = vweird.f32 %v770
        %vm777 = vmor %vm775, %vm776
        %v778 = vsel %vm777, %v770, %v774
        %v779 = vand.u32 2147483647, %v738
        %vm780 = vcmp.eq.f32.partialorder %v779, 8.507059e+37
        %v781 = vand.u32 %v738, 2147483648
        %v782 = vor.u32 1.1754944e-38, %v781
        %v783 = vsel %vm780, %v782, %v778
        %v784 = vrcp.pop %v741
        %v785 = vmul.f32 %v741, %v784
        %v786 = vsub.f32 1.0, %v785
        %v787 = vmul.f32 %v784, %v786
        %v788 = vadd.f32 %v784, %v787
        %vm789 = vweird.f32 %v741
        %vm790 = vweird.f32 %v784
        %vm791 = vmor %vm789, %vm790
        %v792 = vsel %vm791, %v784, %v788
        %v793 = vand.u32 2147483647, %v741
        %vm794 = vcmp.eq.f32.partialorder %v793, 8.507059e+37
        %v795 = vand.u32 %v741, 2147483648
        %v796 = vor.u32 1.1754944e-38, %v795
        %v797 = vsel %vm794, %v796, %v792
        %v798 = vmul.f32 %v723, %v755
        %v799 = vmul.f32 %v725, %v769
        %v800 = vmul.f32 %v727, %v783
        %v801 = vmul.f32 %v729, %v797
        %v803 = vsel %vm597, %v798, 0
        %805 = vmatpush.msra.mxu0 0.0
        %806 = vmatpush.msra.mxu0 0.0
        %807 = vmatpush.msra.mxu0 0.0
        %808 = vmatpush.msra.mxu0 0.0
        %809 = vmatpush.msra.mxu0 0.0
        %810 = vmatpush.msra.mxu0 0.0
        %811 = vmatpush.msra.mxu0 0.0
        %812 = vmatpush.msra.mxu0 0.0
        %813 = vmatpush.msra.mxu0 0.0
        %814 = vmatpush.msra.mxu0 0.0
        %815 = vmatpush.msra.mxu0 0.0
        %816 = vmatpush.msra.mxu0 0.0
        %817 = vmatpush.msra.mxu0 0.0
        %818 = vmatpush.msra.mxu0 0.0
        %819 = vmatpush.msra.mxu0 0.0
        %820 = vmatpush.msra.mxu0 %v586
        %821 = vmatmul.f32.gmra.mxu0 %v803
        %v822 = vpop.f32.mrf.mxu0
        %v823 = vadd.f32 0.0, %v822
        %824 = vdwg.mxu0
        %v826 = vsel %vm597, %v799, 0
        %828 = vmatpush.msra.mxu0 0.0
        %829 = vmatpush.msra.mxu0 0.0
        %830 = vmatpush.msra.mxu0 0.0
        %831 = vmatpush.msra.mxu0 0.0
        %832 = vmatpush.msra.mxu0 0.0
        %833 = vmatpush.msra.mxu0 0.0
        %834 = vmatpush.msra.mxu0 0.0
        %835 = vmatpush.msra.mxu0 0.0
        %836 = vmatpush.msra.mxu0 0.0
        %837 = vmatpush.msra.mxu0 0.0
        %838 = vmatpush.msra.mxu0 0.0
        %839 = vmatpush.msra.mxu0 0.0
        %840 = vmatpush.msra.mxu0 0.0
        %841 = vmatpush.msra.mxu0 0.0
        %842 = vmatpush.msra.mxu0 0.0
        %843 = vmatpush.msra.mxu0 %v589
        %844 = vmatmul.f32.gmra.mxu0 %v826
        %v845 = vpop.f32.mrf.mxu0
        %v846 = vadd.f32 0.0, %v845
        %847 = vdwg.mxu0
        %v849 = vsel %vm597, %v800, 0
        %851 = vmatpush.msra.mxu0 0.0
        %852 = vmatpush.msra.mxu0 0.0
        %853 = vmatpush.msra.mxu0 0.0
        %854 = vmatpush.msra.mxu0 0.0
        %855 = vmatpush.msra.mxu0 0.0
        %856 = vmatpush.msra.mxu0 0.0
        %857 = vmatpush.msra.mxu0 0.0
        %858 = vmatpush.msra.mxu0 0.0
        %859 = vmatpush.msra.mxu0 0.0
        %860 = vmatpush.msra.mxu0 0.0
        %861 = vmatpush.msra.mxu0 0.0
        %862 = vmatpush.msra.mxu0 0.0
        %863 = vmatpush.msra.mxu0 0.0
        %864 = vmatpush.msra.mxu0 0.0
        %865 = vmatpush.msra.mxu0 0.0
        %866 = vmatpush.msra.mxu0 %v592
        %867 = vmatmul.f32.gmra.mxu0 %v849
        %v868 = vpop.f32.mrf.mxu0
        %v869 = vadd.f32 0.0, %v868
        %870 = vdwg.mxu0
        %v872 = vsel %vm597, %v801, 0
        %874 = vmatpush.msra.mxu0 0.0
        %875 = vmatpush.msra.mxu0 0.0
        %876 = vmatpush.msra.mxu0 0.0
        %877 = vmatpush.msra.mxu0 0.0
        %878 = vmatpush.msra.mxu0 0.0
        %879 = vmatpush.msra.mxu0 0.0
        %880 = vmatpush.msra.mxu0 0.0
        %881 = vmatpush.msra.mxu0 0.0
        %882 = vmatpush.msra.mxu0 0.0
        %883 = vmatpush.msra.mxu0 0.0
        %884 = vmatpush.msra.mxu0 0.0
        %885 = vmatpush.msra.mxu0 0.0
        %886 = vmatpush.msra.mxu0 0.0
        %887 = vmatpush.msra.mxu0 0.0
        %888 = vmatpush.msra.mxu0 0.0
        %889 = vmatpush.msra.mxu0 %v595
        %890 = vmatmul.f32.gmra.mxu0 %v872
        %v891 = vpop.f32.mrf.mxu0
        %v892 = vadd.f32 0.0, %v891
        %893 = vdwg.mxu0
        %894 = vrot.lane.b32.xlu0 %v512, 120
        %v895 = vpop.permute.xlu0 %894
        %896 = vrot.lane.b32.xlu0 %v549, 120
        %v897 = vpop.permute.xlu0 %896
        %v898 = vsel %vm597, %v895, 0
        %v900 = vsel %vm597, %v897, 0
        %902 = vmatpush.xpose.msra.mxu0 0.0
        %903 = vmatpush.xpose.msra.mxu0 0.0
        %904 = vmatpush.xpose.msra.mxu0 0.0
        %905 = vmatpush.xpose.msra.mxu0 0.0
        %906 = vmatpush.xpose.msra.mxu0 0.0
        %907 = vmatpush.xpose.msra.mxu0 0.0
        %908 = vmatpush.xpose.msra.mxu0 0.0
        %909 = vmatpush.xpose.msra.mxu0 0.0
        %910 = vmatpush.xpose.msra.mxu0 0.0
        %911 = vmatpush.xpose.msra.mxu0 0.0
        %912 = vmatpush.xpose.msra.mxu0 0.0
        %913 = vmatpush.xpose.msra.mxu0 0.0
        %914 = vmatpush.xpose.msra.mxu0 0.0
        %915 = vmatpush.xpose.msra.mxu0 0.0
        %916 = vmatpush.xpose.msra.mxu0 0.0
        %917 = vmatpush.xpose.msra.mxu0 %v900
        %918 = vmatmul.f32.gmra.mxu0 %v898
        %v919 = vpop.f32.mrf.mxu0
        %v920 = vadd.f32 0.0, %v919
        %921 = vdwg.mxu0
        %922 = vrot.lane.b32.xlu0 %v515, 120
        %v923 = vpop.permute.xlu0 %922
        %924 = vrot.lane.b32.xlu0 %v552, 120
        %v925 = vpop.permute.xlu0 %924
        %v926 = vsel %vm597, %v923, 0
        %v928 = vsel %vm597, %v925, 0
        %930 = vmatpush.xpose.msra.mxu0 0.0
        %931 = vmatpush.xpose.msra.mxu0 0.0
        %932 = vmatpush.xpose.msra.mxu0 0.0
        %933 = vmatpush.xpose.msra.mxu0 0.0
        %934 = vmatpush.xpose.msra.mxu0 0.0
        %935 = vmatpush.xpose.msra.mxu0 0.0
        %936 = vmatpush.xpose.msra.mxu0 0.0
        %937 = vmatpush.xpose.msra.mxu0 0.0
        %938 = vmatpush.xpose.msra.mxu0 0.0
        %939 = vmatpush.xpose.msra.mxu0 0.0
        %940 = vmatpush.xpose.msra.mxu0 0.0
        %941 = vmatpush.xpose.msra.mxu0 0.0
        %942 = vmatpush.xpose.msra.mxu0 0.0
        %943 = vmatpush.xpose.msra.mxu0 0.0
        %944 = vmatpush.xpose.msra.mxu0 0.0
        %945 = vmatpush.xpose.msra.mxu0 %v928
        %946 = vmatmul.f32.gmra.mxu0 %v926
        %v947 = vpop.f32.mrf.mxu0
        %v948 = vadd.f32 0.0, %v947
        %949 = vdwg.mxu0
        %950 = vrot.lane.b32.xlu0 %v518, 120
        %v951 = vpop.permute.xlu0 %950
        %952 = vrot.lane.b32.xlu0 %v555, 120
        %v953 = vpop.permute.xlu0 %952
        %v954 = vsel %vm597, %v951, 0
        %v956 = vsel %vm597, %v953, 0
        %958 = vmatpush.xpose.msra.mxu0 0.0
        %959 = vmatpush.xpose.msra.mxu0 0.0
        %960 = vmatpush.xpose.msra.mxu0 0.0
        %961 = vmatpush.xpose.msra.mxu0 0.0
        %962 = vmatpush.xpose.msra.mxu0 0.0
        %963 = vmatpush.xpose.msra.mxu0 0.0
        %964 = vmatpush.xpose.msra.mxu0 0.0
        %965 = vmatpush.xpose.msra.mxu0 0.0
        %966 = vmatpush.xpose.msra.mxu0 0.0
        %967 = vmatpush.xpose.msra.mxu0 0.0
        %968 = vmatpush.xpose.msra.mxu0 0.0
        %969 = vmatpush.xpose.msra.mxu0 0.0
        %970 = vmatpush.xpose.msra.mxu0 0.0
        %971 = vmatpush.xpose.msra.mxu0 0.0
        %972 = vmatpush.xpose.msra.mxu0 0.0
        %973 = vmatpush.xpose.msra.mxu0 %v956
        %974 = vmatmul.f32.gmra.mxu0 %v954
        %v975 = vpop.f32.mrf.mxu0
        %v976 = vadd.f32 0.0, %v975
        %977 = vdwg.mxu0
        %978 = vrot.lane.b32.xlu0 %v521, 120
        %v979 = vpop.permute.xlu0 %978
        %980 = vrot.lane.b32.xlu0 %v558, 120
        %v981 = vpop.permute.xlu0 %980
        %v982 = vsel %vm597, %v979, 0
        %v984 = vsel %vm597, %v981, 0
        %986 = vmatpush.xpose.msra.mxu0 0.0
        %987 = vmatpush.xpose.msra.mxu0 0.0
        %988 = vmatpush.xpose.msra.mxu0 0.0
        %989 = vmatpush.xpose.msra.mxu0 0.0
        %990 = vmatpush.xpose.msra.mxu0 0.0
        %991 = vmatpush.xpose.msra.mxu0 0.0
        %992 = vmatpush.xpose.msra.mxu0 0.0
        %993 = vmatpush.xpose.msra.mxu0 0.0
        %994 = vmatpush.xpose.msra.mxu0 0.0
        %995 = vmatpush.xpose.msra.mxu0 0.0
        %996 = vmatpush.xpose.msra.mxu0 0.0
        %997 = vmatpush.xpose.msra.mxu0 0.0
        %998 = vmatpush.xpose.msra.mxu0 0.0
        %999 = vmatpush.xpose.msra.mxu0 0.0
        %1000 = vmatpush.xpose.msra.mxu0 0.0
        %1001 = vmatpush.xpose.msra.mxu0 %v984
        %1002 = vmatmul.f32.gmra.mxu0 %v982
        %v1003 = vpop.f32.mrf.mxu0
        %v1004 = vadd.f32 0.0, %v1003
        %1005 = vdwg.mxu0
        %s1006 = scalar_lea.vmem %s445, 32 [#allocation9]
        %1007 = vst.msk [vmem:[%s1006] sm:$0xff] %vm597, %v920
        %1008 = vst.msk [vmem:[%s1006 + $0x8] sm:$0xff] %vm597, %v948
        %1009 = vst.msk [vmem:[%s1006 + $0x10] sm:$0xff] %vm597, %v976
        %1010 = vst.msk [vmem:[%s1006 + $0x18] sm:$0xff] %vm597, %v1004
        %v1011 = vsel %vm597, %v920, -inf
        %1012 = vmax.xlane.f32.xlu0 %v1011
        %v1013 = vpop.xlane.xlu0 %1012
        %v1014 = vsel %vm597, %v948, -inf
        %1015 = vmax.xlane.f32.xlu0 %v1014
        %v1016 = vpop.xlane.xlu0 %1015
        %v1017 = vsel %vm597, %v976, -inf
        %1018 = vmax.xlane.f32.xlu0 %v1017
        %v1019 = vpop.xlane.xlu0 %1018
        %v1020 = vsel %vm597, %v1004, -inf
        %1021 = vmax.xlane.f32.xlu0 %v1020
        %v1022 = vpop.xlane.xlu0 %1021
        %v1023 = vsub.f32 %v920, %v1013
        %v1024 = vsub.f32 %v948, %v1016
        %v1025 = vsub.f32 %v976, %v1019
        %v1026 = vsub.f32 %v1004, %v1022
        %v1027 = vmul.f32 %v1023, 1.442695
        %v1028 = vpow.pop %v1027
        %v1029 = vmul.f32 %v1024, 1.442695
        %v1030 = vpow.pop %v1029
        %v1031 = vmul.f32 %v1025, 1.442695
        %v1032 = vpow.pop %v1031
        %v1033 = vmul.f32 %v1026, 1.442695
        %v1034 = vpow.pop %v1033
        %v1035 = vsel %vm597, %v1028, 0.0
        %1036 = vadd.xlane.f32.xlu0 %v1035
        %v1037 = vpop.xlane.xlu0 %1036
        %v1038 = vsel %vm597, %v1030, 0.0
        %1039 = vadd.xlane.f32.xlu0 %v1038
        %v1040 = vpop.xlane.xlu0 %1039
        %v1041 = vsel %vm597, %v1032, 0.0
        %1042 = vadd.xlane.f32.xlu0 %v1041
        %v1043 = vpop.xlane.xlu0 %1042
        %v1044 = vsel %vm597, %v1034, 0.0
        %1045 = vadd.xlane.f32.xlu0 %v1044
        %v1046 = vpop.xlane.xlu0 %1045
        %v1047 = vrcp.pop %v1037
        %v1048 = vmul.f32 %v1037, %v1047
        %v1049 = vsub.f32 1.0, %v1048
        %v1050 = vmul.f32 %v1047, %v1049
        %v1051 = vadd.f32 %v1047, %v1050
        %vm1052 = vweird.f32 %v1037
        %vm1053 = vweird.f32 %v1047
        %vm1054 = vmor %vm1052, %vm1053
        %v1055 = vsel %vm1054, %v1047, %v1051
        %v1056 = vand.u32 2147483647, %v1037
        %vm1057 = vcmp.eq.f32.partialorder %v1056, 8.507059e+37
        %v1058 = vand.u32 %v1037, 2147483648
        %v1059 = vor.u32 1.1754944e-38, %v1058
        %v1060 = vsel %vm1057, %v1059, %v1055
        %v1061 = vrcp.pop %v1040
        %v1062 = vmul.f32 %v1040, %v1061
        %v1063 = vsub.f32 1.0, %v1062
        %v1064 = vmul.f32 %v1061, %v1063
        %v1065 = vadd.f32 %v1061, %v1064
        %vm1066 = vweird.f32 %v1040
        %vm1067 = vweird.f32 %v1061
        %vm1068 = vmor %vm1066, %vm1067
        %v1069 = vsel %vm1068, %v1061, %v1065
        %v1070 = vand.u32 2147483647, %v1040
        %vm1071 = vcmp.eq.f32.partialorder %v1070, 8.507059e+37
        %v1072 = vand.u32 %v1040, 2147483648
        %v1073 = vor.u32 1.1754944e-38, %v1072
        %v1074 = vsel %vm1071, %v1073, %v1069
        %v1075 = vrcp.pop %v1043
        %v1076 = vmul.f32 %v1043, %v1075
        %v1077 = vsub.f32 1.0, %v1076
        %v1078 = vmul.f32 %v1075, %v1077
        %v1079 = vadd.f32 %v1075, %v1078
        %vm1080 = vweird.f32 %v1043
        %vm1081 = vweird.f32 %v1075
        %vm1082 = vmor %vm1080, %vm1081
        %v1083 = vsel %vm1082, %v1075, %v1079
        %v1084 = vand.u32 2147483647, %v1043
        %vm1085 = vcmp.eq.f32.partialorder %v1084, 8.507059e+37
        %v1086 = vand.u32 %v1043, 2147483648
        %v1087 = vor.u32 1.1754944e-38, %v1086
        %v1088 = vsel %vm1085, %v1087, %v1083
        %v1089 = vrcp.pop %v1046
        %v1090 = vmul.f32 %v1046, %v1089
        %v1091 = vsub.f32 1.0, %v1090
        %v1092 = vmul.f32 %v1089, %v1091
        %v1093 = vadd.f32 %v1089, %v1092
        %vm1094 = vweird.f32 %v1046
        %vm1095 = vweird.f32 %v1089
        %vm1096 = vmor %vm1094, %vm1095
        %v1097 = vsel %vm1096, %v1089, %v1093
        %v1098 = vand.u32 2147483647, %v1046
        %vm1099 = vcmp.eq.f32.partialorder %v1098, 8.507059e+37
        %v1100 = vand.u32 %v1046, 2147483648
        %v1101 = vor.u32 1.1754944e-38, %v1100
        %v1102 = vsel %vm1099, %v1101, %v1097
        %v1103 = vmul.f32 %v1028, %v1060
        %v1104 = vmul.f32 %v1030, %v1074
        %v1105 = vmul.f32 %v1032, %v1088
        %v1106 = vmul.f32 %v1034, %v1102
        %1108 = vrot.lane.b32.xlu0 %v586, 120
        %v1109 = vpop.permute.xlu0 %1108
        %v1112 = vsel %vm597, %v1103, 0
        %1114 = vmatpush.msra.mxu0 0.0
        %1115 = vmatpush.msra.mxu0 0.0
        %1116 = vmatpush.msra.mxu0 0.0
        %1117 = vmatpush.msra.mxu0 0.0
        %1118 = vmatpush.msra.mxu0 0.0
        %1119 = vmatpush.msra.mxu0 0.0
        %1120 = vmatpush.msra.mxu0 0.0
        %1121 = vmatpush.msra.mxu0 0.0
        %1122 = vmatpush.msra.mxu0 0.0
        %1123 = vmatpush.msra.mxu0 0.0
        %1124 = vmatpush.msra.mxu0 0.0
        %1125 = vmatpush.msra.mxu0 0.0
        %1126 = vmatpush.msra.mxu0 0.0
        %1127 = vmatpush.msra.mxu0 0.0
        %1128 = vmatpush.msra.mxu0 0.0
        %1129 = vmatpush.msra.mxu0 %v1109
        %1130 = vmatmul.f32.gmra.mxu0 %v1112
        %v1131 = vpop.f32.mrf.mxu0
        %v1132 = vadd.f32 0.0, %v1131
        %1133 = vdwg.mxu0
        %1135 = vrot.lane.b32.xlu0 %v589, 120
        %v1136 = vpop.permute.xlu0 %1135
        %v1139 = vsel %vm597, %v1104, 0
        %1141 = vmatpush.msra.mxu0 0.0
        %1142 = vmatpush.msra.mxu0 0.0
        %1143 = vmatpush.msra.mxu0 0.0
        %1144 = vmatpush.msra.mxu0 0.0
        %1145 = vmatpush.msra.mxu0 0.0
        %1146 = vmatpush.msra.mxu0 0.0
        %1147 = vmatpush.msra.mxu0 0.0
        %1148 = vmatpush.msra.mxu0 0.0
        %1149 = vmatpush.msra.mxu0 0.0
        %1150 = vmatpush.msra.mxu0 0.0
        %1151 = vmatpush.msra.mxu0 0.0
        %1152 = vmatpush.msra.mxu0 0.0
        %1153 = vmatpush.msra.mxu0 0.0
        %1154 = vmatpush.msra.mxu0 0.0
        %1155 = vmatpush.msra.mxu0 0.0
        %1156 = vmatpush.msra.mxu0 %v1136
        %1157 = vmatmul.f32.gmra.mxu0 %v1139
        %v1158 = vpop.f32.mrf.mxu0
        %v1159 = vadd.f32 0.0, %v1158
        %1160 = vdwg.mxu0
        %1162 = vrot.lane.b32.xlu0 %v592, 120
        %v1163 = vpop.permute.xlu0 %1162
        %v1166 = vsel %vm597, %v1105, 0
        %1168 = vmatpush.msra.mxu0 0.0
        %1169 = vmatpush.msra.mxu0 0.0
        %1170 = vmatpush.msra.mxu0 0.0
        %1171 = vmatpush.msra.mxu0 0.0
        %1172 = vmatpush.msra.mxu0 0.0
        %1173 = vmatpush.msra.mxu0 0.0
        %1174 = vmatpush.msra.mxu0 0.0
        %1175 = vmatpush.msra.mxu0 0.0
        %1176 = vmatpush.msra.mxu0 0.0
        %1177 = vmatpush.msra.mxu0 0.0
        %1178 = vmatpush.msra.mxu0 0.0
        %1179 = vmatpush.msra.mxu0 0.0
        %1180 = vmatpush.msra.mxu0 0.0
        %1181 = vmatpush.msra.mxu0 0.0
        %1182 = vmatpush.msra.mxu0 0.0
        %1183 = vmatpush.msra.mxu0 %v1163
        %1184 = vmatmul.f32.gmra.mxu0 %v1166
        %v1185 = vpop.f32.mrf.mxu0
        %v1186 = vadd.f32 0.0, %v1185
        %1187 = vdwg.mxu0
        %1189 = vrot.lane.b32.xlu0 %v595, 120
        %v1190 = vpop.permute.xlu0 %1189
        %v1193 = vsel %vm597, %v1106, 0
        %1195 = vmatpush.msra.mxu0 0.0
        %1196 = vmatpush.msra.mxu0 0.0
        %1197 = vmatpush.msra.mxu0 0.0
        %1198 = vmatpush.msra.mxu0 0.0
        %1199 = vmatpush.msra.mxu0 0.0
        %1200 = vmatpush.msra.mxu0 0.0
        %1201 = vmatpush.msra.mxu0 0.0
        %1202 = vmatpush.msra.mxu0 0.0
        %1203 = vmatpush.msra.mxu0 0.0
        %1204 = vmatpush.msra.mxu0 0.0
        %1205 = vmatpush.msra.mxu0 0.0
        %1206 = vmatpush.msra.mxu0 0.0
        %1207 = vmatpush.msra.mxu0 0.0
        %1208 = vmatpush.msra.mxu0 0.0
        %1209 = vmatpush.msra.mxu0 0.0
        %1210 = vmatpush.msra.mxu0 %v1190
        %1211 = vmatmul.f32.gmra.mxu0 %v1193
        %v1212 = vpop.f32.mrf.mxu0
        %v1213 = vadd.f32 0.0, %v1212
        %1214 = vdwg.mxu0
        %1215 = vrot.lane.b32.xlu0 %v512, 112
        %v1216 = vpop.permute.xlu0 %1215
        %1217 = vrot.lane.b32.xlu0 %v549, 112
        %v1218 = vpop.permute.xlu0 %1217
        %v1219 = vsel %vm597, %v1216, 0
        %v1221 = vsel %vm597, %v1218, 0
        %1223 = vmatpush.xpose.msra.mxu0 0.0
        %1224 = vmatpush.xpose.msra.mxu0 0.0
        %1225 = vmatpush.xpose.msra.mxu0 0.0
        %1226 = vmatpush.xpose.msra.mxu0 0.0
        %1227 = vmatpush.xpose.msra.mxu0 0.0
        %1228 = vmatpush.xpose.msra.mxu0 0.0
        %1229 = vmatpush.xpose.msra.mxu0 0.0
        %1230 = vmatpush.xpose.msra.mxu0 0.0
        %1231 = vmatpush.xpose.msra.mxu0 0.0
        %1232 = vmatpush.xpose.msra.mxu0 0.0
        %1233 = vmatpush.xpose.msra.mxu0 0.0
        %1234 = vmatpush.xpose.msra.mxu0 0.0
        %1235 = vmatpush.xpose.msra.mxu0 0.0
        %1236 = vmatpush.xpose.msra.mxu0 0.0
        %1237 = vmatpush.xpose.msra.mxu0 0.0
        %1238 = vmatpush.xpose.msra.mxu0 %v1221
        %1239 = vmatmul.f32.gmra.mxu0 %v1219
        %v1240 = vpop.f32.mrf.mxu0
        %v1241 = vadd.f32 0.0, %v1240
        %1242 = vdwg.mxu0
        %1243 = vrot.lane.b32.xlu0 %v515, 112
        %v1244 = vpop.permute.xlu0 %1243
        %1245 = vrot.lane.b32.xlu0 %v552, 112
        %v1246 = vpop.permute.xlu0 %1245
        %v1247 = vsel %vm597, %v1244, 0
        %v1249 = vsel %vm597, %v1246, 0
        %1251 = vmatpush.xpose.msra.mxu0 0.0
        %1252 = vmatpush.xpose.msra.mxu0 0.0
        %1253 = vmatpush.xpose.msra.mxu0 0.0
        %1254 = vmatpush.xpose.msra.mxu0 0.0
        %1255 = vmatpush.xpose.msra.mxu0 0.0
        %1256 = vmatpush.xpose.msra.mxu0 0.0
        %1257 = vmatpush.xpose.msra.mxu0 0.0
        %1258 = vmatpush.xpose.msra.mxu0 0.0
        %1259 = vmatpush.xpose.msra.mxu0 0.0
        %1260 = vmatpush.xpose.msra.mxu0 0.0
        %1261 = vmatpush.xpose.msra.mxu0 0.0
        %1262 = vmatpush.xpose.msra.mxu0 0.0
        %1263 = vmatpush.xpose.msra.mxu0 0.0
        %1264 = vmatpush.xpose.msra.mxu0 0.0
        %1265 = vmatpush.xpose.msra.mxu0 0.0
        %1266 = vmatpush.xpose.msra.mxu0 %v1249
        %1267 = vmatmul.f32.gmra.mxu0 %v1247
        %v1268 = vpop.f32.mrf.mxu0
        %v1269 = vadd.f32 0.0, %v1268
        %1270 = vdwg.mxu0
        %1271 = vrot.lane.b32.xlu0 %v518, 112
        %v1272 = vpop.permute.xlu0 %1271
        %1273 = vrot.lane.b32.xlu0 %v555, 112
        %v1274 = vpop.permute.xlu0 %1273
        %v1275 = vsel %vm597, %v1272, 0
        %v1277 = vsel %vm597, %v1274, 0
        %1279 = vmatpush.xpose.msra.mxu0 0.0
        %1280 = vmatpush.xpose.msra.mxu0 0.0
        %1281 = vmatpush.xpose.msra.mxu0 0.0
        %1282 = vmatpush.xpose.msra.mxu0 0.0
        %1283 = vmatpush.xpose.msra.mxu0 0.0
        %1284 = vmatpush.xpose.msra.mxu0 0.0
        %1285 = vmatpush.xpose.msra.mxu0 0.0
        %1286 = vmatpush.xpose.msra.mxu0 0.0
        %1287 = vmatpush.xpose.msra.mxu0 0.0
        %1288 = vmatpush.xpose.msra.mxu0 0.0
        %1289 = vmatpush.xpose.msra.mxu0 0.0
        %1290 = vmatpush.xpose.msra.mxu0 0.0
        %1291 = vmatpush.xpose.msra.mxu0 0.0
        %1292 = vmatpush.xpose.msra.mxu0 0.0
        %1293 = vmatpush.xpose.msra.mxu0 0.0
        %1294 = vmatpush.xpose.msra.mxu0 %v1277
        %1295 = vmatmul.f32.gmra.mxu0 %v1275
        %v1296 = vpop.f32.mrf.mxu0
        %v1297 = vadd.f32 0.0, %v1296
        %1298 = vdwg.mxu0
        %1299 = vrot.lane.b32.xlu0 %v521, 112
        %v1300 = vpop.permute.xlu0 %1299
        %1301 = vrot.lane.b32.xlu0 %v558, 112
        %v1302 = vpop.permute.xlu0 %1301
        %v1303 = vsel %vm597, %v1300, 0
        %v1305 = vsel %vm597, %v1302, 0
        %1307 = vmatpush.xpose.msra.mxu0 0.0
        %1308 = vmatpush.xpose.msra.mxu0 0.0
        %1309 = vmatpush.xpose.msra.mxu0 0.0
        %1310 = vmatpush.xpose.msra.mxu0 0.0
        %1311 = vmatpush.xpose.msra.mxu0 0.0
        %1312 = vmatpush.xpose.msra.mxu0 0.0
        %1313 = vmatpush.xpose.msra.mxu0 0.0
        %1314 = vmatpush.xpose.msra.mxu0 0.0
        %1315 = vmatpush.xpose.msra.mxu0 0.0
        %1316 = vmatpush.xpose.msra.mxu0 0.0
        %1317 = vmatpush.xpose.msra.mxu0 0.0
        %1318 = vmatpush.xpose.msra.mxu0 0.0
        %1319 = vmatpush.xpose.msra.mxu0 0.0
        %1320 = vmatpush.xpose.msra.mxu0 0.0
        %1321 = vmatpush.xpose.msra.mxu0 0.0
        %1322 = vmatpush.xpose.msra.mxu0 %v1305
        %1323 = vmatmul.f32.gmra.mxu0 %v1303
        %v1324 = vpop.f32.mrf.mxu0
        %v1325 = vadd.f32 0.0, %v1324
        %1326 = vdwg.mxu0
        %s1327 = scalar_lea.vmem %s445, 64 [#allocation9]
        %1328 = vst.msk [vmem:[%s1327] sm:$0xff] %vm597, %v1241
        %1329 = vst.msk [vmem:[%s1327 + $0x8] sm:$0xff] %vm597, %v1269
        %1330 = vst.msk [vmem:[%s1327 + $0x10] sm:$0xff] %vm597, %v1297
        %1331 = vst.msk [vmem:[%s1327 + $0x18] sm:$0xff] %vm597, %v1325
        %v1332 = vsel %vm597, %v1241, -inf
        %1333 = vmax.xlane.f32.xlu0 %v1332
        %v1334 = vpop.xlane.xlu0 %1333
        %v1335 = vsel %vm597, %v1269, -inf
        %1336 = vmax.xlane.f32.xlu0 %v1335
        %v1337 = vpop.xlane.xlu0 %1336
        %v1338 = vsel %vm597, %v1297, -inf
        %1339 = vmax.xlane.f32.xlu0 %v1338
        %v1340 = vpop.xlane.xlu0 %1339
        %v1341 = vsel %vm597, %v1325, -inf
        %1342 = vmax.xlane.f32.xlu0 %v1341
        %v1343 = vpop.xlane.xlu0 %1342
        %v1344 = vsub.f32 %v1241, %v1334
        %v1345 = vsub.f32 %v1269, %v1337
        %v1346 = vsub.f32 %v1297, %v1340
        %v1347 = vsub.f32 %v1325, %v1343
        %v1348 = vmul.f32 %v1344, 1.442695
        %v1349 = vpow.pop %v1348
        %v1350 = vmul.f32 %v1345, 1.442695
        %v1351 = vpow.pop %v1350
        %v1352 = vmul.f32 %v1346, 1.442695
        %v1353 = vpow.pop %v1352
        %v1354 = vmul.f32 %v1347, 1.442695
        %v1355 = vpow.pop %v1354
        %v1356 = vsel %vm597, %v1349, 0.0
        %1357 = vadd.xlane.f32.xlu0 %v1356
        %v1358 = vpop.xlane.xlu0 %1357
        %v1359 = vsel %vm597, %v1351, 0.0
        %1360 = vadd.xlane.f32.xlu0 %v1359
        %v1361 = vpop.xlane.xlu0 %1360
        %v1362 = vsel %vm597, %v1353, 0.0
        %1363 = vadd.xlane.f32.xlu0 %v1362
        %v1364 = vpop.xlane.xlu0 %1363
        %v1365 = vsel %vm597, %v1355, 0.0
        %1366 = vadd.xlane.f32.xlu0 %v1365
        %v1367 = vpop.xlane.xlu0 %1366
        %v1368 = vrcp.pop %v1358
        %v1369 = vmul.f32 %v1358, %v1368
        %v1370 = vsub.f32 1.0, %v1369
        %v1371 = vmul.f32 %v1368, %v1370
        %v1372 = vadd.f32 %v1368, %v1371
        %vm1373 = vweird.f32 %v1358
        %vm1374 = vweird.f32 %v1368
        %vm1375 = vmor %vm1373, %vm1374
        %v1376 = vsel %vm1375, %v1368, %v1372
        %v1377 = vand.u32 2147483647, %v1358
        %vm1378 = vcmp.eq.f32.partialorder %v1377, 8.507059e+37
        %v1379 = vand.u32 %v1358, 2147483648
        %v1380 = vor.u32 1.1754944e-38, %v1379
        %v1381 = vsel %vm1378, %v1380, %v1376
        %v1382 = vrcp.pop %v1361
        %v1383 = vmul.f32 %v1361, %v1382
        %v1384 = vsub.f32 1.0, %v1383
        %v1385 = vmul.f32 %v1382, %v1384
        %v1386 = vadd.f32 %v1382, %v1385
        %vm1387 = vweird.f32 %v1361
        %vm1388 = vweird.f32 %v1382
        %vm1389 = vmor %vm1387, %vm1388
        %v1390 = vsel %vm1389, %v1382, %v1386
        %v1391 = vand.u32 2147483647, %v1361
        %vm1392 = vcmp.eq.f32.partialorder %v1391, 8.507059e+37
        %v1393 = vand.u32 %v1361, 2147483648
        %v1394 = vor.u32 1.1754944e-38, %v1393
        %v1395 = vsel %vm1392, %v1394, %v1390
        %v1396 = vrcp.pop %v1364
        %v1397 = vmul.f32 %v1364, %v1396
        %v1398 = vsub.f32 1.0, %v1397
        %v1399 = vmul.f32 %v1396, %v1398
        %v1400 = vadd.f32 %v1396, %v1399
        %vm1401 = vweird.f32 %v1364
        %vm1402 = vweird.f32 %v1396
        %vm1403 = vmor %vm1401, %vm1402
        %v1404 = vsel %vm1403, %v1396, %v1400
        %v1405 = vand.u32 2147483647, %v1364
        %vm1406 = vcmp.eq.f32.partialorder %v1405, 8.507059e+37
        %v1407 = vand.u32 %v1364, 2147483648
        %v1408 = vor.u32 1.1754944e-38, %v1407
        %v1409 = vsel %vm1406, %v1408, %v1404
        %v1410 = vrcp.pop %v1367
        %v1411 = vmul.f32 %v1367, %v1410
        %v1412 = vsub.f32 1.0, %v1411
        %v1413 = vmul.f32 %v1410, %v1412
        %v1414 = vadd.f32 %v1410, %v1413
        %vm1415 = vweird.f32 %v1367
        %vm1416 = vweird.f32 %v1410
        %vm1417 = vmor %vm1415, %vm1416
        %v1418 = vsel %vm1417, %v1410, %v1414
        %v1419 = vand.u32 2147483647, %v1367
        %vm1420 = vcmp.eq.f32.partialorder %v1419, 8.507059e+37
        %v1421 = vand.u32 %v1367, 2147483648
        %v1422 = vor.u32 1.1754944e-38, %v1421
        %v1423 = vsel %vm1420, %v1422, %v1418
        %v1424 = vmul.f32 %v1349, %v1381
        %v1425 = vmul.f32 %v1351, %v1395
        %v1426 = vmul.f32 %v1353, %v1409
        %v1427 = vmul.f32 %v1355, %v1423
        %1428 = vrot.lane.b32.xlu0 %v586, 112
        %v1429 = vpop.permute.xlu0 %1428
        %v1432 = vsel %vm597, %v1424, 0
        %1434 = vmatpush.msra.mxu0 0.0
        %1435 = vmatpush.msra.mxu0 0.0
        %1436 = vmatpush.msra.mxu0 0.0
        %1437 = vmatpush.msra.mxu0 0.0
        %1438 = vmatpush.msra.mxu0 0.0
        %1439 = vmatpush.msra.mxu0 0.0
        %1440 = vmatpush.msra.mxu0 0.0
        %1441 = vmatpush.msra.mxu0 0.0
        %1442 = vmatpush.msra.mxu0 0.0
        %1443 = vmatpush.msra.mxu0 0.0
        %1444 = vmatpush.msra.mxu0 0.0
        %1445 = vmatpush.msra.mxu0 0.0
        %1446 = vmatpush.msra.mxu0 0.0
        %1447 = vmatpush.msra.mxu0 0.0
        %1448 = vmatpush.msra.mxu0 0.0
        %1449 = vmatpush.msra.mxu0 %v1429
        %1450 = vmatmul.f32.gmra.mxu0 %v1432
        %v1451 = vpop.f32.mrf.mxu0
        %v1452 = vadd.f32 0.0, %v1451
        %1453 = vdwg.mxu0
        %1454 = vrot.lane.b32.xlu0 %v589, 112
        %v1455 = vpop.permute.xlu0 %1454
        %v1458 = vsel %vm597, %v1425, 0
        %1460 = vmatpush.msra.mxu0 0.0
        %1461 = vmatpush.msra.mxu0 0.0
        %1462 = vmatpush.msra.mxu0 0.0
        %1463 = vmatpush.msra.mxu0 0.0
        %1464 = vmatpush.msra.mxu0 0.0
        %1465 = vmatpush.msra.mxu0 0.0
        %1466 = vmatpush.msra.mxu0 0.0
        %1467 = vmatpush.msra.mxu0 0.0
        %1468 = vmatpush.msra.mxu0 0.0
        %1469 = vmatpush.msra.mxu0 0.0
        %1470 = vmatpush.msra.mxu0 0.0
        %1471 = vmatpush.msra.mxu0 0.0
        %1472 = vmatpush.msra.mxu0 0.0
        %1473 = vmatpush.msra.mxu0 0.0
        %1474 = vmatpush.msra.mxu0 0.0
        %1475 = vmatpush.msra.mxu0 %v1455
        %1476 = vmatmul.f32.gmra.mxu0 %v1458
        %v1477 = vpop.f32.mrf.mxu0
        %v1478 = vadd.f32 0.0, %v1477
        %1479 = vdwg.mxu0
        %1480 = vrot.lane.b32.xlu0 %v592, 112
        %v1481 = vpop.permute.xlu0 %1480
        %v1484 = vsel %vm597, %v1426, 0
        %1486 = vmatpush.msra.mxu0 0.0
        %1487 = vmatpush.msra.mxu0 0.0
        %1488 = vmatpush.msra.mxu0 0.0
        %1489 = vmatpush.msra.mxu0 0.0
        %1490 = vmatpush.msra.mxu0 0.0
        %1491 = vmatpush.msra.mxu0 0.0
        %1492 = vmatpush.msra.mxu0 0.0
        %1493 = vmatpush.msra.mxu0 0.0
        %1494 = vmatpush.msra.mxu0 0.0
        %1495 = vmatpush.msra.mxu0 0.0
        %1496 = vmatpush.msra.mxu0 0.0
        %1497 = vmatpush.msra.mxu0 0.0
        %1498 = vmatpush.msra.mxu0 0.0
        %1499 = vmatpush.msra.mxu0 0.0
        %1500 = vmatpush.msra.mxu0 0.0
        %1501 = vmatpush.msra.mxu0 %v1481
        %1502 = vmatmul.f32.gmra.mxu0 %v1484
        %v1503 = vpop.f32.mrf.mxu0
        %v1504 = vadd.f32 0.0, %v1503
        %1505 = vdwg.mxu0
        %1506 = vrot.lane.b32.xlu0 %v595, 112
        %v1507 = vpop.permute.xlu0 %1506
        %v1510 = vsel %vm597, %v1427, 0
        %1512 = vmatpush.msra.mxu0 0.0
        %1513 = vmatpush.msra.mxu0 0.0
        %1514 = vmatpush.msra.mxu0 0.0
        %1515 = vmatpush.msra.mxu0 0.0
        %1516 = vmatpush.msra.mxu0 0.0
        %1517 = vmatpush.msra.mxu0 0.0
        %1518 = vmatpush.msra.mxu0 0.0
        %1519 = vmatpush.msra.mxu0 0.0
        %1520 = vmatpush.msra.mxu0 0.0
        %1521 = vmatpush.msra.mxu0 0.0
        %1522 = vmatpush.msra.mxu0 0.0
        %1523 = vmatpush.msra.mxu0 0.0
        %1524 = vmatpush.msra.mxu0 0.0
        %1525 = vmatpush.msra.mxu0 0.0
        %1526 = vmatpush.msra.mxu0 0.0
        %1527 = vmatpush.msra.mxu0 %v1507
        %1528 = vmatmul.f32.gmra.mxu0 %v1510
        %v1529 = vpop.f32.mrf.mxu0
        %v1530 = vadd.f32 0.0, %v1529
        %1531 = vdwg.mxu0
        %1532 = vrot.lane.b32.xlu0 %v512, 104
        %v1533 = vpop.permute.xlu0 %1532
        %1534 = vrot.lane.b32.xlu0 %v549, 104
        %v1535 = vpop.permute.xlu0 %1534
        %v1536 = vsel %vm597, %v1533, 0
        %v1538 = vsel %vm597, %v1535, 0
        %1540 = vmatpush.xpose.msra.mxu0 0.0
        %1541 = vmatpush.xpose.msra.mxu0 0.0
        %1542 = vmatpush.xpose.msra.mxu0 0.0
        %1543 = vmatpush.xpose.msra.mxu0 0.0
        %1544 = vmatpush.xpose.msra.mxu0 0.0
        %1545 = vmatpush.xpose.msra.mxu0 0.0
        %1546 = vmatpush.xpose.msra.mxu0 0.0
        %1547 = vmatpush.xpose.msra.mxu0 0.0
        %1548 = vmatpush.xpose.msra.mxu0 0.0
        %1549 = vmatpush.xpose.msra.mxu0 0.0
        %1550 = vmatpush.xpose.msra.mxu0 0.0
        %1551 = vmatpush.xpose.msra.mxu0 0.0
        %1552 = vmatpush.xpose.msra.mxu0 0.0
        %1553 = vmatpush.xpose.msra.mxu0 0.0
        %1554 = vmatpush.xpose.msra.mxu0 0.0
        %1555 = vmatpush.xpose.msra.mxu0 %v1538
        %1556 = vmatmul.f32.gmra.mxu0 %v1536
        %v1557 = vpop.f32.mrf.mxu0
        %v1558 = vadd.f32 0.0, %v1557
        %1559 = vdwg.mxu0
        %1560 = vrot.lane.b32.xlu0 %v515, 104
        %v1561 = vpop.permute.xlu0 %1560
        %1562 = vrot.lane.b32.xlu0 %v552, 104
        %v1563 = vpop.permute.xlu0 %1562
        %v1564 = vsel %vm597, %v1561, 0
        %v1566 = vsel %vm597, %v1563, 0
        %1568 = vmatpush.xpose.msra.mxu0 0.0
        %1569 = vmatpush.xpose.msra.mxu0 0.0
        %1570 = vmatpush.xpose.msra.mxu0 0.0
        %1571 = vmatpush.xpose.msra.mxu0 0.0
        %1572 = vmatpush.xpose.msra.mxu0 0.0
        %1573 = vmatpush.xpose.msra.mxu0 0.0
        %1574 = vmatpush.xpose.msra.mxu0 0.0
        %1575 = vmatpush.xpose.msra.mxu0 0.0
        %1576 = vmatpush.xpose.msra.mxu0 0.0
        %1577 = vmatpush.xpose.msra.mxu0 0.0
        %1578 = vmatpush.xpose.msra.mxu0 0.0
        %1579 = vmatpush.xpose.msra.mxu0 0.0
        %1580 = vmatpush.xpose.msra.mxu0 0.0
        %1581 = vmatpush.xpose.msra.mxu0 0.0
        %1582 = vmatpush.xpose.msra.mxu0 0.0
        %1583 = vmatpush.xpose.msra.mxu0 %v1566
        %1584 = vmatmul.f32.gmra.mxu0 %v1564
        %v1585 = vpop.f32.mrf.mxu0
        %v1586 = vadd.f32 0.0, %v1585
        %1587 = vdwg.mxu0
        %1588 = vrot.lane.b32.xlu0 %v518, 104
        %v1589 = vpop.permute.xlu0 %1588
        %1590 = vrot.lane.b32.xlu0 %v555, 104
        %v1591 = vpop.permute.xlu0 %1590
        %v1592 = vsel %vm597, %v1589, 0
        %v1594 = vsel %vm597, %v1591, 0
        %1596 = vmatpush.xpose.msra.mxu0 0.0
        %1597 = vmatpush.xpose.msra.mxu0 0.0
        %1598 = vmatpush.xpose.msra.mxu0 0.0
        %1599 = vmatpush.xpose.msra.mxu0 0.0
        %1600 = vmatpush.xpose.msra.mxu0 0.0
        %1601 = vmatpush.xpose.msra.mxu0 0.0
        %1602 = vmatpush.xpose.msra.mxu0 0.0
        %1603 = vmatpush.xpose.msra.mxu0 0.0
        %1604 = vmatpush.xpose.msra.mxu0 0.0
        %1605 = vmatpush.xpose.msra.mxu0 0.0
        %1606 = vmatpush.xpose.msra.mxu0 0.0
        %1607 = vmatpush.xpose.msra.mxu0 0.0
        %1608 = vmatpush.xpose.msra.mxu0 0.0
        %1609 = vmatpush.xpose.msra.mxu0 0.0
        %1610 = vmatpush.xpose.msra.mxu0 0.0
        %1611 = vmatpush.xpose.msra.mxu0 %v1594
        %1612 = vmatmul.f32.gmra.mxu0 %v1592
        %v1613 = vpop.f32.mrf.mxu0
        %v1614 = vadd.f32 0.0, %v1613
        %1615 = vdwg.mxu0
        %1616 = vrot.lane.b32.xlu0 %v521, 104
        %v1617 = vpop.permute.xlu0 %1616
        %1618 = vrot.lane.b32.xlu0 %v558, 104
        %v1619 = vpop.permute.xlu0 %1618
        %v1620 = vsel %vm597, %v1617, 0
        %v1622 = vsel %vm597, %v1619, 0
        %1624 = vmatpush.xpose.msra.mxu0 0.0
        %1625 = vmatpush.xpose.msra.mxu0 0.0
        %1626 = vmatpush.xpose.msra.mxu0 0.0
        %1627 = vmatpush.xpose.msra.mxu0 0.0
        %1628 = vmatpush.xpose.msra.mxu0 0.0
        %1629 = vmatpush.xpose.msra.mxu0 0.0
        %1630 = vmatpush.xpose.msra.mxu0 0.0
        %1631 = vmatpush.xpose.msra.mxu0 0.0
        %1632 = vmatpush.xpose.msra.mxu0 0.0
        %1633 = vmatpush.xpose.msra.mxu0 0.0
        %1634 = vmatpush.xpose.msra.mxu0 0.0
        %1635 = vmatpush.xpose.msra.mxu0 0.0
        %1636 = vmatpush.xpose.msra.mxu0 0.0
        %1637 = vmatpush.xpose.msra.mxu0 0.0
        %1638 = vmatpush.xpose.msra.mxu0 0.0
        %1639 = vmatpush.xpose.msra.mxu0 %v1622
        %1640 = vmatmul.f32.gmra.mxu0 %v1620
        %v1641 = vpop.f32.mrf.mxu0
        %v1642 = vadd.f32 0.0, %v1641
        %1643 = vdwg.mxu0
        %s1644 = scalar_lea.vmem %s445, 96 [#allocation9]
        %1645 = vst.msk [vmem:[%s1644] sm:$0xff] %vm597, %v1558
        %1646 = vst.msk [vmem:[%s1644 + $0x8] sm:$0xff] %vm597, %v1586
        %1647 = vst.msk [vmem:[%s1644 + $0x10] sm:$0xff] %vm597, %v1614
        %1648 = vst.msk [vmem:[%s1644 + $0x18] sm:$0xff] %vm597, %v1642
        %v1649 = vsel %vm597, %v1558, -inf
        %1650 = vmax.xlane.f32.xlu0 %v1649
        %v1651 = vpop.xlane.xlu0 %1650
        %v1652 = vsel %vm597, %v1586, -inf
        %1653 = vmax.xlane.f32.xlu0 %v1652
        %v1654 = vpop.xlane.xlu0 %1653
        %v1655 = vsel %vm597, %v1614, -inf
        %1656 = vmax.xlane.f32.xlu0 %v1655
        %v1657 = vpop.xlane.xlu0 %1656
        %v1658 = vsel %vm597, %v1642, -inf
        %1659 = vmax.xlane.f32.xlu0 %v1658
        %v1660 = vpop.xlane.xlu0 %1659
        %v1661 = vsub.f32 %v1558, %v1651
        %v1662 = vsub.f32 %v1586, %v1654
        %v1663 = vsub.f32 %v1614, %v1657
        %v1664 = vsub.f32 %v1642, %v1660
        %v1665 = vmul.f32 %v1661, 1.442695
        %v1666 = vpow.pop %v1665
        %v1667 = vmul.f32 %v1662, 1.442695
        %v1668 = vpow.pop %v1667
        %v1669 = vmul.f32 %v1663, 1.442695
        %v1670 = vpow.pop %v1669
        %v1671 = vmul.f32 %v1664, 1.442695
        %v1672 = vpow.pop %v1671
        %v1673 = vsel %vm597, %v1666, 0.0
        %1674 = vadd.xlane.f32.xlu0 %v1673
        %v1675 = vpop.xlane.xlu0 %1674
        %v1676 = vsel %vm597, %v1668, 0.0
        %1677 = vadd.xlane.f32.xlu0 %v1676
        %v1678 = vpop.xlane.xlu0 %1677
        %v1679 = vsel %vm597, %v1670, 0.0
        %1680 = vadd.xlane.f32.xlu0 %v1679
        %v1681 = vpop.xlane.xlu0 %1680
        %v1682 = vsel %vm597, %v1672, 0.0
        %1683 = vadd.xlane.f32.xlu0 %v1682
        %v1684 = vpop.xlane.xlu0 %1683
        %v1685 = vrcp.pop %v1675
        %v1686 = vmul.f32 %v1675, %v1685
        %v1687 = vsub.f32 1.0, %v1686
        %v1688 = vmul.f32 %v1685, %v1687
        %v1689 = vadd.f32 %v1685, %v1688
        %vm1690 = vweird.f32 %v1675
        %vm1691 = vweird.f32 %v1685
        %vm1692 = vmor %vm1690, %vm1691
        %v1693 = vsel %vm1692, %v1685, %v1689
        %v1694 = vand.u32 2147483647, %v1675
        %vm1695 = vcmp.eq.f32.partialorder %v1694, 8.507059e+37
        %v1696 = vand.u32 %v1675, 2147483648
        %v1697 = vor.u32 1.1754944e-38, %v1696
        %v1698 = vsel %vm1695, %v1697, %v1693
        %v1699 = vrcp.pop %v1678
        %v1700 = vmul.f32 %v1678, %v1699
        %v1701 = vsub.f32 1.0, %v1700
        %v1702 = vmul.f32 %v1699, %v1701
        %v1703 = vadd.f32 %v1699, %v1702
        %vm1704 = vweird.f32 %v1678
        %vm1705 = vweird.f32 %v1699
        %vm1706 = vmor %vm1704, %vm1705
        %v1707 = vsel %vm1706, %v1699, %v1703
        %v1708 = vand.u32 2147483647, %v1678
        %vm1709 = vcmp.eq.f32.partialorder %v1708, 8.507059e+37
        %v1710 = vand.u32 %v1678, 2147483648
        %v1711 = vor.u32 1.1754944e-38, %v1710
        %v1712 = vsel %vm1709, %v1711, %v1707
        %v1713 = vrcp.pop %v1681
        %v1714 = vmul.f32 %v1681, %v1713
        %v1715 = vsub.f32 1.0, %v1714
        %v1716 = vmul.f32 %v1713, %v1715
        %v1717 = vadd.f32 %v1713, %v1716
        %vm1718 = vweird.f32 %v1681
        %vm1719 = vweird.f32 %v1713
        %vm1720 = vmor %vm1718, %vm1719
        %v1721 = vsel %vm1720, %v1713, %v1717
        %v1722 = vand.u32 2147483647, %v1681
        %vm1723 = vcmp.eq.f32.partialorder %v1722, 8.507059e+37
        %v1724 = vand.u32 %v1681, 2147483648
        %v1725 = vor.u32 1.1754944e-38, %v1724
        %v1726 = vsel %vm1723, %v1725, %v1721
        %v1727 = vrcp.pop %v1684
        %v1728 = vmul.f32 %v1684, %v1727
        %v1729 = vsub.f32 1.0, %v1728
        %v1730 = vmul.f32 %v1727, %v1729
        %v1731 = vadd.f32 %v1727, %v1730
        %vm1732 = vweird.f32 %v1684
        %vm1733 = vweird.f32 %v1727
        %vm1734 = vmor %vm1732, %vm1733
        %v1735 = vsel %vm1734, %v1727, %v1731
        %v1736 = vand.u32 2147483647, %v1684
        %vm1737 = vcmp.eq.f32.partialorder %v1736, 8.507059e+37
        %v1738 = vand.u32 %v1684, 2147483648
        %v1739 = vor.u32 1.1754944e-38, %v1738
        %v1740 = vsel %vm1737, %v1739, %v1735
        %v1741 = vmul.f32 %v1666, %v1698
        %v1742 = vmul.f32 %v1668, %v1712
        %v1743 = vmul.f32 %v1670, %v1726
        %v1744 = vmul.f32 %v1672, %v1740
        %1745 = vrot.lane.b32.xlu0 %v586, 104
        %v1746 = vpop.permute.xlu0 %1745
        %v1749 = vsel %vm597, %v1741, 0
        %1751 = vmatpush.msra.mxu0 0.0
        %1752 = vmatpush.msra.mxu0 0.0
        %1753 = vmatpush.msra.mxu0 0.0
        %1754 = vmatpush.msra.mxu0 0.0
        %1755 = vmatpush.msra.mxu0 0.0
        %1756 = vmatpush.msra.mxu0 0.0
        %1757 = vmatpush.msra.mxu0 0.0
        %1758 = vmatpush.msra.mxu0 0.0
        %1759 = vmatpush.msra.mxu0 0.0
        %1760 = vmatpush.msra.mxu0 0.0
        %1761 = vmatpush.msra.mxu0 0.0
        %1762 = vmatpush.msra.mxu0 0.0
        %1763 = vmatpush.msra.mxu0 0.0
        %1764 = vmatpush.msra.mxu0 0.0
        %1765 = vmatpush.msra.mxu0 0.0
        %1766 = vmatpush.msra.mxu0 %v1746
        %1767 = vmatmul.f32.gmra.mxu0 %v1749
        %v1768 = vpop.f32.mrf.mxu0
        %v1769 = vadd.f32 0.0, %v1768
        %1770 = vdwg.mxu0
        %1771 = vrot.lane.b32.xlu0 %v589, 104
        %v1772 = vpop.permute.xlu0 %1771
        %v1775 = vsel %vm597, %v1742, 0
        %1777 = vmatpush.msra.mxu0 0.0
        %1778 = vmatpush.msra.mxu0 0.0
        %1779 = vmatpush.msra.mxu0 0.0
        %1780 = vmatpush.msra.mxu0 0.0
        %1781 = vmatpush.msra.mxu0 0.0
        %1782 = vmatpush.msra.mxu0 0.0
        %1783 = vmatpush.msra.mxu0 0.0
        %1784 = vmatpush.msra.mxu0 0.0
        %1785 = vmatpush.msra.mxu0 0.0
        %1786 = vmatpush.msra.mxu0 0.0
        %1787 = vmatpush.msra.mxu0 0.0
        %1788 = vmatpush.msra.mxu0 0.0
        %1789 = vmatpush.msra.mxu0 0.0
        %1790 = vmatpush.msra.mxu0 0.0
        %1791 = vmatpush.msra.mxu0 0.0
        %1792 = vmatpush.msra.mxu0 %v1772
        %1793 = vmatmul.f32.gmra.mxu0 %v1775
        %v1794 = vpop.f32.mrf.mxu0
        %v1795 = vadd.f32 0.0, %v1794
        %1796 = vdwg.mxu0
        %1797 = vrot.lane.b32.xlu0 %v592, 104
        %v1798 = vpop.permute.xlu0 %1797
        %v1801 = vsel %vm597, %v1743, 0
        %1803 = vmatpush.msra.mxu0 0.0
        %1804 = vmatpush.msra.mxu0 0.0
        %1805 = vmatpush.msra.mxu0 0.0
        %1806 = vmatpush.msra.mxu0 0.0
        %1807 = vmatpush.msra.mxu0 0.0
        %1808 = vmatpush.msra.mxu0 0.0
        %1809 = vmatpush.msra.mxu0 0.0
        %1810 = vmatpush.msra.mxu0 0.0
        %1811 = vmatpush.msra.mxu0 0.0
        %1812 = vmatpush.msra.mxu0 0.0
        %1813 = vmatpush.msra.mxu0 0.0
        %1814 = vmatpush.msra.mxu0 0.0
        %1815 = vmatpush.msra.mxu0 0.0
        %1816 = vmatpush.msra.mxu0 0.0
        %1817 = vmatpush.msra.mxu0 0.0
        %1818 = vmatpush.msra.mxu0 %v1798
        %1819 = vmatmul.f32.gmra.mxu0 %v1801
        %v1820 = vpop.f32.mrf.mxu0
        %v1821 = vadd.f32 0.0, %v1820
        %1822 = vdwg.mxu0
        %1823 = vrot.lane.b32.xlu0 %v595, 104
        %v1824 = vpop.permute.xlu0 %1823
        %v1827 = vsel %vm597, %v1744, 0
        %1829 = vmatpush.msra.mxu0 0.0
        %1830 = vmatpush.msra.mxu0 0.0
        %1831 = vmatpush.msra.mxu0 0.0
        %1832 = vmatpush.msra.mxu0 0.0
        %1833 = vmatpush.msra.mxu0 0.0
        %1834 = vmatpush.msra.mxu0 0.0
        %1835 = vmatpush.msra.mxu0 0.0
        %1836 = vmatpush.msra.mxu0 0.0
        %1837 = vmatpush.msra.mxu0 0.0
        %1838 = vmatpush.msra.mxu0 0.0
        %1839 = vmatpush.msra.mxu0 0.0
        %1840 = vmatpush.msra.mxu0 0.0
        %1841 = vmatpush.msra.mxu0 0.0
        %1842 = vmatpush.msra.mxu0 0.0
        %1843 = vmatpush.msra.mxu0 0.0
        %1844 = vmatpush.msra.mxu0 %v1824
        %1845 = vmatmul.f32.gmra.mxu0 %v1827
        %v1846 = vpop.f32.mrf.mxu0
        %v1847 = vadd.f32 0.0, %v1846
        %1848 = vdwg.mxu0
        %1853 = vrot.lane.b32.xlu0 %v1132, 8
        %v1854 = vpop.permute.xlu0 %1853
        %1855 = vrot.lane.b32.xlu0 %v1159, 8
        %v1856 = vpop.permute.xlu0 %1855
        %1857 = vrot.lane.b32.xlu0 %v1186, 8
        %v1858 = vpop.permute.xlu0 %1857
        %1859 = vrot.lane.b32.xlu0 %v1213, 8
        %v1860 = vpop.permute.xlu0 %1859
        %1869 = vrot.lane.b32.xlu0 %v1452, 16
        %v1870 = vpop.permute.xlu0 %1869
        %1871 = vrot.lane.b32.xlu0 %v1478, 16
        %v1872 = vpop.permute.xlu0 %1871
        %1873 = vrot.lane.b32.xlu0 %v1504, 16
        %v1874 = vpop.permute.xlu0 %1873
        %1875 = vrot.lane.b32.xlu0 %v1530, 16
        %v1876 = vpop.permute.xlu0 %1875
        %1885 = vrot.lane.b32.xlu0 %v1769, 24
        %v1886 = vpop.permute.xlu0 %1885
        %1887 = vrot.lane.b32.xlu0 %v1795, 24
        %v1888 = vpop.permute.xlu0 %1887
        %1889 = vrot.lane.b32.xlu0 %v1821, 24
        %v1890 = vpop.permute.xlu0 %1889
        %1891 = vrot.lane.b32.xlu0 %v1847, 24
        %v1892 = vpop.permute.xlu0 %1891
        %v1897 = vsel %vm597, %v823, %v1854
        %v1898 = vsel %vm597, %v846, %v1856
        %v1899 = vsel %vm597, %v869, %v1858
        %v1900 = vsel %vm597, %v892, %v1860
        %vm1901 = vcmask 130048
        %v1902 = vsel %vm1901, %v1897, %v1870
        %v1903 = vsel %vm1901, %v1898, %v1872
        %v1904 = vsel %vm1901, %v1899, %v1874
        %v1905 = vsel %vm1901, %v1900, %v1876
        %vm1906 = vcmask 195584
        %v1907 = vsel %vm1906, %v1902, %v1886
        %v1908 = vsel %vm1906, %v1903, %v1888
        %v1909 = vsel %vm1906, %v1904, %v1890
        %v1910 = vsel %vm1906, %v1905, %v1892
        %v1911 = vld [vmem:[#allocation6] sm:$0xff]
        %v1912 = vld [vmem:[#allocation6 + $0x8] sm:$0xff]
        %v1913 = vld [vmem:[#allocation6 + $0x10] sm:$0xff]
        %v1914 = vld [vmem:[#allocation6 + $0x18] sm:$0xff]
        %v1915 = vld [vmem:[#allocation7] sm:$0x1]
        %v1917 = vperm.slane %v1915, 0
        %v1920 = vsel %vm481, %v1907, 0
        %v1923 = vsel %vm481, %v1908, 0
        %v1926 = vsel %vm481, %v1909, 0
        %v1929 = vsel %vm481, %v1910, 0
        %1931 = vmatpush.msra.mxu0 0.0
        %1932 = vmatpush.msra.mxu0 0.0
        %1933 = vmatpush.msra.mxu0 0.0
        %1934 = vmatpush.msra.mxu0 0.0
        %1935 = vmatpush.msra.mxu0 0.0
        %1936 = vmatpush.msra.mxu0 0.0
        %1937 = vmatpush.msra.mxu0 0.0
        %1938 = vmatpush.msra.mxu0 0.0
        %1939 = vmatpush.msra.mxu0 0.0
        %1940 = vmatpush.msra.mxu0 0.0
        %1941 = vmatpush.msra.mxu0 0.0
        %1942 = vmatpush.msra.mxu0 0.0
        %1943 = vmatpush.msra.mxu0 %v1914
        %1944 = vmatpush.msra.mxu0 %v1913
        %1945 = vmatpush.msra.mxu0 %v1912
        %1946 = vmatpush.msra.mxu0 %v1911
        %1947 = vmatmul.f32.gmra.mxu0 %v1920
        %v1948 = vpop.f32.mrf.mxu0
        %v1949 = vadd.f32 %v1917, %v1948
        %1950 = vmatmul.f32.gmra.mxu0 %v1923
        %v1951 = vpop.f32.mrf.mxu0
        %v1952 = vadd.f32 %v1917, %v1951
        %1953 = vmatmul.f32.gmra.mxu0 %v1926
        %v1954 = vpop.f32.mrf.mxu0
        %v1955 = vadd.f32 %v1917, %v1954
        %1956 = vmatmul.f32.gmra.mxu0 %v1929
        %v1957 = vpop.f32.mrf.mxu0
        %v1958 = vadd.f32 %v1917, %v1957
        %1959 = vdwg.mxu0
        %v1960 = vadd.f32 %v469, %v1949
        %v1961 = vadd.f32 %v470, %v1952
        %v1962 = vadd.f32 %v471, %v1955
        %v1963 = vadd.f32 %v472, %v1958
        %1964 = vst.msk [vmem:[%s462] sm:$0xff] %vm481, %v1960
        %1965 = vst.msk [vmem:[%s462 + $0x8] sm:$0xff] %vm481, %v1961
        %1966 = vst.msk [vmem:[%s462 + $0x10] sm:$0xff] %vm481, %v1962
        %1967 = vst.msk [vmem:[%s462 + $0x18] sm:$0xff] %vm481, %v1963
        %v1968 = vsel %vm481, %v1960, 0.0
        %v1969 = vsel %vm481, %v1961, 0.0
        %v1970 = vadd.f32 %v1968, %v1969
        %v1971 = vsel %vm481, %v1962, 0.0
        %v1972 = vadd.f32 %v1970, %v1971
        %v1973 = vsel %vm481, %v1963, 0.0
        %v1974 = vadd.f32 %v1972, %v1973
        %v1975 = vrot.slane %v1974, 4
        %v1976 = vadd.f32 %v1974, %v1975
        %v1977 = vrot.slane %v1976, 2
        %v1978 = vadd.f32 %v1976, %v1977
        %v1979 = vrot.slane %v1978, 1
        %v1980 = vadd.f32 %v1978, %v1979
        %vm1981 = vcmask 253952
        %1982 = vst.msk [vmem:[%s468] sm:$0x1] %vm1981, %v1980
        %v1983 = vmul.f32 %v1960, %v1960
        %v1984 = vmul.f32 %v1961, %v1961
        %v1985 = vmul.f32 %v1962, %v1962
        %v1986 = vmul.f32 %v1963, %v1963
        %v1987 = vsel %vm481, %v1983, 0.0
        %v1988 = vsel %vm481, %v1984, 0.0
        %v1989 = vadd.f32 %v1987, %v1988
        %v1990 = vsel %vm481, %v1985, 0.0
        %v1991 = vadd.f32 %v1989, %v1990
        %v1992 = vsel %vm481, %v1986, 0.0
        %v1993 = vadd.f32 %v1991, %v1992
        %v1994 = vrot.slane %v1993, 4
        %v1995 = vadd.f32 %v1993, %v1994
        %v1996 = vrot.slane %v1995, 2
        %v1997 = vadd.f32 %v1995, %v1996
        %v1998 = vrot.slane %v1997, 1
        %v1999 = vadd.f32 %v1997, %v1998
        %2000 = vst.msk [vmem:[%s468 + $0x1] sm:$0x1] %vm1981, %v1999
        %s2001 = smul.u32 4, %s26
        %p2002 = scmp.lt.s32.totalorder %s2001, 7
        %s2003 = scalar_select %p2002, %s2001, 7
        %s2004 = smul.addr %s2003, 8
        %s2005 = scalar_lea.vmem %s9, %s2004
        %s2006 = sand.u32 %s254, 1
        %s2007 = sand.u32 %s254, 1
        %s2008 = smul.addr %s2007, 128
        %s2009 = scalar_lea.vmem [#allocation9], %s2008
        %p2010 = scmp.lt.s32.totalorder %s26, 1
        %s2011 = scalar_select %p2010, %s26, 1
        %s2012 = smul.addr %s2011, 2
        %s2013 = scalar_lea.vmem %s11, %s2012
        // Predicated region
        $region73: #{tsti_encoder_forward.7} parent=55 // pred_check
          %p2014 = pneg %p238
        $region74: #{tsti_encoder_forward.7} parent=55 // pred_check_branch
          %2016 = sbr.rel (%p2014) target = $region76
        $region75: #{tsti_encoder_forward.7} parent=55 // pred_region
          %s2017 = smul.u32 4, %s26
        $region76: #{tsti_encoder_forward.7} parent=55 // pred_fallthru
          _
        // Predicated region
        $region77: #{tsti_encoder_forward.7} parent=55 // pred_check
          %p2018 = pneg %p264
        $region78: #{tsti_encoder_forward.7} parent=55 // pred_check_branch
          %2020 = sbr.rel (%p2018) target = $region80
        $region79: #{tsti_encoder_forward.7} parent=55 // pred_region
          %s2021 = smul.u32 4, %s26
          %s2022 = smul.addr %s2021, 8
          %s2023 = scalar_lea.vmem %s10, %s2022
          // Predicated region
          $region81: #{tsti_encoder_forward.7} parent=79 // pred_check
            _
          $region82: #{tsti_encoder_forward.7} parent=79 // pred_check_branch
            %2025 = sbr.rel (0) target = $region84
          $region83: #{tsti_encoder_forward.7} parent=79 // pred_region
            // Predicated region
            $region85: #{tsti_encoder_forward.7} parent=83 // pred_check
              _
            $region86: #{tsti_encoder_forward.7} parent=83 // pred_check_branch
              %2027 = sbr.rel (0) target = $region88
            $region87: #{tsti_encoder_forward.7} parent=83 // pred_region
              // Predicated region
              $region100: #{tsti_encoder_forward.7} parent=87 // pred_check
                _
              $region101: #{tsti_encoder_forward.7} parent=87 // pred_check_branch
                %2073 = sbr.rel (0) target = $region103
              $region102: #{tsti_encoder_forward.7} parent=87 // pred_region
                loop: start=0, step=1, limit=1
                $region104: #{tsti_encoder_forward.7} parent=102 // loop_pre_header
                  _
                $region105: #{tsti_encoder_forward.7} parent=102 // loop_header
                  %s2075 = sphi 0, %s2079
                  %p2076 = scmp.ge.s32.totalorder %s2075, 1
                  %s2080 = sphi %s2009, %s2009
                  %s2081 = sphi %s2023, %s2023
                $region106: #{tsti_encoder_forward.7} parent=102 // loop_header_branch
                  %2078 = sbr.rel (%p2076) target = $region110
                $region107: #{tsti_encoder_forward.7} parent=102 // loop_body
                  %v2082 = vld [vmem:[%s2080] sm:$0xff]
                  %2083 = vst [vmem:[%s2081] sm:$0xff] %v2082
                  %v2084 = vld [vmem:[%s2080 + $0x8] sm:$0xff]
                  %2085 = vst [vmem:[%s2081 + $0x8] sm:$0xff] %v2084
                  %v2086 = vld [vmem:[%s2080 + $0x10] sm:$0xff]
                  %2087 = vst [vmem:[%s2081 + $0x10] sm:$0xff] %v2086
                  %v2088 = vld [vmem:[%s2080 + $0x18] sm:$0xff]
                  %2089 = vst [vmem:[%s2081 + $0x18] sm:$0xff] %v2088
                  %v2090 = vld [vmem:[%s2080 + $0x20] sm:$0xff]
                  %2091 = vst [vmem:[%s2081 + $0x40] sm:$0xff] %v2090
                  %v2092 = vld [vmem:[%s2080 + $0x28] sm:$0xff]
                  %2093 = vst [vmem:[%s2081 + $0x48] sm:$0xff] %v2092
                  %v2094 = vld [vmem:[%s2080 + $0x30] sm:$0xff]
                  %2095 = vst [vmem:[%s2081 + $0x50] sm:$0xff] %v2094
                  %v2096 = vld [vmem:[%s2080 + $0x38] sm:$0xff]
                  %2097 = vst [vmem:[%s2081 + $0x58] sm:$0xff] %v2096
                  %v2098 = vld [vmem:[%s2080 + $0x40] sm:$0xff]
                  %2099 = vst [vmem:[%s2081 + $0x80] sm:$0xff] %v2098
                  %v2100 = vld [vmem:[%s2080 + $0x48] sm:$0xff]
                  %2101 = vst [vmem:[%s2081 + $0x88] sm:$0xff] %v2100
                  %v2102 = vld [vmem:[%s2080 + $0x50] sm:$0xff]
                  %2103 = vst [vmem:[%s2081 + $0x90] sm:$0xff] %v2102
                  %v2104 = vld [vmem:[%s2080 + $0x58] sm:$0xff]
                  %2105 = vst [vmem:[%s2081 + $0x98] sm:$0xff] %v2104
                  %v2106 = vld [vmem:[%s2080 + $0x60] sm:$0xff]
                  %2107 = vst [vmem:[%s2081 + $0xc0] sm:$0xff] %v2106
                  %v2108 = vld [vmem:[%s2080 + $0x68] sm:$0xff]
                  %2109 = vst [vmem:[%s2081 + $0xc8] sm:$0xff] %v2108
                  %v2110 = vld [vmem:[%s2080 + $0x70] sm:$0xff]
                  %2111 = vst [vmem:[%s2081 + $0xd0] sm:$0xff] %v2110
                  %v2112 = vld [vmem:[%s2080 + $0x78] sm:$0xff]
                  %2113 = vst [vmem:[%s2081 + $0xd8] sm:$0xff] %v2112
                $region108: #{tsti_encoder_forward.7} parent=102 // loop_footer
                  %s2079 = sadd.s32 1, %s2075
                $region109: #{tsti_encoder_forward.7} parent=102 // loop_footer_branch
                  %2074 = sbr.rel target = $region105
                $region110: #{tsti_encoder_forward.7} parent=102 // loop_exit
                  _
              $region103: #{tsti_encoder_forward.7} parent=87 // pred_fallthru
                _
              // Predicated region
              $region111: #{tsti_encoder_forward.7} parent=87 // pred_check
                _
              $region112: #{tsti_encoder_forward.7} parent=87 // pred_check_branch
                %2115 = sbr.rel target = $region114
              $region113: #{tsti_encoder_forward.7} parent=87 // pred_region
                _
              $region114: #{tsti_encoder_forward.7} parent=87 // pred_fallthru
                _
            $region88: #{tsti_encoder_forward.7} parent=83 // pred_fallthru
              _
            // Predicated region
            $region89: #{tsti_encoder_forward.7} parent=83 // pred_check
              _
            $region90: #{tsti_encoder_forward.7} parent=83 // pred_check_branch
              %2029 = sbr.rel target = $region92
            $region91: #{tsti_encoder_forward.7} parent=83 // pred_region
              %s2031 = ssub.s32 256, 1
              loop: start=0, step=1, limit=1
              $region93: #{tsti_encoder_forward.7} parent=91 // loop_pre_header
                _
              $region94: #{tsti_encoder_forward.7} parent=91 // loop_header
                %s2033 = sphi 0, %s2037
                %p2034 = scmp.ge.s32.totalorder %s2033, 1
                %s2038 = sphi %s2009, %s2009
                %s2039 = sphi %s2023, %s2023
              $region95: #{tsti_encoder_forward.7} parent=91 // loop_header_branch
                %2036 = sbr.rel (%p2034) target = $region99
              $region96: #{tsti_encoder_forward.7} parent=91 // loop_body
                %v2040 = vld [vmem:[%s2038] sm:%s2031]
                %2041 = vst [vmem:[%s2039] sm:%s2031] %v2040
                %v2042 = vld [vmem:[%s2038 + $0x8] sm:%s2031]
                %2043 = vst [vmem:[%s2039 + $0x8] sm:%s2031] %v2042
                %v2044 = vld [vmem:[%s2038 + $0x10] sm:%s2031]
                %2045 = vst [vmem:[%s2039 + $0x10] sm:%s2031] %v2044
                %v2046 = vld [vmem:[%s2038 + $0x18] sm:%s2031]
                %2047 = vst [vmem:[%s2039 + $0x18] sm:%s2031] %v2046
                %v2048 = vld [vmem:[%s2038 + $0x20] sm:%s2031]
                %2049 = vst [vmem:[%s2039 + $0x40] sm:%s2031] %v2048
                %v2050 = vld [vmem:[%s2038 + $0x28] sm:%s2031]
                %2051 = vst [vmem:[%s2039 + $0x48] sm:%s2031] %v2050
                %v2052 = vld [vmem:[%s2038 + $0x30] sm:%s2031]
                %2053 = vst [vmem:[%s2039 + $0x50] sm:%s2031] %v2052
                %v2054 = vld [vmem:[%s2038 + $0x38] sm:%s2031]
                %2055 = vst [vmem:[%s2039 + $0x58] sm:%s2031] %v2054
                %v2056 = vld [vmem:[%s2038 + $0x40] sm:%s2031]
                %2057 = vst [vmem:[%s2039 + $0x80] sm:%s2031] %v2056
                %v2058 = vld [vmem:[%s2038 + $0x48] sm:%s2031]
                %2059 = vst [vmem:[%s2039 + $0x88] sm:%s2031] %v2058
                %v2060 = vld [vmem:[%s2038 + $0x50] sm:%s2031]
                %2061 = vst [vmem:[%s2039 + $0x90] sm:%s2031] %v2060
                %v2062 = vld [vmem:[%s2038 + $0x58] sm:%s2031]
                %2063 = vst [vmem:[%s2039 + $0x98] sm:%s2031] %v2062
                %v2064 = vld [vmem:[%s2038 + $0x60] sm:%s2031]
                %2065 = vst [vmem:[%s2039 + $0xc0] sm:%s2031] %v2064
                %v2066 = vld [vmem:[%s2038 + $0x68] sm:%s2031]
                %2067 = vst [vmem:[%s2039 + $0xc8] sm:%s2031] %v2066
                %v2068 = vld [vmem:[%s2038 + $0x70] sm:%s2031]
                %2069 = vst [vmem:[%s2039 + $0xd0] sm:%s2031] %v2068
                %v2070 = vld [vmem:[%s2038 + $0x78] sm:%s2031]
                %2071 = vst [vmem:[%s2039 + $0xd8] sm:%s2031] %v2070
              $region97: #{tsti_encoder_forward.7} parent=91 // loop_footer
                %s2037 = sadd.s32 1, %s2033
              $region98: #{tsti_encoder_forward.7} parent=91 // loop_footer_branch
                %2032 = sbr.rel target = $region94
              $region99: #{tsti_encoder_forward.7} parent=91 // loop_exit
                _
            $region92: #{tsti_encoder_forward.7} parent=83 // pred_fallthru
              _
          $region84: #{tsti_encoder_forward.7} parent=79 // pred_fallthru
            _
          %2116 = vnop
        $region80: #{tsti_encoder_forward.7} parent=55 // pred_fallthru
          _
        // Predicated region
        $region115: #{tsti_encoder_forward.7} parent=55 // pred_check
          %p2117 = pneg %p290
        $region116: #{tsti_encoder_forward.7} parent=55 // pred_check_branch
          %2119 = sbr.rel (%p2117) target = $region118
        $region117: #{tsti_encoder_forward.7} parent=55 // pred_region
          _
        $region118: #{tsti_encoder_forward.7} parent=55 // pred_fallthru
          _
      $region56: #{tsti_encoder_forward.7} parent=5 // pred_fallthru
        _
      %p2120 = scmp.le.s32.totalorder 2, %s21
      // Predicated region
      $region119: #{tsti_encoder_forward.7} parent=5 // pred_check
        %p2121 = pneg %p2120
      $region120: #{tsti_encoder_forward.7} parent=5 // pred_check_branch
        %2123 = sbr.rel (%p2121) target = $region122
      $region121: #{tsti_encoder_forward.7} parent=5 // pred_region
        %s2124 = ssub.s32 %s21, 2
        // Predicated region
        $region123: #{tsti_encoder_forward.7} parent=121 // pred_check
          %p2125 = pneg %p244
        $region124: #{tsti_encoder_forward.7} parent=121 // pred_check_branch
          %2127 = sbr.rel (%p2125) target = $region126
        $region125: #{tsti_encoder_forward.7} parent=121 // pred_region
          %s2128 = smul.u32 4, %s27
          %p2129 = scmp.lt.s32.totalorder %s2128, 7
          %s2130 = scalar_select %p2129, %s2128, 7
          %s2131 = smul.addr %s2130, 8
          %s2132 = scalar_lea.vmem %s9, %s2131
        $region126: #{tsti_encoder_forward.7} parent=121 // pred_fallthru
          _
        // Predicated region
        $region127: #{tsti_encoder_forward.7} parent=121 // pred_check
          %p2133 = pneg %p270
        $region128: #{tsti_encoder_forward.7} parent=121 // pred_check_branch
          %2135 = sbr.rel (%p2133) target = $region130
        $region129: #{tsti_encoder_forward.7} parent=121 // pred_region
          %s2136 = sand.u32 %s255, 1
          %s2137 = sand.u32 %s255, 1
          %s2138 = smul.addr %s2137, 128
          %s2139 = scalar_lea.vmem [#allocation9], %s2138
        $region130: #{tsti_encoder_forward.7} parent=121 // pred_fallthru
          _
        // Predicated region
        $region131: #{tsti_encoder_forward.7} parent=121 // pred_check
          %p2140 = pneg %p296
        $region132: #{tsti_encoder_forward.7} parent=121 // pred_check_branch
          %2142 = sbr.rel (%p2140) target = $region134
        $region133: #{tsti_encoder_forward.7} parent=121 // pred_region
          %p2143 = scmp.lt.s32.totalorder %s27, 1
          %s2144 = scalar_select %p2143, %s27, 1
          %s2145 = smul.addr %s2144, 2
          %s2146 = scalar_lea.vmem %s11, %s2145
        $region134: #{tsti_encoder_forward.7} parent=121 // pred_fallthru
          _
      $region122: #{tsti_encoder_forward.7} parent=5 // pred_fallthru
        _
    $region6: #{tsti_encoder_forward.7} parent=1 // loop_footer
      %s25 = sadd.s32 1, %s21
    $region7: #{tsti_encoder_forward.7} parent=1 // loop_footer_branch
      %20 = sbr.rel target = $region3
    $region8: #{tsti_encoder_forward.7} parent=1 // loop_exit
      _
    %2147 = vsyncpa [#allocation3], 1
    %s2148 = scalar_lea.sflag [#allocation3], 1
    %2149 = vsyncpa %s2148, 1
    %2150 = vsyncpa [#allocation5], 1
    %2151 = vsyncpa [#allocation8], 1

</llo_original>
